<compile_context>
chip_gen: v6e
topology: v6e:2x2x1
jax: 0.10.0
libtpu: 0.0.40
codegen_flags: <defaults>
</compile_context>

<pallas_src>
import functools
import math

import jax
import jax.numpy as jnp
from jax.experimental import pallas as pl
from jax.experimental.pallas import tpu as pltpu

_EPS = 1e-5          # nn.InstanceNorm2d default eps
_NEG_SLOPE = 0.2     # nn.LeakyReLU(0.2)
_PARALLEL = pltpu.CompilerParams(dimension_semantics=("parallel",))


# ------------------------------ Pallas kernels ------------------------------ #

def _conv_bias_lrelu_kernel(x_ref, w_ref, b_ref, o_ref):
    """Block 1: conv-as-matmul + bias + LeakyReLU(0.2), no norm.

    x_ref: (1, NB*S, K) bf16   w_ref: (K, C) bf16   b_ref: (1, C) f32
    o_ref: (1, NB*S, C) bf16
    """
    acc = jnp.dot(x_ref[0], w_ref[...], preferred_element_type=jnp.float32)
    acc = acc + b_ref[...]
    acc = jnp.where(acc >= 0, acc, _NEG_SLOPE * acc)
    o_ref[0] = acc.astype(o_ref.dtype)


def _conv_in_lrelu_kernel(x_ref, w_ref, o_ref, *, nb, s):
    """Blocks 2-3: conv-as-matmul + per-sample InstanceNorm2d + LeakyReLU(0.2).

    The MXU matmul uses the full NB*S row dimension; the f32 accumulator is then
    viewed as (nb, s, C) so the norm statistics (biased variance, eps=1e-5) stay
    per sample.  Conv bias omitted (no-op before affine-free InstanceNorm).
    """
    acc = jnp.dot(x_ref[0], w_ref[...], preferred_element_type=jnp.float32)   # (nb*s, C)
    c = acc.shape[-1]
    acc = acc.reshape(nb, s, c)
    mean = jnp.mean(acc, axis=1, keepdims=True)
    var = jnp.mean(jnp.square(acc - mean), axis=1, keepdims=True)
    acc = (acc - mean) * jax.lax.rsqrt(var + _EPS)
    acc = jnp.where(acc >= 0, acc, _NEG_SLOPE * acc)
    o_ref[0] = acc.reshape(nb * s, c).astype(o_ref.dtype)


def _block4_final_kernel(x_ref, w4_ref, w5_ref, o_ref, *, nb):
    """Block 4 (conv + InstanceNorm + LeakyReLU) fused with ZeroPad2d((1,0,1,0)) +
    Conv2d(512, 1, 4, padding=1, bias=False).

    The block-4 output is only 2x2x512 per sample; prepare_params() folds the final
    conv into w5_ref of shape (4 block-4 positions, 512 channels, 4 output positions),
    so the patch-map result never leaves VMEM.
    """
    acc = jnp.dot(x_ref[0], w4_ref[...], preferred_element_type=jnp.float32)  # (nb*4, 512)
    m, c = acc.shape
    s = m // nb                                                               # == 4
    acc = acc.reshape(nb, s, c)
    mean = jnp.mean(acc, axis=1, keepdims=True)
    var = jnp.mean(jnp.square(acc - mean), axis=1, keepdims=True)
    acc = (acc - mean) * jax.lax.rsqrt(var + _EPS)
    acc = jnp.where(acc >= 0, acc, _NEG_SLOPE * acc)
    res = jnp.zeros((nb, 4), jnp.float32)
    for pos in range(s):                                      # static, unrolled
        res = res + jnp.dot(acc[:, pos, :], w5_ref[pos],
                            preferred_element_type=jnp.float32)
    o_ref[0] = res


# -------------------------------- JAX glue ---------------------------------- #

def _im2col(x, k, stride, pad):
    """x: (N, H, W, C) -> (N, Ho*Wo, k*k*C); flattened feature order is (kh, kw, c)."""
    if pad:
        x = jnp.pad(x, ((0, 0), (pad, pad), (pad, pad), (0, 0)))
    N, H, W, C = x.shape
    Ho = (H - k) // stride + 1
    Wo = (W - k) // stride + 1
    cols = []
    for kh in range(k):
        for kw in range(k):
            cols.append(x[:, kh:kh + stride * Ho:stride,
                           kw:kw + stride * Wo:stride, :])
    p = jnp.stack(cols, axis=3)                       # (N, Ho, Wo, k*k, C)
    return p.reshape(N, Ho * Wo, k * k * C), Ho, Wo


def conv_stage(x_nhwc, w_mat, b_mat, *, groups, norm):
    """One Conv2d(4, s=2, p=1) [+ InstanceNorm2d] + LeakyReLU(0.2) block as a single
    pallas_call; grid over `groups` batch chunks, one big MXU matmul per step."""
    N = x_nhwc.shape[0]
    cols, Ho, Wo = _im2col(x_nhwc, 4, 2, 1)
    _, S, K = cols.shape
    C = w_mat.shape[1]
    G = groups
    NB = N // G
    M = NB * S
    cols = cols.reshape(G, M, K)                      # free, row-major view

    in_specs = [pl.BlockSpec((1, M, K), lambda g: (g, 0, 0)),
                pl.BlockSpec((K, C), lambda g: (0, 0))]   # weights VMEM-resident
    args = [cols, w_mat]
    if norm:
        kernel = functools.partial(_conv_in_lrelu_kernel, nb=NB, s=S)
    else:
        kernel = _conv_bias_lrelu_kernel
        in_specs.append(pl.BlockSpec((1, C), lambda g: (0, 0)))
        args.append(b_mat)

    cost = pl.CostEstimate(
        flops=2 * N * S * K * C,
        transcendentals=(N * C if norm else 0),
        bytes_accessed=cols.size * 2 + w_mat.size * 2 + N * S * C * 2)

    out = pl.pallas_call(
        kernel,
        grid=(G,),
        in_specs=in_specs,
        out_specs=pl.BlockSpec((1, M, C), lambda g: (g, 0, 0)),
        out_shape=jax.ShapeDtypeStruct((G, M, C), jnp.bfloat16),
        compiler_params=_PARALLEL,
        cost_estimate=cost,
    )(*args)
    return out.reshape(N, Ho, Wo, C)


def block4_and_final_stage(x_nhwc, w4_mat, w5_eff, *, groups):
    """Block 4 fused with the folded ZeroPad2d + final Conv2d; returns (N, 2, 2) f32."""
    N = x_nhwc.shape[0]
    cols, Ho, Wo = _im2col(x_nhwc, 4, 2, 1)
    assert (Ho, Wo) == (2, 2), "final-conv fold assumes a 2x2 block-4 map (32x32 inputs)"
    _, S, K = cols.shape                               # S = 4, K = 4096
    C = w4_mat.shape[1]                                # 512
    G = groups
    NB = N // G
    M = NB * S
    cols = cols.reshape(G, M, K)

    cost = pl.CostEstimate(
        flops=2 * N * S * K * C + 2 * N * S * C * 4,
        transcendentals=N * C,
        bytes_accessed=cols.size * 2 + w4_mat.size * 2 + w5_eff.size * 4 + N * 4 * 4)

    out = pl.pallas_call(
        functools.partial(_block4_final_kernel, nb=NB),
        grid=(G,),
        in_specs=[pl.BlockSpec((1, M, K), lambda g: (g, 0, 0)),
                  pl.BlockSpec((K, C), lambda g: (0, 0)),
                  pl.BlockSpec(w5_eff.shape, lambda g: (0, 0, 0))],
        out_specs=pl.BlockSpec((1, NB, 4), lambda g: (g, 0, 0)),
        out_shape=jax.ShapeDtypeStruct((G, NB, 4), jnp.float32),
        compiler_params=_PARALLEL,
        cost_estimate=cost,
    )(cols, w4_mat, w5_eff)
    return out.reshape(N, 2, 2)


# ---------------------------- model definition ------------------------------ #

def init_params(key, in_channels=3):
    """Deterministic params; shapes match nn.Conv2d in the torch module."""
    specs = [(in_channels * 2, 64), (64, 128), (128, 256), (256, 512)]
    keys = jax.random.split(key, 2 * len(specs) + 1)
    params = {}
    for i, (cin, cout) in enumerate(specs, start=1):
        bound = 1.0 / math.sqrt(cin * 4 * 4)
        params[f"w{i}"] = jax.random.uniform(
            keys[2 * (i - 1)], (cout, cin, 4, 4), jnp.float32, -bound, bound)
        params[f"b{i}"] = jax.random.uniform(
            keys[2 * (i - 1) + 1], (cout,), jnp.float32, -bound, bound)
    bound = 1.0 / math.sqrt(512 * 4 * 4)
    params["w5"] = jax.random.uniform(keys[-1], (1, 512, 4, 4), jnp.float32,
                                      -bound, bound)
    return params


def prepare_params(params):
    """One-time weight layout transforms (off the forward path).

    * OIHW conv weights -> (k*k*Cin, Cout) bf16 in the im2col (kh, kw, c) order.
    * Biases of blocks 2-4 dropped: exact no-ops before affine-free InstanceNorm2d.
    * ZeroPad2d((1,0,1,0)) + Conv2d(512,1,4,p=1,bias=False) folded into a
      (4 block-4 positions, 512, 4 output positions) tensor for the fused epilogue.
    """
    prep = {}
    for i in range(1, 5):
        w = params[f"w{i}"]                                   # (Cout, Cin, 4, 4)
        cout, cin = w.shape[0], w.shape[1]
        prep[f"w{i}"] = (jnp.transpose(w, (2, 3, 1, 0))
                         .reshape(16 * cin, cout).astype(jnp.bfloat16))
    prep["b1"] = params["b1"].astype(jnp.float32).reshape(1, -1)

    w5 = params["w5"]                                         # (1, 512, 4, 4)
    outs = []
    for i in range(2):
        for j in range(2):
            taps = [w5[0, :, a + 2 - i, b + 2 - j]            # tap idx always in [1,3]
                    for a in range(2) for b in range(2)]
            outs.append(jnp.stack(taps, axis=0))              # (4, 512)
    prep["w5"] = jnp.stack(outs, axis=-1).astype(jnp.float32)  # (4, 512, 4)
    return prep


def _num_chunks(n):
    """>=2 grid steps when possible (both v7x TensorCores busy) while keeping the
    per-chunk sample count modest so layer-1 blocks stay well inside scoped VMEM."""
    if n % 2 != 0:
        return 1
    g = 2
    while n % (2 * g) == 0 and n // g > 32:
        g *= 2
    return g


def discriminator_forward(params, img_A, img_B):
    # torch.cat((img_A, img_B), dim=1) in NCHW, then NCHW -> NHWC bf16 MXU operands
    x = jnp.concatenate([img_A, img_B], axis=1)
    x = jnp.transpose(x, (0, 2, 3, 1)).astype(jnp.bfloat16)
    N = x.shape[0]
    G = _num_chunks(N)

    x = conv_stage(x, params["w1"], params["b1"], groups=G, norm=False)    # 6->64,   32->16
    x = conv_stage(x, params["w2"], None, groups=G, norm=True)             # 64->128, 16->8
    x = conv_stage(x, params["w3"], None, groups=G, norm=True)             # 128->256, 8->4
    out = block4_and_final_stage(x, params["w4"], params["w5"], groups=G)  # 256->512->1
    return out.reshape(N, 1, 2, 2)                                         # NCHW


if __name__ == "__main__":
    key = jax.random.PRNGKey(0)
    k_par, k_a, k_b = jax.random.split(key, 3)
    raw_params = init_params(k_par, in_channels=3)
    params = prepare_params(raw_params)        # one-time layout transform (review item)

    img_A = jax.random.normal(k_a, (2, 3, 32, 32), jnp.float32)
    img_B = jax.random.normal(k_b, (2, 3, 32, 32), jnp.float32)

    out = jax.jit(discriminator_forward)(params, img_A, img_B)
    out = jax.block_until_ready(out)

    assert out.shape == (2, 1, 2, 2), out.shape        # PatchGAN output for 32x32 input
    assert bool(jnp.all(jnp.isfinite(out)))
    print("KERNEL_OK")
</pallas_src>

<mosaic_0001>
module attributes {stable_mosaic.version = 11 : i64} {
  func.func @_conv_bias_lrelu_kernel(%arg0: i32, %arg1: memref<1x256x96xbf16, #tpu.memory_space<vmem>>, %arg2: memref<96x64xbf16, #tpu.memory_space<vmem>>, %arg3: memref<1x64xf32, #tpu.memory_space<vmem>>, %arg4: memref<1x256x64xbf16, #tpu.memory_space<vmem>>) attributes {dimension_semantics = [#tpu.dimension_semantics<parallel>], iteration_bounds = array<i64: 2>, scalar_prefetch = 0 : i64, scratch_operands = 0 : i64, tpu.core_type = #tpu.core_type<tc>, window_params = [{transform_indices = @transform_0, window_bounds = array<i64: 1, 256, 96>}, {pipeline_mode = #tpu.pipeline_mode<synchronous>, transform_indices = @transform_1, window_bounds = array<i64: 96, 64>}, {pipeline_mode = #tpu.pipeline_mode<synchronous>, transform_indices = @transform_2, window_bounds = array<i64: 1, 64>}, {transform_indices = @transform_3, window_bounds = array<i64: 1, 256, 64>}]} {
    %c0 = arith.constant 0 : index
    %c0_0 = arith.constant 0 : index
    %c0_1 = arith.constant 0 : index
    %0 = vector.load %arg1[%c0, %c0_0, %c0_1] : memref<1x256x96xbf16, #tpu.memory_space<vmem>>, vector<1x256x96xbf16>
    %1 = vector.shape_cast %0 : vector<1x256x96xbf16> to vector<256x96xbf16>
    %c0_2 = arith.constant 0 : index
    %c0_3 = arith.constant 0 : index
    %2 = vector.load %arg2[%c0_2, %c0_3] : memref<96x64xbf16, #tpu.memory_space<vmem>>, vector<96x64xbf16>
    %cst = arith.constant dense<0.000000e+00> : vector<256x64xf32>
    %3 = tpu.matmul %1, %2, %cst {dimension_numbers = #tpu.dot_dimension_numbers<[1], [0], [0], [1], [0, 0, 1, 1], [], []>} : vector<256x96xbf16>, vector<96x64xbf16>, vector<256x64xf32> -> vector<256x64xf32>
    %c0_4 = arith.constant 0 : index
    %c0_5 = arith.constant 0 : index
    %4 = vector.load %arg3[%c0_4, %c0_5] : memref<1x64xf32, #tpu.memory_space<vmem>>, vector<1x64xf32>
    %5 = vector.broadcast %4 : vector<1x64xf32> to vector<256x64xf32>
    %6 = arith.addf %3, %5 : vector<256x64xf32>
    %cst_6 = arith.constant 0.000000e+00 : f32
    %7 = vector.broadcast %cst_6 : f32 to vector<256x64xf32>
    %8 = arith.cmpf oge, %6, %7 : vector<256x64xf32>
    %cst_7 = arith.constant 2.000000e-01 : f32
    %9 = vector.broadcast %cst_7 : f32 to vector<256x64xf32>
    %10 = arith.mulf %9, %6 : vector<256x64xf32>
    %11 = arith.select %8, %6, %10 : vector<256x64xi1>, vector<256x64xf32>
    %12 = arith.truncf %11 : vector<256x64xf32> to vector<256x64xbf16>
    %c0_8 = arith.constant 0 : index
    %c0_9 = arith.constant 0 : index
    %c0_10 = arith.constant 0 : index
    %13 = vector.load %arg4[%c0_8, %c0_9, %c0_10] : memref<1x256x64xbf16, #tpu.memory_space<vmem>>, vector<1x256x64xbf16>
    %14 = vector.shape_cast %13 : vector<1x256x64xbf16> to vector<256x64xbf16>
    %15 = vector.shape_cast %12 : vector<256x64xbf16> to vector<1x256x64xbf16>
    tpu.vector_store %arg4[%c0_8, %c0_9, %c0_10], %15 {strides = array<i32>} : memref<1x256x64xbf16, #tpu.memory_space<vmem>>, vector<1x256x64xbf16>,
    return
  }
  func.func @transform_0(%arg0: i32) -> (i32, i32, i32) {
    %c0_i32 = arith.constant 0 : i32
    %c0_i32_0 = arith.constant 0 : i32
    %c0_i32_1 = arith.constant 0 : i32
    return %arg0, %c0_i32, %c0_i32_0 : i32, i32, i32
  }
  func.func @transform_1(%arg0: i32) -> (i32, i32) {
    %c0_i32 = arith.constant 0 : i32
    %c0_i32_0 = arith.constant 0 : i32
    %c0_i32_1 = arith.constant 0 : i32
    return %c0_i32, %c0_i32_0 : i32, i32
  }
  func.func @transform_2(%arg0: i32) -> (i32, i32) {
    %c0_i32 = arith.constant 0 : i32
    %c0_i32_0 = arith.constant 0 : i32
    %c0_i32_1 = arith.constant 0 : i32
    return %c0_i32, %c0_i32_0 : i32, i32
  }
  func.func @transform_3(%arg0: i32) -> (i32, i32, i32) {
    %c0_i32 = arith.constant 0 : i32
    %c0_i32_0 = arith.constant 0 : i32
    %c0_i32_1 = arith.constant 0 : i32
    return %arg0, %c0_i32, %c0_i32_0 : i32, i32, i32
  }
}

module attributes {stable_mosaic.version = 11 : i64} {
  func.func @_conv_in_lrelu_kernel(%arg0: i32, %arg1: memref<1x64x1024xbf16, #tpu.memory_space<vmem>>, %arg2: memref<1024x128xbf16, #tpu.memory_space<vmem>>, %arg3: memref<1x64x128xbf16, #tpu.memory_space<vmem>>) attributes {dimension_semantics = [#tpu.dimension_semantics<parallel>], iteration_bounds = array<i64: 2>, scalar_prefetch = 0 : i64, scratch_operands = 0 : i64, tpu.core_type = #tpu.core_type<tc>, window_params = [{transform_indices = @transform_0, window_bounds = array<i64: 1, 64, 1024>}, {pipeline_mode = #tpu.pipeline_mode<synchronous>, transform_indices = @transform_1, window_bounds = array<i64: 1024, 128>}, {transform_indices = @transform_2, window_bounds = array<i64: 1, 64, 128>}]} {
    %c0 = arith.constant 0 : index
    %c0_0 = arith.constant 0 : index
    %c0_1 = arith.constant 0 : index
    %0 = vector.load %arg1[%c0, %c0_0, %c0_1] : memref<1x64x1024xbf16, #tpu.memory_space<vmem>>, vector<1x64x1024xbf16>
    %1 = vector.shape_cast %0 : vector<1x64x1024xbf16> to vector<64x1024xbf16>
    %c0_2 = arith.constant 0 : index
    %c0_3 = arith.constant 0 : index
    %2 = vector.load %arg2[%c0_2, %c0_3] : memref<1024x128xbf16, #tpu.memory_space<vmem>>, vector<1024x128xbf16>
    %cst = arith.constant dense<0.000000e+00> : vector<64x128xf32>
    %3 = tpu.matmul %1, %2, %cst {dimension_numbers = #tpu.dot_dimension_numbers<[1], [0], [0], [1], [0, 0, 1, 1], [], []>} : vector<64x1024xbf16>, vector<1024x128xbf16>, vector<64x128xf32> -> vector<64x128xf32>
    %4 = vector.shape_cast %3 : vector<64x128xf32> to vector<1x64x128xf32>
    %cst_4 = arith.constant dense<0.000000e+00> : vector<1x128xf32>
    %5 = vector.multi_reduction <add>, %4, %cst_4 [1] : vector<1x64x128xf32> to vector<1x128xf32>
    %6 = vector.shape_cast %5 : vector<1x128xf32> to vector<1x1x128xf32>
    %cst_5 = arith.constant 6.400000e+01 : f32
    %7 = vector.broadcast %cst_5 : f32 to vector<1x1x128xf32>
    %8 = arith.divf %6, %7 : vector<1x1x128xf32>
    %9 = vector.broadcast %8 : vector<1x1x128xf32> to vector<1x64x128xf32>
    %10 = arith.subf %4, %9 : vector<1x64x128xf32>
    %11 = arith.mulf %10, %10 : vector<1x64x128xf32>
    %cst_6 = arith.constant dense<0.000000e+00> : vector<1x128xf32>
    %12 = vector.multi_reduction <add>, %11, %cst_6 [1] : vector<1x64x128xf32> to vector<1x128xf32>
    %13 = vector.shape_cast %12 : vector<1x128xf32> to vector<1x1x128xf32>
    %cst_7 = arith.constant 6.400000e+01 : f32
    %14 = vector.broadcast %cst_7 : f32 to vector<1x1x128xf32>
    %15 = arith.divf %13, %14 : vector<1x1x128xf32>
    %16 = vector.broadcast %8 : vector<1x1x128xf32> to vector<1x64x128xf32>
    %17 = arith.subf %4, %16 : vector<1x64x128xf32>
    %cst_8 = arith.constant 9.99999974E-6 : f32
    %18 = vector.broadcast %cst_8 : f32 to vector<1x1x128xf32>
    %19 = arith.addf %15, %18 : vector<1x1x128xf32>
    %20 = math.rsqrt %19 : vector<1x1x128xf32>
    %21 = vector.broadcast %20 : vector<1x1x128xf32> to vector<1x64x128xf32>
    %22 = arith.mulf %17, %21 : vector<1x64x128xf32>
    %cst_9 = arith.constant 0.000000e+00 : f32
    %23 = vector.broadcast %cst_9 : f32 to vector<1x64x128xf32>
    %24 = arith.cmpf oge, %22, %23 : vector<1x64x128xf32>
    %cst_10 = arith.constant 2.000000e-01 : f32
    %25 = vector.broadcast %cst_10 : f32 to vector<1x64x128xf32>
    %26 = arith.mulf %25, %22 : vector<1x64x128xf32>
    %27 = arith.select %24, %22, %26 : vector<1x64x128xi1>, vector<1x64x128xf32>
    %28 = vector.shape_cast %27 : vector<1x64x128xf32> to vector<64x128xf32>
    %29 = arith.truncf %28 : vector<64x128xf32> to vector<64x128xbf16>
    %c0_11 = arith.constant 0 : index
    %c0_12 = arith.constant 0 : index
    %c0_13 = arith.constant 0 : index
    %30 = vector.load %arg3[%c0_11, %c0_12, %c0_13] : memref<1x64x128xbf16, #tpu.memory_space<vmem>>, vector<1x64x128xbf16>
    %31 = vector.shape_cast %30 : vector<1x64x128xbf16> to vector<64x128xbf16>
    %32 = vector.shape_cast %29 : vector<64x128xbf16> to vector<1x64x128xbf16>
    tpu.vector_store %arg3[%c0_11, %c0_12, %c0_13], %32 {strides = array<i32>} : memref<1x64x128xbf16, #tpu.memory_space<vmem>>, vector<1x64x128xbf16>,
    return
  }
  func.func @transform_0(%arg0: i32) -> (i32, i32, i32) {
    %c0_i32 = arith.constant 0 : i32
    %c0_i32_0 = arith.constant 0 : i32
    %c0_i32_1 = arith.constant 0 : i32
    return %arg0, %c0_i32, %c0_i32_0 : i32, i32, i32
  }
  func.func @transform_1(%arg0: i32) -> (i32, i32) {
    %c0_i32 = arith.constant 0 : i32
    %c0_i32_0 = arith.constant 0 : i32
    %c0_i32_1 = arith.constant 0 : i32
    return %c0_i32, %c0_i32_0 : i32, i32
  }
  func.func @transform_2(%arg0: i32) -> (i32, i32, i32) {
    %c0_i32 = arith.constant 0 : i32
    %c0_i32_0 = arith.constant 0 : i32
    %c0_i32_1 = arith.constant 0 : i32
    return %arg0, %c0_i32, %c0_i32_0 : i32, i32, i32
  }
}

module attributes {stable_mosaic.version = 11 : i64} {
  func.func @_conv_in_lrelu_kernel(%arg0: i32, %arg1: memref<1x16x2048xbf16, #tpu.memory_space<vmem>>, %arg2: memref<2048x256xbf16, #tpu.memory_space<vmem>>, %arg3: memref<1x16x256xbf16, #tpu.memory_space<vmem>>) attributes {dimension_semantics = [#tpu.dimension_semantics<parallel>], iteration_bounds = array<i64: 2>, scalar_prefetch = 0 : i64, scratch_operands = 0 : i64, tpu.core_type = #tpu.core_type<tc>, window_params = [{transform_indices = @transform_0, window_bounds = array<i64: 1, 16, 2048>}, {pipeline_mode = #tpu.pipeline_mode<synchronous>, transform_indices = @transform_1, window_bounds = array<i64: 2048, 256>}, {transform_indices = @transform_2, window_bounds = array<i64: 1, 16, 256>}]} {
    %c0 = arith.constant 0 : index
    %c0_0 = arith.constant 0 : index
    %c0_1 = arith.constant 0 : index
    %0 = vector.load %arg1[%c0, %c0_0, %c0_1] : memref<1x16x2048xbf16, #tpu.memory_space<vmem>>, vector<1x16x2048xbf16>
    %1 = vector.shape_cast %0 : vector<1x16x2048xbf16> to vector<16x2048xbf16>
    %c0_2 = arith.constant 0 : index
    %c0_3 = arith.constant 0 : index
    %2 = vector.load %arg2[%c0_2, %c0_3] : memref<2048x256xbf16, #tpu.memory_space<vmem>>, vector<2048x256xbf16>
    %cst = arith.constant dense<0.000000e+00> : vector<16x256xf32>
    %3 = tpu.matmul %1, %2, %cst {dimension_numbers = #tpu.dot_dimension_numbers<[1], [0], [0], [1], [0, 0, 1, 1], [], []>} : vector<16x2048xbf16>, vector<2048x256xbf16>, vector<16x256xf32> -> vector<16x256xf32>
    %4 = vector.shape_cast %3 : vector<16x256xf32> to vector<1x16x256xf32>
    %cst_4 = arith.constant dense<0.000000e+00> : vector<1x256xf32>
    %5 = vector.multi_reduction <add>, %4, %cst_4 [1] : vector<1x16x256xf32> to vector<1x256xf32>
    %6 = vector.shape_cast %5 : vector<1x256xf32> to vector<1x1x256xf32>
    %cst_5 = arith.constant 1.600000e+01 : f32
    %7 = vector.broadcast %cst_5 : f32 to vector<1x1x256xf32>
    %8 = arith.divf %6, %7 : vector<1x1x256xf32>
    %9 = vector.broadcast %8 : vector<1x1x256xf32> to vector<1x16x256xf32>
    %10 = arith.subf %4, %9 : vector<1x16x256xf32>
    %11 = arith.mulf %10, %10 : vector<1x16x256xf32>
    %cst_6 = arith.constant dense<0.000000e+00> : vector<1x256xf32>
    %12 = vector.multi_reduction <add>, %11, %cst_6 [1] : vector<1x16x256xf32> to vector<1x256xf32>
    %13 = vector.shape_cast %12 : vector<1x256xf32> to vector<1x1x256xf32>
    %cst_7 = arith.constant 1.600000e+01 : f32
    %14 = vector.broadcast %cst_7 : f32 to vector<1x1x256xf32>
    %15 = arith.divf %13, %14 : vector<1x1x256xf32>
    %16 = vector.broadcast %8 : vector<1x1x256xf32> to vector<1x16x256xf32>
    %17 = arith.subf %4, %16 : vector<1x16x256xf32>
    %cst_8 = arith.constant 9.99999974E-6 : f32
    %18 = vector.broadcast %cst_8 : f32 to vector<1x1x256xf32>
    %19 = arith.addf %15, %18 : vector<1x1x256xf32>
    %20 = math.rsqrt %19 : vector<1x1x256xf32>
    %21 = vector.broadcast %20 : vector<1x1x256xf32> to vector<1x16x256xf32>
    %22 = arith.mulf %17, %21 : vector<1x16x256xf32>
    %cst_9 = arith.constant 0.000000e+00 : f32
    %23 = vector.broadcast %cst_9 : f32 to vector<1x16x256xf32>
    %24 = arith.cmpf oge, %22, %23 : vector<1x16x256xf32>
    %cst_10 = arith.constant 2.000000e-01 : f32
    %25 = vector.broadcast %cst_10 : f32 to vector<1x16x256xf32>
    %26 = arith.mulf %25, %22 : vector<1x16x256xf32>
    %27 = arith.select %24, %22, %26 : vector<1x16x256xi1>, vector<1x16x256xf32>
    %28 = vector.shape_cast %27 : vector<1x16x256xf32> to vector<16x256xf32>
    %29 = arith.truncf %28 : vector<16x256xf32> to vector<16x256xbf16>
    %c0_11 = arith.constant 0 : index
    %c0_12 = arith.constant 0 : index
    %c0_13 = arith.constant 0 : index
    %30 = vector.load %arg3[%c0_11, %c0_12, %c0_13] : memref<1x16x256xbf16, #tpu.memory_space<vmem>>, vector<1x16x256xbf16>
    %31 = vector.shape_cast %30 : vector<1x16x256xbf16> to vector<16x256xbf16>
    %32 = vector.shape_cast %29 : vector<16x256xbf16> to vector<1x16x256xbf16>
    tpu.vector_store %arg3[%c0_11, %c0_12, %c0_13], %32 {strides = array<i32>} : memref<1x16x256xbf16, #tpu.memory_space<vmem>>, vector<1x16x256xbf16>,
    return
  }
  func.func @transform_0(%arg0: i32) -> (i32, i32, i32) {
    %c0_i32 = arith.constant 0 : i32
    %c0_i32_0 = arith.constant 0 : i32
    %c0_i32_1 = arith.constant 0 : i32
    return %arg0, %c0_i32, %c0_i32_0 : i32, i32, i32
  }
  func.func @transform_1(%arg0: i32) -> (i32, i32) {
    %c0_i32 = arith.constant 0 : i32
    %c0_i32_0 = arith.constant 0 : i32
    %c0_i32_1 = arith.constant 0 : i32
    return %c0_i32, %c0_i32_0 : i32, i32
  }
  func.func @transform_2(%arg0: i32) -> (i32, i32, i32) {
    %c0_i32 = arith.constant 0 : i32
    %c0_i32_0 = arith.constant 0 : i32
    %c0_i32_1 = arith.constant 0 : i32
    return %arg0, %c0_i32, %c0_i32_0 : i32, i32, i32
  }
}

module attributes {stable_mosaic.version = 11 : i64} {
  func.func @_block4_final_kernel(%arg0: i32, %arg1: memref<1x4x4096xbf16, #tpu.memory_space<vmem>>, %arg2: memref<4096x512xbf16, #tpu.memory_space<vmem>>, %arg3: memref<4x512x4xf32, #tpu.memory_space<vmem>>, %arg4: memref<1x1x4xf32, #tpu.memory_space<vmem>>) attributes {dimension_semantics = [#tpu.dimension_semantics<parallel>], iteration_bounds = array<i64: 2>, scalar_prefetch = 0 : i64, scratch_operands = 0 : i64, tpu.core_type = #tpu.core_type<tc>, window_params = [{transform_indices = @transform_0, window_bounds = array<i64: 1, 4, 4096>}, {pipeline_mode = #tpu.pipeline_mode<synchronous>, transform_indices = @transform_1, window_bounds = array<i64: 4096, 512>}, {pipeline_mode = #tpu.pipeline_mode<synchronous>, transform_indices = @transform_2, window_bounds = array<i64: 4, 512, 4>}, {transform_indices = @transform_3, window_bounds = array<i64: 1, 1, 4>}]} {
    %c0 = arith.constant 0 : index
    %c0_0 = arith.constant 0 : index
    %c0_1 = arith.constant 0 : index
    %0 = vector.load %arg1[%c0, %c0_0, %c0_1] : memref<1x4x4096xbf16, #tpu.memory_space<vmem>>, vector<1x4x4096xbf16>
    %1 = vector.shape_cast %0 : vector<1x4x4096xbf16> to vector<4x4096xbf16>
    %c0_2 = arith.constant 0 : index
    %c0_3 = arith.constant 0 : index
    %2 = vector.load %arg2[%c0_2, %c0_3] : memref<4096x512xbf16, #tpu.memory_space<vmem>>, vector<4096x512xbf16>
    %cst = arith.constant dense<0.000000e+00> : vector<4x512xf32>
    %3 = tpu.matmul %1, %2, %cst {dimension_numbers = #tpu.dot_dimension_numbers<[1], [0], [0], [1], [0, 0, 1, 1], [], []>} : vector<4x4096xbf16>, vector<4096x512xbf16>, vector<4x512xf32> -> vector<4x512xf32>
    %4 = vector.shape_cast %3 : vector<4x512xf32> to vector<1x4x512xf32>
    %cst_4 = arith.constant dense<0.000000e+00> : vector<1x512xf32>
    %5 = vector.multi_reduction <add>, %4, %cst_4 [1] : vector<1x4x512xf32> to vector<1x512xf32>
    %6 = vector.shape_cast %5 : vector<1x512xf32> to vector<1x1x512xf32>
    %cst_5 = arith.constant 4.000000e+00 : f32
    %7 = vector.broadcast %cst_5 : f32 to vector<1x1x512xf32>
    %8 = arith.divf %6, %7 : vector<1x1x512xf32>
    %9 = vector.broadcast %8 : vector<1x1x512xf32> to vector<1x4x512xf32>
    %10 = arith.subf %4, %9 : vector<1x4x512xf32>
    %11 = arith.mulf %10, %10 : vector<1x4x512xf32>
    %cst_6 = arith.constant dense<0.000000e+00> : vector<1x512xf32>
    %12 = vector.multi_reduction <add>, %11, %cst_6 [1] : vector<1x4x512xf32> to vector<1x512xf32>
    %13 = vector.shape_cast %12 : vector<1x512xf32> to vector<1x1x512xf32>
    %cst_7 = arith.constant 4.000000e+00 : f32
    %14 = vector.broadcast %cst_7 : f32 to vector<1x1x512xf32>
    %15 = arith.divf %13, %14 : vector<1x1x512xf32>
    %16 = vector.broadcast %8 : vector<1x1x512xf32> to vector<1x4x512xf32>
    %17 = arith.subf %4, %16 : vector<1x4x512xf32>
    %cst_8 = arith.constant 9.99999974E-6 : f32
    %18 = vector.broadcast %cst_8 : f32 to vector<1x1x512xf32>
    %19 = arith.addf %15, %18 : vector<1x1x512xf32>
    %20 = math.rsqrt %19 : vector<1x1x512xf32>
    %21 = vector.broadcast %20 : vector<1x1x512xf32> to vector<1x4x512xf32>
    %22 = arith.mulf %17, %21 : vector<1x4x512xf32>
    %cst_9 = arith.constant 0.000000e+00 : f32
    %23 = vector.broadcast %cst_9 : f32 to vector<1x4x512xf32>
    %24 = arith.cmpf oge, %22, %23 : vector<1x4x512xf32>
    %cst_10 = arith.constant 2.000000e-01 : f32
    %25 = vector.broadcast %cst_10 : f32 to vector<1x4x512xf32>
    %26 = arith.mulf %25, %22 : vector<1x4x512xf32>
    %27 = arith.select %24, %22, %26 : vector<1x4x512xi1>, vector<1x4x512xf32>
    %cst_11 = arith.constant 0.000000e+00 : f32
    %28 = vector.broadcast %cst_11 : f32 to vector<1x4xf32>
    %29 = vector.extract_strided_slice %27 {offsets = [0, 0, 0], sizes = [1, 1, 512], strides = [1, 1, 1]} : vector<1x4x512xf32> to vector<1x1x512xf32>
    %30 = vector.shape_cast %29 : vector<1x1x512xf32> to vector<1x512xf32>
    %c0_12 = arith.constant 0 : index
    %c0_13 = arith.constant 0 : index
    %c0_14 = arith.constant 0 : index
    %31 = vector.load %arg3[%c0_12, %c0_13, %c0_14] : memref<4x512x4xf32, #tpu.memory_space<vmem>>, vector<1x512x4xf32>
    %32 = vector.shape_cast %31 : vector<1x512x4xf32> to vector<512x4xf32>
    %cst_15 = arith.constant dense<0.000000e+00> : vector<1x4xf32>
    %33 = tpu.matmul %30, %32, %cst_15 {dimension_numbers = #tpu.dot_dimension_numbers<[1], [0], [0], [1], [0, 0, 1, 1], [], []>} : vector<1x512xf32>, vector<512x4xf32>, vector<1x4xf32> -> vector<1x4xf32>
    %34 = arith.addf %28, %33 : vector<1x4xf32>
    %35 = vector.extract_strided_slice %27 {offsets = [0, 1, 0], sizes = [1, 1, 512], strides = [1, 1, 1]} : vector<1x4x512xf32> to vector<1x1x512xf32>
    %36 = vector.shape_cast %35 : vector<1x1x512xf32> to vector<1x512xf32>
    %c1 = arith.constant 1 : index
    %c0_16 = arith.constant 0 : index
    %c0_17 = arith.constant 0 : index
    %37 = vector.load %arg3[%c1, %c0_16, %c0_17] : memref<4x512x4xf32, #tpu.memory_space<vmem>>, vector<1x512x4xf32>
    %38 = vector.shape_cast %37 : vector<1x512x4xf32> to vector<512x4xf32>
    %cst_18 = arith.constant dense<0.000000e+00> : vector<1x4xf32>
    %39 = tpu.matmul %36, %38, %cst_18 {dimension_numbers = #tpu.dot_dimension_numbers<[1], [0], [0], [1], [0, 0, 1, 1], [], []>} : vector<1x512xf32>, vector<512x4xf32>, vector<1x4xf32> -> vector<1x4xf32>
    %40 = arith.addf %34, %39 : vector<1x4xf32>
    %41 = vector.extract_strided_slice %27 {offsets = [0, 2, 0], sizes = [1, 1, 512], strides = [1, 1, 1]} : vector<1x4x512xf32> to vector<1x1x512xf32>
    %42 = vector.shape_cast %41 : vector<1x1x512xf32> to vector<1x512xf32>
    %c2 = arith.constant 2 : index
    %c0_19 = arith.constant 0 : index
    %c0_20 = arith.constant 0 : index
    %43 = vector.load %arg3[%c2, %c0_19, %c0_20] : memref<4x512x4xf32, #tpu.memory_space<vmem>>, vector<1x512x4xf32>
    %44 = vector.shape_cast %43 : vector<1x512x4xf32> to vector<512x4xf32>
    %cst_21 = arith.constant dense<0.000000e+00> : vector<1x4xf32>
    %45 = tpu.matmul %42, %44, %cst_21 {dimension_numbers = #tpu.dot_dimension_numbers<[1], [0], [0], [1], [0, 0, 1, 1], [], []>} : vector<1x512xf32>, vector<512x4xf32>, vector<1x4xf32> -> vector<1x4xf32>
    %46 = arith.addf %40, %45 : vector<1x4xf32>
    %47 = vector.extract_strided_slice %27 {offsets = [0, 3, 0], sizes = [1, 1, 512], strides = [1, 1, 1]} : vector<1x4x512xf32> to vector<1x1x512xf32>
    %48 = vector.shape_cast %47 : vector<1x1x512xf32> to vector<1x512xf32>
    %c3 = arith.constant 3 : index
    %c0_22 = arith.constant 0 : index
    %c0_23 = arith.constant 0 : index
    %49 = vector.load %arg3[%c3, %c0_22, %c0_23] : memref<4x512x4xf32, #tpu.memory_space<vmem>>, vector<1x512x4xf32>
    %50 = vector.shape_cast %49 : vector<1x512x4xf32> to vector<512x4xf32>
    %cst_24 = arith.constant dense<0.000000e+00> : vector<1x4xf32>
    %51 = tpu.matmul %48, %50, %cst_24 {dimension_numbers = #tpu.dot_dimension_numbers<[1], [0], [0], [1], [0, 0, 1, 1], [], []>} : vector<1x512xf32>, vector<512x4xf32>, vector<1x4xf32> -> vector<1x4xf32>
    %52 = arith.addf %46, %51 : vector<1x4xf32>
    %c0_25 = arith.constant 0 : index
    %c0_26 = arith.constant 0 : index
    %c0_27 = arith.constant 0 : index
    %53 = vector.load %arg4[%c0_25, %c0_26, %c0_27] : memref<1x1x4xf32, #tpu.memory_space<vmem>>, vector<1x1x4xf32>
    %54 = vector.shape_cast %53 : vector<1x1x4xf32> to vector<1x4xf32>
    %55 = vector.shape_cast %52 : vector<1x4xf32> to vector<1x1x4xf32>
    tpu.vector_store %arg4[%c0_25, %c0_26, %c0_27], %55 {strides = array<i32>} : memref<1x1x4xf32, #tpu.memory_space<vmem>>, vector<1x1x4xf32>,
    return
  }
  func.func @transform_0(%arg0: i32) -> (i32, i32, i32) {
    %c0_i32 = arith.constant 0 : i32
    %c0_i32_0 = arith.constant 0 : i32
    %c0_i32_1 = arith.constant 0 : i32
    return %arg0, %c0_i32, %c0_i32_0 : i32, i32, i32
  }
  func.func @transform_1(%arg0: i32) -> (i32, i32) {
    %c0_i32 = arith.constant 0 : i32
    %c0_i32_0 = arith.constant 0 : i32
    %c0_i32_1 = arith.constant 0 : i32
    return %c0_i32, %c0_i32_0 : i32, i32
  }
  func.func @transform_2(%arg0: i32) -> (i32, i32, i32) {
    %c0_i32 = arith.constant 0 : i32
    %c0_i32_0 = arith.constant 0 : i32
    %c0_i32_1 = arith.constant 0 : i32
    %c0_i32_2 = arith.constant 0 : i32
    return %c0_i32, %c0_i32_0, %c0_i32_1 : i32, i32, i32
  }
  func.func @transform_3(%arg0: i32) -> (i32, i32, i32) {
    %c0_i32 = arith.constant 0 : i32
    %c0_i32_0 = arith.constant 0 : i32
    %c0_i32_1 = arith.constant 0 : i32
    return %arg0, %c0_i32, %c0_i32_0 : i32, i32, i32
  }
}

</mosaic_0001>

<llo_original>
// kernel: discriminator_forward.4
$region0: #{discriminator_forward.4}
  #allocation0 [shape = 'u32[]', space=smem, size = 0x4, offset = 0x4, fixed_abs, tag = 'smem constant byte address 0x4 - core index']
  #allocation1 [shape = 'u32[144,128]{1,0:T(1,128)}', space=vmem, size = 0x12000, scoped, tag = 'internal scratch']
  %s0 = inlined_call_operand.vmem [shape: bf16[2,256,96], index: 0, kind: input, shape index: {}]
  %s1 = inlined_call_operand.vmem [shape: bf16[96,64], index: 1, kind: input, shape index: {}]
  %s2 = inlined_call_operand.vmem [shape: f32[1,64], index: 2, kind: input, shape index: {}]
  %s3 = inlined_call_operand.vmem [shape: bf16[2,256,64], index: 3, kind: output, shape index: {}]
  %s4 = sld [smem:[#allocation0]]
  $region45: #{discriminator_forward.4} parent=0
    _
  %s6 = ssub.s32 1, %s4
  %s7 = scalar_select 0, %s6, %s4
  loop: start=0, step=1, limit=4
  $region2: #{discriminator_forward.4} parent=0 // loop_pre_header
    _
  $region3: #{discriminator_forward.4} parent=0 // loop_header
    %s9 = sphi 0, %s13
    %p10 = scmp.ge.s32.totalorder %s9, 4
    %s19 = sphi 0, %s21
    %s22 = sphi 0, %s19
    %s23 = sphi 0, %s22
    %s39 = sphi 0, %s23
    %s43 = sphi 0, %s43
    %s45 = sphi 0, %s43
    %s46 = sphi 0, %s45
    %s60 = sphi 0, %s46
    %s64 = sphi 0, %s64
    %s66 = sphi 0, %s64
    %s67 = sphi 0, %s66
    %s81 = sphi 0, %s67
    %s87 = sphi 0, %s89
    %s90 = sphi 0, %s87
    %s91 = sphi 0, %s90
    %s107 = sphi 0, %s91
  $region4: #{discriminator_forward.4} parent=0 // loop_header_branch
    %12 = sbr.rel (%p10) target = $region8
  $region5: #{discriminator_forward.4} parent=0 // loop_body
    %s14 = ssub.s32 %s9, 1
    %s15 = ssub.s32 %s9, 2
    %s16 = sadd.s32 %s9, 1
    %s17 = ssub.s32 %s9, %s16
    %p18 = scmp.eq.s32.totalorder %s17, 0
    %s20 = sadd.s32 %s19, 1
    %s21 = scalar_select %p18, %s19, %s20
    %p24 = pneg %p18
    %p25 = scmp.eq.s32.totalorder %s9, 1
    %p26 = por %p24, %p25
    %p27 = scmp.ne.s32.totalorder %s19, %s22
    %p28 = scmp.eq.s32.totalorder %s9, 0
    %p29 = por %p27, %p28
    %p30 = scmp.ne.s32.totalorder %s19, %s22
    %p31 = scmp.eq.s32.totalorder %s14, 1
    %p32 = por %p30, %p31
    %p33 = scmp.ne.s32.totalorder %s22, %s23
    %p34 = scmp.eq.s32.totalorder %s14, 0
    %p35 = por %p33, %p34
    %p36 = scmp.ne.s32.totalorder %s22, %s23
    %p37 = scmp.eq.s32.totalorder %s15, 1
    %p38 = por %p36, %p37
    %p40 = scmp.ne.s32.totalorder %s23, %s39
    %p41 = scmp.eq.s32.totalorder %s15, 0
    %p42 = por %p40, %p41
    %s44 = sadd.s32 %s43, 1
    %p47 = scmp.eq.s32.totalorder %s9, 1
    %p48 = scmp.ne.s32.totalorder %s43, %s45
    %p49 = scmp.eq.s32.totalorder %s9, 0
    %p50 = por %p48, %p49
    %p51 = scmp.ne.s32.totalorder %s43, %s45
    %p52 = scmp.eq.s32.totalorder %s14, 1
    %p53 = por %p51, %p52
    %p54 = scmp.ne.s32.totalorder %s45, %s46
    %p55 = scmp.eq.s32.totalorder %s14, 0
    %p56 = por %p54, %p55
    %p57 = scmp.ne.s32.totalorder %s45, %s46
    %p58 = scmp.eq.s32.totalorder %s15, 1
    %p59 = por %p57, %p58
    %p61 = scmp.ne.s32.totalorder %s46, %s60
    %p62 = scmp.eq.s32.totalorder %s15, 0
    %p63 = por %p61, %p62
    %s65 = sadd.s32 %s64, 1
    %p68 = scmp.eq.s32.totalorder %s9, 1
    %p69 = scmp.ne.s32.totalorder %s64, %s66
    %p70 = scmp.eq.s32.totalorder %s9, 0
    %p71 = por %p69, %p70
    %p72 = scmp.ne.s32.totalorder %s64, %s66
    %p73 = scmp.eq.s32.totalorder %s14, 1
    %p74 = por %p72, %p73
    %p75 = scmp.ne.s32.totalorder %s66, %s67
    %p76 = scmp.eq.s32.totalorder %s14, 0
    %p77 = por %p75, %p76
    %p78 = scmp.ne.s32.totalorder %s66, %s67
    %p79 = scmp.eq.s32.totalorder %s15, 1
    %p80 = por %p78, %p79
    %p82 = scmp.ne.s32.totalorder %s67, %s81
    %p83 = scmp.eq.s32.totalorder %s15, 0
    %p84 = por %p82, %p83
    %s85 = ssub.s32 %s9, %s16
    %p86 = scmp.eq.s32.totalorder %s85, 0
    %s88 = sadd.s32 %s87, 1
    %s89 = scalar_select %p86, %s87, %s88
    %p92 = pneg %p86
    %p93 = scmp.eq.s32.totalorder %s9, 1
    %p94 = por %p92, %p93
    %p95 = scmp.ne.s32.totalorder %s87, %s90
    %p96 = scmp.eq.s32.totalorder %s9, 0
    %p97 = por %p95, %p96
    %p98 = scmp.ne.s32.totalorder %s87, %s90
    %p99 = scmp.eq.s32.totalorder %s14, 1
    %p100 = por %p98, %p99
    %p101 = scmp.ne.s32.totalorder %s90, %s91
    %p102 = scmp.eq.s32.totalorder %s14, 0
    %p103 = por %p101, %p102
    %p104 = scmp.ne.s32.totalorder %s90, %s91
    %p105 = scmp.eq.s32.totalorder %s15, 1
    %p106 = por %p104, %p105
    %p108 = scmp.ne.s32.totalorder %s91, %s107
    %p109 = scmp.eq.s32.totalorder %s15, 0
    %p110 = por %p108, %p109
    %p111 = scmp.le.s32.totalorder 1, %s9
    %p112 = scmp.lt.s32.totalorder %s9, 3
    %p113 = pnand %p111, %p112
    %p114 = pneg %p113
    // Predicated region
    $region9: #{discriminator_forward.4} parent=5 // pred_check
      _
    $region10: #{discriminator_forward.4} parent=5 // pred_check_branch
      %116 = sbr.rel (%p113) target = $region12
    $region11: #{discriminator_forward.4} parent=5 // pred_region
      %s117 = ssub.s32 %s9, 1
      // Predicated region
      $region13: #{discriminator_forward.4} parent=11 // pred_check
        %p118 = pneg %p56
      $region14: #{discriminator_forward.4} parent=11 // pred_check_branch
        %120 = sbr.rel (%p118) target = $region16
      $region15: #{discriminator_forward.4} parent=11 // pred_region
        _
      $region16: #{discriminator_forward.4} parent=11 // pred_fallthru
        _
      // Predicated region
      $region17: #{discriminator_forward.4} parent=11 // pred_check
        %p121 = pneg %p77
      $region18: #{discriminator_forward.4} parent=11 // pred_check_branch
        %123 = sbr.rel (%p121) target = $region20
      $region19: #{discriminator_forward.4} parent=11 // pred_region
        _
      $region20: #{discriminator_forward.4} parent=11 // pred_fallthru
        _
    $region12: #{discriminator_forward.4} parent=5 // pred_fallthru
      _
    %p124 = scmp.lt.s32.totalorder %s9, 2
    // Predicated region
    $region21: #{discriminator_forward.4} parent=5 // pred_check
      %p125 = pneg %p124
    $region22: #{discriminator_forward.4} parent=5 // pred_check_branch
      %127 = sbr.rel (%p125) target = $region24
    $region23: #{discriminator_forward.4} parent=5 // pred_region
      // Predicated region
      $region25: #{discriminator_forward.4} parent=23 // pred_check
        %p128 = pneg %p29
      $region26: #{discriminator_forward.4} parent=23 // pred_check_branch
        %130 = sbr.rel (%p128) target = $region28
      $region27: #{discriminator_forward.4} parent=23 // pred_region
        %p131 = scmp.lt.s32.totalorder %s9, 1
        %s132 = scalar_select %p131, %s9, 1
        %s133 = smul.addr %s132, 32
        %s134 = smul.addr %s133, 4
        %s135 = scalar_lea.vmem %s0, %s134
      $region28: #{discriminator_forward.4} parent=23 // pred_fallthru
        _
    $region24: #{discriminator_forward.4} parent=5 // pred_fallthru
      _
    %p136 = scmp.le.s32.totalorder 1, %s9
    %p137 = scmp.lt.s32.totalorder %s9, 3
    %p138 = pnand %p136, %p137
    %p139 = pneg %p138
    // Predicated region
    $region29: #{discriminator_forward.4} parent=5 // pred_check
      _
    $region30: #{discriminator_forward.4} parent=5 // pred_check_branch
      %141 = sbr.rel (%p138) target = $region32
    $region31: #{discriminator_forward.4} parent=5 // pred_region
      %s142 = ssub.s32 %s9, 1
      %p143 = scmp.lt.s32.totalorder %s14, 1
      %s144 = scalar_select %p143, %s14, 1
      %s145 = smul.addr %s144, 32
      %s146 = smul.addr %s145, 4
      %s147 = scalar_lea.vmem %s0, %s146
      %p148 = pneg %p35
      %p149 = pneg %p32
      %p150 = pneg %p56
      %p151 = pneg %p53
      %p152 = pneg %p77
      %p153 = pneg %p74
      %p154 = pneg %p103
      %p155 = pneg %p100
      %p156 = scmp.lt.s32.totalorder %s14, 1
      %s157 = scalar_select %p156, %s14, 1
      %s158 = smul.addr %s157, 32
      %s159 = smul.addr %s158, 4
      %s160 = scalar_lea.vmem %s3, %s159
      %p161 = scmp.lt.s32.totalorder %s14, 1
      %s162 = scalar_select %p161, %s14, 1
      %s163 = smul.addr %s162, 32
      %s164 = smul.addr %s163, 4
      %s165 = scalar_lea.vmem %s0, %s164
      %p166 = scmp.lt.s32.totalorder %s14, 1
      %s167 = scalar_select %p166, %s14, 1
      %s168 = smul.addr %s167, 32
      %s169 = smul.addr %s168, 4
      %s170 = scalar_lea.vmem %s3, %s169
      %v172 = vld [vmem:[%s165] sm:$0xf]
      %v173 = vld [vmem:[%s165 + $0x4] sm:$0xf]
      %v174 = vld [vmem:[%s165 + $0x8] sm:$0xf]
      %v175 = vld [vmem:[%s165 + $0xc] sm:$0xf]
      %v176 = vld [vmem:[%s165 + $0x10] sm:$0xf]
      %v177 = vld [vmem:[%s165 + $0x14] sm:$0xf]
      %v178 = vld [vmem:[%s165 + $0x18] sm:$0xf]
      %v179 = vld [vmem:[%s165 + $0x1c] sm:$0xf]
      %v180 = vld [vmem:[%s165 + $0x20] sm:$0xf]
      %v181 = vld [vmem:[%s165 + $0x24] sm:$0xf]
      %v182 = vld [vmem:[%s165 + $0x28] sm:$0xf]
      %v183 = vld [vmem:[%s165 + $0x2c] sm:$0xf]
      %v184 = vld [vmem:[%s165 + $0x30] sm:$0xf]
      %v185 = vld [vmem:[%s165 + $0x34] sm:$0xf]
      %v186 = vld [vmem:[%s165 + $0x38] sm:$0xf]
      %v187 = vld [vmem:[%s165 + $0x3c] sm:$0xf]
      %v188 = vld [vmem:[%s165 + $0x40] sm:$0xf]
      %v189 = vld [vmem:[%s165 + $0x44] sm:$0xf]
      %v190 = vld [vmem:[%s165 + $0x48] sm:$0xf]
      %v191 = vld [vmem:[%s165 + $0x4c] sm:$0xf]
      %v192 = vld [vmem:[%s165 + $0x50] sm:$0xf]
      %v193 = vld [vmem:[%s165 + $0x54] sm:$0xf]
      %v194 = vld [vmem:[%s165 + $0x58] sm:$0xf]
      %v195 = vld [vmem:[%s165 + $0x5c] sm:$0xf]
      %v196 = vld [vmem:[%s165 + $0x60] sm:$0xf]
      %v197 = vld [vmem:[%s165 + $0x64] sm:$0xf]
      %v198 = vld [vmem:[%s165 + $0x68] sm:$0xf]
      %v199 = vld [vmem:[%s165 + $0x6c] sm:$0xf]
      %v200 = vld [vmem:[%s165 + $0x70] sm:$0xf]
      %v201 = vld [vmem:[%s165 + $0x74] sm:$0xf]
      %v202 = vld [vmem:[%s165 + $0x78] sm:$0xf]
      %v203 = vld [vmem:[%s165 + $0x7c] sm:$0xf]
      %v204 = vld [vmem:[%s1] sm:$0xf]
      %v205 = vld [vmem:[%s1 + $0x4] sm:$0xf]
      %v206 = vld [vmem:[%s1 + $0x8] sm:$0xf]
      %v207 = vld [vmem:[%s1 + $0xc] sm:$0xf]
      %v208 = vld [vmem:[%s1 + $0x10] sm:$0xf]
      %v209 = vld [vmem:[%s1 + $0x14] sm:$0xf]
      %v210 = vld [vmem:[%s1 + $0x18] sm:$0xf]
      %v211 = vld [vmem:[%s1 + $0x1c] sm:$0xf]
      %v212 = vld [vmem:[%s1 + $0x20] sm:$0xf]
      %v213 = vld [vmem:[%s1 + $0x24] sm:$0xf]
      %v214 = vld [vmem:[%s1 + $0x28] sm:$0xf]
      %v215 = vld [vmem:[%s1 + $0x2c] sm:$0xf]
      %v216 = vld [vmem:[%s2] sm:$0x1]
      %v218 = vlaneseq
      %v219 = vshrl.u32 %v218, 7
      %v220 = vsub.s32 0, %v219
      %v221 = vrot.slane %v216, %v220
      %v255 = vunpack.c.l.b16 %v172
      %v256 = vunpack.c.l.b16 %v173
      %v257 = vunpack.c.l.b16 %v174
      %v258 = vunpack.c.l.b16 %v175
      %v259 = vunpack.c.l.b16 %v176
      %v260 = vunpack.c.l.b16 %v177
      %v261 = vunpack.c.l.b16 %v178
      %v262 = vunpack.c.l.b16 %v179
      %v263 = vunpack.c.l.b16 %v180
      %v264 = vunpack.c.l.b16 %v181
      %v265 = vunpack.c.l.b16 %v182
      %v266 = vunpack.c.l.b16 %v183
      %v267 = vunpack.c.l.b16 %v184
      %v268 = vunpack.c.l.b16 %v185
      %v269 = vunpack.c.l.b16 %v186
      %v270 = vunpack.c.l.b16 %v187
      %v271 = vunpack.c.l.b16 %v188
      %v272 = vunpack.c.l.b16 %v189
      %v273 = vunpack.c.l.b16 %v190
      %v274 = vunpack.c.l.b16 %v191
      %v275 = vunpack.c.l.b16 %v192
      %v276 = vunpack.c.l.b16 %v193
      %v277 = vunpack.c.l.b16 %v194
      %v278 = vunpack.c.l.b16 %v195
      %v279 = vunpack.c.l.b16 %v196
      %v280 = vunpack.c.l.b16 %v197
      %v281 = vunpack.c.l.b16 %v198
      %v282 = vunpack.c.l.b16 %v199
      %v283 = vunpack.c.l.b16 %v200
      %v284 = vunpack.c.l.b16 %v201
      %v285 = vunpack.c.l.b16 %v202
      %v286 = vunpack.c.l.b16 %v203
      %v287 = vpack.c.b16 %v256, %v255
      %v288 = vpack.c.b16 %v258, %v257
      %v289 = vpack.c.b16 %v260, %v259
      %v290 = vpack.c.b16 %v262, %v261
      %v291 = vpack.c.b16 %v264, %v263
      %v292 = vpack.c.b16 %v266, %v265
      %v293 = vpack.c.b16 %v268, %v267
      %v294 = vpack.c.b16 %v270, %v269
      %v295 = vpack.c.b16 %v272, %v271
      %v296 = vpack.c.b16 %v274, %v273
      %v297 = vpack.c.b16 %v276, %v275
      %v298 = vpack.c.b16 %v278, %v277
      %v299 = vpack.c.b16 %v280, %v279
      %v300 = vpack.c.b16 %v282, %v281
      %v301 = vpack.c.b16 %v284, %v283
      %v302 = vpack.c.b16 %v286, %v285
      %v315 = vunpack.c.l.b16 %v204
      %v316 = vunpack.c.l.b16 %v205
      %v317 = vunpack.c.l.b16 %v206
      %v318 = vunpack.c.l.b16 %v207
      %v319 = vunpack.c.l.b16 %v208
      %v320 = vunpack.c.l.b16 %v209
      %v321 = vunpack.c.l.b16 %v210
      %v322 = vunpack.c.l.b16 %v211
      %v323 = vunpack.c.l.b16 %v212
      %v324 = vunpack.c.l.b16 %v213
      %v325 = vunpack.c.l.b16 %v214
      %v326 = vunpack.c.l.b16 %v215
      %v327 = vpack.c.b16 %v316, %v315
      %v328 = vpack.c.b16 %v318, %v317
      %v329 = vpack.c.b16 %v320, %v319
      %v330 = vpack.c.b16 %v322, %v321
      %v331 = vpack.c.b16 %v324, %v323
      %v332 = vpack.c.b16 %v326, %v325
      %vm339 = vcmask 785408
      %v341 = vsel %vm339, %v287, 0
      %v344 = vsel %vm339, %v288, 0
      %v347 = vsel %vm339, %v289, 0
      %v350 = vsel %vm339, %v290, 0
      %v353 = vsel %vm339, %v291, 0
      %v356 = vsel %vm339, %v292, 0
      %v359 = vsel %vm339, %v293, 0
      %v362 = vsel %vm339, %v294, 0
      %v365 = vsel %vm339, %v295, 0
      %v368 = vsel %vm339, %v296, 0
      %v371 = vsel %vm339, %v297, 0
      %v374 = vsel %vm339, %v298, 0
      %v377 = vsel %vm339, %v299, 0
      %v380 = vsel %vm339, %v300, 0
      %v383 = vsel %vm339, %v301, 0
      %v386 = vsel %vm339, %v302, 0
      %388 = vmatprep.subr.bf16.mxu0 0
      %389 = vmatpush1.bf16.msra.mxu0 0
      %390 = vmatprep.subr.bf16.mxu0 0
      %391 = vmatpush1.bf16.msra.mxu0 0
      %392 = vmatprep.subr.bf16.mxu0 0
      %393 = vmatpush1.bf16.msra.mxu0 %v332
      %394 = vmatprep.subr.bf16.mxu0 0
      %395 = vmatpush1.bf16.msra.mxu0 %v331
      %396 = vmatprep.subr.bf16.mxu0 0
      %397 = vmatpush1.bf16.msra.mxu0 %v330
      %398 = vmatprep.subr.bf16.mxu0 0
      %399 = vmatpush1.bf16.msra.mxu0 %v329
      %400 = vmatprep.subr.bf16.mxu0 0
      %401 = vmatpush1.bf16.msra.mxu0 %v328
      %402 = vmatprep.subr.bf16.mxu0 0
      %403 = vmatpush1.bf16.msra.mxu0 %v327
      %404 = vmatprep.subr.bf16.mxu0 0
      %405 = vmatpush2.bf16.msra.mxu0 0
      %406 = vmatprep.subr.bf16.mxu0 0
      %407 = vmatpush2.bf16.msra.mxu0 0
      %408 = vmatprep.subr.bf16.mxu0 0
      %409 = vmatpush2.bf16.msra.mxu0 0
      %410 = vmatprep.subr.bf16.mxu0 0
      %411 = vmatpush2.bf16.msra.mxu0 0
      %412 = vmatprep.subr.bf16.mxu0 0
      %413 = vmatpush2.bf16.msra.mxu0 0
      %414 = vmatprep.subr.bf16.mxu0 0
      %415 = vmatpush2.bf16.msra.mxu0 0
      %416 = vmatprep.subr.bf16.mxu0 0
      %417 = vmatpush2.bf16.msra.mxu0 0
      %418 = vmatprep.subr.bf16.mxu0 0
      %419 = vmatpush2.bf16.msra.mxu0 0
      %420 = vmatprep.mubr.bf16.mxu0 0
      %421 = vmatmul.mubr.bf16.gmra.mxu0 %v341
      %v422 = vpop.f32.mrf.mxu0
      %v423 = vadd.f32 %v221, %v422
      %v424 = vpop.f32.mrf.mxu0
      %v425 = vpop.f32.mrf.mxu0
      %v426 = vadd.f32 %v221, %v425
      %v427 = vpop.f32.mrf.mxu0
      %428 = vmatprep.mubr.bf16.mxu0 0
      %429 = vmatmul.mubr.bf16.gmra.mxu0 %v344
      %v430 = vpop.f32.mrf.mxu0
      %v431 = vadd.f32 %v221, %v430
      %v432 = vpop.f32.mrf.mxu0
      %v433 = vpop.f32.mrf.mxu0
      %v434 = vadd.f32 %v221, %v433
      %v435 = vpop.f32.mrf.mxu0
      %436 = vmatprep.mubr.bf16.mxu0 0
      %437 = vmatmul.mubr.bf16.gmra.mxu0 %v347
      %v438 = vpop.f32.mrf.mxu0
      %v439 = vadd.f32 %v221, %v438
      %v440 = vpop.f32.mrf.mxu0
      %v441 = vpop.f32.mrf.mxu0
      %v442 = vadd.f32 %v221, %v441
      %v443 = vpop.f32.mrf.mxu0
      %444 = vmatprep.mubr.bf16.mxu0 0
      %445 = vmatmul.mubr.bf16.gmra.mxu0 %v350
      %v446 = vpop.f32.mrf.mxu0
      %v447 = vadd.f32 %v221, %v446
      %v448 = vpop.f32.mrf.mxu0
      %v449 = vpop.f32.mrf.mxu0
      %v450 = vadd.f32 %v221, %v449
      %v451 = vpop.f32.mrf.mxu0
      %452 = vmatprep.mubr.bf16.mxu0 0
      %453 = vmatmul.mubr.bf16.gmra.mxu0 %v353
      %v454 = vpop.f32.mrf.mxu0
      %v455 = vadd.f32 %v221, %v454
      %v456 = vpop.f32.mrf.mxu0
      %v457 = vpop.f32.mrf.mxu0
      %v458 = vadd.f32 %v221, %v457
      %v459 = vpop.f32.mrf.mxu0
      %460 = vmatprep.mubr.bf16.mxu0 0
      %461 = vmatmul.mubr.bf16.gmra.mxu0 %v356
      %v462 = vpop.f32.mrf.mxu0
      %v463 = vadd.f32 %v221, %v462
      %v464 = vpop.f32.mrf.mxu0
      %v465 = vpop.f32.mrf.mxu0
      %v466 = vadd.f32 %v221, %v465
      %v467 = vpop.f32.mrf.mxu0
      %468 = vmatprep.mubr.bf16.mxu0 0
      %469 = vmatmul.mubr.bf16.gmra.mxu0 %v359
      %v470 = vpop.f32.mrf.mxu0
      %v471 = vadd.f32 %v221, %v470
      %v472 = vpop.f32.mrf.mxu0
      %v473 = vpop.f32.mrf.mxu0
      %v474 = vadd.f32 %v221, %v473
      %v475 = vpop.f32.mrf.mxu0
      %476 = vmatprep.mubr.bf16.mxu0 0
      %477 = vmatmul.mubr.bf16.gmra.mxu0 %v362
      %v478 = vpop.f32.mrf.mxu0
      %v479 = vadd.f32 %v221, %v478
      %v480 = vpop.f32.mrf.mxu0
      %v481 = vpop.f32.mrf.mxu0
      %v482 = vadd.f32 %v221, %v481
      %v483 = vpop.f32.mrf.mxu0
      %484 = vmatprep.mubr.bf16.mxu0 0
      %485 = vmatmul.mubr.bf16.gmra.mxu0 %v365
      %v486 = vpop.f32.mrf.mxu0
      %v487 = vadd.f32 %v221, %v486
      %v488 = vpop.f32.mrf.mxu0
      %v489 = vpop.f32.mrf.mxu0
      %v490 = vadd.f32 %v221, %v489
      %v491 = vpop.f32.mrf.mxu0
      %492 = vmatprep.mubr.bf16.mxu0 0
      %493 = vmatmul.mubr.bf16.gmra.mxu0 %v368
      %v494 = vpop.f32.mrf.mxu0
      %v495 = vadd.f32 %v221, %v494
      %v496 = vpop.f32.mrf.mxu0
      %v497 = vpop.f32.mrf.mxu0
      %v498 = vadd.f32 %v221, %v497
      %v499 = vpop.f32.mrf.mxu0
      %500 = vmatprep.mubr.bf16.mxu0 0
      %501 = vmatmul.mubr.bf16.gmra.mxu0 %v371
      %v502 = vpop.f32.mrf.mxu0
      %v503 = vadd.f32 %v221, %v502
      %v504 = vpop.f32.mrf.mxu0
      %v505 = vpop.f32.mrf.mxu0
      %v506 = vadd.f32 %v221, %v505
      %v507 = vpop.f32.mrf.mxu0
      %508 = vmatprep.mubr.bf16.mxu0 0
      %509 = vmatmul.mubr.bf16.gmra.mxu0 %v374
      %v510 = vpop.f32.mrf.mxu0
      %v511 = vadd.f32 %v221, %v510
      %v512 = vpop.f32.mrf.mxu0
      %v513 = vpop.f32.mrf.mxu0
      %v514 = vadd.f32 %v221, %v513
      %v515 = vpop.f32.mrf.mxu0
      %516 = vmatprep.mubr.bf16.mxu0 0
      %517 = vmatmul.mubr.bf16.gmra.mxu0 %v377
      %v518 = vpop.f32.mrf.mxu0
      %v519 = vadd.f32 %v221, %v518
      %v520 = vpop.f32.mrf.mxu0
      %v521 = vpop.f32.mrf.mxu0
      %v522 = vadd.f32 %v221, %v521
      %v523 = vpop.f32.mrf.mxu0
      %524 = vmatprep.mubr.bf16.mxu0 0
      %525 = vmatmul.mubr.bf16.gmra.mxu0 %v380
      %v526 = vpop.f32.mrf.mxu0
      %v527 = vadd.f32 %v221, %v526
      %v528 = vpop.f32.mrf.mxu0
      %v529 = vpop.f32.mrf.mxu0
      %v530 = vadd.f32 %v221, %v529
      %v531 = vpop.f32.mrf.mxu0
      %532 = vmatprep.mubr.bf16.mxu0 0
      %533 = vmatmul.mubr.bf16.gmra.mxu0 %v383
      %v534 = vpop.f32.mrf.mxu0
      %v535 = vadd.f32 %v221, %v534
      %v536 = vpop.f32.mrf.mxu0
      %v537 = vpop.f32.mrf.mxu0
      %v538 = vadd.f32 %v221, %v537
      %v539 = vpop.f32.mrf.mxu0
      %540 = vmatprep.mubr.bf16.mxu0 0
      %541 = vmatmul.mubr.bf16.gmra.mxu0 %v386
      %v542 = vpop.f32.mrf.mxu0
      %v543 = vadd.f32 %v221, %v542
      %v544 = vpop.f32.mrf.mxu0
      %v545 = vpop.f32.mrf.mxu0
      %v546 = vadd.f32 %v221, %v545
      %v547 = vpop.f32.mrf.mxu0
      %548 = vdwg.mxu0
      %vm549 = vcmp.ge.f32.partialorder %v423, 0.0
      %vm550 = vcmp.ge.f32.partialorder %v426, 0.0
      %vm551 = vcmp.ge.f32.partialorder %v431, 0.0
      %vm552 = vcmp.ge.f32.partialorder %v434, 0.0
      %vm553 = vcmp.ge.f32.partialorder %v439, 0.0
      %vm554 = vcmp.ge.f32.partialorder %v442, 0.0
      %vm555 = vcmp.ge.f32.partialorder %v447, 0.0
      %vm556 = vcmp.ge.f32.partialorder %v450, 0.0
      %vm557 = vcmp.ge.f32.partialorder %v455, 0.0
      %vm558 = vcmp.ge.f32.partialorder %v458, 0.0
      %vm559 = vcmp.ge.f32.partialorder %v463, 0.0
      %vm560 = vcmp.ge.f32.partialorder %v466, 0.0
      %vm561 = vcmp.ge.f32.partialorder %v471, 0.0
      %vm562 = vcmp.ge.f32.partialorder %v474, 0.0
      %vm563 = vcmp.ge.f32.partialorder %v479, 0.0
      %vm564 = vcmp.ge.f32.partialorder %v482, 0.0
      %vm565 = vcmp.ge.f32.partialorder %v487, 0.0
      %vm566 = vcmp.ge.f32.partialorder %v490, 0.0
      %vm567 = vcmp.ge.f32.partialorder %v495, 0.0
      %vm568 = vcmp.ge.f32.partialorder %v498, 0.0
      %vm569 = vcmp.ge.f32.partialorder %v503, 0.0
      %vm570 = vcmp.ge.f32.partialorder %v506, 0.0
      %vm571 = vcmp.ge.f32.partialorder %v511, 0.0
      %vm572 = vcmp.ge.f32.partialorder %v514, 0.0
      %vm573 = vcmp.ge.f32.partialorder %v519, 0.0
      %vm574 = vcmp.ge.f32.partialorder %v522, 0.0
      %vm575 = vcmp.ge.f32.partialorder %v527, 0.0
      %vm576 = vcmp.ge.f32.partialorder %v530, 0.0
      %vm577 = vcmp.ge.f32.partialorder %v535, 0.0
      %vm578 = vcmp.ge.f32.partialorder %v538, 0.0
      %vm579 = vcmp.ge.f32.partialorder %v543, 0.0
      %vm580 = vcmp.ge.f32.partialorder %v546, 0.0
      %v581 = vmul.f32 %v423, 0.2
      %v582 = vmul.f32 %v426, 0.2
      %v583 = vmul.f32 %v431, 0.2
      %v584 = vmul.f32 %v434, 0.2
      %v585 = vmul.f32 %v439, 0.2
      %v586 = vmul.f32 %v442, 0.2
      %v587 = vmul.f32 %v447, 0.2
      %v588 = vmul.f32 %v450, 0.2
      %v589 = vmul.f32 %v455, 0.2
      %v590 = vmul.f32 %v458, 0.2
      %v591 = vmul.f32 %v463, 0.2
      %v592 = vmul.f32 %v466, 0.2
      %v593 = vmul.f32 %v471, 0.2
      %v594 = vmul.f32 %v474, 0.2
      %v595 = vmul.f32 %v479, 0.2
      %v596 = vmul.f32 %v482, 0.2
      %v597 = vmul.f32 %v487, 0.2
      %v598 = vmul.f32 %v490, 0.2
      %v599 = vmul.f32 %v495, 0.2
      %v600 = vmul.f32 %v498, 0.2
      %v601 = vmul.f32 %v503, 0.2
      %v602 = vmul.f32 %v506, 0.2
      %v603 = vmul.f32 %v511, 0.2
      %v604 = vmul.f32 %v514, 0.2
      %v605 = vmul.f32 %v519, 0.2
      %v606 = vmul.f32 %v522, 0.2
      %v607 = vmul.f32 %v527, 0.2
      %v608 = vmul.f32 %v530, 0.2
      %v609 = vmul.f32 %v535, 0.2
      %v610 = vmul.f32 %v538, 0.2
      %v611 = vmul.f32 %v543, 0.2
      %v612 = vmul.f32 %v546, 0.2
      %v613 = vsel %vm549, %v423, %v581
      %v614 = vsel %vm550, %v426, %v582
      %v615 = vsel %vm551, %v431, %v583
      %v616 = vsel %vm552, %v434, %v584
      %v617 = vsel %vm553, %v439, %v585
      %v618 = vsel %vm554, %v442, %v586
      %v619 = vsel %vm555, %v447, %v587
      %v620 = vsel %vm556, %v450, %v588
      %v621 = vsel %vm557, %v455, %v589
      %v622 = vsel %vm558, %v458, %v590
      %v623 = vsel %vm559, %v463, %v591
      %v624 = vsel %vm560, %v466, %v592
      %v625 = vsel %vm561, %v471, %v593
      %v626 = vsel %vm562, %v474, %v594
      %v627 = vsel %vm563, %v479, %v595
      %v628 = vsel %vm564, %v482, %v596
      %v629 = vsel %vm565, %v487, %v597
      %v630 = vsel %vm566, %v490, %v598
      %v631 = vsel %vm567, %v495, %v599
      %v632 = vsel %vm568, %v498, %v600
      %v633 = vsel %vm569, %v503, %v601
      %v634 = vsel %vm570, %v506, %v602
      %v635 = vsel %vm571, %v511, %v603
      %v636 = vsel %vm572, %v514, %v604
      %v637 = vsel %vm573, %v519, %v605
      %v638 = vsel %vm574, %v522, %v606
      %v639 = vsel %vm575, %v527, %v607
      %v640 = vsel %vm576, %v530, %v608
      %v641 = vsel %vm577, %v535, %v609
      %v642 = vsel %vm578, %v538, %v610
      %v643 = vsel %vm579, %v543, %v611
      %v644 = vsel %vm580, %v546, %v612
      %v645 = vpack.c.bf16 %v614, %v613
      %v646 = vpack.c.bf16 %v616, %v615
      %v647 = vpack.c.bf16 %v618, %v617
      %v648 = vpack.c.bf16 %v620, %v619
      %v649 = vpack.c.bf16 %v622, %v621
      %v650 = vpack.c.bf16 %v624, %v623
      %v651 = vpack.c.bf16 %v626, %v625
      %v652 = vpack.c.bf16 %v628, %v627
      %v653 = vpack.c.bf16 %v630, %v629
      %v654 = vpack.c.bf16 %v632, %v631
      %v655 = vpack.c.bf16 %v634, %v633
      %v656 = vpack.c.bf16 %v636, %v635
      %v657 = vpack.c.bf16 %v638, %v637
      %v658 = vpack.c.bf16 %v640, %v639
      %v659 = vpack.c.bf16 %v642, %v641
      %v660 = vpack.c.bf16 %v644, %v643
      %v677 = vunpack.c.l.b16 %v645
      %v678 = vunpack.c.h.b16 %v645
      %v679 = vunpack.c.l.b16 %v646
      %v680 = vunpack.c.h.b16 %v646
      %v681 = vunpack.c.l.b16 %v647
      %v682 = vunpack.c.h.b16 %v647
      %v683 = vunpack.c.l.b16 %v648
      %v684 = vunpack.c.h.b16 %v648
      %v685 = vunpack.c.l.b16 %v649
      %v686 = vunpack.c.h.b16 %v649
      %v687 = vunpack.c.l.b16 %v650
      %v688 = vunpack.c.h.b16 %v650
      %v689 = vunpack.c.l.b16 %v651
      %v690 = vunpack.c.h.b16 %v651
      %v691 = vunpack.c.l.b16 %v652
      %v692 = vunpack.c.h.b16 %v652
      %v693 = vunpack.c.l.b16 %v653
      %v694 = vunpack.c.h.b16 %v653
      %v695 = vunpack.c.l.b16 %v654
      %v696 = vunpack.c.h.b16 %v654
      %v697 = vunpack.c.l.b16 %v655
      %v698 = vunpack.c.h.b16 %v655
      %v699 = vunpack.c.l.b16 %v656
      %v700 = vunpack.c.h.b16 %v656
      %v701 = vunpack.c.l.b16 %v657
      %v702 = vunpack.c.h.b16 %v657
      %v703 = vunpack.c.l.b16 %v658
      %v704 = vunpack.c.h.b16 %v658
      %v705 = vunpack.c.l.b16 %v659
      %v706 = vunpack.c.h.b16 %v659
      %v707 = vunpack.c.l.b16 %v660
      %v708 = vunpack.c.h.b16 %v660
      %v709 = vpack.c.b16 %v677, %v677
      %v710 = vpack.c.b16 %v678, %v678
      %v711 = vpack.c.b16 %v679, %v679
      %v712 = vpack.c.b16 %v680, %v680
      %v713 = vpack.c.b16 %v681, %v681
      %v714 = vpack.c.b16 %v682, %v682
      %v715 = vpack.c.b16 %v683, %v683
      %v716 = vpack.c.b16 %v684, %v684
      %v717 = vpack.c.b16 %v685, %v685
      %v718 = vpack.c.b16 %v686, %v686
      %v719 = vpack.c.b16 %v687, %v687
      %v720 = vpack.c.b16 %v688, %v688
      %v721 = vpack.c.b16 %v689, %v689
      %v722 = vpack.c.b16 %v690, %v690
      %v723 = vpack.c.b16 %v691, %v691
      %v724 = vpack.c.b16 %v692, %v692
      %v725 = vpack.c.b16 %v693, %v693
      %v726 = vpack.c.b16 %v694, %v694
      %v727 = vpack.c.b16 %v695, %v695
      %v728 = vpack.c.b16 %v696, %v696
      %v729 = vpack.c.b16 %v697, %v697
      %v730 = vpack.c.b16 %v698, %v698
      %v731 = vpack.c.b16 %v699, %v699
      %v732 = vpack.c.b16 %v700, %v700
      %v733 = vpack.c.b16 %v701, %v701
      %v734 = vpack.c.b16 %v702, %v702
      %v735 = vpack.c.b16 %v703, %v703
      %v736 = vpack.c.b16 %v704, %v704
      %v737 = vpack.c.b16 %v705, %v705
      %v738 = vpack.c.b16 %v706, %v706
      %v739 = vpack.c.b16 %v707, %v707
      %v740 = vpack.c.b16 %v708, %v708
      %vm773 = vcmask 519168
      %774 = vst.msk [vmem:[%s170] sm:$0xf] %vm773, %v709
      %775 = vst.msk [vmem:[%s170 + $0x4] sm:$0xf] %vm773, %v710
      %776 = vst.msk [vmem:[%s170 + $0x8] sm:$0xf] %vm773, %v711
      %777 = vst.msk [vmem:[%s170 + $0xc] sm:$0xf] %vm773, %v712
      %778 = vst.msk [vmem:[%s170 + $0x10] sm:$0xf] %vm773, %v713
      %779 = vst.msk [vmem:[%s170 + $0x14] sm:$0xf] %vm773, %v714
      %780 = vst.msk [vmem:[%s170 + $0x18] sm:$0xf] %vm773, %v715
      %781 = vst.msk [vmem:[%s170 + $0x1c] sm:$0xf] %vm773, %v716
      %782 = vst.msk [vmem:[%s170 + $0x20] sm:$0xf] %vm773, %v717
      %783 = vst.msk [vmem:[%s170 + $0x24] sm:$0xf] %vm773, %v718
      %784 = vst.msk [vmem:[%s170 + $0x28] sm:$0xf] %vm773, %v719
      %785 = vst.msk [vmem:[%s170 + $0x2c] sm:$0xf] %vm773, %v720
      %786 = vst.msk [vmem:[%s170 + $0x30] sm:$0xf] %vm773, %v721
      %787 = vst.msk [vmem:[%s170 + $0x34] sm:$0xf] %vm773, %v722
      %788 = vst.msk [vmem:[%s170 + $0x38] sm:$0xf] %vm773, %v723
      %789 = vst.msk [vmem:[%s170 + $0x3c] sm:$0xf] %vm773, %v724
      %790 = vst.msk [vmem:[%s170 + $0x40] sm:$0xf] %vm773, %v725
      %791 = vst.msk [vmem:[%s170 + $0x44] sm:$0xf] %vm773, %v726
      %792 = vst.msk [vmem:[%s170 + $0x48] sm:$0xf] %vm773, %v727
      %793 = vst.msk [vmem:[%s170 + $0x4c] sm:$0xf] %vm773, %v728
      %794 = vst.msk [vmem:[%s170 + $0x50] sm:$0xf] %vm773, %v729
      %795 = vst.msk [vmem:[%s170 + $0x54] sm:$0xf] %vm773, %v730
      %796 = vst.msk [vmem:[%s170 + $0x58] sm:$0xf] %vm773, %v731
      %797 = vst.msk [vmem:[%s170 + $0x5c] sm:$0xf] %vm773, %v732
      %798 = vst.msk [vmem:[%s170 + $0x60] sm:$0xf] %vm773, %v733
      %799 = vst.msk [vmem:[%s170 + $0x64] sm:$0xf] %vm773, %v734
      %800 = vst.msk [vmem:[%s170 + $0x68] sm:$0xf] %vm773, %v735
      %801 = vst.msk [vmem:[%s170 + $0x6c] sm:$0xf] %vm773, %v736
      %802 = vst.msk [vmem:[%s170 + $0x70] sm:$0xf] %vm773, %v737
      %803 = vst.msk [vmem:[%s170 + $0x74] sm:$0xf] %vm773, %v738
      %804 = vst.msk [vmem:[%s170 + $0x78] sm:$0xf] %vm773, %v739
      %805 = vst.msk [vmem:[%s170 + $0x7c] sm:$0xf] %vm773, %v740
      %p806 = scmp.lt.s32.totalorder %s14, 1
      %s807 = scalar_select %p806, %s14, 1
      %s808 = smul.addr %s807, 32
      %s809 = smul.addr %s808, 4
      %s810 = scalar_lea.vmem %s3, %s809
      // Predicated region
      $region33: #{discriminator_forward.4} parent=31 // pred_check
        %p811 = pneg %p100
      $region34: #{discriminator_forward.4} parent=31 // pred_check_branch
        %813 = sbr.rel (%p811) target = $region36
      $region35: #{discriminator_forward.4} parent=31 // pred_region
        _
      $region36: #{discriminator_forward.4} parent=31 // pred_fallthru
        _
    $region32: #{discriminator_forward.4} parent=5 // pred_fallthru
      _
    %p814 = scmp.le.s32.totalorder 2, %s9
    // Predicated region
    $region37: #{discriminator_forward.4} parent=5 // pred_check
      %p815 = pneg %p814
    $region38: #{discriminator_forward.4} parent=5 // pred_check_branch
      %817 = sbr.rel (%p815) target = $region40
    $region39: #{discriminator_forward.4} parent=5 // pred_region
      %s818 = ssub.s32 %s9, 2
      // Predicated region
      $region41: #{discriminator_forward.4} parent=39 // pred_check
        %p819 = pneg %p106
      $region42: #{discriminator_forward.4} parent=39 // pred_check_branch
        %821 = sbr.rel (%p819) target = $region44
      $region43: #{discriminator_forward.4} parent=39 // pred_region
        %p822 = scmp.lt.s32.totalorder %s15, 1
        %s823 = scalar_select %p822, %s15, 1
        %s824 = smul.addr %s823, 32
        %s825 = smul.addr %s824, 4
        %s826 = scalar_lea.vmem %s3, %s825
      $region44: #{discriminator_forward.4} parent=39 // pred_fallthru
        _
    $region40: #{discriminator_forward.4} parent=5 // pred_fallthru
      _
  $region6: #{discriminator_forward.4} parent=0 // loop_footer
    %s13 = sadd.s32 1, %s9
  $region7: #{discriminator_forward.4} parent=0 // loop_footer_branch
    %8 = sbr.rel target = $region3
  $region8: #{discriminator_forward.4} parent=0 // loop_exit
    _

// kernel: discriminator_forward.5
$region0: #{discriminator_forward.5}
  #allocation0 [shape = 'u32[]', space=smem, size = 0x4, offset = 0x4, fixed_abs, tag = 'smem constant byte address 0x4 - core index']
  #allocation1 [shape = 'u32[144,128]{1,0:T(1,128)}', space=vmem, size = 0x12000, scoped, tag = 'internal scratch']
  %s0 = inlined_call_operand.vmem [shape: bf16[2,64,1024], index: 0, kind: input, shape index: {}]
  %s1 = inlined_call_operand.vmem [shape: bf16[1024,128], index: 1, kind: input, shape index: {}]
  %s2 = inlined_call_operand.vmem [shape: bf16[2,64,128], index: 2, kind: output, shape index: {}]
  %s3 = sld [smem:[#allocation0]]
  $region41: #{discriminator_forward.5} parent=0
    _
  %s5 = ssub.s32 1, %s3
  %s6 = scalar_select 0, %s5, %s3
  loop: start=0, step=1, limit=4
  $region2: #{discriminator_forward.5} parent=0 // loop_pre_header
    _
  $region3: #{discriminator_forward.5} parent=0 // loop_header
    %s8 = sphi 0, %s12
    %p9 = scmp.ge.s32.totalorder %s8, 4
    %s18 = sphi 0, %s20
    %s21 = sphi 0, %s18
    %s22 = sphi 0, %s21
    %s38 = sphi 0, %s22
    %s42 = sphi 0, %s42
    %s44 = sphi 0, %s42
    %s45 = sphi 0, %s44
    %s59 = sphi 0, %s45
    %s65 = sphi 0, %s67
    %s68 = sphi 0, %s65
    %s69 = sphi 0, %s68
    %s85 = sphi 0, %s69
  $region4: #{discriminator_forward.5} parent=0 // loop_header_branch
    %11 = sbr.rel (%p9) target = $region8
  $region5: #{discriminator_forward.5} parent=0 // loop_body
    %s13 = ssub.s32 %s8, 1
    %s14 = ssub.s32 %s8, 2
    %s15 = sadd.s32 %s8, 1
    %s16 = ssub.s32 %s8, %s15
    %p17 = scmp.eq.s32.totalorder %s16, 0
    %s19 = sadd.s32 %s18, 1
    %s20 = scalar_select %p17, %s18, %s19
    %p23 = pneg %p17
    %p24 = scmp.eq.s32.totalorder %s8, 1
    %p25 = por %p23, %p24
    %p26 = scmp.ne.s32.totalorder %s18, %s21
    %p27 = scmp.eq.s32.totalorder %s8, 0
    %p28 = por %p26, %p27
    %p29 = scmp.ne.s32.totalorder %s18, %s21
    %p30 = scmp.eq.s32.totalorder %s13, 1
    %p31 = por %p29, %p30
    %p32 = scmp.ne.s32.totalorder %s21, %s22
    %p33 = scmp.eq.s32.totalorder %s13, 0
    %p34 = por %p32, %p33
    %p35 = scmp.ne.s32.totalorder %s21, %s22
    %p36 = scmp.eq.s32.totalorder %s14, 1
    %p37 = por %p35, %p36
    %p39 = scmp.ne.s32.totalorder %s22, %s38
    %p40 = scmp.eq.s32.totalorder %s14, 0
    %p41 = por %p39, %p40
    %s43 = sadd.s32 %s42, 1
    %p46 = scmp.eq.s32.totalorder %s8, 1
    %p47 = scmp.ne.s32.totalorder %s42, %s44
    %p48 = scmp.eq.s32.totalorder %s8, 0
    %p49 = por %p47, %p48
    %p50 = scmp.ne.s32.totalorder %s42, %s44
    %p51 = scmp.eq.s32.totalorder %s13, 1
    %p52 = por %p50, %p51
    %p53 = scmp.ne.s32.totalorder %s44, %s45
    %p54 = scmp.eq.s32.totalorder %s13, 0
    %p55 = por %p53, %p54
    %p56 = scmp.ne.s32.totalorder %s44, %s45
    %p57 = scmp.eq.s32.totalorder %s14, 1
    %p58 = por %p56, %p57
    %p60 = scmp.ne.s32.totalorder %s45, %s59
    %p61 = scmp.eq.s32.totalorder %s14, 0
    %p62 = por %p60, %p61
    %s63 = ssub.s32 %s8, %s15
    %p64 = scmp.eq.s32.totalorder %s63, 0
    %s66 = sadd.s32 %s65, 1
    %s67 = scalar_select %p64, %s65, %s66
    %p70 = pneg %p64
    %p71 = scmp.eq.s32.totalorder %s8, 1
    %p72 = por %p70, %p71
    %p73 = scmp.ne.s32.totalorder %s65, %s68
    %p74 = scmp.eq.s32.totalorder %s8, 0
    %p75 = por %p73, %p74
    %p76 = scmp.ne.s32.totalorder %s65, %s68
    %p77 = scmp.eq.s32.totalorder %s13, 1
    %p78 = por %p76, %p77
    %p79 = scmp.ne.s32.totalorder %s68, %s69
    %p80 = scmp.eq.s32.totalorder %s13, 0
    %p81 = por %p79, %p80
    %p82 = scmp.ne.s32.totalorder %s68, %s69
    %p83 = scmp.eq.s32.totalorder %s14, 1
    %p84 = por %p82, %p83
    %p86 = scmp.ne.s32.totalorder %s69, %s85
    %p87 = scmp.eq.s32.totalorder %s14, 0
    %p88 = por %p86, %p87
    %p89 = scmp.le.s32.totalorder 1, %s8
    %p90 = scmp.lt.s32.totalorder %s8, 3
    %p91 = pnand %p89, %p90
    %p92 = pneg %p91
    // Predicated region
    $region9: #{discriminator_forward.5} parent=5 // pred_check
      _
    $region10: #{discriminator_forward.5} parent=5 // pred_check_branch
      %94 = sbr.rel (%p91) target = $region12
    $region11: #{discriminator_forward.5} parent=5 // pred_region
      %s95 = ssub.s32 %s8, 1
      // Predicated region
      $region13: #{discriminator_forward.5} parent=11 // pred_check
        %p96 = pneg %p55
      $region14: #{discriminator_forward.5} parent=11 // pred_check_branch
        %98 = sbr.rel (%p96) target = $region16
      $region15: #{discriminator_forward.5} parent=11 // pred_region
        _
      $region16: #{discriminator_forward.5} parent=11 // pred_fallthru
        _
    $region12: #{discriminator_forward.5} parent=5 // pred_fallthru
      _
    %p99 = scmp.lt.s32.totalorder %s8, 2
    // Predicated region
    $region17: #{discriminator_forward.5} parent=5 // pred_check
      %p100 = pneg %p99
    $region18: #{discriminator_forward.5} parent=5 // pred_check_branch
      %102 = sbr.rel (%p100) target = $region20
    $region19: #{discriminator_forward.5} parent=5 // pred_region
      // Predicated region
      $region21: #{discriminator_forward.5} parent=19 // pred_check
        %p103 = pneg %p28
      $region22: #{discriminator_forward.5} parent=19 // pred_check_branch
        %105 = sbr.rel (%p103) target = $region24
      $region23: #{discriminator_forward.5} parent=19 // pred_region
        %p106 = scmp.lt.s32.totalorder %s8, 1
        %s107 = scalar_select %p106, %s8, 1
        %s108 = smul.addr %s107, 64
        %s109 = smul.addr %s108, 4
        %s110 = scalar_lea.vmem %s0, %s109
      $region24: #{discriminator_forward.5} parent=19 // pred_fallthru
        _
    $region20: #{discriminator_forward.5} parent=5 // pred_fallthru
      _
    %p111 = scmp.le.s32.totalorder 1, %s8
    %p112 = scmp.lt.s32.totalorder %s8, 3
    %p113 = pnand %p111, %p112
    %p114 = pneg %p113
    // Predicated region
    $region25: #{discriminator_forward.5} parent=5 // pred_check
      _
    $region26: #{discriminator_forward.5} parent=5 // pred_check_branch
      %116 = sbr.rel (%p113) target = $region28
    $region27: #{discriminator_forward.5} parent=5 // pred_region
      %s117 = ssub.s32 %s8, 1
      %p118 = scmp.lt.s32.totalorder %s13, 1
      %s119 = scalar_select %p118, %s13, 1
      %s120 = smul.addr %s119, 64
      %s121 = smul.addr %s120, 4
      %s122 = scalar_lea.vmem %s0, %s121
      %p123 = pneg %p34
      %p124 = pneg %p31
      %p125 = pneg %p55
      %p126 = pneg %p52
      %p127 = pneg %p81
      %p128 = pneg %p78
      %p129 = scmp.lt.s32.totalorder %s13, 1
      %s130 = scalar_select %p129, %s13, 1
      %s131 = smul.addr %s130, 8
      %s132 = smul.addr %s131, 4
      %s133 = scalar_lea.vmem %s2, %s132
      %p134 = scmp.lt.s32.totalorder %s13, 1
      %s135 = scalar_select %p134, %s13, 1
      %s136 = smul.addr %s135, 64
      %s137 = smul.addr %s136, 4
      %s138 = scalar_lea.vmem %s0, %s137
      %p139 = scmp.lt.s32.totalorder %s13, 1
      %s140 = scalar_select %p139, %s13, 1
      %s141 = smul.addr %s140, 8
      %s142 = smul.addr %s141, 4
      %s143 = scalar_lea.vmem %s2, %s142
      %v145 = vld [vmem:[%s138] sm:$0xff]
      %v146 = vld [vmem:[%s138 + $0x8] sm:$0xff]
      %v147 = vld [vmem:[%s138 + $0x10] sm:$0xff]
      %v148 = vld [vmem:[%s138 + $0x18] sm:$0xff]
      %v149 = vld [vmem:[%s138 + $0x20] sm:$0xff]
      %v150 = vld [vmem:[%s138 + $0x28] sm:$0xff]
      %v151 = vld [vmem:[%s138 + $0x30] sm:$0xff]
      %v152 = vld [vmem:[%s138 + $0x38] sm:$0xff]
      %v153 = vld [vmem:[%s138 + $0x40] sm:$0xff]
      %v154 = vld [vmem:[%s138 + $0x48] sm:$0xff]
      %v155 = vld [vmem:[%s138 + $0x50] sm:$0xff]
      %v156 = vld [vmem:[%s138 + $0x58] sm:$0xff]
      %v157 = vld [vmem:[%s138 + $0x60] sm:$0xff]
      %v158 = vld [vmem:[%s138 + $0x68] sm:$0xff]
      %v159 = vld [vmem:[%s138 + $0x70] sm:$0xff]
      %v160 = vld [vmem:[%s138 + $0x78] sm:$0xff]
      %v161 = vld [vmem:[%s138 + $0x80] sm:$0xff]
      %v162 = vld [vmem:[%s138 + $0x88] sm:$0xff]
      %v163 = vld [vmem:[%s138 + $0x90] sm:$0xff]
      %v164 = vld [vmem:[%s138 + $0x98] sm:$0xff]
      %v165 = vld [vmem:[%s138 + $0xa0] sm:$0xff]
      %v166 = vld [vmem:[%s138 + $0xa8] sm:$0xff]
      %v167 = vld [vmem:[%s138 + $0xb0] sm:$0xff]
      %v168 = vld [vmem:[%s138 + $0xb8] sm:$0xff]
      %v169 = vld [vmem:[%s138 + $0xc0] sm:$0xff]
      %v170 = vld [vmem:[%s138 + $0xc8] sm:$0xff]
      %v171 = vld [vmem:[%s138 + $0xd0] sm:$0xff]
      %v172 = vld [vmem:[%s138 + $0xd8] sm:$0xff]
      %v173 = vld [vmem:[%s138 + $0xe0] sm:$0xff]
      %v174 = vld [vmem:[%s138 + $0xe8] sm:$0xff]
      %v175 = vld [vmem:[%s138 + $0xf0] sm:$0xff]
      %v176 = vld [vmem:[%s138 + $0xf8] sm:$0xff]
      %v177 = vld [vmem:[%s1] sm:$0xf]
      %v178 = vld [vmem:[%s1 + $0x4] sm:$0xf]
      %v179 = vld [vmem:[%s1 + $0x8] sm:$0xf]
      %v180 = vld [vmem:[%s1 + $0xc] sm:$0xf]
      %v181 = vld [vmem:[%s1 + $0x10] sm:$0xf]
      %v182 = vld [vmem:[%s1 + $0x14] sm:$0xf]
      %v183 = vld [vmem:[%s1 + $0x18] sm:$0xf]
      %v184 = vld [vmem:[%s1 + $0x1c] sm:$0xf]
      %v185 = vld [vmem:[%s1 + $0x20] sm:$0xf]
      %v186 = vld [vmem:[%s1 + $0x24] sm:$0xf]
      %v187 = vld [vmem:[%s1 + $0x28] sm:$0xf]
      %v188 = vld [vmem:[%s1 + $0x2c] sm:$0xf]
      %v189 = vld [vmem:[%s1 + $0x30] sm:$0xf]
      %v190 = vld [vmem:[%s1 + $0x34] sm:$0xf]
      %v191 = vld [vmem:[%s1 + $0x38] sm:$0xf]
      %v192 = vld [vmem:[%s1 + $0x3c] sm:$0xf]
      %v193 = vld [vmem:[%s1 + $0x40] sm:$0xf]
      %v194 = vld [vmem:[%s1 + $0x44] sm:$0xf]
      %v195 = vld [vmem:[%s1 + $0x48] sm:$0xf]
      %v196 = vld [vmem:[%s1 + $0x4c] sm:$0xf]
      %v197 = vld [vmem:[%s1 + $0x50] sm:$0xf]
      %v198 = vld [vmem:[%s1 + $0x54] sm:$0xf]
      %v199 = vld [vmem:[%s1 + $0x58] sm:$0xf]
      %v200 = vld [vmem:[%s1 + $0x5c] sm:$0xf]
      %v201 = vld [vmem:[%s1 + $0x60] sm:$0xf]
      %v202 = vld [vmem:[%s1 + $0x64] sm:$0xf]
      %v203 = vld [vmem:[%s1 + $0x68] sm:$0xf]
      %v204 = vld [vmem:[%s1 + $0x6c] sm:$0xf]
      %v205 = vld [vmem:[%s1 + $0x70] sm:$0xf]
      %v206 = vld [vmem:[%s1 + $0x74] sm:$0xf]
      %v207 = vld [vmem:[%s1 + $0x78] sm:$0xf]
      %v208 = vld [vmem:[%s1 + $0x7c] sm:$0xf]
      %v209 = vld [vmem:[%s1 + $0x80] sm:$0xf]
      %v210 = vld [vmem:[%s1 + $0x84] sm:$0xf]
      %v211 = vld [vmem:[%s1 + $0x88] sm:$0xf]
      %v212 = vld [vmem:[%s1 + $0x8c] sm:$0xf]
      %v213 = vld [vmem:[%s1 + $0x90] sm:$0xf]
      %v214 = vld [vmem:[%s1 + $0x94] sm:$0xf]
      %v215 = vld [vmem:[%s1 + $0x98] sm:$0xf]
      %v216 = vld [vmem:[%s1 + $0x9c] sm:$0xf]
      %v217 = vld [vmem:[%s1 + $0xa0] sm:$0xf]
      %v218 = vld [vmem:[%s1 + $0xa4] sm:$0xf]
      %v219 = vld [vmem:[%s1 + $0xa8] sm:$0xf]
      %v220 = vld [vmem:[%s1 + $0xac] sm:$0xf]
      %v221 = vld [vmem:[%s1 + $0xb0] sm:$0xf]
      %v222 = vld [vmem:[%s1 + $0xb4] sm:$0xf]
      %v223 = vld [vmem:[%s1 + $0xb8] sm:$0xf]
      %v224 = vld [vmem:[%s1 + $0xbc] sm:$0xf]
      %v225 = vld [vmem:[%s1 + $0xc0] sm:$0xf]
      %v226 = vld [vmem:[%s1 + $0xc4] sm:$0xf]
      %v227 = vld [vmem:[%s1 + $0xc8] sm:$0xf]
      %v228 = vld [vmem:[%s1 + $0xcc] sm:$0xf]
      %v229 = vld [vmem:[%s1 + $0xd0] sm:$0xf]
      %v230 = vld [vmem:[%s1 + $0xd4] sm:$0xf]
      %v231 = vld [vmem:[%s1 + $0xd8] sm:$0xf]
      %v232 = vld [vmem:[%s1 + $0xdc] sm:$0xf]
      %v233 = vld [vmem:[%s1 + $0xe0] sm:$0xf]
      %v234 = vld [vmem:[%s1 + $0xe4] sm:$0xf]
      %v235 = vld [vmem:[%s1 + $0xe8] sm:$0xf]
      %v236 = vld [vmem:[%s1 + $0xec] sm:$0xf]
      %v237 = vld [vmem:[%s1 + $0xf0] sm:$0xf]
      %v238 = vld [vmem:[%s1 + $0xf4] sm:$0xf]
      %v239 = vld [vmem:[%s1 + $0xf8] sm:$0xf]
      %v240 = vld [vmem:[%s1 + $0xfc] sm:$0xf]
      %v241 = vld [vmem:[%s1 + $0x100] sm:$0xf]
      %v242 = vld [vmem:[%s1 + $0x104] sm:$0xf]
      %v243 = vld [vmem:[%s1 + $0x108] sm:$0xf]
      %v244 = vld [vmem:[%s1 + $0x10c] sm:$0xf]
      %v245 = vld [vmem:[%s1 + $0x110] sm:$0xf]
      %v246 = vld [vmem:[%s1 + $0x114] sm:$0xf]
      %v247 = vld [vmem:[%s1 + $0x118] sm:$0xf]
      %v248 = vld [vmem:[%s1 + $0x11c] sm:$0xf]
      %v249 = vld [vmem:[%s1 + $0x120] sm:$0xf]
      %v250 = vld [vmem:[%s1 + $0x124] sm:$0xf]
      %v251 = vld [vmem:[%s1 + $0x128] sm:$0xf]
      %v252 = vld [vmem:[%s1 + $0x12c] sm:$0xf]
      %v253 = vld [vmem:[%s1 + $0x130] sm:$0xf]
      %v254 = vld [vmem:[%s1 + $0x134] sm:$0xf]
      %v255 = vld [vmem:[%s1 + $0x138] sm:$0xf]
      %v256 = vld [vmem:[%s1 + $0x13c] sm:$0xf]
      %v257 = vld [vmem:[%s1 + $0x140] sm:$0xf]
      %v258 = vld [vmem:[%s1 + $0x144] sm:$0xf]
      %v259 = vld [vmem:[%s1 + $0x148] sm:$0xf]
      %v260 = vld [vmem:[%s1 + $0x14c] sm:$0xf]
      %v261 = vld [vmem:[%s1 + $0x150] sm:$0xf]
      %v262 = vld [vmem:[%s1 + $0x154] sm:$0xf]
      %v263 = vld [vmem:[%s1 + $0x158] sm:$0xf]
      %v264 = vld [vmem:[%s1 + $0x15c] sm:$0xf]
      %v265 = vld [vmem:[%s1 + $0x160] sm:$0xf]
      %v266 = vld [vmem:[%s1 + $0x164] sm:$0xf]
      %v267 = vld [vmem:[%s1 + $0x168] sm:$0xf]
      %v268 = vld [vmem:[%s1 + $0x16c] sm:$0xf]
      %v269 = vld [vmem:[%s1 + $0x170] sm:$0xf]
      %v270 = vld [vmem:[%s1 + $0x174] sm:$0xf]
      %v271 = vld [vmem:[%s1 + $0x178] sm:$0xf]
      %v272 = vld [vmem:[%s1 + $0x17c] sm:$0xf]
      %v273 = vld [vmem:[%s1 + $0x180] sm:$0xf]
      %v274 = vld [vmem:[%s1 + $0x184] sm:$0xf]
      %v275 = vld [vmem:[%s1 + $0x188] sm:$0xf]
      %v276 = vld [vmem:[%s1 + $0x18c] sm:$0xf]
      %v277 = vld [vmem:[%s1 + $0x190] sm:$0xf]
      %v278 = vld [vmem:[%s1 + $0x194] sm:$0xf]
      %v279 = vld [vmem:[%s1 + $0x198] sm:$0xf]
      %v280 = vld [vmem:[%s1 + $0x19c] sm:$0xf]
      %v281 = vld [vmem:[%s1 + $0x1a0] sm:$0xf]
      %v282 = vld [vmem:[%s1 + $0x1a4] sm:$0xf]
      %v283 = vld [vmem:[%s1 + $0x1a8] sm:$0xf]
      %v284 = vld [vmem:[%s1 + $0x1ac] sm:$0xf]
      %v285 = vld [vmem:[%s1 + $0x1b0] sm:$0xf]
      %v286 = vld [vmem:[%s1 + $0x1b4] sm:$0xf]
      %v287 = vld [vmem:[%s1 + $0x1b8] sm:$0xf]
      %v288 = vld [vmem:[%s1 + $0x1bc] sm:$0xf]
      %v289 = vld [vmem:[%s1 + $0x1c0] sm:$0xf]
      %v290 = vld [vmem:[%s1 + $0x1c4] sm:$0xf]
      %v291 = vld [vmem:[%s1 + $0x1c8] sm:$0xf]
      %v292 = vld [vmem:[%s1 + $0x1cc] sm:$0xf]
      %v293 = vld [vmem:[%s1 + $0x1d0] sm:$0xf]
      %v294 = vld [vmem:[%s1 + $0x1d4] sm:$0xf]
      %v295 = vld [vmem:[%s1 + $0x1d8] sm:$0xf]
      %v296 = vld [vmem:[%s1 + $0x1dc] sm:$0xf]
      %v297 = vld [vmem:[%s1 + $0x1e0] sm:$0xf]
      %v298 = vld [vmem:[%s1 + $0x1e4] sm:$0xf]
      %v299 = vld [vmem:[%s1 + $0x1e8] sm:$0xf]
      %v300 = vld [vmem:[%s1 + $0x1ec] sm:$0xf]
      %v301 = vld [vmem:[%s1 + $0x1f0] sm:$0xf]
      %v302 = vld [vmem:[%s1 + $0x1f4] sm:$0xf]
      %v303 = vld [vmem:[%s1 + $0x1f8] sm:$0xf]
      %v304 = vld [vmem:[%s1 + $0x1fc] sm:$0xf]
      %v337 = vunpack.c.l.b16 %v145
      %v338 = vunpack.c.h.b16 %v145
      %v339 = vunpack.c.l.b16 %v146
      %v340 = vunpack.c.h.b16 %v146
      %v341 = vunpack.c.l.b16 %v147
      %v342 = vunpack.c.h.b16 %v147
      %v343 = vunpack.c.l.b16 %v148
      %v344 = vunpack.c.h.b16 %v148
      %v345 = vunpack.c.l.b16 %v149
      %v346 = vunpack.c.h.b16 %v149
      %v347 = vunpack.c.l.b16 %v150
      %v348 = vunpack.c.h.b16 %v150
      %v349 = vunpack.c.l.b16 %v151
      %v350 = vunpack.c.h.b16 %v151
      %v351 = vunpack.c.l.b16 %v152
      %v352 = vunpack.c.h.b16 %v152
      %v353 = vunpack.c.l.b16 %v153
      %v354 = vunpack.c.h.b16 %v153
      %v355 = vunpack.c.l.b16 %v154
      %v356 = vunpack.c.h.b16 %v154
      %v357 = vunpack.c.l.b16 %v155
      %v358 = vunpack.c.h.b16 %v155
      %v359 = vunpack.c.l.b16 %v156
      %v360 = vunpack.c.h.b16 %v156
      %v361 = vunpack.c.l.b16 %v157
      %v362 = vunpack.c.h.b16 %v157
      %v363 = vunpack.c.l.b16 %v158
      %v364 = vunpack.c.h.b16 %v158
      %v365 = vunpack.c.l.b16 %v159
      %v366 = vunpack.c.h.b16 %v159
      %v367 = vunpack.c.l.b16 %v160
      %v368 = vunpack.c.h.b16 %v160
      %v369 = vunpack.c.l.b16 %v161
      %v370 = vunpack.c.h.b16 %v161
      %v371 = vunpack.c.l.b16 %v162
      %v372 = vunpack.c.h.b16 %v162
      %v373 = vunpack.c.l.b16 %v163
      %v374 = vunpack.c.h.b16 %v163
      %v375 = vunpack.c.l.b16 %v164
      %v376 = vunpack.c.h.b16 %v164
      %v377 = vunpack.c.l.b16 %v165
      %v378 = vunpack.c.h.b16 %v165
      %v379 = vunpack.c.l.b16 %v166
      %v380 = vunpack.c.h.b16 %v166
      %v381 = vunpack.c.l.b16 %v167
      %v382 = vunpack.c.h.b16 %v167
      %v383 = vunpack.c.l.b16 %v168
      %v384 = vunpack.c.h.b16 %v168
      %v385 = vunpack.c.l.b16 %v169
      %v386 = vunpack.c.h.b16 %v169
      %v387 = vunpack.c.l.b16 %v170
      %v388 = vunpack.c.h.b16 %v170
      %v389 = vunpack.c.l.b16 %v171
      %v390 = vunpack.c.h.b16 %v171
      %v391 = vunpack.c.l.b16 %v172
      %v392 = vunpack.c.h.b16 %v172
      %v393 = vunpack.c.l.b16 %v173
      %v394 = vunpack.c.h.b16 %v173
      %v395 = vunpack.c.l.b16 %v174
      %v396 = vunpack.c.h.b16 %v174
      %v397 = vunpack.c.l.b16 %v175
      %v398 = vunpack.c.h.b16 %v175
      %v399 = vunpack.c.l.b16 %v176
      %v400 = vunpack.c.h.b16 %v176
      %v401 = vpack.c.b16 %v345, %v337
      %v402 = vpack.c.b16 %v346, %v338
      %v403 = vpack.c.b16 %v347, %v339
      %v404 = vpack.c.b16 %v348, %v340
      %v405 = vpack.c.b16 %v349, %v341
      %v406 = vpack.c.b16 %v350, %v342
      %v407 = vpack.c.b16 %v351, %v343
      %v408 = vpack.c.b16 %v352, %v344
      %v409 = vpack.c.b16 %v361, %v353
      %v410 = vpack.c.b16 %v362, %v354
      %v411 = vpack.c.b16 %v363, %v355
      %v412 = vpack.c.b16 %v364, %v356
      %v413 = vpack.c.b16 %v365, %v357
      %v414 = vpack.c.b16 %v366, %v358
      %v415 = vpack.c.b16 %v367, %v359
      %v416 = vpack.c.b16 %v368, %v360
      %v417 = vpack.c.b16 %v377, %v369
      %v418 = vpack.c.b16 %v378, %v370
      %v419 = vpack.c.b16 %v379, %v371
      %v420 = vpack.c.b16 %v380, %v372
      %v421 = vpack.c.b16 %v381, %v373
      %v422 = vpack.c.b16 %v382, %v374
      %v423 = vpack.c.b16 %v383, %v375
      %v424 = vpack.c.b16 %v384, %v376
      %v425 = vpack.c.b16 %v393, %v385
      %v426 = vpack.c.b16 %v394, %v386
      %v427 = vpack.c.b16 %v395, %v387
      %v428 = vpack.c.b16 %v396, %v388
      %v429 = vpack.c.b16 %v397, %v389
      %v430 = vpack.c.b16 %v398, %v390
      %v431 = vpack.c.b16 %v399, %v391
      %v432 = vpack.c.b16 %v400, %v392
      %v593 = vunpack.c.l.b16 %v177
      %v594 = vunpack.c.l.b16 %v178
      %v595 = vunpack.c.l.b16 %v179
      %v596 = vunpack.c.l.b16 %v180
      %v597 = vunpack.c.l.b16 %v181
      %v598 = vunpack.c.l.b16 %v182
      %v599 = vunpack.c.l.b16 %v183
      %v600 = vunpack.c.l.b16 %v184
      %v601 = vunpack.c.l.b16 %v185
      %v602 = vunpack.c.l.b16 %v186
      %v603 = vunpack.c.l.b16 %v187
      %v604 = vunpack.c.l.b16 %v188
      %v605 = vunpack.c.l.b16 %v189
      %v606 = vunpack.c.l.b16 %v190
      %v607 = vunpack.c.l.b16 %v191
      %v608 = vunpack.c.l.b16 %v192
      %v609 = vunpack.c.l.b16 %v193
      %v610 = vunpack.c.l.b16 %v194
      %v611 = vunpack.c.l.b16 %v195
      %v612 = vunpack.c.l.b16 %v196
      %v613 = vunpack.c.l.b16 %v197
      %v614 = vunpack.c.l.b16 %v198
      %v615 = vunpack.c.l.b16 %v199
      %v616 = vunpack.c.l.b16 %v200
      %v617 = vunpack.c.l.b16 %v201
      %v618 = vunpack.c.l.b16 %v202
      %v619 = vunpack.c.l.b16 %v203
      %v620 = vunpack.c.l.b16 %v204
      %v621 = vunpack.c.l.b16 %v205
      %v622 = vunpack.c.l.b16 %v206
      %v623 = vunpack.c.l.b16 %v207
      %v624 = vunpack.c.l.b16 %v208
      %v625 = vunpack.c.l.b16 %v209
      %v626 = vunpack.c.l.b16 %v210
      %v627 = vunpack.c.l.b16 %v211
      %v628 = vunpack.c.l.b16 %v212
      %v629 = vunpack.c.l.b16 %v213
      %v630 = vunpack.c.l.b16 %v214
      %v631 = vunpack.c.l.b16 %v215
      %v632 = vunpack.c.l.b16 %v216
      %v633 = vunpack.c.l.b16 %v217
      %v634 = vunpack.c.l.b16 %v218
      %v635 = vunpack.c.l.b16 %v219
      %v636 = vunpack.c.l.b16 %v220
      %v637 = vunpack.c.l.b16 %v221
      %v638 = vunpack.c.l.b16 %v222
      %v639 = vunpack.c.l.b16 %v223
      %v640 = vunpack.c.l.b16 %v224
      %v641 = vunpack.c.l.b16 %v225
      %v642 = vunpack.c.l.b16 %v226
      %v643 = vunpack.c.l.b16 %v227
      %v644 = vunpack.c.l.b16 %v228
      %v645 = vunpack.c.l.b16 %v229
      %v646 = vunpack.c.l.b16 %v230
      %v647 = vunpack.c.l.b16 %v231
      %v648 = vunpack.c.l.b16 %v232
      %v649 = vunpack.c.l.b16 %v233
      %v650 = vunpack.c.l.b16 %v234
      %v651 = vunpack.c.l.b16 %v235
      %v652 = vunpack.c.l.b16 %v236
      %v653 = vunpack.c.l.b16 %v237
      %v654 = vunpack.c.l.b16 %v238
      %v655 = vunpack.c.l.b16 %v239
      %v656 = vunpack.c.l.b16 %v240
      %v657 = vunpack.c.l.b16 %v241
      %v658 = vunpack.c.l.b16 %v242
      %v659 = vunpack.c.l.b16 %v243
      %v660 = vunpack.c.l.b16 %v244
      %v661 = vunpack.c.l.b16 %v245
      %v662 = vunpack.c.l.b16 %v246
      %v663 = vunpack.c.l.b16 %v247
      %v664 = vunpack.c.l.b16 %v248
      %v665 = vunpack.c.l.b16 %v249
      %v666 = vunpack.c.l.b16 %v250
      %v667 = vunpack.c.l.b16 %v251
      %v668 = vunpack.c.l.b16 %v252
      %v669 = vunpack.c.l.b16 %v253
      %v670 = vunpack.c.l.b16 %v254
      %v671 = vunpack.c.l.b16 %v255
      %v672 = vunpack.c.l.b16 %v256
      %v673 = vunpack.c.l.b16 %v257
      %v674 = vunpack.c.l.b16 %v258
      %v675 = vunpack.c.l.b16 %v259
      %v676 = vunpack.c.l.b16 %v260
      %v677 = vunpack.c.l.b16 %v261
      %v678 = vunpack.c.l.b16 %v262
      %v679 = vunpack.c.l.b16 %v263
      %v680 = vunpack.c.l.b16 %v264
      %v681 = vunpack.c.l.b16 %v265
      %v682 = vunpack.c.l.b16 %v266
      %v683 = vunpack.c.l.b16 %v267
      %v684 = vunpack.c.l.b16 %v268
      %v685 = vunpack.c.l.b16 %v269
      %v686 = vunpack.c.l.b16 %v270
      %v687 = vunpack.c.l.b16 %v271
      %v688 = vunpack.c.l.b16 %v272
      %v689 = vunpack.c.l.b16 %v273
      %v690 = vunpack.c.l.b16 %v274
      %v691 = vunpack.c.l.b16 %v275
      %v692 = vunpack.c.l.b16 %v276
      %v693 = vunpack.c.l.b16 %v277
      %v694 = vunpack.c.l.b16 %v278
      %v695 = vunpack.c.l.b16 %v279
      %v696 = vunpack.c.l.b16 %v280
      %v697 = vunpack.c.l.b16 %v281
      %v698 = vunpack.c.l.b16 %v282
      %v699 = vunpack.c.l.b16 %v283
      %v700 = vunpack.c.l.b16 %v284
      %v701 = vunpack.c.l.b16 %v285
      %v702 = vunpack.c.l.b16 %v286
      %v703 = vunpack.c.l.b16 %v287
      %v704 = vunpack.c.l.b16 %v288
      %v705 = vunpack.c.l.b16 %v289
      %v706 = vunpack.c.l.b16 %v290
      %v707 = vunpack.c.l.b16 %v291
      %v708 = vunpack.c.l.b16 %v292
      %v709 = vunpack.c.l.b16 %v293
      %v710 = vunpack.c.l.b16 %v294
      %v711 = vunpack.c.l.b16 %v295
      %v712 = vunpack.c.l.b16 %v296
      %v713 = vunpack.c.l.b16 %v297
      %v714 = vunpack.c.l.b16 %v298
      %v715 = vunpack.c.l.b16 %v299
      %v716 = vunpack.c.l.b16 %v300
      %v717 = vunpack.c.l.b16 %v301
      %v718 = vunpack.c.l.b16 %v302
      %v719 = vunpack.c.l.b16 %v303
      %v720 = vunpack.c.l.b16 %v304
      %v721 = vpack.c.b16 %v594, %v593
      %v722 = vpack.c.b16 %v596, %v595
      %v723 = vpack.c.b16 %v598, %v597
      %v724 = vpack.c.b16 %v600, %v599
      %v725 = vpack.c.b16 %v602, %v601
      %v726 = vpack.c.b16 %v604, %v603
      %v727 = vpack.c.b16 %v606, %v605
      %v728 = vpack.c.b16 %v608, %v607
      %v729 = vpack.c.b16 %v610, %v609
      %v730 = vpack.c.b16 %v612, %v611
      %v731 = vpack.c.b16 %v614, %v613
      %v732 = vpack.c.b16 %v616, %v615
      %v733 = vpack.c.b16 %v618, %v617
      %v734 = vpack.c.b16 %v620, %v619
      %v735 = vpack.c.b16 %v622, %v621
      %v736 = vpack.c.b16 %v624, %v623
      %v737 = vpack.c.b16 %v626, %v625
      %v738 = vpack.c.b16 %v628, %v627
      %v739 = vpack.c.b16 %v630, %v629
      %v740 = vpack.c.b16 %v632, %v631
      %v741 = vpack.c.b16 %v634, %v633
      %v742 = vpack.c.b16 %v636, %v635
      %v743 = vpack.c.b16 %v638, %v637
      %v744 = vpack.c.b16 %v640, %v639
      %v745 = vpack.c.b16 %v642, %v641
      %v746 = vpack.c.b16 %v644, %v643
      %v747 = vpack.c.b16 %v646, %v645
      %v748 = vpack.c.b16 %v648, %v647
      %v749 = vpack.c.b16 %v650, %v649
      %v750 = vpack.c.b16 %v652, %v651
      %v751 = vpack.c.b16 %v654, %v653
      %v752 = vpack.c.b16 %v656, %v655
      %v753 = vpack.c.b16 %v658, %v657
      %v754 = vpack.c.b16 %v660, %v659
      %v755 = vpack.c.b16 %v662, %v661
      %v756 = vpack.c.b16 %v664, %v663
      %v757 = vpack.c.b16 %v666, %v665
      %v758 = vpack.c.b16 %v668, %v667
      %v759 = vpack.c.b16 %v670, %v669
      %v760 = vpack.c.b16 %v672, %v671
      %v761 = vpack.c.b16 %v674, %v673
      %v762 = vpack.c.b16 %v676, %v675
      %v763 = vpack.c.b16 %v678, %v677
      %v764 = vpack.c.b16 %v680, %v679
      %v765 = vpack.c.b16 %v682, %v681
      %v766 = vpack.c.b16 %v684, %v683
      %v767 = vpack.c.b16 %v686, %v685
      %v768 = vpack.c.b16 %v688, %v687
      %v769 = vpack.c.b16 %v690, %v689
      %v770 = vpack.c.b16 %v692, %v691
      %v771 = vpack.c.b16 %v694, %v693
      %v772 = vpack.c.b16 %v696, %v695
      %v773 = vpack.c.b16 %v698, %v697
      %v774 = vpack.c.b16 %v700, %v699
      %v775 = vpack.c.b16 %v702, %v701
      %v776 = vpack.c.b16 %v704, %v703
      %v777 = vpack.c.b16 %v706, %v705
      %v778 = vpack.c.b16 %v708, %v707
      %v779 = vpack.c.b16 %v710, %v709
      %v780 = vpack.c.b16 %v712, %v711
      %v781 = vpack.c.b16 %v714, %v713
      %v782 = vpack.c.b16 %v716, %v715
      %v783 = vpack.c.b16 %v718, %v717
      %v784 = vpack.c.b16 %v720, %v719
      %849 = vmatprep.subr.bf16.mxu0 0
      %850 = vmatpush1.bf16.msra.mxu0 %v728
      %851 = vmatprep.subr.bf16.mxu0 0
      %852 = vmatpush1.bf16.msra.mxu0 %v727
      %853 = vmatprep.subr.bf16.mxu0 0
      %854 = vmatpush1.bf16.msra.mxu0 %v726
      %855 = vmatprep.subr.bf16.mxu0 0
      %856 = vmatpush1.bf16.msra.mxu0 %v725
      %857 = vmatprep.subr.bf16.mxu0 0
      %858 = vmatpush1.bf16.msra.mxu0 %v724
      %859 = vmatprep.subr.bf16.mxu0 0
      %860 = vmatpush1.bf16.msra.mxu0 %v723
      %861 = vmatprep.subr.bf16.mxu0 0
      %862 = vmatpush1.bf16.msra.mxu0 %v722
      %863 = vmatprep.subr.bf16.mxu0 0
      %864 = vmatpush1.bf16.msra.mxu0 %v721
      %865 = vmatprep.subr.bf16.mxu0 0
      %866 = vmatpush2.bf16.msra.mxu0 %v736
      %867 = vmatprep.subr.bf16.mxu0 0
      %868 = vmatpush2.bf16.msra.mxu0 %v735
      %869 = vmatprep.subr.bf16.mxu0 0
      %870 = vmatpush2.bf16.msra.mxu0 %v734
      %871 = vmatprep.subr.bf16.mxu0 0
      %872 = vmatpush2.bf16.msra.mxu0 %v733
      %873 = vmatprep.subr.bf16.mxu0 0
      %874 = vmatpush2.bf16.msra.mxu0 %v732
      %875 = vmatprep.subr.bf16.mxu0 0
      %876 = vmatpush2.bf16.msra.mxu0 %v731
      %877 = vmatprep.subr.bf16.mxu0 0
      %878 = vmatpush2.bf16.msra.mxu0 %v730
      %879 = vmatprep.subr.bf16.mxu0 0
      %880 = vmatpush2.bf16.msra.mxu0 %v729
      %881 = vmatprep.mubr.bf16.mxu0 %v402
      %882 = vmatmul.mubr.bf16.gmra.mxu0 %v401
      %v883 = vpop.f32.mrf.mxu0
      %v884 = vadd.f32 0.0, %v883
      %v885 = vpop.f32.mrf.mxu0
      %v886 = vpop.f32.mrf.mxu0
      %v887 = vadd.f32 0.0, %v886
      %v888 = vpop.f32.mrf.mxu0
      %889 = vmatprep.mubr.bf16.mxu0 %v410
      %890 = vmatmul.mubr.bf16.gmra.mxu0 %v409
      %v891 = vpop.f32.mrf.mxu0
      %v892 = vadd.f32 0.0, %v891
      %v893 = vpop.f32.mrf.mxu0
      %v894 = vpop.f32.mrf.mxu0
      %v895 = vadd.f32 0.0, %v894
      %v896 = vpop.f32.mrf.mxu0
      %897 = vmatprep.mubr.bf16.mxu0 %v418
      %898 = vmatmul.mubr.bf16.gmra.mxu0 %v417
      %v899 = vpop.f32.mrf.mxu0
      %v900 = vadd.f32 0.0, %v899
      %v901 = vpop.f32.mrf.mxu0
      %v902 = vpop.f32.mrf.mxu0
      %v903 = vadd.f32 0.0, %v902
      %v904 = vpop.f32.mrf.mxu0
      %905 = vmatprep.mubr.bf16.mxu0 %v426
      %906 = vmatmul.mubr.bf16.gmra.mxu0 %v425
      %v907 = vpop.f32.mrf.mxu0
      %v908 = vadd.f32 0.0, %v907
      %v909 = vpop.f32.mrf.mxu0
      %v910 = vpop.f32.mrf.mxu0
      %v911 = vadd.f32 0.0, %v910
      %v912 = vpop.f32.mrf.mxu0
      %913 = vdwg.mxu0
      %914 = vmatprep.subr.bf16.mxu0 0
      %915 = vmatpush1.bf16.msra.mxu0 %v744
      %916 = vmatprep.subr.bf16.mxu0 0
      %917 = vmatpush1.bf16.msra.mxu0 %v743
      %918 = vmatprep.subr.bf16.mxu0 0
      %919 = vmatpush1.bf16.msra.mxu0 %v742
      %920 = vmatprep.subr.bf16.mxu0 0
      %921 = vmatpush1.bf16.msra.mxu0 %v741
      %922 = vmatprep.subr.bf16.mxu0 0
      %923 = vmatpush1.bf16.msra.mxu0 %v740
      %924 = vmatprep.subr.bf16.mxu0 0
      %925 = vmatpush1.bf16.msra.mxu0 %v739
      %926 = vmatprep.subr.bf16.mxu0 0
      %927 = vmatpush1.bf16.msra.mxu0 %v738
      %928 = vmatprep.subr.bf16.mxu0 0
      %929 = vmatpush1.bf16.msra.mxu0 %v737
      %930 = vmatprep.subr.bf16.mxu0 0
      %931 = vmatpush2.bf16.msra.mxu0 %v752
      %932 = vmatprep.subr.bf16.mxu0 0
      %933 = vmatpush2.bf16.msra.mxu0 %v751
      %934 = vmatprep.subr.bf16.mxu0 0
      %935 = vmatpush2.bf16.msra.mxu0 %v750
      %936 = vmatprep.subr.bf16.mxu0 0
      %937 = vmatpush2.bf16.msra.mxu0 %v749
      %938 = vmatprep.subr.bf16.mxu0 0
      %939 = vmatpush2.bf16.msra.mxu0 %v748
      %940 = vmatprep.subr.bf16.mxu0 0
      %941 = vmatpush2.bf16.msra.mxu0 %v747
      %942 = vmatprep.subr.bf16.mxu0 0
      %943 = vmatpush2.bf16.msra.mxu0 %v746
      %944 = vmatprep.subr.bf16.mxu0 0
      %945 = vmatpush2.bf16.msra.mxu0 %v745
      %946 = vmatprep.mubr.bf16.mxu0 %v404
      %947 = vmatmul.mubr.bf16.gmra.mxu0 %v403
      %v948 = vpop.f32.mrf.mxu0
      %v949 = vadd.f32 %v884, %v948
      %v950 = vpop.f32.mrf.mxu0
      %v951 = vpop.f32.mrf.mxu0
      %v952 = vadd.f32 %v887, %v951
      %v953 = vpop.f32.mrf.mxu0
      %954 = vmatprep.mubr.bf16.mxu0 %v412
      %955 = vmatmul.mubr.bf16.gmra.mxu0 %v411
      %v956 = vpop.f32.mrf.mxu0
      %v957 = vadd.f32 %v892, %v956
      %v958 = vpop.f32.mrf.mxu0
      %v959 = vpop.f32.mrf.mxu0
      %v960 = vadd.f32 %v895, %v959
      %v961 = vpop.f32.mrf.mxu0
      %962 = vmatprep.mubr.bf16.mxu0 %v420
      %963 = vmatmul.mubr.bf16.gmra.mxu0 %v419
      %v964 = vpop.f32.mrf.mxu0
      %v965 = vadd.f32 %v900, %v964
      %v966 = vpop.f32.mrf.mxu0
      %v967 = vpop.f32.mrf.mxu0
      %v968 = vadd.f32 %v903, %v967
      %v969 = vpop.f32.mrf.mxu0
      %970 = vmatprep.mubr.bf16.mxu0 %v428
      %971 = vmatmul.mubr.bf16.gmra.mxu0 %v427
      %v972 = vpop.f32.mrf.mxu0
      %v973 = vadd.f32 %v908, %v972
      %v974 = vpop.f32.mrf.mxu0
      %v975 = vpop.f32.mrf.mxu0
      %v976 = vadd.f32 %v911, %v975
      %v977 = vpop.f32.mrf.mxu0
      %978 = vdwg.mxu0
      %979 = vmatprep.subr.bf16.mxu0 0
      %980 = vmatpush1.bf16.msra.mxu0 %v760
      %981 = vmatprep.subr.bf16.mxu0 0
      %982 = vmatpush1.bf16.msra.mxu0 %v759
      %983 = vmatprep.subr.bf16.mxu0 0
      %984 = vmatpush1.bf16.msra.mxu0 %v758
      %985 = vmatprep.subr.bf16.mxu0 0
      %986 = vmatpush1.bf16.msra.mxu0 %v757
      %987 = vmatprep.subr.bf16.mxu0 0
      %988 = vmatpush1.bf16.msra.mxu0 %v756
      %989 = vmatprep.subr.bf16.mxu0 0
      %990 = vmatpush1.bf16.msra.mxu0 %v755
      %991 = vmatprep.subr.bf16.mxu0 0
      %992 = vmatpush1.bf16.msra.mxu0 %v754
      %993 = vmatprep.subr.bf16.mxu0 0
      %994 = vmatpush1.bf16.msra.mxu0 %v753
      %995 = vmatprep.subr.bf16.mxu0 0
      %996 = vmatpush2.bf16.msra.mxu0 %v768
      %997 = vmatprep.subr.bf16.mxu0 0
      %998 = vmatpush2.bf16.msra.mxu0 %v767
      %999 = vmatprep.subr.bf16.mxu0 0
      %1000 = vmatpush2.bf16.msra.mxu0 %v766
      %1001 = vmatprep.subr.bf16.mxu0 0
      %1002 = vmatpush2.bf16.msra.mxu0 %v765
      %1003 = vmatprep.subr.bf16.mxu0 0
      %1004 = vmatpush2.bf16.msra.mxu0 %v764
      %1005 = vmatprep.subr.bf16.mxu0 0
      %1006 = vmatpush2.bf16.msra.mxu0 %v763
      %1007 = vmatprep.subr.bf16.mxu0 0
      %1008 = vmatpush2.bf16.msra.mxu0 %v762
      %1009 = vmatprep.subr.bf16.mxu0 0
      %1010 = vmatpush2.bf16.msra.mxu0 %v761
      %1011 = vmatprep.mubr.bf16.mxu0 %v406
      %1012 = vmatmul.mubr.bf16.gmra.mxu0 %v405
      %v1013 = vpop.f32.mrf.mxu0
      %v1014 = vadd.f32 %v949, %v1013
      %v1015 = vpop.f32.mrf.mxu0
      %v1016 = vpop.f32.mrf.mxu0
      %v1017 = vadd.f32 %v952, %v1016
      %v1018 = vpop.f32.mrf.mxu0
      %1019 = vmatprep.mubr.bf16.mxu0 %v414
      %1020 = vmatmul.mubr.bf16.gmra.mxu0 %v413
      %v1021 = vpop.f32.mrf.mxu0
      %v1022 = vadd.f32 %v957, %v1021
      %v1023 = vpop.f32.mrf.mxu0
      %v1024 = vpop.f32.mrf.mxu0
      %v1025 = vadd.f32 %v960, %v1024
      %v1026 = vpop.f32.mrf.mxu0
      %1027 = vmatprep.mubr.bf16.mxu0 %v422
      %1028 = vmatmul.mubr.bf16.gmra.mxu0 %v421
      %v1029 = vpop.f32.mrf.mxu0
      %v1030 = vadd.f32 %v965, %v1029
      %v1031 = vpop.f32.mrf.mxu0
      %v1032 = vpop.f32.mrf.mxu0
      %v1033 = vadd.f32 %v968, %v1032
      %v1034 = vpop.f32.mrf.mxu0
      %1035 = vmatprep.mubr.bf16.mxu0 %v430
      %1036 = vmatmul.mubr.bf16.gmra.mxu0 %v429
      %v1037 = vpop.f32.mrf.mxu0
      %v1038 = vadd.f32 %v973, %v1037
      %v1039 = vpop.f32.mrf.mxu0
      %v1040 = vpop.f32.mrf.mxu0
      %v1041 = vadd.f32 %v976, %v1040
      %v1042 = vpop.f32.mrf.mxu0
      %1043 = vdwg.mxu0
      %1044 = vmatprep.subr.bf16.mxu0 0
      %1045 = vmatpush1.bf16.msra.mxu0 %v776
      %1046 = vmatprep.subr.bf16.mxu0 0
      %1047 = vmatpush1.bf16.msra.mxu0 %v775
      %1048 = vmatprep.subr.bf16.mxu0 0
      %1049 = vmatpush1.bf16.msra.mxu0 %v774
      %1050 = vmatprep.subr.bf16.mxu0 0
      %1051 = vmatpush1.bf16.msra.mxu0 %v773
      %1052 = vmatprep.subr.bf16.mxu0 0
      %1053 = vmatpush1.bf16.msra.mxu0 %v772
      %1054 = vmatprep.subr.bf16.mxu0 0
      %1055 = vmatpush1.bf16.msra.mxu0 %v771
      %1056 = vmatprep.subr.bf16.mxu0 0
      %1057 = vmatpush1.bf16.msra.mxu0 %v770
      %1058 = vmatprep.subr.bf16.mxu0 0
      %1059 = vmatpush1.bf16.msra.mxu0 %v769
      %1060 = vmatprep.subr.bf16.mxu0 0
      %1061 = vmatpush2.bf16.msra.mxu0 %v784
      %1062 = vmatprep.subr.bf16.mxu0 0
      %1063 = vmatpush2.bf16.msra.mxu0 %v783
      %1064 = vmatprep.subr.bf16.mxu0 0
      %1065 = vmatpush2.bf16.msra.mxu0 %v782
      %1066 = vmatprep.subr.bf16.mxu0 0
      %1067 = vmatpush2.bf16.msra.mxu0 %v781
      %1068 = vmatprep.subr.bf16.mxu0 0
      %1069 = vmatpush2.bf16.msra.mxu0 %v780
      %1070 = vmatprep.subr.bf16.mxu0 0
      %1071 = vmatpush2.bf16.msra.mxu0 %v779
      %1072 = vmatprep.subr.bf16.mxu0 0
      %1073 = vmatpush2.bf16.msra.mxu0 %v778
      %1074 = vmatprep.subr.bf16.mxu0 0
      %1075 = vmatpush2.bf16.msra.mxu0 %v777
      %1076 = vmatprep.mubr.bf16.mxu0 %v408
      %1077 = vmatmul.mubr.bf16.gmra.mxu0 %v407
      %v1078 = vpop.f32.mrf.mxu0
      %v1079 = vadd.f32 %v1014, %v1078
      %v1080 = vpop.f32.mrf.mxu0
      %v1081 = vpop.f32.mrf.mxu0
      %v1082 = vadd.f32 %v1017, %v1081
      %v1083 = vpop.f32.mrf.mxu0
      %1084 = vmatprep.mubr.bf16.mxu0 %v416
      %1085 = vmatmul.mubr.bf16.gmra.mxu0 %v415
      %v1086 = vpop.f32.mrf.mxu0
      %v1087 = vadd.f32 %v1022, %v1086
      %v1088 = vpop.f32.mrf.mxu0
      %v1089 = vpop.f32.mrf.mxu0
      %v1090 = vadd.f32 %v1025, %v1089
      %v1091 = vpop.f32.mrf.mxu0
      %1092 = vmatprep.mubr.bf16.mxu0 %v424
      %1093 = vmatmul.mubr.bf16.gmra.mxu0 %v423
      %v1094 = vpop.f32.mrf.mxu0
      %v1095 = vadd.f32 %v1030, %v1094
      %v1096 = vpop.f32.mrf.mxu0
      %v1097 = vpop.f32.mrf.mxu0
      %v1098 = vadd.f32 %v1033, %v1097
      %v1099 = vpop.f32.mrf.mxu0
      %1100 = vmatprep.mubr.bf16.mxu0 %v432
      %1101 = vmatmul.mubr.bf16.gmra.mxu0 %v431
      %v1102 = vpop.f32.mrf.mxu0
      %v1103 = vadd.f32 %v1038, %v1102
      %v1104 = vpop.f32.mrf.mxu0
      %v1105 = vpop.f32.mrf.mxu0
      %v1106 = vadd.f32 %v1041, %v1105
      %v1107 = vpop.f32.mrf.mxu0
      %1108 = vdwg.mxu0
      %v1109 = vadd.f32 %v1079, %v1082
      %v1110 = vadd.f32 %v1109, %v1087
      %v1111 = vadd.f32 %v1110, %v1090
      %v1112 = vadd.f32 %v1111, %v1095
      %v1113 = vadd.f32 %v1112, %v1098
      %v1114 = vadd.f32 %v1113, %v1103
      %v1115 = vadd.f32 %v1114, %v1106
      %v1116 = vrot.slane %v1115, 4
      %v1117 = vadd.f32 %v1115, %v1116
      %v1118 = vrot.slane %v1117, 2
      %v1119 = vadd.f32 %v1117, %v1118
      %v1120 = vrot.slane %v1119, 1
      %v1121 = vadd.f32 %v1119, %v1120
      %v1122 = vrcp.pop 64.0
      %v1123 = vmul.f32 %v1121, %v1122
      %v1124 = vsub.f32 %v1079, %v1123
      %v1125 = vsub.f32 %v1082, %v1123
      %v1126 = vsub.f32 %v1087, %v1123
      %v1127 = vsub.f32 %v1090, %v1123
      %v1128 = vsub.f32 %v1095, %v1123
      %v1129 = vsub.f32 %v1098, %v1123
      %v1130 = vsub.f32 %v1103, %v1123
      %v1131 = vsub.f32 %v1106, %v1123
      %v1132 = vmul.f32 %v1124, %v1124
      %v1133 = vmul.f32 %v1125, %v1125
      %v1134 = vmul.f32 %v1126, %v1126
      %v1135 = vmul.f32 %v1127, %v1127
      %v1136 = vmul.f32 %v1128, %v1128
      %v1137 = vmul.f32 %v1129, %v1129
      %v1138 = vmul.f32 %v1130, %v1130
      %v1139 = vmul.f32 %v1131, %v1131
      %v1140 = vadd.f32 %v1132, %v1133
      %v1141 = vadd.f32 %v1140, %v1134
      %v1142 = vadd.f32 %v1141, %v1135
      %v1143 = vadd.f32 %v1142, %v1136
      %v1144 = vadd.f32 %v1143, %v1137
      %v1145 = vadd.f32 %v1144, %v1138
      %v1146 = vadd.f32 %v1145, %v1139
      %v1147 = vrot.slane %v1146, 4
      %v1148 = vadd.f32 %v1146, %v1147
      %v1149 = vrot.slane %v1148, 2
      %v1150 = vadd.f32 %v1148, %v1149
      %v1151 = vrot.slane %v1150, 1
      %v1152 = vadd.f32 %v1150, %v1151
      %v1153 = vmul.f32 %v1152, %v1122
      %v1154 = vadd.f32 %v1153, 1e-05
      %v1155 = vrsqrt.pop %v1154
      %v1156 = vmul.f32 %v1124, %v1155
      %v1157 = vmul.f32 %v1125, %v1155
      %v1158 = vmul.f32 %v1126, %v1155
      %v1159 = vmul.f32 %v1127, %v1155
      %v1160 = vmul.f32 %v1128, %v1155
      %v1161 = vmul.f32 %v1129, %v1155
      %v1162 = vmul.f32 %v1130, %v1155
      %v1163 = vmul.f32 %v1131, %v1155
      %vm1164 = vcmp.ge.f32.partialorder %v1156, 0.0
      %vm1165 = vcmp.ge.f32.partialorder %v1157, 0.0
      %vm1166 = vcmp.ge.f32.partialorder %v1158, 0.0
      %vm1167 = vcmp.ge.f32.partialorder %v1159, 0.0
      %vm1168 = vcmp.ge.f32.partialorder %v1160, 0.0
      %vm1169 = vcmp.ge.f32.partialorder %v1161, 0.0
      %vm1170 = vcmp.ge.f32.partialorder %v1162, 0.0
      %vm1171 = vcmp.ge.f32.partialorder %v1163, 0.0
      %v1172 = vmul.f32 %v1156, 0.2
      %v1173 = vmul.f32 %v1157, 0.2
      %v1174 = vmul.f32 %v1158, 0.2
      %v1175 = vmul.f32 %v1159, 0.2
      %v1176 = vmul.f32 %v1160, 0.2
      %v1177 = vmul.f32 %v1161, 0.2
      %v1178 = vmul.f32 %v1162, 0.2
      %v1179 = vmul.f32 %v1163, 0.2
      %v1180 = vsel %vm1164, %v1156, %v1172
      %v1181 = vsel %vm1165, %v1157, %v1173
      %v1182 = vsel %vm1166, %v1158, %v1174
      %v1183 = vsel %vm1167, %v1159, %v1175
      %v1184 = vsel %vm1168, %v1160, %v1176
      %v1185 = vsel %vm1169, %v1161, %v1177
      %v1186 = vsel %vm1170, %v1162, %v1178
      %v1187 = vsel %vm1171, %v1163, %v1179
      %v1188 = vpack.c.bf16 %v1181, %v1180
      %v1189 = vpack.c.bf16 %v1183, %v1182
      %v1190 = vpack.c.bf16 %v1185, %v1184
      %v1191 = vpack.c.bf16 %v1187, %v1186
      %v1196 = vunpack.c.l.b16 %v1188
      %v1197 = vunpack.c.h.b16 %v1188
      %v1198 = vunpack.c.l.b16 %v1189
      %v1199 = vunpack.c.h.b16 %v1189
      %v1200 = vunpack.c.l.b16 %v1190
      %v1201 = vunpack.c.h.b16 %v1190
      %v1202 = vunpack.c.l.b16 %v1191
      %v1203 = vunpack.c.h.b16 %v1191
      %v1204 = vpack.c.b16 %v1196, %v1196
      %v1205 = vpack.c.b16 %v1197, %v1197
      %v1206 = vpack.c.b16 %v1198, %v1198
      %v1207 = vpack.c.b16 %v1199, %v1199
      %v1208 = vpack.c.b16 %v1200, %v1200
      %v1209 = vpack.c.b16 %v1201, %v1201
      %v1210 = vpack.c.b16 %v1202, %v1202
      %v1211 = vpack.c.b16 %v1203, %v1203
      %1220 = vst [vmem:[%s143] sm:$0xf] %v1204
      %1221 = vst [vmem:[%s143 + $0x4] sm:$0xf] %v1205
      %1222 = vst [vmem:[%s143 + $0x8] sm:$0xf] %v1206
      %1223 = vst [vmem:[%s143 + $0xc] sm:$0xf] %v1207
      %1224 = vst [vmem:[%s143 + $0x10] sm:$0xf] %v1208
      %1225 = vst [vmem:[%s143 + $0x14] sm:$0xf] %v1209
      %1226 = vst [vmem:[%s143 + $0x18] sm:$0xf] %v1210
      %1227 = vst [vmem:[%s143 + $0x1c] sm:$0xf] %v1211
      %p1228 = scmp.lt.s32.totalorder %s13, 1
      %s1229 = scalar_select %p1228, %s13, 1
      %s1230 = smul.addr %s1229, 8
      %s1231 = smul.addr %s1230, 4
      %s1232 = scalar_lea.vmem %s2, %s1231
      // Predicated region
      $region29: #{discriminator_forward.5} parent=27 // pred_check
        %p1233 = pneg %p78
      $region30: #{discriminator_forward.5} parent=27 // pred_check_branch
        %1235 = sbr.rel (%p1233) target = $region32
      $region31: #{discriminator_forward.5} parent=27 // pred_region
        _
      $region32: #{discriminator_forward.5} parent=27 // pred_fallthru
        _
    $region28: #{discriminator_forward.5} parent=5 // pred_fallthru
      _
    %p1236 = scmp.le.s32.totalorder 2, %s8
    // Predicated region
    $region33: #{discriminator_forward.5} parent=5 // pred_check
      %p1237 = pneg %p1236
    $region34: #{discriminator_forward.5} parent=5 // pred_check_branch
      %1239 = sbr.rel (%p1237) target = $region36
    $region35: #{discriminator_forward.5} parent=5 // pred_region
      %s1240 = ssub.s32 %s8, 2
      // Predicated region
      $region37: #{discriminator_forward.5} parent=35 // pred_check
        %p1241 = pneg %p84
      $region38: #{discriminator_forward.5} parent=35 // pred_check_branch
        %1243 = sbr.rel (%p1241) target = $region40
      $region39: #{discriminator_forward.5} parent=35 // pred_region
        %p1244 = scmp.lt.s32.totalorder %s14, 1
        %s1245 = scalar_select %p1244, %s14, 1
        %s1246 = smul.addr %s1245, 8
        %s1247 = smul.addr %s1246, 4
        %s1248 = scalar_lea.vmem %s2, %s1247
      $region40: #{discriminator_forward.5} parent=35 // pred_fallthru
        _
    $region36: #{discriminator_forward.5} parent=5 // pred_fallthru
      _
  $region6: #{discriminator_forward.5} parent=0 // loop_footer
    %s12 = sadd.s32 1, %s8
  $region7: #{discriminator_forward.5} parent=0 // loop_footer_branch
    %7 = sbr.rel target = $region3
  $region8: #{discriminator_forward.5} parent=0 // loop_exit
    _

// kernel: discriminator_forward.6
$region0: #{discriminator_forward.6}
  #allocation0 [shape = 'u32[]', space=smem, size = 0x4, offset = 0x4, fixed_abs, tag = 'smem constant byte address 0x4 - core index']
  #allocation1 [shape = 'u32[144,128]{1,0:T(1,128)}', space=vmem, size = 0x12000, scoped, tag = 'internal scratch']
  %s0 = inlined_call_operand.vmem [shape: bf16[2,16,2048], index: 0, kind: input, shape index: {}]
  %s1 = inlined_call_operand.vmem [shape: bf16[2048,256], index: 1, kind: input, shape index: {}]
  %s2 = inlined_call_operand.vmem [shape: bf16[2,16,256], index: 2, kind: output, shape index: {}]
  %s3 = sld [smem:[#allocation0]]
  $region41: #{discriminator_forward.6} parent=0
    _
  %s5 = ssub.s32 1, %s3
  %s6 = scalar_select 0, %s5, %s3
  loop: start=0, step=1, limit=4
  $region2: #{discriminator_forward.6} parent=0 // loop_pre_header
    _
  $region3: #{discriminator_forward.6} parent=0 // loop_header
    %s8 = sphi 0, %s12
    %p9 = scmp.ge.s32.totalorder %s8, 4
    %s18 = sphi 0, %s20
    %s21 = sphi 0, %s18
    %s22 = sphi 0, %s21
    %s38 = sphi 0, %s22
    %s42 = sphi 0, %s42
    %s44 = sphi 0, %s42
    %s45 = sphi 0, %s44
    %s59 = sphi 0, %s45
    %s65 = sphi 0, %s67
    %s68 = sphi 0, %s65
    %s69 = sphi 0, %s68
    %s85 = sphi 0, %s69
  $region4: #{discriminator_forward.6} parent=0 // loop_header_branch
    %11 = sbr.rel (%p9) target = $region8
  $region5: #{discriminator_forward.6} parent=0 // loop_body
    %s13 = ssub.s32 %s8, 1
    %s14 = ssub.s32 %s8, 2
    %s15 = sadd.s32 %s8, 1
    %s16 = ssub.s32 %s8, %s15
    %p17 = scmp.eq.s32.totalorder %s16, 0
    %s19 = sadd.s32 %s18, 1
    %s20 = scalar_select %p17, %s18, %s19
    %p23 = pneg %p17
    %p24 = scmp.eq.s32.totalorder %s8, 1
    %p25 = por %p23, %p24
    %p26 = scmp.ne.s32.totalorder %s18, %s21
    %p27 = scmp.eq.s32.totalorder %s8, 0
    %p28 = por %p26, %p27
    %p29 = scmp.ne.s32.totalorder %s18, %s21
    %p30 = scmp.eq.s32.totalorder %s13, 1
    %p31 = por %p29, %p30
    %p32 = scmp.ne.s32.totalorder %s21, %s22
    %p33 = scmp.eq.s32.totalorder %s13, 0
    %p34 = por %p32, %p33
    %p35 = scmp.ne.s32.totalorder %s21, %s22
    %p36 = scmp.eq.s32.totalorder %s14, 1
    %p37 = por %p35, %p36
    %p39 = scmp.ne.s32.totalorder %s22, %s38
    %p40 = scmp.eq.s32.totalorder %s14, 0
    %p41 = por %p39, %p40
    %s43 = sadd.s32 %s42, 1
    %p46 = scmp.eq.s32.totalorder %s8, 1
    %p47 = scmp.ne.s32.totalorder %s42, %s44
    %p48 = scmp.eq.s32.totalorder %s8, 0
    %p49 = por %p47, %p48
    %p50 = scmp.ne.s32.totalorder %s42, %s44
    %p51 = scmp.eq.s32.totalorder %s13, 1
    %p52 = por %p50, %p51
    %p53 = scmp.ne.s32.totalorder %s44, %s45
    %p54 = scmp.eq.s32.totalorder %s13, 0
    %p55 = por %p53, %p54
    %p56 = scmp.ne.s32.totalorder %s44, %s45
    %p57 = scmp.eq.s32.totalorder %s14, 1
    %p58 = por %p56, %p57
    %p60 = scmp.ne.s32.totalorder %s45, %s59
    %p61 = scmp.eq.s32.totalorder %s14, 0
    %p62 = por %p60, %p61
    %s63 = ssub.s32 %s8, %s15
    %p64 = scmp.eq.s32.totalorder %s63, 0
    %s66 = sadd.s32 %s65, 1
    %s67 = scalar_select %p64, %s65, %s66
    %p70 = pneg %p64
    %p71 = scmp.eq.s32.totalorder %s8, 1
    %p72 = por %p70, %p71
    %p73 = scmp.ne.s32.totalorder %s65, %s68
    %p74 = scmp.eq.s32.totalorder %s8, 0
    %p75 = por %p73, %p74
    %p76 = scmp.ne.s32.totalorder %s65, %s68
    %p77 = scmp.eq.s32.totalorder %s13, 1
    %p78 = por %p76, %p77
    %p79 = scmp.ne.s32.totalorder %s68, %s69
    %p80 = scmp.eq.s32.totalorder %s13, 0
    %p81 = por %p79, %p80
    %p82 = scmp.ne.s32.totalorder %s68, %s69
    %p83 = scmp.eq.s32.totalorder %s14, 1
    %p84 = por %p82, %p83
    %p86 = scmp.ne.s32.totalorder %s69, %s85
    %p87 = scmp.eq.s32.totalorder %s14, 0
    %p88 = por %p86, %p87
    %p89 = scmp.le.s32.totalorder 1, %s8
    %p90 = scmp.lt.s32.totalorder %s8, 3
    %p91 = pnand %p89, %p90
    %p92 = pneg %p91
    // Predicated region
    $region9: #{discriminator_forward.6} parent=5 // pred_check
      _
    $region10: #{discriminator_forward.6} parent=5 // pred_check_branch
      %94 = sbr.rel (%p91) target = $region12
    $region11: #{discriminator_forward.6} parent=5 // pred_region
      %s95 = ssub.s32 %s8, 1
      // Predicated region
      $region13: #{discriminator_forward.6} parent=11 // pred_check
        %p96 = pneg %p55
      $region14: #{discriminator_forward.6} parent=11 // pred_check_branch
        %98 = sbr.rel (%p96) target = $region16
      $region15: #{discriminator_forward.6} parent=11 // pred_region
        _
      $region16: #{discriminator_forward.6} parent=11 // pred_fallthru
        _
    $region12: #{discriminator_forward.6} parent=5 // pred_fallthru
      _
    %p99 = scmp.lt.s32.totalorder %s8, 2
    // Predicated region
    $region17: #{discriminator_forward.6} parent=5 // pred_check
      %p100 = pneg %p99
    $region18: #{discriminator_forward.6} parent=5 // pred_check_branch
      %102 = sbr.rel (%p100) target = $region20
    $region19: #{discriminator_forward.6} parent=5 // pred_region
      // Predicated region
      $region21: #{discriminator_forward.6} parent=19 // pred_check
        %p103 = pneg %p28
      $region22: #{discriminator_forward.6} parent=19 // pred_check_branch
        %105 = sbr.rel (%p103) target = $region24
      $region23: #{discriminator_forward.6} parent=19 // pred_region
        %p106 = scmp.lt.s32.totalorder %s8, 1
        %s107 = scalar_select %p106, %s8, 1
        %s108 = smul.addr %s107, 32
        %s109 = smul.addr %s108, 4
        %s110 = scalar_lea.vmem %s0, %s109
      $region24: #{discriminator_forward.6} parent=19 // pred_fallthru
        _
    $region20: #{discriminator_forward.6} parent=5 // pred_fallthru
      _
    %p111 = scmp.le.s32.totalorder 1, %s8
    %p112 = scmp.lt.s32.totalorder %s8, 3
    %p113 = pnand %p111, %p112
    %p114 = pneg %p113
    // Predicated region
    $region25: #{discriminator_forward.6} parent=5 // pred_check
      _
    $region26: #{discriminator_forward.6} parent=5 // pred_check_branch
      %116 = sbr.rel (%p113) target = $region28
    $region27: #{discriminator_forward.6} parent=5 // pred_region
      %s117 = ssub.s32 %s8, 1
      %p118 = scmp.lt.s32.totalorder %s13, 1
      %s119 = scalar_select %p118, %s13, 1
      %s120 = smul.addr %s119, 32
      %s121 = smul.addr %s120, 4
      %s122 = scalar_lea.vmem %s0, %s121
      %p123 = pneg %p34
      %p124 = pneg %p31
      %p125 = pneg %p55
      %p126 = pneg %p52
      %p127 = pneg %p81
      %p128 = pneg %p78
      %p129 = scmp.lt.s32.totalorder %s13, 1
      %s130 = scalar_select %p129, %s13, 1
      %s131 = smul.addr %s130, 4
      %s132 = smul.addr %s131, 4
      %s133 = scalar_lea.vmem %s2, %s132
      %p134 = scmp.lt.s32.totalorder %s13, 1
      %s135 = scalar_select %p134, %s13, 1
      %s136 = smul.addr %s135, 32
      %s137 = smul.addr %s136, 4
      %s138 = scalar_lea.vmem %s0, %s137
      %p139 = scmp.lt.s32.totalorder %s13, 1
      %s140 = scalar_select %p139, %s13, 1
      %s141 = smul.addr %s140, 4
      %s142 = smul.addr %s141, 4
      %s143 = scalar_lea.vmem %s2, %s142
      %v144 = vld [vmem:[%s138] sm:$0xff]
      %v145 = vld [vmem:[%s138 + $0x8] sm:$0xff]
      %v146 = vld [vmem:[%s138 + $0x10] sm:$0xff]
      %v147 = vld [vmem:[%s138 + $0x18] sm:$0xff]
      %v148 = vld [vmem:[%s138 + $0x20] sm:$0xff]
      %v149 = vld [vmem:[%s138 + $0x28] sm:$0xff]
      %v150 = vld [vmem:[%s138 + $0x30] sm:$0xff]
      %v151 = vld [vmem:[%s138 + $0x38] sm:$0xff]
      %v152 = vld [vmem:[%s138 + $0x40] sm:$0xff]
      %v153 = vld [vmem:[%s138 + $0x48] sm:$0xff]
      %v154 = vld [vmem:[%s138 + $0x50] sm:$0xff]
      %v155 = vld [vmem:[%s138 + $0x58] sm:$0xff]
      %v156 = vld [vmem:[%s138 + $0x60] sm:$0xff]
      %v157 = vld [vmem:[%s138 + $0x68] sm:$0xff]
      %v158 = vld [vmem:[%s138 + $0x70] sm:$0xff]
      %v159 = vld [vmem:[%s138 + $0x78] sm:$0xff]
      %v160 = vld [vmem:[%s1] sm:$0xff]
      %v161 = vld [vmem:[%s1 + $0x8] sm:$0xff]
      %v162 = vld [vmem:[%s1 + $0x10] sm:$0xff]
      %v163 = vld [vmem:[%s1 + $0x18] sm:$0xff]
      %v164 = vld [vmem:[%s1 + $0x20] sm:$0xff]
      %v165 = vld [vmem:[%s1 + $0x28] sm:$0xff]
      %v166 = vld [vmem:[%s1 + $0x30] sm:$0xff]
      %v167 = vld [vmem:[%s1 + $0x38] sm:$0xff]
      %v168 = vld [vmem:[%s1 + $0x40] sm:$0xff]
      %v169 = vld [vmem:[%s1 + $0x48] sm:$0xff]
      %v170 = vld [vmem:[%s1 + $0x50] sm:$0xff]
      %v171 = vld [vmem:[%s1 + $0x58] sm:$0xff]
      %v172 = vld [vmem:[%s1 + $0x60] sm:$0xff]
      %v173 = vld [vmem:[%s1 + $0x68] sm:$0xff]
      %v174 = vld [vmem:[%s1 + $0x70] sm:$0xff]
      %v175 = vld [vmem:[%s1 + $0x78] sm:$0xff]
      %v176 = vld [vmem:[%s1 + $0x80] sm:$0xff]
      %v177 = vld [vmem:[%s1 + $0x88] sm:$0xff]
      %v178 = vld [vmem:[%s1 + $0x90] sm:$0xff]
      %v179 = vld [vmem:[%s1 + $0x98] sm:$0xff]
      %v180 = vld [vmem:[%s1 + $0xa0] sm:$0xff]
      %v181 = vld [vmem:[%s1 + $0xa8] sm:$0xff]
      %v182 = vld [vmem:[%s1 + $0xb0] sm:$0xff]
      %v183 = vld [vmem:[%s1 + $0xb8] sm:$0xff]
      %v184 = vld [vmem:[%s1 + $0xc0] sm:$0xff]
      %v185 = vld [vmem:[%s1 + $0xc8] sm:$0xff]
      %v186 = vld [vmem:[%s1 + $0xd0] sm:$0xff]
      %v187 = vld [vmem:[%s1 + $0xd8] sm:$0xff]
      %v188 = vld [vmem:[%s1 + $0xe0] sm:$0xff]
      %v189 = vld [vmem:[%s1 + $0xe8] sm:$0xff]
      %v190 = vld [vmem:[%s1 + $0xf0] sm:$0xff]
      %v191 = vld [vmem:[%s1 + $0xf8] sm:$0xff]
      %v192 = vld [vmem:[%s1 + $0x100] sm:$0xff]
      %v193 = vld [vmem:[%s1 + $0x108] sm:$0xff]
      %v194 = vld [vmem:[%s1 + $0x110] sm:$0xff]
      %v195 = vld [vmem:[%s1 + $0x118] sm:$0xff]
      %v196 = vld [vmem:[%s1 + $0x120] sm:$0xff]
      %v197 = vld [vmem:[%s1 + $0x128] sm:$0xff]
      %v198 = vld [vmem:[%s1 + $0x130] sm:$0xff]
      %v199 = vld [vmem:[%s1 + $0x138] sm:$0xff]
      %v200 = vld [vmem:[%s1 + $0x140] sm:$0xff]
      %v201 = vld [vmem:[%s1 + $0x148] sm:$0xff]
      %v202 = vld [vmem:[%s1 + $0x150] sm:$0xff]
      %v203 = vld [vmem:[%s1 + $0x158] sm:$0xff]
      %v204 = vld [vmem:[%s1 + $0x160] sm:$0xff]
      %v205 = vld [vmem:[%s1 + $0x168] sm:$0xff]
      %v206 = vld [vmem:[%s1 + $0x170] sm:$0xff]
      %v207 = vld [vmem:[%s1 + $0x178] sm:$0xff]
      %v208 = vld [vmem:[%s1 + $0x180] sm:$0xff]
      %v209 = vld [vmem:[%s1 + $0x188] sm:$0xff]
      %v210 = vld [vmem:[%s1 + $0x190] sm:$0xff]
      %v211 = vld [vmem:[%s1 + $0x198] sm:$0xff]
      %v212 = vld [vmem:[%s1 + $0x1a0] sm:$0xff]
      %v213 = vld [vmem:[%s1 + $0x1a8] sm:$0xff]
      %v214 = vld [vmem:[%s1 + $0x1b0] sm:$0xff]
      %v215 = vld [vmem:[%s1 + $0x1b8] sm:$0xff]
      %v216 = vld [vmem:[%s1 + $0x1c0] sm:$0xff]
      %v217 = vld [vmem:[%s1 + $0x1c8] sm:$0xff]
      %v218 = vld [vmem:[%s1 + $0x1d0] sm:$0xff]
      %v219 = vld [vmem:[%s1 + $0x1d8] sm:$0xff]
      %v220 = vld [vmem:[%s1 + $0x1e0] sm:$0xff]
      %v221 = vld [vmem:[%s1 + $0x1e8] sm:$0xff]
      %v222 = vld [vmem:[%s1 + $0x1f0] sm:$0xff]
      %v223 = vld [vmem:[%s1 + $0x1f8] sm:$0xff]
      %v224 = vld [vmem:[%s1 + $0x200] sm:$0xff]
      %v225 = vld [vmem:[%s1 + $0x208] sm:$0xff]
      %v226 = vld [vmem:[%s1 + $0x210] sm:$0xff]
      %v227 = vld [vmem:[%s1 + $0x218] sm:$0xff]
      %v228 = vld [vmem:[%s1 + $0x220] sm:$0xff]
      %v229 = vld [vmem:[%s1 + $0x228] sm:$0xff]
      %v230 = vld [vmem:[%s1 + $0x230] sm:$0xff]
      %v231 = vld [vmem:[%s1 + $0x238] sm:$0xff]
      %v232 = vld [vmem:[%s1 + $0x240] sm:$0xff]
      %v233 = vld [vmem:[%s1 + $0x248] sm:$0xff]
      %v234 = vld [vmem:[%s1 + $0x250] sm:$0xff]
      %v235 = vld [vmem:[%s1 + $0x258] sm:$0xff]
      %v236 = vld [vmem:[%s1 + $0x260] sm:$0xff]
      %v237 = vld [vmem:[%s1 + $0x268] sm:$0xff]
      %v238 = vld [vmem:[%s1 + $0x270] sm:$0xff]
      %v239 = vld [vmem:[%s1 + $0x278] sm:$0xff]
      %v240 = vld [vmem:[%s1 + $0x280] sm:$0xff]
      %v241 = vld [vmem:[%s1 + $0x288] sm:$0xff]
      %v242 = vld [vmem:[%s1 + $0x290] sm:$0xff]
      %v243 = vld [vmem:[%s1 + $0x298] sm:$0xff]
      %v244 = vld [vmem:[%s1 + $0x2a0] sm:$0xff]
      %v245 = vld [vmem:[%s1 + $0x2a8] sm:$0xff]
      %v246 = vld [vmem:[%s1 + $0x2b0] sm:$0xff]
      %v247 = vld [vmem:[%s1 + $0x2b8] sm:$0xff]
      %v248 = vld [vmem:[%s1 + $0x2c0] sm:$0xff]
      %v249 = vld [vmem:[%s1 + $0x2c8] sm:$0xff]
      %v250 = vld [vmem:[%s1 + $0x2d0] sm:$0xff]
      %v251 = vld [vmem:[%s1 + $0x2d8] sm:$0xff]
      %v252 = vld [vmem:[%s1 + $0x2e0] sm:$0xff]
      %v253 = vld [vmem:[%s1 + $0x2e8] sm:$0xff]
      %v254 = vld [vmem:[%s1 + $0x2f0] sm:$0xff]
      %v255 = vld [vmem:[%s1 + $0x2f8] sm:$0xff]
      %v256 = vld [vmem:[%s1 + $0x300] sm:$0xff]
      %v257 = vld [vmem:[%s1 + $0x308] sm:$0xff]
      %v258 = vld [vmem:[%s1 + $0x310] sm:$0xff]
      %v259 = vld [vmem:[%s1 + $0x318] sm:$0xff]
      %v260 = vld [vmem:[%s1 + $0x320] sm:$0xff]
      %v261 = vld [vmem:[%s1 + $0x328] sm:$0xff]
      %v262 = vld [vmem:[%s1 + $0x330] sm:$0xff]
      %v263 = vld [vmem:[%s1 + $0x338] sm:$0xff]
      %v264 = vld [vmem:[%s1 + $0x340] sm:$0xff]
      %v265 = vld [vmem:[%s1 + $0x348] sm:$0xff]
      %v266 = vld [vmem:[%s1 + $0x350] sm:$0xff]
      %v267 = vld [vmem:[%s1 + $0x358] sm:$0xff]
      %v268 = vld [vmem:[%s1 + $0x360] sm:$0xff]
      %v269 = vld [vmem:[%s1 + $0x368] sm:$0xff]
      %v270 = vld [vmem:[%s1 + $0x370] sm:$0xff]
      %v271 = vld [vmem:[%s1 + $0x378] sm:$0xff]
      %v272 = vld [vmem:[%s1 + $0x380] sm:$0xff]
      %v273 = vld [vmem:[%s1 + $0x388] sm:$0xff]
      %v274 = vld [vmem:[%s1 + $0x390] sm:$0xff]
      %v275 = vld [vmem:[%s1 + $0x398] sm:$0xff]
      %v276 = vld [vmem:[%s1 + $0x3a0] sm:$0xff]
      %v277 = vld [vmem:[%s1 + $0x3a8] sm:$0xff]
      %v278 = vld [vmem:[%s1 + $0x3b0] sm:$0xff]
      %v279 = vld [vmem:[%s1 + $0x3b8] sm:$0xff]
      %v280 = vld [vmem:[%s1 + $0x3c0] sm:$0xff]
      %v281 = vld [vmem:[%s1 + $0x3c8] sm:$0xff]
      %v282 = vld [vmem:[%s1 + $0x3d0] sm:$0xff]
      %v283 = vld [vmem:[%s1 + $0x3d8] sm:$0xff]
      %v284 = vld [vmem:[%s1 + $0x3e0] sm:$0xff]
      %v285 = vld [vmem:[%s1 + $0x3e8] sm:$0xff]
      %v286 = vld [vmem:[%s1 + $0x3f0] sm:$0xff]
      %v287 = vld [vmem:[%s1 + $0x3f8] sm:$0xff]
      %v288 = vld [vmem:[%s1 + $0x400] sm:$0xff]
      %v289 = vld [vmem:[%s1 + $0x408] sm:$0xff]
      %v290 = vld [vmem:[%s1 + $0x410] sm:$0xff]
      %v291 = vld [vmem:[%s1 + $0x418] sm:$0xff]
      %v292 = vld [vmem:[%s1 + $0x420] sm:$0xff]
      %v293 = vld [vmem:[%s1 + $0x428] sm:$0xff]
      %v294 = vld [vmem:[%s1 + $0x430] sm:$0xff]
      %v295 = vld [vmem:[%s1 + $0x438] sm:$0xff]
      %v296 = vld [vmem:[%s1 + $0x440] sm:$0xff]
      %v297 = vld [vmem:[%s1 + $0x448] sm:$0xff]
      %v298 = vld [vmem:[%s1 + $0x450] sm:$0xff]
      %v299 = vld [vmem:[%s1 + $0x458] sm:$0xff]
      %v300 = vld [vmem:[%s1 + $0x460] sm:$0xff]
      %v301 = vld [vmem:[%s1 + $0x468] sm:$0xff]
      %v302 = vld [vmem:[%s1 + $0x470] sm:$0xff]
      %v303 = vld [vmem:[%s1 + $0x478] sm:$0xff]
      %v304 = vld [vmem:[%s1 + $0x480] sm:$0xff]
      %v305 = vld [vmem:[%s1 + $0x488] sm:$0xff]
      %v306 = vld [vmem:[%s1 + $0x490] sm:$0xff]
      %v307 = vld [vmem:[%s1 + $0x498] sm:$0xff]
      %v308 = vld [vmem:[%s1 + $0x4a0] sm:$0xff]
      %v309 = vld [vmem:[%s1 + $0x4a8] sm:$0xff]
      %v310 = vld [vmem:[%s1 + $0x4b0] sm:$0xff]
      %v311 = vld [vmem:[%s1 + $0x4b8] sm:$0xff]
      %v312 = vld [vmem:[%s1 + $0x4c0] sm:$0xff]
      %v313 = vld [vmem:[%s1 + $0x4c8] sm:$0xff]
      %v314 = vld [vmem:[%s1 + $0x4d0] sm:$0xff]
      %v315 = vld [vmem:[%s1 + $0x4d8] sm:$0xff]
      %v316 = vld [vmem:[%s1 + $0x4e0] sm:$0xff]
      %v317 = vld [vmem:[%s1 + $0x4e8] sm:$0xff]
      %v318 = vld [vmem:[%s1 + $0x4f0] sm:$0xff]
      %v319 = vld [vmem:[%s1 + $0x4f8] sm:$0xff]
      %v320 = vld [vmem:[%s1 + $0x500] sm:$0xff]
      %v321 = vld [vmem:[%s1 + $0x508] sm:$0xff]
      %v322 = vld [vmem:[%s1 + $0x510] sm:$0xff]
      %v323 = vld [vmem:[%s1 + $0x518] sm:$0xff]
      %v324 = vld [vmem:[%s1 + $0x520] sm:$0xff]
      %v325 = vld [vmem:[%s1 + $0x528] sm:$0xff]
      %v326 = vld [vmem:[%s1 + $0x530] sm:$0xff]
      %v327 = vld [vmem:[%s1 + $0x538] sm:$0xff]
      %v328 = vld [vmem:[%s1 + $0x540] sm:$0xff]
      %v329 = vld [vmem:[%s1 + $0x548] sm:$0xff]
      %v330 = vld [vmem:[%s1 + $0x550] sm:$0xff]
      %v331 = vld [vmem:[%s1 + $0x558] sm:$0xff]
      %v332 = vld [vmem:[%s1 + $0x560] sm:$0xff]
      %v333 = vld [vmem:[%s1 + $0x568] sm:$0xff]
      %v334 = vld [vmem:[%s1 + $0x570] sm:$0xff]
      %v335 = vld [vmem:[%s1 + $0x578] sm:$0xff]
      %v336 = vld [vmem:[%s1 + $0x580] sm:$0xff]
      %v337 = vld [vmem:[%s1 + $0x588] sm:$0xff]
      %v338 = vld [vmem:[%s1 + $0x590] sm:$0xff]
      %v339 = vld [vmem:[%s1 + $0x598] sm:$0xff]
      %v340 = vld [vmem:[%s1 + $0x5a0] sm:$0xff]
      %v341 = vld [vmem:[%s1 + $0x5a8] sm:$0xff]
      %v342 = vld [vmem:[%s1 + $0x5b0] sm:$0xff]
      %v343 = vld [vmem:[%s1 + $0x5b8] sm:$0xff]
      %v344 = vld [vmem:[%s1 + $0x5c0] sm:$0xff]
      %v345 = vld [vmem:[%s1 + $0x5c8] sm:$0xff]
      %v346 = vld [vmem:[%s1 + $0x5d0] sm:$0xff]
      %v347 = vld [vmem:[%s1 + $0x5d8] sm:$0xff]
      %v348 = vld [vmem:[%s1 + $0x5e0] sm:$0xff]
      %v349 = vld [vmem:[%s1 + $0x5e8] sm:$0xff]
      %v350 = vld [vmem:[%s1 + $0x5f0] sm:$0xff]
      %v351 = vld [vmem:[%s1 + $0x5f8] sm:$0xff]
      %v352 = vld [vmem:[%s1 + $0x600] sm:$0xff]
      %v353 = vld [vmem:[%s1 + $0x608] sm:$0xff]
      %v354 = vld [vmem:[%s1 + $0x610] sm:$0xff]
      %v355 = vld [vmem:[%s1 + $0x618] sm:$0xff]
      %v356 = vld [vmem:[%s1 + $0x620] sm:$0xff]
      %v357 = vld [vmem:[%s1 + $0x628] sm:$0xff]
      %v358 = vld [vmem:[%s1 + $0x630] sm:$0xff]
      %v359 = vld [vmem:[%s1 + $0x638] sm:$0xff]
      %v360 = vld [vmem:[%s1 + $0x640] sm:$0xff]
      %v361 = vld [vmem:[%s1 + $0x648] sm:$0xff]
      %v362 = vld [vmem:[%s1 + $0x650] sm:$0xff]
      %v363 = vld [vmem:[%s1 + $0x658] sm:$0xff]
      %v364 = vld [vmem:[%s1 + $0x660] sm:$0xff]
      %v365 = vld [vmem:[%s1 + $0x668] sm:$0xff]
      %v366 = vld [vmem:[%s1 + $0x670] sm:$0xff]
      %v367 = vld [vmem:[%s1 + $0x678] sm:$0xff]
      %v368 = vld [vmem:[%s1 + $0x680] sm:$0xff]
      %v369 = vld [vmem:[%s1 + $0x688] sm:$0xff]
      %v370 = vld [vmem:[%s1 + $0x690] sm:$0xff]
      %v371 = vld [vmem:[%s1 + $0x698] sm:$0xff]
      %v372 = vld [vmem:[%s1 + $0x6a0] sm:$0xff]
      %v373 = vld [vmem:[%s1 + $0x6a8] sm:$0xff]
      %v374 = vld [vmem:[%s1 + $0x6b0] sm:$0xff]
      %v375 = vld [vmem:[%s1 + $0x6b8] sm:$0xff]
      %v376 = vld [vmem:[%s1 + $0x6c0] sm:$0xff]
      %v377 = vld [vmem:[%s1 + $0x6c8] sm:$0xff]
      %v378 = vld [vmem:[%s1 + $0x6d0] sm:$0xff]
      %v379 = vld [vmem:[%s1 + $0x6d8] sm:$0xff]
      %v380 = vld [vmem:[%s1 + $0x6e0] sm:$0xff]
      %v381 = vld [vmem:[%s1 + $0x6e8] sm:$0xff]
      %v382 = vld [vmem:[%s1 + $0x6f0] sm:$0xff]
      %v383 = vld [vmem:[%s1 + $0x6f8] sm:$0xff]
      %v384 = vld [vmem:[%s1 + $0x700] sm:$0xff]
      %v385 = vld [vmem:[%s1 + $0x708] sm:$0xff]
      %v386 = vld [vmem:[%s1 + $0x710] sm:$0xff]
      %v387 = vld [vmem:[%s1 + $0x718] sm:$0xff]
      %v388 = vld [vmem:[%s1 + $0x720] sm:$0xff]
      %v389 = vld [vmem:[%s1 + $0x728] sm:$0xff]
      %v390 = vld [vmem:[%s1 + $0x730] sm:$0xff]
      %v391 = vld [vmem:[%s1 + $0x738] sm:$0xff]
      %v392 = vld [vmem:[%s1 + $0x740] sm:$0xff]
      %v393 = vld [vmem:[%s1 + $0x748] sm:$0xff]
      %v394 = vld [vmem:[%s1 + $0x750] sm:$0xff]
      %v395 = vld [vmem:[%s1 + $0x758] sm:$0xff]
      %v396 = vld [vmem:[%s1 + $0x760] sm:$0xff]
      %v397 = vld [vmem:[%s1 + $0x768] sm:$0xff]
      %v398 = vld [vmem:[%s1 + $0x770] sm:$0xff]
      %v399 = vld [vmem:[%s1 + $0x778] sm:$0xff]
      %v400 = vld [vmem:[%s1 + $0x780] sm:$0xff]
      %v401 = vld [vmem:[%s1 + $0x788] sm:$0xff]
      %v402 = vld [vmem:[%s1 + $0x790] sm:$0xff]
      %v403 = vld [vmem:[%s1 + $0x798] sm:$0xff]
      %v404 = vld [vmem:[%s1 + $0x7a0] sm:$0xff]
      %v405 = vld [vmem:[%s1 + $0x7a8] sm:$0xff]
      %v406 = vld [vmem:[%s1 + $0x7b0] sm:$0xff]
      %v407 = vld [vmem:[%s1 + $0x7b8] sm:$0xff]
      %v408 = vld [vmem:[%s1 + $0x7c0] sm:$0xff]
      %v409 = vld [vmem:[%s1 + $0x7c8] sm:$0xff]
      %v410 = vld [vmem:[%s1 + $0x7d0] sm:$0xff]
      %v411 = vld [vmem:[%s1 + $0x7d8] sm:$0xff]
      %v412 = vld [vmem:[%s1 + $0x7e0] sm:$0xff]
      %v413 = vld [vmem:[%s1 + $0x7e8] sm:$0xff]
      %v414 = vld [vmem:[%s1 + $0x7f0] sm:$0xff]
      %v415 = vld [vmem:[%s1 + $0x7f8] sm:$0xff]
      %v432 = vunpack.c.l.b16 %v144
      %v433 = vunpack.c.h.b16 %v144
      %v434 = vunpack.c.l.b16 %v145
      %v435 = vunpack.c.h.b16 %v145
      %v436 = vunpack.c.l.b16 %v146
      %v437 = vunpack.c.h.b16 %v146
      %v438 = vunpack.c.l.b16 %v147
      %v439 = vunpack.c.h.b16 %v147
      %v440 = vunpack.c.l.b16 %v148
      %v441 = vunpack.c.h.b16 %v148
      %v442 = vunpack.c.l.b16 %v149
      %v443 = vunpack.c.h.b16 %v149
      %v444 = vunpack.c.l.b16 %v150
      %v445 = vunpack.c.h.b16 %v150
      %v446 = vunpack.c.l.b16 %v151
      %v447 = vunpack.c.h.b16 %v151
      %v448 = vunpack.c.l.b16 %v152
      %v449 = vunpack.c.h.b16 %v152
      %v450 = vunpack.c.l.b16 %v153
      %v451 = vunpack.c.h.b16 %v153
      %v452 = vunpack.c.l.b16 %v154
      %v453 = vunpack.c.h.b16 %v154
      %v454 = vunpack.c.l.b16 %v155
      %v455 = vunpack.c.h.b16 %v155
      %v456 = vunpack.c.l.b16 %v156
      %v457 = vunpack.c.h.b16 %v156
      %v458 = vunpack.c.l.b16 %v157
      %v459 = vunpack.c.h.b16 %v157
      %v460 = vunpack.c.l.b16 %v158
      %v461 = vunpack.c.h.b16 %v158
      %v462 = vunpack.c.l.b16 %v159
      %v463 = vunpack.c.h.b16 %v159
      %v464 = vpack.c.b16 %v448, %v432
      %v465 = vpack.c.b16 %v449, %v433
      %v466 = vpack.c.b16 %v450, %v434
      %v467 = vpack.c.b16 %v451, %v435
      %v468 = vpack.c.b16 %v452, %v436
      %v469 = vpack.c.b16 %v453, %v437
      %v470 = vpack.c.b16 %v454, %v438
      %v471 = vpack.c.b16 %v455, %v439
      %v472 = vpack.c.b16 %v456, %v440
      %v473 = vpack.c.b16 %v457, %v441
      %v474 = vpack.c.b16 %v458, %v442
      %v475 = vpack.c.b16 %v459, %v443
      %v476 = vpack.c.b16 %v460, %v444
      %v477 = vpack.c.b16 %v461, %v445
      %v478 = vpack.c.b16 %v462, %v446
      %v479 = vpack.c.b16 %v463, %v447
      %v752 = vunpack.c.l.b16 %v160
      %v753 = vunpack.c.h.b16 %v160
      %v754 = vunpack.c.l.b16 %v161
      %v755 = vunpack.c.h.b16 %v161
      %v756 = vunpack.c.l.b16 %v162
      %v757 = vunpack.c.h.b16 %v162
      %v758 = vunpack.c.l.b16 %v163
      %v759 = vunpack.c.h.b16 %v163
      %v760 = vunpack.c.l.b16 %v164
      %v761 = vunpack.c.h.b16 %v164
      %v762 = vunpack.c.l.b16 %v165
      %v763 = vunpack.c.h.b16 %v165
      %v764 = vunpack.c.l.b16 %v166
      %v765 = vunpack.c.h.b16 %v166
      %v766 = vunpack.c.l.b16 %v167
      %v767 = vunpack.c.h.b16 %v167
      %v768 = vunpack.c.l.b16 %v168
      %v769 = vunpack.c.h.b16 %v168
      %v770 = vunpack.c.l.b16 %v169
      %v771 = vunpack.c.h.b16 %v169
      %v772 = vunpack.c.l.b16 %v170
      %v773 = vunpack.c.h.b16 %v170
      %v774 = vunpack.c.l.b16 %v171
      %v775 = vunpack.c.h.b16 %v171
      %v776 = vunpack.c.l.b16 %v172
      %v777 = vunpack.c.h.b16 %v172
      %v778 = vunpack.c.l.b16 %v173
      %v779 = vunpack.c.h.b16 %v173
      %v780 = vunpack.c.l.b16 %v174
      %v781 = vunpack.c.h.b16 %v174
      %v782 = vunpack.c.l.b16 %v175
      %v783 = vunpack.c.h.b16 %v175
      %v784 = vunpack.c.l.b16 %v176
      %v785 = vunpack.c.h.b16 %v176
      %v786 = vunpack.c.l.b16 %v177
      %v787 = vunpack.c.h.b16 %v177
      %v788 = vunpack.c.l.b16 %v178
      %v789 = vunpack.c.h.b16 %v178
      %v790 = vunpack.c.l.b16 %v179
      %v791 = vunpack.c.h.b16 %v179
      %v792 = vunpack.c.l.b16 %v180
      %v793 = vunpack.c.h.b16 %v180
      %v794 = vunpack.c.l.b16 %v181
      %v795 = vunpack.c.h.b16 %v181
      %v796 = vunpack.c.l.b16 %v182
      %v797 = vunpack.c.h.b16 %v182
      %v798 = vunpack.c.l.b16 %v183
      %v799 = vunpack.c.h.b16 %v183
      %v800 = vunpack.c.l.b16 %v184
      %v801 = vunpack.c.h.b16 %v184
      %v802 = vunpack.c.l.b16 %v185
      %v803 = vunpack.c.h.b16 %v185
      %v804 = vunpack.c.l.b16 %v186
      %v805 = vunpack.c.h.b16 %v186
      %v806 = vunpack.c.l.b16 %v187
      %v807 = vunpack.c.h.b16 %v187
      %v808 = vunpack.c.l.b16 %v188
      %v809 = vunpack.c.h.b16 %v188
      %v810 = vunpack.c.l.b16 %v189
      %v811 = vunpack.c.h.b16 %v189
      %v812 = vunpack.c.l.b16 %v190
      %v813 = vunpack.c.h.b16 %v190
      %v814 = vunpack.c.l.b16 %v191
      %v815 = vunpack.c.h.b16 %v191
      %v816 = vunpack.c.l.b16 %v192
      %v817 = vunpack.c.h.b16 %v192
      %v818 = vunpack.c.l.b16 %v193
      %v819 = vunpack.c.h.b16 %v193
      %v820 = vunpack.c.l.b16 %v194
      %v821 = vunpack.c.h.b16 %v194
      %v822 = vunpack.c.l.b16 %v195
      %v823 = vunpack.c.h.b16 %v195
      %v824 = vunpack.c.l.b16 %v196
      %v825 = vunpack.c.h.b16 %v196
      %v826 = vunpack.c.l.b16 %v197
      %v827 = vunpack.c.h.b16 %v197
      %v828 = vunpack.c.l.b16 %v198
      %v829 = vunpack.c.h.b16 %v198
      %v830 = vunpack.c.l.b16 %v199
      %v831 = vunpack.c.h.b16 %v199
      %v832 = vunpack.c.l.b16 %v200
      %v833 = vunpack.c.h.b16 %v200
      %v834 = vunpack.c.l.b16 %v201
      %v835 = vunpack.c.h.b16 %v201
      %v836 = vunpack.c.l.b16 %v202
      %v837 = vunpack.c.h.b16 %v202
      %v838 = vunpack.c.l.b16 %v203
      %v839 = vunpack.c.h.b16 %v203
      %v840 = vunpack.c.l.b16 %v204
      %v841 = vunpack.c.h.b16 %v204
      %v842 = vunpack.c.l.b16 %v205
      %v843 = vunpack.c.h.b16 %v205
      %v844 = vunpack.c.l.b16 %v206
      %v845 = vunpack.c.h.b16 %v206
      %v846 = vunpack.c.l.b16 %v207
      %v847 = vunpack.c.h.b16 %v207
      %v848 = vunpack.c.l.b16 %v208
      %v849 = vunpack.c.h.b16 %v208
      %v850 = vunpack.c.l.b16 %v209
      %v851 = vunpack.c.h.b16 %v209
      %v852 = vunpack.c.l.b16 %v210
      %v853 = vunpack.c.h.b16 %v210
      %v854 = vunpack.c.l.b16 %v211
      %v855 = vunpack.c.h.b16 %v211
      %v856 = vunpack.c.l.b16 %v212
      %v857 = vunpack.c.h.b16 %v212
      %v858 = vunpack.c.l.b16 %v213
      %v859 = vunpack.c.h.b16 %v213
      %v860 = vunpack.c.l.b16 %v214
      %v861 = vunpack.c.h.b16 %v214
      %v862 = vunpack.c.l.b16 %v215
      %v863 = vunpack.c.h.b16 %v215
      %v864 = vunpack.c.l.b16 %v216
      %v865 = vunpack.c.h.b16 %v216
      %v866 = vunpack.c.l.b16 %v217
      %v867 = vunpack.c.h.b16 %v217
      %v868 = vunpack.c.l.b16 %v218
      %v869 = vunpack.c.h.b16 %v218
      %v870 = vunpack.c.l.b16 %v219
      %v871 = vunpack.c.h.b16 %v219
      %v872 = vunpack.c.l.b16 %v220
      %v873 = vunpack.c.h.b16 %v220
      %v874 = vunpack.c.l.b16 %v221
      %v875 = vunpack.c.h.b16 %v221
      %v876 = vunpack.c.l.b16 %v222
      %v877 = vunpack.c.h.b16 %v222
      %v878 = vunpack.c.l.b16 %v223
      %v879 = vunpack.c.h.b16 %v223
      %v880 = vunpack.c.l.b16 %v224
      %v881 = vunpack.c.h.b16 %v224
      %v882 = vunpack.c.l.b16 %v225
      %v883 = vunpack.c.h.b16 %v225
      %v884 = vunpack.c.l.b16 %v226
      %v885 = vunpack.c.h.b16 %v226
      %v886 = vunpack.c.l.b16 %v227
      %v887 = vunpack.c.h.b16 %v227
      %v888 = vunpack.c.l.b16 %v228
      %v889 = vunpack.c.h.b16 %v228
      %v890 = vunpack.c.l.b16 %v229
      %v891 = vunpack.c.h.b16 %v229
      %v892 = vunpack.c.l.b16 %v230
      %v893 = vunpack.c.h.b16 %v230
      %v894 = vunpack.c.l.b16 %v231
      %v895 = vunpack.c.h.b16 %v231
      %v896 = vunpack.c.l.b16 %v232
      %v897 = vunpack.c.h.b16 %v232
      %v898 = vunpack.c.l.b16 %v233
      %v899 = vunpack.c.h.b16 %v233
      %v900 = vunpack.c.l.b16 %v234
      %v901 = vunpack.c.h.b16 %v234
      %v902 = vunpack.c.l.b16 %v235
      %v903 = vunpack.c.h.b16 %v235
      %v904 = vunpack.c.l.b16 %v236
      %v905 = vunpack.c.h.b16 %v236
      %v906 = vunpack.c.l.b16 %v237
      %v907 = vunpack.c.h.b16 %v237
      %v908 = vunpack.c.l.b16 %v238
      %v909 = vunpack.c.h.b16 %v238
      %v910 = vunpack.c.l.b16 %v239
      %v911 = vunpack.c.h.b16 %v239
      %v912 = vunpack.c.l.b16 %v240
      %v913 = vunpack.c.h.b16 %v240
      %v914 = vunpack.c.l.b16 %v241
      %v915 = vunpack.c.h.b16 %v241
      %v916 = vunpack.c.l.b16 %v242
      %v917 = vunpack.c.h.b16 %v242
      %v918 = vunpack.c.l.b16 %v243
      %v919 = vunpack.c.h.b16 %v243
      %v920 = vunpack.c.l.b16 %v244
      %v921 = vunpack.c.h.b16 %v244
      %v922 = vunpack.c.l.b16 %v245
      %v923 = vunpack.c.h.b16 %v245
      %v924 = vunpack.c.l.b16 %v246
      %v925 = vunpack.c.h.b16 %v246
      %v926 = vunpack.c.l.b16 %v247
      %v927 = vunpack.c.h.b16 %v247
      %v928 = vunpack.c.l.b16 %v248
      %v929 = vunpack.c.h.b16 %v248
      %v930 = vunpack.c.l.b16 %v249
      %v931 = vunpack.c.h.b16 %v249
      %v932 = vunpack.c.l.b16 %v250
      %v933 = vunpack.c.h.b16 %v250
      %v934 = vunpack.c.l.b16 %v251
      %v935 = vunpack.c.h.b16 %v251
      %v936 = vunpack.c.l.b16 %v252
      %v937 = vunpack.c.h.b16 %v252
      %v938 = vunpack.c.l.b16 %v253
      %v939 = vunpack.c.h.b16 %v253
      %v940 = vunpack.c.l.b16 %v254
      %v941 = vunpack.c.h.b16 %v254
      %v942 = vunpack.c.l.b16 %v255
      %v943 = vunpack.c.h.b16 %v255
      %v944 = vunpack.c.l.b16 %v256
      %v945 = vunpack.c.h.b16 %v256
      %v946 = vunpack.c.l.b16 %v257
      %v947 = vunpack.c.h.b16 %v257
      %v948 = vunpack.c.l.b16 %v258
      %v949 = vunpack.c.h.b16 %v258
      %v950 = vunpack.c.l.b16 %v259
      %v951 = vunpack.c.h.b16 %v259
      %v952 = vunpack.c.l.b16 %v260
      %v953 = vunpack.c.h.b16 %v260
      %v954 = vunpack.c.l.b16 %v261
      %v955 = vunpack.c.h.b16 %v261
      %v956 = vunpack.c.l.b16 %v262
      %v957 = vunpack.c.h.b16 %v262
      %v958 = vunpack.c.l.b16 %v263
      %v959 = vunpack.c.h.b16 %v263
      %v960 = vunpack.c.l.b16 %v264
      %v961 = vunpack.c.h.b16 %v264
      %v962 = vunpack.c.l.b16 %v265
      %v963 = vunpack.c.h.b16 %v265
      %v964 = vunpack.c.l.b16 %v266
      %v965 = vunpack.c.h.b16 %v266
      %v966 = vunpack.c.l.b16 %v267
      %v967 = vunpack.c.h.b16 %v267
      %v968 = vunpack.c.l.b16 %v268
      %v969 = vunpack.c.h.b16 %v268
      %v970 = vunpack.c.l.b16 %v269
      %v971 = vunpack.c.h.b16 %v269
      %v972 = vunpack.c.l.b16 %v270
      %v973 = vunpack.c.h.b16 %v270
      %v974 = vunpack.c.l.b16 %v271
      %v975 = vunpack.c.h.b16 %v271
      %v976 = vunpack.c.l.b16 %v272
      %v977 = vunpack.c.h.b16 %v272
      %v978 = vunpack.c.l.b16 %v273
      %v979 = vunpack.c.h.b16 %v273
      %v980 = vunpack.c.l.b16 %v274
      %v981 = vunpack.c.h.b16 %v274
      %v982 = vunpack.c.l.b16 %v275
      %v983 = vunpack.c.h.b16 %v275
      %v984 = vunpack.c.l.b16 %v276
      %v985 = vunpack.c.h.b16 %v276
      %v986 = vunpack.c.l.b16 %v277
      %v987 = vunpack.c.h.b16 %v277
      %v988 = vunpack.c.l.b16 %v278
      %v989 = vunpack.c.h.b16 %v278
      %v990 = vunpack.c.l.b16 %v279
      %v991 = vunpack.c.h.b16 %v279
      %v992 = vunpack.c.l.b16 %v280
      %v993 = vunpack.c.h.b16 %v280
      %v994 = vunpack.c.l.b16 %v281
      %v995 = vunpack.c.h.b16 %v281
      %v996 = vunpack.c.l.b16 %v282
      %v997 = vunpack.c.h.b16 %v282
      %v998 = vunpack.c.l.b16 %v283
      %v999 = vunpack.c.h.b16 %v283
      %v1000 = vunpack.c.l.b16 %v284
      %v1001 = vunpack.c.h.b16 %v284
      %v1002 = vunpack.c.l.b16 %v285
      %v1003 = vunpack.c.h.b16 %v285
      %v1004 = vunpack.c.l.b16 %v286
      %v1005 = vunpack.c.h.b16 %v286
      %v1006 = vunpack.c.l.b16 %v287
      %v1007 = vunpack.c.h.b16 %v287
      %v1008 = vunpack.c.l.b16 %v288
      %v1009 = vunpack.c.h.b16 %v288
      %v1010 = vunpack.c.l.b16 %v289
      %v1011 = vunpack.c.h.b16 %v289
      %v1012 = vunpack.c.l.b16 %v290
      %v1013 = vunpack.c.h.b16 %v290
      %v1014 = vunpack.c.l.b16 %v291
      %v1015 = vunpack.c.h.b16 %v291
      %v1016 = vunpack.c.l.b16 %v292
      %v1017 = vunpack.c.h.b16 %v292
      %v1018 = vunpack.c.l.b16 %v293
      %v1019 = vunpack.c.h.b16 %v293
      %v1020 = vunpack.c.l.b16 %v294
      %v1021 = vunpack.c.h.b16 %v294
      %v1022 = vunpack.c.l.b16 %v295
      %v1023 = vunpack.c.h.b16 %v295
      %v1024 = vunpack.c.l.b16 %v296
      %v1025 = vunpack.c.h.b16 %v296
      %v1026 = vunpack.c.l.b16 %v297
      %v1027 = vunpack.c.h.b16 %v297
      %v1028 = vunpack.c.l.b16 %v298
      %v1029 = vunpack.c.h.b16 %v298
      %v1030 = vunpack.c.l.b16 %v299
      %v1031 = vunpack.c.h.b16 %v299
      %v1032 = vunpack.c.l.b16 %v300
      %v1033 = vunpack.c.h.b16 %v300
      %v1034 = vunpack.c.l.b16 %v301
      %v1035 = vunpack.c.h.b16 %v301
      %v1036 = vunpack.c.l.b16 %v302
      %v1037 = vunpack.c.h.b16 %v302
      %v1038 = vunpack.c.l.b16 %v303
      %v1039 = vunpack.c.h.b16 %v303
      %v1040 = vunpack.c.l.b16 %v304
      %v1041 = vunpack.c.h.b16 %v304
      %v1042 = vunpack.c.l.b16 %v305
      %v1043 = vunpack.c.h.b16 %v305
      %v1044 = vunpack.c.l.b16 %v306
      %v1045 = vunpack.c.h.b16 %v306
      %v1046 = vunpack.c.l.b16 %v307
      %v1047 = vunpack.c.h.b16 %v307
      %v1048 = vunpack.c.l.b16 %v308
      %v1049 = vunpack.c.h.b16 %v308
      %v1050 = vunpack.c.l.b16 %v309
      %v1051 = vunpack.c.h.b16 %v309
      %v1052 = vunpack.c.l.b16 %v310
      %v1053 = vunpack.c.h.b16 %v310
      %v1054 = vunpack.c.l.b16 %v311
      %v1055 = vunpack.c.h.b16 %v311
      %v1056 = vunpack.c.l.b16 %v312
      %v1057 = vunpack.c.h.b16 %v312
      %v1058 = vunpack.c.l.b16 %v313
      %v1059 = vunpack.c.h.b16 %v313
      %v1060 = vunpack.c.l.b16 %v314
      %v1061 = vunpack.c.h.b16 %v314
      %v1062 = vunpack.c.l.b16 %v315
      %v1063 = vunpack.c.h.b16 %v315
      %v1064 = vunpack.c.l.b16 %v316
      %v1065 = vunpack.c.h.b16 %v316
      %v1066 = vunpack.c.l.b16 %v317
      %v1067 = vunpack.c.h.b16 %v317
      %v1068 = vunpack.c.l.b16 %v318
      %v1069 = vunpack.c.h.b16 %v318
      %v1070 = vunpack.c.l.b16 %v319
      %v1071 = vunpack.c.h.b16 %v319
      %v1072 = vunpack.c.l.b16 %v320
      %v1073 = vunpack.c.h.b16 %v320
      %v1074 = vunpack.c.l.b16 %v321
      %v1075 = vunpack.c.h.b16 %v321
      %v1076 = vunpack.c.l.b16 %v322
      %v1077 = vunpack.c.h.b16 %v322
      %v1078 = vunpack.c.l.b16 %v323
      %v1079 = vunpack.c.h.b16 %v323
      %v1080 = vunpack.c.l.b16 %v324
      %v1081 = vunpack.c.h.b16 %v324
      %v1082 = vunpack.c.l.b16 %v325
      %v1083 = vunpack.c.h.b16 %v325
      %v1084 = vunpack.c.l.b16 %v326
      %v1085 = vunpack.c.h.b16 %v326
      %v1086 = vunpack.c.l.b16 %v327
      %v1087 = vunpack.c.h.b16 %v327
      %v1088 = vunpack.c.l.b16 %v328
      %v1089 = vunpack.c.h.b16 %v328
      %v1090 = vunpack.c.l.b16 %v329
      %v1091 = vunpack.c.h.b16 %v329
      %v1092 = vunpack.c.l.b16 %v330
      %v1093 = vunpack.c.h.b16 %v330
      %v1094 = vunpack.c.l.b16 %v331
      %v1095 = vunpack.c.h.b16 %v331
      %v1096 = vunpack.c.l.b16 %v332
      %v1097 = vunpack.c.h.b16 %v332
      %v1098 = vunpack.c.l.b16 %v333
      %v1099 = vunpack.c.h.b16 %v333
      %v1100 = vunpack.c.l.b16 %v334
      %v1101 = vunpack.c.h.b16 %v334
      %v1102 = vunpack.c.l.b16 %v335
      %v1103 = vunpack.c.h.b16 %v335
      %v1104 = vunpack.c.l.b16 %v336
      %v1105 = vunpack.c.h.b16 %v336
      %v1106 = vunpack.c.l.b16 %v337
      %v1107 = vunpack.c.h.b16 %v337
      %v1108 = vunpack.c.l.b16 %v338
      %v1109 = vunpack.c.h.b16 %v338
      %v1110 = vunpack.c.l.b16 %v339
      %v1111 = vunpack.c.h.b16 %v339
      %v1112 = vunpack.c.l.b16 %v340
      %v1113 = vunpack.c.h.b16 %v340
      %v1114 = vunpack.c.l.b16 %v341
      %v1115 = vunpack.c.h.b16 %v341
      %v1116 = vunpack.c.l.b16 %v342
      %v1117 = vunpack.c.h.b16 %v342
      %v1118 = vunpack.c.l.b16 %v343
      %v1119 = vunpack.c.h.b16 %v343
      %v1120 = vunpack.c.l.b16 %v344
      %v1121 = vunpack.c.h.b16 %v344
      %v1122 = vunpack.c.l.b16 %v345
      %v1123 = vunpack.c.h.b16 %v345
      %v1124 = vunpack.c.l.b16 %v346
      %v1125 = vunpack.c.h.b16 %v346
      %v1126 = vunpack.c.l.b16 %v347
      %v1127 = vunpack.c.h.b16 %v347
      %v1128 = vunpack.c.l.b16 %v348
      %v1129 = vunpack.c.h.b16 %v348
      %v1130 = vunpack.c.l.b16 %v349
      %v1131 = vunpack.c.h.b16 %v349
      %v1132 = vunpack.c.l.b16 %v350
      %v1133 = vunpack.c.h.b16 %v350
      %v1134 = vunpack.c.l.b16 %v351
      %v1135 = vunpack.c.h.b16 %v351
      %v1136 = vunpack.c.l.b16 %v352
      %v1137 = vunpack.c.h.b16 %v352
      %v1138 = vunpack.c.l.b16 %v353
      %v1139 = vunpack.c.h.b16 %v353
      %v1140 = vunpack.c.l.b16 %v354
      %v1141 = vunpack.c.h.b16 %v354
      %v1142 = vunpack.c.l.b16 %v355
      %v1143 = vunpack.c.h.b16 %v355
      %v1144 = vunpack.c.l.b16 %v356
      %v1145 = vunpack.c.h.b16 %v356
      %v1146 = vunpack.c.l.b16 %v357
      %v1147 = vunpack.c.h.b16 %v357
      %v1148 = vunpack.c.l.b16 %v358
      %v1149 = vunpack.c.h.b16 %v358
      %v1150 = vunpack.c.l.b16 %v359
      %v1151 = vunpack.c.h.b16 %v359
      %v1152 = vunpack.c.l.b16 %v360
      %v1153 = vunpack.c.h.b16 %v360
      %v1154 = vunpack.c.l.b16 %v361
      %v1155 = vunpack.c.h.b16 %v361
      %v1156 = vunpack.c.l.b16 %v362
      %v1157 = vunpack.c.h.b16 %v362
      %v1158 = vunpack.c.l.b16 %v363
      %v1159 = vunpack.c.h.b16 %v363
      %v1160 = vunpack.c.l.b16 %v364
      %v1161 = vunpack.c.h.b16 %v364
      %v1162 = vunpack.c.l.b16 %v365
      %v1163 = vunpack.c.h.b16 %v365
      %v1164 = vunpack.c.l.b16 %v366
      %v1165 = vunpack.c.h.b16 %v366
      %v1166 = vunpack.c.l.b16 %v367
      %v1167 = vunpack.c.h.b16 %v367
      %v1168 = vunpack.c.l.b16 %v368
      %v1169 = vunpack.c.h.b16 %v368
      %v1170 = vunpack.c.l.b16 %v369
      %v1171 = vunpack.c.h.b16 %v369
      %v1172 = vunpack.c.l.b16 %v370
      %v1173 = vunpack.c.h.b16 %v370
      %v1174 = vunpack.c.l.b16 %v371
      %v1175 = vunpack.c.h.b16 %v371
      %v1176 = vunpack.c.l.b16 %v372
      %v1177 = vunpack.c.h.b16 %v372
      %v1178 = vunpack.c.l.b16 %v373
      %v1179 = vunpack.c.h.b16 %v373
      %v1180 = vunpack.c.l.b16 %v374
      %v1181 = vunpack.c.h.b16 %v374
      %v1182 = vunpack.c.l.b16 %v375
      %v1183 = vunpack.c.h.b16 %v375
      %v1184 = vunpack.c.l.b16 %v376
      %v1185 = vunpack.c.h.b16 %v376
      %v1186 = vunpack.c.l.b16 %v377
      %v1187 = vunpack.c.h.b16 %v377
      %v1188 = vunpack.c.l.b16 %v378
      %v1189 = vunpack.c.h.b16 %v378
      %v1190 = vunpack.c.l.b16 %v379
      %v1191 = vunpack.c.h.b16 %v379
      %v1192 = vunpack.c.l.b16 %v380
      %v1193 = vunpack.c.h.b16 %v380
      %v1194 = vunpack.c.l.b16 %v381
      %v1195 = vunpack.c.h.b16 %v381
      %v1196 = vunpack.c.l.b16 %v382
      %v1197 = vunpack.c.h.b16 %v382
      %v1198 = vunpack.c.l.b16 %v383
      %v1199 = vunpack.c.h.b16 %v383
      %v1200 = vunpack.c.l.b16 %v384
      %v1201 = vunpack.c.h.b16 %v384
      %v1202 = vunpack.c.l.b16 %v385
      %v1203 = vunpack.c.h.b16 %v385
      %v1204 = vunpack.c.l.b16 %v386
      %v1205 = vunpack.c.h.b16 %v386
      %v1206 = vunpack.c.l.b16 %v387
      %v1207 = vunpack.c.h.b16 %v387
      %v1208 = vunpack.c.l.b16 %v388
      %v1209 = vunpack.c.h.b16 %v388
      %v1210 = vunpack.c.l.b16 %v389
      %v1211 = vunpack.c.h.b16 %v389
      %v1212 = vunpack.c.l.b16 %v390
      %v1213 = vunpack.c.h.b16 %v390
      %v1214 = vunpack.c.l.b16 %v391
      %v1215 = vunpack.c.h.b16 %v391
      %v1216 = vunpack.c.l.b16 %v392
      %v1217 = vunpack.c.h.b16 %v392
      %v1218 = vunpack.c.l.b16 %v393
      %v1219 = vunpack.c.h.b16 %v393
      %v1220 = vunpack.c.l.b16 %v394
      %v1221 = vunpack.c.h.b16 %v394
      %v1222 = vunpack.c.l.b16 %v395
      %v1223 = vunpack.c.h.b16 %v395
      %v1224 = vunpack.c.l.b16 %v396
      %v1225 = vunpack.c.h.b16 %v396
      %v1226 = vunpack.c.l.b16 %v397
      %v1227 = vunpack.c.h.b16 %v397
      %v1228 = vunpack.c.l.b16 %v398
      %v1229 = vunpack.c.h.b16 %v398
      %v1230 = vunpack.c.l.b16 %v399
      %v1231 = vunpack.c.h.b16 %v399
      %v1232 = vunpack.c.l.b16 %v400
      %v1233 = vunpack.c.h.b16 %v400
      %v1234 = vunpack.c.l.b16 %v401
      %v1235 = vunpack.c.h.b16 %v401
      %v1236 = vunpack.c.l.b16 %v402
      %v1237 = vunpack.c.h.b16 %v402
      %v1238 = vunpack.c.l.b16 %v403
      %v1239 = vunpack.c.h.b16 %v403
      %v1240 = vunpack.c.l.b16 %v404
      %v1241 = vunpack.c.h.b16 %v404
      %v1242 = vunpack.c.l.b16 %v405
      %v1243 = vunpack.c.h.b16 %v405
      %v1244 = vunpack.c.l.b16 %v406
      %v1245 = vunpack.c.h.b16 %v406
      %v1246 = vunpack.c.l.b16 %v407
      %v1247 = vunpack.c.h.b16 %v407
      %v1248 = vunpack.c.l.b16 %v408
      %v1249 = vunpack.c.h.b16 %v408
      %v1250 = vunpack.c.l.b16 %v409
      %v1251 = vunpack.c.h.b16 %v409
      %v1252 = vunpack.c.l.b16 %v410
      %v1253 = vunpack.c.h.b16 %v410
      %v1254 = vunpack.c.l.b16 %v411
      %v1255 = vunpack.c.h.b16 %v411
      %v1256 = vunpack.c.l.b16 %v412
      %v1257 = vunpack.c.h.b16 %v412
      %v1258 = vunpack.c.l.b16 %v413
      %v1259 = vunpack.c.h.b16 %v413
      %v1260 = vunpack.c.l.b16 %v414
      %v1261 = vunpack.c.h.b16 %v414
      %v1262 = vunpack.c.l.b16 %v415
      %v1263 = vunpack.c.h.b16 %v415
      %v1264 = vpack.c.b16 %v754, %v752
      %v1265 = vpack.c.b16 %v755, %v753
      %v1266 = vpack.c.b16 %v758, %v756
      %v1267 = vpack.c.b16 %v759, %v757
      %v1268 = vpack.c.b16 %v762, %v760
      %v1269 = vpack.c.b16 %v763, %v761
      %v1270 = vpack.c.b16 %v766, %v764
      %v1271 = vpack.c.b16 %v767, %v765
      %v1272 = vpack.c.b16 %v770, %v768
      %v1273 = vpack.c.b16 %v771, %v769
      %v1274 = vpack.c.b16 %v774, %v772
      %v1275 = vpack.c.b16 %v775, %v773
      %v1276 = vpack.c.b16 %v778, %v776
      %v1277 = vpack.c.b16 %v779, %v777
      %v1278 = vpack.c.b16 %v782, %v780
      %v1279 = vpack.c.b16 %v783, %v781
      %v1280 = vpack.c.b16 %v786, %v784
      %v1281 = vpack.c.b16 %v787, %v785
      %v1282 = vpack.c.b16 %v790, %v788
      %v1283 = vpack.c.b16 %v791, %v789
      %v1284 = vpack.c.b16 %v794, %v792
      %v1285 = vpack.c.b16 %v795, %v793
      %v1286 = vpack.c.b16 %v798, %v796
      %v1287 = vpack.c.b16 %v799, %v797
      %v1288 = vpack.c.b16 %v802, %v800
      %v1289 = vpack.c.b16 %v803, %v801
      %v1290 = vpack.c.b16 %v806, %v804
      %v1291 = vpack.c.b16 %v807, %v805
      %v1292 = vpack.c.b16 %v810, %v808
      %v1293 = vpack.c.b16 %v811, %v809
      %v1294 = vpack.c.b16 %v814, %v812
      %v1295 = vpack.c.b16 %v815, %v813
      %v1296 = vpack.c.b16 %v818, %v816
      %v1297 = vpack.c.b16 %v819, %v817
      %v1298 = vpack.c.b16 %v822, %v820
      %v1299 = vpack.c.b16 %v823, %v821
      %v1300 = vpack.c.b16 %v826, %v824
      %v1301 = vpack.c.b16 %v827, %v825
      %v1302 = vpack.c.b16 %v830, %v828
      %v1303 = vpack.c.b16 %v831, %v829
      %v1304 = vpack.c.b16 %v834, %v832
      %v1305 = vpack.c.b16 %v835, %v833
      %v1306 = vpack.c.b16 %v838, %v836
      %v1307 = vpack.c.b16 %v839, %v837
      %v1308 = vpack.c.b16 %v842, %v840
      %v1309 = vpack.c.b16 %v843, %v841
      %v1310 = vpack.c.b16 %v846, %v844
      %v1311 = vpack.c.b16 %v847, %v845
      %v1312 = vpack.c.b16 %v850, %v848
      %v1313 = vpack.c.b16 %v851, %v849
      %v1314 = vpack.c.b16 %v854, %v852
      %v1315 = vpack.c.b16 %v855, %v853
      %v1316 = vpack.c.b16 %v858, %v856
      %v1317 = vpack.c.b16 %v859, %v857
      %v1318 = vpack.c.b16 %v862, %v860
      %v1319 = vpack.c.b16 %v863, %v861
      %v1320 = vpack.c.b16 %v866, %v864
      %v1321 = vpack.c.b16 %v867, %v865
      %v1322 = vpack.c.b16 %v870, %v868
      %v1323 = vpack.c.b16 %v871, %v869
      %v1324 = vpack.c.b16 %v874, %v872
      %v1325 = vpack.c.b16 %v875, %v873
      %v1326 = vpack.c.b16 %v878, %v876
      %v1327 = vpack.c.b16 %v879, %v877
      %v1328 = vpack.c.b16 %v882, %v880
      %v1329 = vpack.c.b16 %v883, %v881
      %v1330 = vpack.c.b16 %v886, %v884
      %v1331 = vpack.c.b16 %v887, %v885
      %v1332 = vpack.c.b16 %v890, %v888
      %v1333 = vpack.c.b16 %v891, %v889
      %v1334 = vpack.c.b16 %v894, %v892
      %v1335 = vpack.c.b16 %v895, %v893
      %v1336 = vpack.c.b16 %v898, %v896
      %v1337 = vpack.c.b16 %v899, %v897
      %v1338 = vpack.c.b16 %v902, %v900
      %v1339 = vpack.c.b16 %v903, %v901
      %v1340 = vpack.c.b16 %v906, %v904
      %v1341 = vpack.c.b16 %v907, %v905
      %v1342 = vpack.c.b16 %v910, %v908
      %v1343 = vpack.c.b16 %v911, %v909
      %v1344 = vpack.c.b16 %v914, %v912
      %v1345 = vpack.c.b16 %v915, %v913
      %v1346 = vpack.c.b16 %v918, %v916
      %v1347 = vpack.c.b16 %v919, %v917
      %v1348 = vpack.c.b16 %v922, %v920
      %v1349 = vpack.c.b16 %v923, %v921
      %v1350 = vpack.c.b16 %v926, %v924
      %v1351 = vpack.c.b16 %v927, %v925
      %v1352 = vpack.c.b16 %v930, %v928
      %v1353 = vpack.c.b16 %v931, %v929
      %v1354 = vpack.c.b16 %v934, %v932
      %v1355 = vpack.c.b16 %v935, %v933
      %v1356 = vpack.c.b16 %v938, %v936
      %v1357 = vpack.c.b16 %v939, %v937
      %v1358 = vpack.c.b16 %v942, %v940
      %v1359 = vpack.c.b16 %v943, %v941
      %v1360 = vpack.c.b16 %v946, %v944
      %v1361 = vpack.c.b16 %v947, %v945
      %v1362 = vpack.c.b16 %v950, %v948
      %v1363 = vpack.c.b16 %v951, %v949
      %v1364 = vpack.c.b16 %v954, %v952
      %v1365 = vpack.c.b16 %v955, %v953
      %v1366 = vpack.c.b16 %v958, %v956
      %v1367 = vpack.c.b16 %v959, %v957
      %v1368 = vpack.c.b16 %v962, %v960
      %v1369 = vpack.c.b16 %v963, %v961
      %v1370 = vpack.c.b16 %v966, %v964
      %v1371 = vpack.c.b16 %v967, %v965
      %v1372 = vpack.c.b16 %v970, %v968
      %v1373 = vpack.c.b16 %v971, %v969
      %v1374 = vpack.c.b16 %v974, %v972
      %v1375 = vpack.c.b16 %v975, %v973
      %v1376 = vpack.c.b16 %v978, %v976
      %v1377 = vpack.c.b16 %v979, %v977
      %v1378 = vpack.c.b16 %v982, %v980
      %v1379 = vpack.c.b16 %v983, %v981
      %v1380 = vpack.c.b16 %v986, %v984
      %v1381 = vpack.c.b16 %v987, %v985
      %v1382 = vpack.c.b16 %v990, %v988
      %v1383 = vpack.c.b16 %v991, %v989
      %v1384 = vpack.c.b16 %v994, %v992
      %v1385 = vpack.c.b16 %v995, %v993
      %v1386 = vpack.c.b16 %v998, %v996
      %v1387 = vpack.c.b16 %v999, %v997
      %v1388 = vpack.c.b16 %v1002, %v1000
      %v1389 = vpack.c.b16 %v1003, %v1001
      %v1390 = vpack.c.b16 %v1006, %v1004
      %v1391 = vpack.c.b16 %v1007, %v1005
      %v1392 = vpack.c.b16 %v1010, %v1008
      %v1393 = vpack.c.b16 %v1011, %v1009
      %v1394 = vpack.c.b16 %v1014, %v1012
      %v1395 = vpack.c.b16 %v1015, %v1013
      %v1396 = vpack.c.b16 %v1018, %v1016
      %v1397 = vpack.c.b16 %v1019, %v1017
      %v1398 = vpack.c.b16 %v1022, %v1020
      %v1399 = vpack.c.b16 %v1023, %v1021
      %v1400 = vpack.c.b16 %v1026, %v1024
      %v1401 = vpack.c.b16 %v1027, %v1025
      %v1402 = vpack.c.b16 %v1030, %v1028
      %v1403 = vpack.c.b16 %v1031, %v1029
      %v1404 = vpack.c.b16 %v1034, %v1032
      %v1405 = vpack.c.b16 %v1035, %v1033
      %v1406 = vpack.c.b16 %v1038, %v1036
      %v1407 = vpack.c.b16 %v1039, %v1037
      %v1408 = vpack.c.b16 %v1042, %v1040
      %v1409 = vpack.c.b16 %v1043, %v1041
      %v1410 = vpack.c.b16 %v1046, %v1044
      %v1411 = vpack.c.b16 %v1047, %v1045
      %v1412 = vpack.c.b16 %v1050, %v1048
      %v1413 = vpack.c.b16 %v1051, %v1049
      %v1414 = vpack.c.b16 %v1054, %v1052
      %v1415 = vpack.c.b16 %v1055, %v1053
      %v1416 = vpack.c.b16 %v1058, %v1056
      %v1417 = vpack.c.b16 %v1059, %v1057
      %v1418 = vpack.c.b16 %v1062, %v1060
      %v1419 = vpack.c.b16 %v1063, %v1061
      %v1420 = vpack.c.b16 %v1066, %v1064
      %v1421 = vpack.c.b16 %v1067, %v1065
      %v1422 = vpack.c.b16 %v1070, %v1068
      %v1423 = vpack.c.b16 %v1071, %v1069
      %v1424 = vpack.c.b16 %v1074, %v1072
      %v1425 = vpack.c.b16 %v1075, %v1073
      %v1426 = vpack.c.b16 %v1078, %v1076
      %v1427 = vpack.c.b16 %v1079, %v1077
      %v1428 = vpack.c.b16 %v1082, %v1080
      %v1429 = vpack.c.b16 %v1083, %v1081
      %v1430 = vpack.c.b16 %v1086, %v1084
      %v1431 = vpack.c.b16 %v1087, %v1085
      %v1432 = vpack.c.b16 %v1090, %v1088
      %v1433 = vpack.c.b16 %v1091, %v1089
      %v1434 = vpack.c.b16 %v1094, %v1092
      %v1435 = vpack.c.b16 %v1095, %v1093
      %v1436 = vpack.c.b16 %v1098, %v1096
      %v1437 = vpack.c.b16 %v1099, %v1097
      %v1438 = vpack.c.b16 %v1102, %v1100
      %v1439 = vpack.c.b16 %v1103, %v1101
      %v1440 = vpack.c.b16 %v1106, %v1104
      %v1441 = vpack.c.b16 %v1107, %v1105
      %v1442 = vpack.c.b16 %v1110, %v1108
      %v1443 = vpack.c.b16 %v1111, %v1109
      %v1444 = vpack.c.b16 %v1114, %v1112
      %v1445 = vpack.c.b16 %v1115, %v1113
      %v1446 = vpack.c.b16 %v1118, %v1116
      %v1447 = vpack.c.b16 %v1119, %v1117
      %v1448 = vpack.c.b16 %v1122, %v1120
      %v1449 = vpack.c.b16 %v1123, %v1121
      %v1450 = vpack.c.b16 %v1126, %v1124
      %v1451 = vpack.c.b16 %v1127, %v1125
      %v1452 = vpack.c.b16 %v1130, %v1128
      %v1453 = vpack.c.b16 %v1131, %v1129
      %v1454 = vpack.c.b16 %v1134, %v1132
      %v1455 = vpack.c.b16 %v1135, %v1133
      %v1456 = vpack.c.b16 %v1138, %v1136
      %v1457 = vpack.c.b16 %v1139, %v1137
      %v1458 = vpack.c.b16 %v1142, %v1140
      %v1459 = vpack.c.b16 %v1143, %v1141
      %v1460 = vpack.c.b16 %v1146, %v1144
      %v1461 = vpack.c.b16 %v1147, %v1145
      %v1462 = vpack.c.b16 %v1150, %v1148
      %v1463 = vpack.c.b16 %v1151, %v1149
      %v1464 = vpack.c.b16 %v1154, %v1152
      %v1465 = vpack.c.b16 %v1155, %v1153
      %v1466 = vpack.c.b16 %v1158, %v1156
      %v1467 = vpack.c.b16 %v1159, %v1157
      %v1468 = vpack.c.b16 %v1162, %v1160
      %v1469 = vpack.c.b16 %v1163, %v1161
      %v1470 = vpack.c.b16 %v1166, %v1164
      %v1471 = vpack.c.b16 %v1167, %v1165
      %v1472 = vpack.c.b16 %v1170, %v1168
      %v1473 = vpack.c.b16 %v1171, %v1169
      %v1474 = vpack.c.b16 %v1174, %v1172
      %v1475 = vpack.c.b16 %v1175, %v1173
      %v1476 = vpack.c.b16 %v1178, %v1176
      %v1477 = vpack.c.b16 %v1179, %v1177
      %v1478 = vpack.c.b16 %v1182, %v1180
      %v1479 = vpack.c.b16 %v1183, %v1181
      %v1480 = vpack.c.b16 %v1186, %v1184
      %v1481 = vpack.c.b16 %v1187, %v1185
      %v1482 = vpack.c.b16 %v1190, %v1188
      %v1483 = vpack.c.b16 %v1191, %v1189
      %v1484 = vpack.c.b16 %v1194, %v1192
      %v1485 = vpack.c.b16 %v1195, %v1193
      %v1486 = vpack.c.b16 %v1198, %v1196
      %v1487 = vpack.c.b16 %v1199, %v1197
      %v1488 = vpack.c.b16 %v1202, %v1200
      %v1489 = vpack.c.b16 %v1203, %v1201
      %v1490 = vpack.c.b16 %v1206, %v1204
      %v1491 = vpack.c.b16 %v1207, %v1205
      %v1492 = vpack.c.b16 %v1210, %v1208
      %v1493 = vpack.c.b16 %v1211, %v1209
      %v1494 = vpack.c.b16 %v1214, %v1212
      %v1495 = vpack.c.b16 %v1215, %v1213
      %v1496 = vpack.c.b16 %v1218, %v1216
      %v1497 = vpack.c.b16 %v1219, %v1217
      %v1498 = vpack.c.b16 %v1222, %v1220
      %v1499 = vpack.c.b16 %v1223, %v1221
      %v1500 = vpack.c.b16 %v1226, %v1224
      %v1501 = vpack.c.b16 %v1227, %v1225
      %v1502 = vpack.c.b16 %v1230, %v1228
      %v1503 = vpack.c.b16 %v1231, %v1229
      %v1504 = vpack.c.b16 %v1234, %v1232
      %v1505 = vpack.c.b16 %v1235, %v1233
      %v1506 = vpack.c.b16 %v1238, %v1236
      %v1507 = vpack.c.b16 %v1239, %v1237
      %v1508 = vpack.c.b16 %v1242, %v1240
      %v1509 = vpack.c.b16 %v1243, %v1241
      %v1510 = vpack.c.b16 %v1246, %v1244
      %v1511 = vpack.c.b16 %v1247, %v1245
      %v1512 = vpack.c.b16 %v1250, %v1248
      %v1513 = vpack.c.b16 %v1251, %v1249
      %v1514 = vpack.c.b16 %v1254, %v1252
      %v1515 = vpack.c.b16 %v1255, %v1253
      %v1516 = vpack.c.b16 %v1258, %v1256
      %v1517 = vpack.c.b16 %v1259, %v1257
      %v1518 = vpack.c.b16 %v1262, %v1260
      %v1519 = vpack.c.b16 %v1263, %v1261
      %1776 = vmatprep.subr.bf16.mxu0 %v1279
      %1777 = vmatpush1.bf16.msra.mxu0 %v1278
      %1778 = vmatprep.subr.bf16.mxu0 %v1277
      %1779 = vmatpush1.bf16.msra.mxu0 %v1276
      %1780 = vmatprep.subr.bf16.mxu0 %v1275
      %1781 = vmatpush1.bf16.msra.mxu0 %v1274
      %1782 = vmatprep.subr.bf16.mxu0 %v1273
      %1783 = vmatpush1.bf16.msra.mxu0 %v1272
      %1784 = vmatprep.subr.bf16.mxu0 %v1271
      %1785 = vmatpush1.bf16.msra.mxu0 %v1270
      %1786 = vmatprep.subr.bf16.mxu0 %v1269
      %1787 = vmatpush1.bf16.msra.mxu0 %v1268
      %1788 = vmatprep.subr.bf16.mxu0 %v1267
      %1789 = vmatpush1.bf16.msra.mxu0 %v1266
      %1790 = vmatprep.subr.bf16.mxu0 %v1265
      %1791 = vmatpush1.bf16.msra.mxu0 %v1264
      %1792 = vmatprep.subr.bf16.mxu0 %v1295
      %1793 = vmatpush2.bf16.msra.mxu0 %v1294
      %1794 = vmatprep.subr.bf16.mxu0 %v1293
      %1795 = vmatpush2.bf16.msra.mxu0 %v1292
      %1796 = vmatprep.subr.bf16.mxu0 %v1291
      %1797 = vmatpush2.bf16.msra.mxu0 %v1290
      %1798 = vmatprep.subr.bf16.mxu0 %v1289
      %1799 = vmatpush2.bf16.msra.mxu0 %v1288
      %1800 = vmatprep.subr.bf16.mxu0 %v1287
      %1801 = vmatpush2.bf16.msra.mxu0 %v1286
      %1802 = vmatprep.subr.bf16.mxu0 %v1285
      %1803 = vmatpush2.bf16.msra.mxu0 %v1284
      %1804 = vmatprep.subr.bf16.mxu0 %v1283
      %1805 = vmatpush2.bf16.msra.mxu0 %v1282
      %1806 = vmatprep.subr.bf16.mxu0 %v1281
      %1807 = vmatpush2.bf16.msra.mxu0 %v1280
      %1808 = vmatprep.mubr.bf16.mxu0 %v465
      %1809 = vmatmul.mubr.bf16.gmra.mxu0 %v464
      %v1810 = vpop.f32.mrf.mxu0
      %v1811 = vadd.f32 0.0, %v1810
      %v1812 = vpop.f32.mrf.mxu0
      %v1813 = vadd.f32 0.0, %v1812
      %v1814 = vpop.f32.mrf.mxu0
      %v1815 = vadd.f32 0.0, %v1814
      %v1816 = vpop.f32.mrf.mxu0
      %v1817 = vadd.f32 0.0, %v1816
      %1818 = vdwg.mxu0
      %1819 = vmatprep.subr.bf16.mxu0 %v1311
      %1820 = vmatpush1.bf16.msra.mxu0 %v1310
      %1821 = vmatprep.subr.bf16.mxu0 %v1309
      %1822 = vmatpush1.bf16.msra.mxu0 %v1308
      %1823 = vmatprep.subr.bf16.mxu0 %v1307
      %1824 = vmatpush1.bf16.msra.mxu0 %v1306
      %1825 = vmatprep.subr.bf16.mxu0 %v1305
      %1826 = vmatpush1.bf16.msra.mxu0 %v1304
      %1827 = vmatprep.subr.bf16.mxu0 %v1303
      %1828 = vmatpush1.bf16.msra.mxu0 %v1302
      %1829 = vmatprep.subr.bf16.mxu0 %v1301
      %1830 = vmatpush1.bf16.msra.mxu0 %v1300
      %1831 = vmatprep.subr.bf16.mxu0 %v1299
      %1832 = vmatpush1.bf16.msra.mxu0 %v1298
      %1833 = vmatprep.subr.bf16.mxu0 %v1297
      %1834 = vmatpush1.bf16.msra.mxu0 %v1296
      %1835 = vmatprep.subr.bf16.mxu0 %v1327
      %1836 = vmatpush2.bf16.msra.mxu0 %v1326
      %1837 = vmatprep.subr.bf16.mxu0 %v1325
      %1838 = vmatpush2.bf16.msra.mxu0 %v1324
      %1839 = vmatprep.subr.bf16.mxu0 %v1323
      %1840 = vmatpush2.bf16.msra.mxu0 %v1322
      %1841 = vmatprep.subr.bf16.mxu0 %v1321
      %1842 = vmatpush2.bf16.msra.mxu0 %v1320
      %1843 = vmatprep.subr.bf16.mxu0 %v1319
      %1844 = vmatpush2.bf16.msra.mxu0 %v1318
      %1845 = vmatprep.subr.bf16.mxu0 %v1317
      %1846 = vmatpush2.bf16.msra.mxu0 %v1316
      %1847 = vmatprep.subr.bf16.mxu0 %v1315
      %1848 = vmatpush2.bf16.msra.mxu0 %v1314
      %1849 = vmatprep.subr.bf16.mxu0 %v1313
      %1850 = vmatpush2.bf16.msra.mxu0 %v1312
      %1851 = vmatprep.mubr.bf16.mxu0 %v467
      %1852 = vmatmul.mubr.bf16.gmra.mxu0 %v466
      %v1853 = vpop.f32.mrf.mxu0
      %v1854 = vadd.f32 %v1811, %v1853
      %v1855 = vpop.f32.mrf.mxu0
      %v1856 = vadd.f32 %v1813, %v1855
      %v1857 = vpop.f32.mrf.mxu0
      %v1858 = vadd.f32 %v1815, %v1857
      %v1859 = vpop.f32.mrf.mxu0
      %v1860 = vadd.f32 %v1817, %v1859
      %1861 = vdwg.mxu0
      %1862 = vmatprep.subr.bf16.mxu0 %v1343
      %1863 = vmatpush1.bf16.msra.mxu0 %v1342
      %1864 = vmatprep.subr.bf16.mxu0 %v1341
      %1865 = vmatpush1.bf16.msra.mxu0 %v1340
      %1866 = vmatprep.subr.bf16.mxu0 %v1339
      %1867 = vmatpush1.bf16.msra.mxu0 %v1338
      %1868 = vmatprep.subr.bf16.mxu0 %v1337
      %1869 = vmatpush1.bf16.msra.mxu0 %v1336
      %1870 = vmatprep.subr.bf16.mxu0 %v1335
      %1871 = vmatpush1.bf16.msra.mxu0 %v1334
      %1872 = vmatprep.subr.bf16.mxu0 %v1333
      %1873 = vmatpush1.bf16.msra.mxu0 %v1332
      %1874 = vmatprep.subr.bf16.mxu0 %v1331
      %1875 = vmatpush1.bf16.msra.mxu0 %v1330
      %1876 = vmatprep.subr.bf16.mxu0 %v1329
      %1877 = vmatpush1.bf16.msra.mxu0 %v1328
      %1878 = vmatprep.subr.bf16.mxu0 %v1359
      %1879 = vmatpush2.bf16.msra.mxu0 %v1358
      %1880 = vmatprep.subr.bf16.mxu0 %v1357
      %1881 = vmatpush2.bf16.msra.mxu0 %v1356
      %1882 = vmatprep.subr.bf16.mxu0 %v1355
      %1883 = vmatpush2.bf16.msra.mxu0 %v1354
      %1884 = vmatprep.subr.bf16.mxu0 %v1353
      %1885 = vmatpush2.bf16.msra.mxu0 %v1352
      %1886 = vmatprep.subr.bf16.mxu0 %v1351
      %1887 = vmatpush2.bf16.msra.mxu0 %v1350
      %1888 = vmatprep.subr.bf16.mxu0 %v1349
      %1889 = vmatpush2.bf16.msra.mxu0 %v1348
      %1890 = vmatprep.subr.bf16.mxu0 %v1347
      %1891 = vmatpush2.bf16.msra.mxu0 %v1346
      %1892 = vmatprep.subr.bf16.mxu0 %v1345
      %1893 = vmatpush2.bf16.msra.mxu0 %v1344
      %1894 = vmatprep.mubr.bf16.mxu0 %v469
      %1895 = vmatmul.mubr.bf16.gmra.mxu0 %v468
      %v1896 = vpop.f32.mrf.mxu0
      %v1897 = vadd.f32 %v1854, %v1896
      %v1898 = vpop.f32.mrf.mxu0
      %v1899 = vadd.f32 %v1856, %v1898
      %v1900 = vpop.f32.mrf.mxu0
      %v1901 = vadd.f32 %v1858, %v1900
      %v1902 = vpop.f32.mrf.mxu0
      %v1903 = vadd.f32 %v1860, %v1902
      %1904 = vdwg.mxu0
      %1905 = vmatprep.subr.bf16.mxu0 %v1375
      %1906 = vmatpush1.bf16.msra.mxu0 %v1374
      %1907 = vmatprep.subr.bf16.mxu0 %v1373
      %1908 = vmatpush1.bf16.msra.mxu0 %v1372
      %1909 = vmatprep.subr.bf16.mxu0 %v1371
      %1910 = vmatpush1.bf16.msra.mxu0 %v1370
      %1911 = vmatprep.subr.bf16.mxu0 %v1369
      %1912 = vmatpush1.bf16.msra.mxu0 %v1368
      %1913 = vmatprep.subr.bf16.mxu0 %v1367
      %1914 = vmatpush1.bf16.msra.mxu0 %v1366
      %1915 = vmatprep.subr.bf16.mxu0 %v1365
      %1916 = vmatpush1.bf16.msra.mxu0 %v1364
      %1917 = vmatprep.subr.bf16.mxu0 %v1363
      %1918 = vmatpush1.bf16.msra.mxu0 %v1362
      %1919 = vmatprep.subr.bf16.mxu0 %v1361
      %1920 = vmatpush1.bf16.msra.mxu0 %v1360
      %1921 = vmatprep.subr.bf16.mxu0 %v1391
      %1922 = vmatpush2.bf16.msra.mxu0 %v1390
      %1923 = vmatprep.subr.bf16.mxu0 %v1389
      %1924 = vmatpush2.bf16.msra.mxu0 %v1388
      %1925 = vmatprep.subr.bf16.mxu0 %v1387
      %1926 = vmatpush2.bf16.msra.mxu0 %v1386
      %1927 = vmatprep.subr.bf16.mxu0 %v1385
      %1928 = vmatpush2.bf16.msra.mxu0 %v1384
      %1929 = vmatprep.subr.bf16.mxu0 %v1383
      %1930 = vmatpush2.bf16.msra.mxu0 %v1382
      %1931 = vmatprep.subr.bf16.mxu0 %v1381
      %1932 = vmatpush2.bf16.msra.mxu0 %v1380
      %1933 = vmatprep.subr.bf16.mxu0 %v1379
      %1934 = vmatpush2.bf16.msra.mxu0 %v1378
      %1935 = vmatprep.subr.bf16.mxu0 %v1377
      %1936 = vmatpush2.bf16.msra.mxu0 %v1376
      %1937 = vmatprep.mubr.bf16.mxu0 %v471
      %1938 = vmatmul.mubr.bf16.gmra.mxu0 %v470
      %v1939 = vpop.f32.mrf.mxu0
      %v1940 = vadd.f32 %v1897, %v1939
      %v1941 = vpop.f32.mrf.mxu0
      %v1942 = vadd.f32 %v1899, %v1941
      %v1943 = vpop.f32.mrf.mxu0
      %v1944 = vadd.f32 %v1901, %v1943
      %v1945 = vpop.f32.mrf.mxu0
      %v1946 = vadd.f32 %v1903, %v1945
      %1947 = vdwg.mxu0
      %1948 = vmatprep.subr.bf16.mxu0 %v1407
      %1949 = vmatpush1.bf16.msra.mxu0 %v1406
      %1950 = vmatprep.subr.bf16.mxu0 %v1405
      %1951 = vmatpush1.bf16.msra.mxu0 %v1404
      %1952 = vmatprep.subr.bf16.mxu0 %v1403
      %1953 = vmatpush1.bf16.msra.mxu0 %v1402
      %1954 = vmatprep.subr.bf16.mxu0 %v1401
      %1955 = vmatpush1.bf16.msra.mxu0 %v1400
      %1956 = vmatprep.subr.bf16.mxu0 %v1399
      %1957 = vmatpush1.bf16.msra.mxu0 %v1398
      %1958 = vmatprep.subr.bf16.mxu0 %v1397
      %1959 = vmatpush1.bf16.msra.mxu0 %v1396
      %1960 = vmatprep.subr.bf16.mxu0 %v1395
      %1961 = vmatpush1.bf16.msra.mxu0 %v1394
      %1962 = vmatprep.subr.bf16.mxu0 %v1393
      %1963 = vmatpush1.bf16.msra.mxu0 %v1392
      %1964 = vmatprep.subr.bf16.mxu0 %v1423
      %1965 = vmatpush2.bf16.msra.mxu0 %v1422
      %1966 = vmatprep.subr.bf16.mxu0 %v1421
      %1967 = vmatpush2.bf16.msra.mxu0 %v1420
      %1968 = vmatprep.subr.bf16.mxu0 %v1419
      %1969 = vmatpush2.bf16.msra.mxu0 %v1418
      %1970 = vmatprep.subr.bf16.mxu0 %v1417
      %1971 = vmatpush2.bf16.msra.mxu0 %v1416
      %1972 = vmatprep.subr.bf16.mxu0 %v1415
      %1973 = vmatpush2.bf16.msra.mxu0 %v1414
      %1974 = vmatprep.subr.bf16.mxu0 %v1413
      %1975 = vmatpush2.bf16.msra.mxu0 %v1412
      %1976 = vmatprep.subr.bf16.mxu0 %v1411
      %1977 = vmatpush2.bf16.msra.mxu0 %v1410
      %1978 = vmatprep.subr.bf16.mxu0 %v1409
      %1979 = vmatpush2.bf16.msra.mxu0 %v1408
      %1980 = vmatprep.mubr.bf16.mxu0 %v473
      %1981 = vmatmul.mubr.bf16.gmra.mxu0 %v472
      %v1982 = vpop.f32.mrf.mxu0
      %v1983 = vadd.f32 %v1940, %v1982
      %v1984 = vpop.f32.mrf.mxu0
      %v1985 = vadd.f32 %v1942, %v1984
      %v1986 = vpop.f32.mrf.mxu0
      %v1987 = vadd.f32 %v1944, %v1986
      %v1988 = vpop.f32.mrf.mxu0
      %v1989 = vadd.f32 %v1946, %v1988
      %1990 = vdwg.mxu0
      %1991 = vmatprep.subr.bf16.mxu0 %v1439
      %1992 = vmatpush1.bf16.msra.mxu0 %v1438
      %1993 = vmatprep.subr.bf16.mxu0 %v1437
      %1994 = vmatpush1.bf16.msra.mxu0 %v1436
      %1995 = vmatprep.subr.bf16.mxu0 %v1435
      %1996 = vmatpush1.bf16.msra.mxu0 %v1434
      %1997 = vmatprep.subr.bf16.mxu0 %v1433
      %1998 = vmatpush1.bf16.msra.mxu0 %v1432
      %1999 = vmatprep.subr.bf16.mxu0 %v1431
      %2000 = vmatpush1.bf16.msra.mxu0 %v1430
      %2001 = vmatprep.subr.bf16.mxu0 %v1429
      %2002 = vmatpush1.bf16.msra.mxu0 %v1428
      %2003 = vmatprep.subr.bf16.mxu0 %v1427
      %2004 = vmatpush1.bf16.msra.mxu0 %v1426
      %2005 = vmatprep.subr.bf16.mxu0 %v1425
      %2006 = vmatpush1.bf16.msra.mxu0 %v1424
      %2007 = vmatprep.subr.bf16.mxu0 %v1455
      %2008 = vmatpush2.bf16.msra.mxu0 %v1454
      %2009 = vmatprep.subr.bf16.mxu0 %v1453
      %2010 = vmatpush2.bf16.msra.mxu0 %v1452
      %2011 = vmatprep.subr.bf16.mxu0 %v1451
      %2012 = vmatpush2.bf16.msra.mxu0 %v1450
      %2013 = vmatprep.subr.bf16.mxu0 %v1449
      %2014 = vmatpush2.bf16.msra.mxu0 %v1448
      %2015 = vmatprep.subr.bf16.mxu0 %v1447
      %2016 = vmatpush2.bf16.msra.mxu0 %v1446
      %2017 = vmatprep.subr.bf16.mxu0 %v1445
      %2018 = vmatpush2.bf16.msra.mxu0 %v1444
      %2019 = vmatprep.subr.bf16.mxu0 %v1443
      %2020 = vmatpush2.bf16.msra.mxu0 %v1442
      %2021 = vmatprep.subr.bf16.mxu0 %v1441
      %2022 = vmatpush2.bf16.msra.mxu0 %v1440
      %2023 = vmatprep.mubr.bf16.mxu0 %v475
      %2024 = vmatmul.mubr.bf16.gmra.mxu0 %v474
      %v2025 = vpop.f32.mrf.mxu0
      %v2026 = vadd.f32 %v1983, %v2025
      %v2027 = vpop.f32.mrf.mxu0
      %v2028 = vadd.f32 %v1985, %v2027
      %v2029 = vpop.f32.mrf.mxu0
      %v2030 = vadd.f32 %v1987, %v2029
      %v2031 = vpop.f32.mrf.mxu0
      %v2032 = vadd.f32 %v1989, %v2031
      %2033 = vdwg.mxu0
      %2034 = vmatprep.subr.bf16.mxu0 %v1471
      %2035 = vmatpush1.bf16.msra.mxu0 %v1470
      %2036 = vmatprep.subr.bf16.mxu0 %v1469
      %2037 = vmatpush1.bf16.msra.mxu0 %v1468
      %2038 = vmatprep.subr.bf16.mxu0 %v1467
      %2039 = vmatpush1.bf16.msra.mxu0 %v1466
      %2040 = vmatprep.subr.bf16.mxu0 %v1465
      %2041 = vmatpush1.bf16.msra.mxu0 %v1464
      %2042 = vmatprep.subr.bf16.mxu0 %v1463
      %2043 = vmatpush1.bf16.msra.mxu0 %v1462
      %2044 = vmatprep.subr.bf16.mxu0 %v1461
      %2045 = vmatpush1.bf16.msra.mxu0 %v1460
      %2046 = vmatprep.subr.bf16.mxu0 %v1459
      %2047 = vmatpush1.bf16.msra.mxu0 %v1458
      %2048 = vmatprep.subr.bf16.mxu0 %v1457
      %2049 = vmatpush1.bf16.msra.mxu0 %v1456
      %2050 = vmatprep.subr.bf16.mxu0 %v1487
      %2051 = vmatpush2.bf16.msra.mxu0 %v1486
      %2052 = vmatprep.subr.bf16.mxu0 %v1485
      %2053 = vmatpush2.bf16.msra.mxu0 %v1484
      %2054 = vmatprep.subr.bf16.mxu0 %v1483
      %2055 = vmatpush2.bf16.msra.mxu0 %v1482
      %2056 = vmatprep.subr.bf16.mxu0 %v1481
      %2057 = vmatpush2.bf16.msra.mxu0 %v1480
      %2058 = vmatprep.subr.bf16.mxu0 %v1479
      %2059 = vmatpush2.bf16.msra.mxu0 %v1478
      %2060 = vmatprep.subr.bf16.mxu0 %v1477
      %2061 = vmatpush2.bf16.msra.mxu0 %v1476
      %2062 = vmatprep.subr.bf16.mxu0 %v1475
      %2063 = vmatpush2.bf16.msra.mxu0 %v1474
      %2064 = vmatprep.subr.bf16.mxu0 %v1473
      %2065 = vmatpush2.bf16.msra.mxu0 %v1472
      %2066 = vmatprep.mubr.bf16.mxu0 %v477
      %2067 = vmatmul.mubr.bf16.gmra.mxu0 %v476
      %v2068 = vpop.f32.mrf.mxu0
      %v2069 = vadd.f32 %v2026, %v2068
      %v2070 = vpop.f32.mrf.mxu0
      %v2071 = vadd.f32 %v2028, %v2070
      %v2072 = vpop.f32.mrf.mxu0
      %v2073 = vadd.f32 %v2030, %v2072
      %v2074 = vpop.f32.mrf.mxu0
      %v2075 = vadd.f32 %v2032, %v2074
      %2076 = vdwg.mxu0
      %2077 = vmatprep.subr.bf16.mxu0 %v1503
      %2078 = vmatpush1.bf16.msra.mxu0 %v1502
      %2079 = vmatprep.subr.bf16.mxu0 %v1501
      %2080 = vmatpush1.bf16.msra.mxu0 %v1500
      %2081 = vmatprep.subr.bf16.mxu0 %v1499
      %2082 = vmatpush1.bf16.msra.mxu0 %v1498
      %2083 = vmatprep.subr.bf16.mxu0 %v1497
      %2084 = vmatpush1.bf16.msra.mxu0 %v1496
      %2085 = vmatprep.subr.bf16.mxu0 %v1495
      %2086 = vmatpush1.bf16.msra.mxu0 %v1494
      %2087 = vmatprep.subr.bf16.mxu0 %v1493
      %2088 = vmatpush1.bf16.msra.mxu0 %v1492
      %2089 = vmatprep.subr.bf16.mxu0 %v1491
      %2090 = vmatpush1.bf16.msra.mxu0 %v1490
      %2091 = vmatprep.subr.bf16.mxu0 %v1489
      %2092 = vmatpush1.bf16.msra.mxu0 %v1488
      %2093 = vmatprep.subr.bf16.mxu0 %v1519
      %2094 = vmatpush2.bf16.msra.mxu0 %v1518
      %2095 = vmatprep.subr.bf16.mxu0 %v1517
      %2096 = vmatpush2.bf16.msra.mxu0 %v1516
      %2097 = vmatprep.subr.bf16.mxu0 %v1515
      %2098 = vmatpush2.bf16.msra.mxu0 %v1514
      %2099 = vmatprep.subr.bf16.mxu0 %v1513
      %2100 = vmatpush2.bf16.msra.mxu0 %v1512
      %2101 = vmatprep.subr.bf16.mxu0 %v1511
      %2102 = vmatpush2.bf16.msra.mxu0 %v1510
      %2103 = vmatprep.subr.bf16.mxu0 %v1509
      %2104 = vmatpush2.bf16.msra.mxu0 %v1508
      %2105 = vmatprep.subr.bf16.mxu0 %v1507
      %2106 = vmatpush2.bf16.msra.mxu0 %v1506
      %2107 = vmatprep.subr.bf16.mxu0 %v1505
      %2108 = vmatpush2.bf16.msra.mxu0 %v1504
      %2109 = vmatprep.mubr.bf16.mxu0 %v479
      %2110 = vmatmul.mubr.bf16.gmra.mxu0 %v478
      %v2111 = vpop.f32.mrf.mxu0
      %v2112 = vadd.f32 %v2069, %v2111
      %v2113 = vpop.f32.mrf.mxu0
      %v2114 = vadd.f32 %v2071, %v2113
      %v2115 = vpop.f32.mrf.mxu0
      %v2116 = vadd.f32 %v2073, %v2115
      %v2117 = vpop.f32.mrf.mxu0
      %v2118 = vadd.f32 %v2075, %v2117
      %2119 = vdwg.mxu0
      %v2120 = vadd.f32 %v2112, %v2116
      %v2121 = vrot.slane %v2120, 4
      %v2122 = vadd.f32 %v2120, %v2121
      %v2123 = vrot.slane %v2122, 2
      %v2124 = vadd.f32 %v2122, %v2123
      %v2125 = vrot.slane %v2124, 1
      %v2126 = vadd.f32 %v2124, %v2125
      %v2127 = vadd.f32 %v2114, %v2118
      %v2128 = vrot.slane %v2127, 4
      %v2129 = vadd.f32 %v2127, %v2128
      %v2130 = vrot.slane %v2129, 2
      %v2131 = vadd.f32 %v2129, %v2130
      %v2132 = vrot.slane %v2131, 1
      %v2133 = vadd.f32 %v2131, %v2132
      %v2134 = vrcp.pop 16.0
      %v2135 = vmul.f32 %v2126, %v2134
      %v2136 = vmul.f32 %v2133, %v2134
      %v2137 = vsub.f32 %v2112, %v2135
      %v2138 = vsub.f32 %v2114, %v2136
      %v2139 = vsub.f32 %v2116, %v2135
      %v2140 = vsub.f32 %v2118, %v2136
      %v2141 = vmul.f32 %v2137, %v2137
      %v2142 = vmul.f32 %v2138, %v2138
      %v2143 = vmul.f32 %v2139, %v2139
      %v2144 = vmul.f32 %v2140, %v2140
      %v2145 = vadd.f32 %v2141, %v2143
      %v2146 = vrot.slane %v2145, 4
      %v2147 = vadd.f32 %v2145, %v2146
      %v2148 = vrot.slane %v2147, 2
      %v2149 = vadd.f32 %v2147, %v2148
      %v2150 = vrot.slane %v2149, 1
      %v2151 = vadd.f32 %v2149, %v2150
      %v2152 = vadd.f32 %v2142, %v2144
      %v2153 = vrot.slane %v2152, 4
      %v2154 = vadd.f32 %v2152, %v2153
      %v2155 = vrot.slane %v2154, 2
      %v2156 = vadd.f32 %v2154, %v2155
      %v2157 = vrot.slane %v2156, 1
      %v2158 = vadd.f32 %v2156, %v2157
      %v2159 = vmul.f32 %v2151, %v2134
      %v2160 = vmul.f32 %v2158, %v2134
      %v2161 = vadd.f32 %v2159, 1e-05
      %v2162 = vadd.f32 %v2160, 1e-05
      %v2163 = vrsqrt.pop %v2161
      %v2164 = vrsqrt.pop %v2162
      %v2165 = vmul.f32 %v2137, %v2163
      %v2166 = vmul.f32 %v2138, %v2164
      %v2167 = vmul.f32 %v2139, %v2163
      %v2168 = vmul.f32 %v2140, %v2164
      %vm2169 = vcmp.ge.f32.partialorder %v2165, 0.0
      %vm2170 = vcmp.ge.f32.partialorder %v2166, 0.0
      %vm2171 = vcmp.ge.f32.partialorder %v2167, 0.0
      %vm2172 = vcmp.ge.f32.partialorder %v2168, 0.0
      %v2173 = vmul.f32 %v2165, 0.2
      %v2174 = vmul.f32 %v2166, 0.2
      %v2175 = vmul.f32 %v2167, 0.2
      %v2176 = vmul.f32 %v2168, 0.2
      %v2177 = vsel %vm2169, %v2165, %v2173
      %v2178 = vsel %vm2170, %v2166, %v2174
      %v2179 = vsel %vm2171, %v2167, %v2175
      %v2180 = vsel %vm2172, %v2168, %v2176
      %v2181 = vpack.c.bf16 %v2179, %v2177
      %v2182 = vpack.c.bf16 %v2180, %v2178
      %v2185 = vunpack.c.l.b16 %v2181
      %v2186 = vunpack.c.l.b16 %v2182
      %v2187 = vunpack.c.h.b16 %v2181
      %v2188 = vunpack.c.h.b16 %v2182
      %v2189 = vpack.c.b16 %v2186, %v2185
      %v2190 = vpack.c.b16 %v2188, %v2187
      %2193 = vst [vmem:[%s143] sm:$0xff] %v2189
      %2194 = vst [vmem:[%s143 + $0x8] sm:$0xff] %v2190
      %p2195 = scmp.lt.s32.totalorder %s13, 1
      %s2196 = scalar_select %p2195, %s13, 1
      %s2197 = smul.addr %s2196, 4
      %s2198 = smul.addr %s2197, 4
      %s2199 = scalar_lea.vmem %s2, %s2198
      // Predicated region
      $region29: #{discriminator_forward.6} parent=27 // pred_check
        %p2200 = pneg %p78
      $region30: #{discriminator_forward.6} parent=27 // pred_check_branch
        %2202 = sbr.rel (%p2200) target = $region32
      $region31: #{discriminator_forward.6} parent=27 // pred_region
        _
      $region32: #{discriminator_forward.6} parent=27 // pred_fallthru
        _
    $region28: #{discriminator_forward.6} parent=5 // pred_fallthru
      _
    %p2203 = scmp.le.s32.totalorder 2, %s8
    // Predicated region
    $region33: #{discriminator_forward.6} parent=5 // pred_check
      %p2204 = pneg %p2203
    $region34: #{discriminator_forward.6} parent=5 // pred_check_branch
      %2206 = sbr.rel (%p2204) target = $region36
    $region35: #{discriminator_forward.6} parent=5 // pred_region
      %s2207 = ssub.s32 %s8, 2
      // Predicated region
      $region37: #{discriminator_forward.6} parent=35 // pred_check
        %p2208 = pneg %p84
      $region38: #{discriminator_forward.6} parent=35 // pred_check_branch
        %2210 = sbr.rel (%p2208) target = $region40
      $region39: #{discriminator_forward.6} parent=35 // pred_region
        %p2211 = scmp.lt.s32.totalorder %s14, 1
        %s2212 = scalar_select %p2211, %s14, 1
        %s2213 = smul.addr %s2212, 4
        %s2214 = smul.addr %s2213, 4
        %s2215 = scalar_lea.vmem %s2, %s2214
      $region40: #{discriminator_forward.6} parent=35 // pred_fallthru
        _
    $region36: #{discriminator_forward.6} parent=5 // pred_fallthru
      _
  $region6: #{discriminator_forward.6} parent=0 // loop_footer
    %s12 = sadd.s32 1, %s8
  $region7: #{discriminator_forward.6} parent=0 // loop_footer_branch
    %7 = sbr.rel target = $region3
  $region8: #{discriminator_forward.6} parent=0 // loop_exit
    _

// kernel: discriminator_forward.7
$region0: #{discriminator_forward.7}
  #allocation0 [shape = 'u32[]', space=smem, size = 0x4, offset = 0x4, fixed_abs, tag = 'smem constant byte address 0x4 - core index']
  #allocation1 [shape = 'u32[144,128]{1,0:T(1,128)}', space=vmem, size = 0x12000, scoped, tag = 'internal scratch']
  %s0 = inlined_call_operand.vmem [shape: bf16[2,4,4096], index: 0, kind: input, shape index: {}]
  %s1 = inlined_call_operand.vmem [shape: bf16[4096,512], index: 1, kind: input, shape index: {}]
  %s2 = inlined_call_operand.vmem [shape: f32[4,512,4], index: 2, kind: input, shape index: {}]
  %s3 = inlined_call_operand.vmem [shape: f32[2,1,4], index: 3, kind: output, shape index: {}]
  %s4 = sld [smem:[#allocation0]]
  $region45: #{discriminator_forward.7} parent=0
    _
  %s6 = ssub.s32 1, %s4
  %s7 = scalar_select 0, %s6, %s4
  loop: start=0, step=1, limit=4
  $region2: #{discriminator_forward.7} parent=0 // loop_pre_header
    _
  $region3: #{discriminator_forward.7} parent=0 // loop_header
    %s9 = sphi 0, %s13
    %p10 = scmp.ge.s32.totalorder %s9, 4
    %s19 = sphi 0, %s21
    %s22 = sphi 0, %s19
    %s23 = sphi 0, %s22
    %s39 = sphi 0, %s23
    %s43 = sphi 0, %s43
    %s45 = sphi 0, %s43
    %s46 = sphi 0, %s45
    %s60 = sphi 0, %s46
    %s64 = sphi 0, %s64
    %s66 = sphi 0, %s64
    %s67 = sphi 0, %s66
    %s81 = sphi 0, %s67
    %s87 = sphi 0, %s89
    %s90 = sphi 0, %s87
    %s91 = sphi 0, %s90
    %s107 = sphi 0, %s91
  $region4: #{discriminator_forward.7} parent=0 // loop_header_branch
    %12 = sbr.rel (%p10) target = $region8
  $region5: #{discriminator_forward.7} parent=0 // loop_body
    %s14 = ssub.s32 %s9, 1
    %s15 = ssub.s32 %s9, 2
    %s16 = sadd.s32 %s9, 1
    %s17 = ssub.s32 %s9, %s16
    %p18 = scmp.eq.s32.totalorder %s17, 0
    %s20 = sadd.s32 %s19, 1
    %s21 = scalar_select %p18, %s19, %s20
    %p24 = pneg %p18
    %p25 = scmp.eq.s32.totalorder %s9, 1
    %p26 = por %p24, %p25
    %p27 = scmp.ne.s32.totalorder %s19, %s22
    %p28 = scmp.eq.s32.totalorder %s9, 0
    %p29 = por %p27, %p28
    %p30 = scmp.ne.s32.totalorder %s19, %s22
    %p31 = scmp.eq.s32.totalorder %s14, 1
    %p32 = por %p30, %p31
    %p33 = scmp.ne.s32.totalorder %s22, %s23
    %p34 = scmp.eq.s32.totalorder %s14, 0
    %p35 = por %p33, %p34
    %p36 = scmp.ne.s32.totalorder %s22, %s23
    %p37 = scmp.eq.s32.totalorder %s15, 1
    %p38 = por %p36, %p37
    %p40 = scmp.ne.s32.totalorder %s23, %s39
    %p41 = scmp.eq.s32.totalorder %s15, 0
    %p42 = por %p40, %p41
    %s44 = sadd.s32 %s43, 1
    %p47 = scmp.eq.s32.totalorder %s9, 1
    %p48 = scmp.ne.s32.totalorder %s43, %s45
    %p49 = scmp.eq.s32.totalorder %s9, 0
    %p50 = por %p48, %p49
    %p51 = scmp.ne.s32.totalorder %s43, %s45
    %p52 = scmp.eq.s32.totalorder %s14, 1
    %p53 = por %p51, %p52
    %p54 = scmp.ne.s32.totalorder %s45, %s46
    %p55 = scmp.eq.s32.totalorder %s14, 0
    %p56 = por %p54, %p55
    %p57 = scmp.ne.s32.totalorder %s45, %s46
    %p58 = scmp.eq.s32.totalorder %s15, 1
    %p59 = por %p57, %p58
    %p61 = scmp.ne.s32.totalorder %s46, %s60
    %p62 = scmp.eq.s32.totalorder %s15, 0
    %p63 = por %p61, %p62
    %s65 = sadd.s32 %s64, 1
    %p68 = scmp.eq.s32.totalorder %s9, 1
    %p69 = scmp.ne.s32.totalorder %s64, %s66
    %p70 = scmp.eq.s32.totalorder %s9, 0
    %p71 = por %p69, %p70
    %p72 = scmp.ne.s32.totalorder %s64, %s66
    %p73 = scmp.eq.s32.totalorder %s14, 1
    %p74 = por %p72, %p73
    %p75 = scmp.ne.s32.totalorder %s66, %s67
    %p76 = scmp.eq.s32.totalorder %s14, 0
    %p77 = por %p75, %p76
    %p78 = scmp.ne.s32.totalorder %s66, %s67
    %p79 = scmp.eq.s32.totalorder %s15, 1
    %p80 = por %p78, %p79
    %p82 = scmp.ne.s32.totalorder %s67, %s81
    %p83 = scmp.eq.s32.totalorder %s15, 0
    %p84 = por %p82, %p83
    %s85 = ssub.s32 %s9, %s16
    %p86 = scmp.eq.s32.totalorder %s85, 0
    %s88 = sadd.s32 %s87, 1
    %s89 = scalar_select %p86, %s87, %s88
    %p92 = pneg %p86
    %p93 = scmp.eq.s32.totalorder %s9, 1
    %p94 = por %p92, %p93
    %p95 = scmp.ne.s32.totalorder %s87, %s90
    %p96 = scmp.eq.s32.totalorder %s9, 0
    %p97 = por %p95, %p96
    %p98 = scmp.ne.s32.totalorder %s87, %s90
    %p99 = scmp.eq.s32.totalorder %s14, 1
    %p100 = por %p98, %p99
    %p101 = scmp.ne.s32.totalorder %s90, %s91
    %p102 = scmp.eq.s32.totalorder %s14, 0
    %p103 = por %p101, %p102
    %p104 = scmp.ne.s32.totalorder %s90, %s91
    %p105 = scmp.eq.s32.totalorder %s15, 1
    %p106 = por %p104, %p105
    %p108 = scmp.ne.s32.totalorder %s91, %s107
    %p109 = scmp.eq.s32.totalorder %s15, 0
    %p110 = por %p108, %p109
    %p111 = scmp.le.s32.totalorder 1, %s9
    %p112 = scmp.lt.s32.totalorder %s9, 3
    %p113 = pnand %p111, %p112
    %p114 = pneg %p113
    // Predicated region
    $region9: #{discriminator_forward.7} parent=5 // pred_check
      _
    $region10: #{discriminator_forward.7} parent=5 // pred_check_branch
      %116 = sbr.rel (%p113) target = $region12
    $region11: #{discriminator_forward.7} parent=5 // pred_region
      %s117 = ssub.s32 %s9, 1
      // Predicated region
      $region13: #{discriminator_forward.7} parent=11 // pred_check
        %p118 = pneg %p56
      $region14: #{discriminator_forward.7} parent=11 // pred_check_branch
        %120 = sbr.rel (%p118) target = $region16
      $region15: #{discriminator_forward.7} parent=11 // pred_region
        _
      $region16: #{discriminator_forward.7} parent=11 // pred_fallthru
        _
      // Predicated region
      $region17: #{discriminator_forward.7} parent=11 // pred_check
        %p121 = pneg %p77
      $region18: #{discriminator_forward.7} parent=11 // pred_check_branch
        %123 = sbr.rel (%p121) target = $region20
      $region19: #{discriminator_forward.7} parent=11 // pred_region
        _
      $region20: #{discriminator_forward.7} parent=11 // pred_fallthru
        _
    $region12: #{discriminator_forward.7} parent=5 // pred_fallthru
      _
    %p124 = scmp.lt.s32.totalorder %s9, 2
    // Predicated region
    $region21: #{discriminator_forward.7} parent=5 // pred_check
      %p125 = pneg %p124
    $region22: #{discriminator_forward.7} parent=5 // pred_check_branch
      %127 = sbr.rel (%p125) target = $region24
    $region23: #{discriminator_forward.7} parent=5 // pred_region
      // Predicated region
      $region25: #{discriminator_forward.7} parent=23 // pred_check
        %p128 = pneg %p29
      $region26: #{discriminator_forward.7} parent=23 // pred_check_branch
        %130 = sbr.rel (%p128) target = $region28
      $region27: #{discriminator_forward.7} parent=23 // pred_region
        %p131 = scmp.lt.s32.totalorder %s9, 1
        %s132 = scalar_select %p131, %s9, 1
        %s133 = smul.addr %s132, 32
        %s134 = smul.addr %s133, 2
        %s135 = scalar_lea.vmem %s0, %s134
      $region28: #{discriminator_forward.7} parent=23 // pred_fallthru
        _
    $region24: #{discriminator_forward.7} parent=5 // pred_fallthru
      _
    %p136 = scmp.le.s32.totalorder 1, %s9
    %p137 = scmp.lt.s32.totalorder %s9, 3
    %p138 = pnand %p136, %p137
    %p139 = pneg %p138
    // Predicated region
    $region29: #{discriminator_forward.7} parent=5 // pred_check
      _
    $region30: #{discriminator_forward.7} parent=5 // pred_check_branch
      %141 = sbr.rel (%p138) target = $region32
    $region31: #{discriminator_forward.7} parent=5 // pred_region
      %s142 = ssub.s32 %s9, 1
      %p143 = scmp.lt.s32.totalorder %s14, 1
      %s144 = scalar_select %p143, %s14, 1
      %s145 = smul.addr %s144, 32
      %s146 = smul.addr %s145, 2
      %s147 = scalar_lea.vmem %s0, %s146
      %p148 = pneg %p35
      %p149 = pneg %p32
      %p150 = pneg %p56
      %p151 = pneg %p53
      %p152 = pneg %p77
      %p153 = pneg %p74
      %p154 = pneg %p103
      %p155 = pneg %p100
      %p156 = scmp.lt.s32.totalorder %s14, 1
      %s157 = scalar_select %p156, %s14, 1
      %s158 = scalar_lea.vmem %s3, %s157
      %p159 = scmp.lt.s32.totalorder %s14, 1
      %s160 = scalar_select %p159, %s14, 1
      %s161 = smul.addr %s160, 32
      %s162 = smul.addr %s161, 2
      %s163 = scalar_lea.vmem %s0, %s162
      %p164 = scmp.lt.s32.totalorder %s14, 1
      %s165 = scalar_select %p164, %s14, 1
      %s166 = scalar_lea.vmem %s3, %s165
      %v167 = vld [vmem:[%s163] sm:$0xff]
      %v168 = vld [vmem:[%s163 + $0x8] sm:$0xff]
      %v169 = vld [vmem:[%s163 + $0x10] sm:$0xff]
      %v170 = vld [vmem:[%s163 + $0x18] sm:$0xff]
      %v171 = vld [vmem:[%s163 + $0x20] sm:$0xff]
      %v172 = vld [vmem:[%s163 + $0x28] sm:$0xff]
      %v173 = vld [vmem:[%s163 + $0x30] sm:$0xff]
      %v174 = vld [vmem:[%s163 + $0x38] sm:$0xff]
      %v175 = vld [vmem:[%s1] sm:$0xff]
      %v176 = vld [vmem:[%s1 + $0x8] sm:$0xff]
      %v177 = vld [vmem:[%s1 + $0x10] sm:$0xff]
      %v178 = vld [vmem:[%s1 + $0x18] sm:$0xff]
      %v179 = vld [vmem:[%s1 + $0x20] sm:$0xff]
      %v180 = vld [vmem:[%s1 + $0x28] sm:$0xff]
      %v181 = vld [vmem:[%s1 + $0x30] sm:$0xff]
      %v182 = vld [vmem:[%s1 + $0x38] sm:$0xff]
      %v183 = vld [vmem:[%s1 + $0x40] sm:$0xff]
      %v184 = vld [vmem:[%s1 + $0x48] sm:$0xff]
      %v185 = vld [vmem:[%s1 + $0x50] sm:$0xff]
      %v186 = vld [vmem:[%s1 + $0x58] sm:$0xff]
      %v187 = vld [vmem:[%s1 + $0x60] sm:$0xff]
      %v188 = vld [vmem:[%s1 + $0x68] sm:$0xff]
      %v189 = vld [vmem:[%s1 + $0x70] sm:$0xff]
      %v190 = vld [vmem:[%s1 + $0x78] sm:$0xff]
      %v191 = vld [vmem:[%s1 + $0x80] sm:$0xff]
      %v192 = vld [vmem:[%s1 + $0x88] sm:$0xff]
      %v193 = vld [vmem:[%s1 + $0x90] sm:$0xff]
      %v194 = vld [vmem:[%s1 + $0x98] sm:$0xff]
      %v195 = vld [vmem:[%s1 + $0xa0] sm:$0xff]
      %v196 = vld [vmem:[%s1 + $0xa8] sm:$0xff]
      %v197 = vld [vmem:[%s1 + $0xb0] sm:$0xff]
      %v198 = vld [vmem:[%s1 + $0xb8] sm:$0xff]
      %v199 = vld [vmem:[%s1 + $0xc0] sm:$0xff]
      %v200 = vld [vmem:[%s1 + $0xc8] sm:$0xff]
      %v201 = vld [vmem:[%s1 + $0xd0] sm:$0xff]
      %v202 = vld [vmem:[%s1 + $0xd8] sm:$0xff]
      %v203 = vld [vmem:[%s1 + $0xe0] sm:$0xff]
      %v204 = vld [vmem:[%s1 + $0xe8] sm:$0xff]
      %v205 = vld [vmem:[%s1 + $0xf0] sm:$0xff]
      %v206 = vld [vmem:[%s1 + $0xf8] sm:$0xff]
      %v207 = vld [vmem:[%s1 + $0x100] sm:$0xff]
      %v208 = vld [vmem:[%s1 + $0x108] sm:$0xff]
      %v209 = vld [vmem:[%s1 + $0x110] sm:$0xff]
      %v210 = vld [vmem:[%s1 + $0x118] sm:$0xff]
      %v211 = vld [vmem:[%s1 + $0x120] sm:$0xff]
      %v212 = vld [vmem:[%s1 + $0x128] sm:$0xff]
      %v213 = vld [vmem:[%s1 + $0x130] sm:$0xff]
      %v214 = vld [vmem:[%s1 + $0x138] sm:$0xff]
      %v215 = vld [vmem:[%s1 + $0x140] sm:$0xff]
      %v216 = vld [vmem:[%s1 + $0x148] sm:$0xff]
      %v217 = vld [vmem:[%s1 + $0x150] sm:$0xff]
      %v218 = vld [vmem:[%s1 + $0x158] sm:$0xff]
      %v219 = vld [vmem:[%s1 + $0x160] sm:$0xff]
      %v220 = vld [vmem:[%s1 + $0x168] sm:$0xff]
      %v221 = vld [vmem:[%s1 + $0x170] sm:$0xff]
      %v222 = vld [vmem:[%s1 + $0x178] sm:$0xff]
      %v223 = vld [vmem:[%s1 + $0x180] sm:$0xff]
      %v224 = vld [vmem:[%s1 + $0x188] sm:$0xff]
      %v225 = vld [vmem:[%s1 + $0x190] sm:$0xff]
      %v226 = vld [vmem:[%s1 + $0x198] sm:$0xff]
      %v227 = vld [vmem:[%s1 + $0x1a0] sm:$0xff]
      %v228 = vld [vmem:[%s1 + $0x1a8] sm:$0xff]
      %v229 = vld [vmem:[%s1 + $0x1b0] sm:$0xff]
      %v230 = vld [vmem:[%s1 + $0x1b8] sm:$0xff]
      %v231 = vld [vmem:[%s1 + $0x1c0] sm:$0xff]
      %v232 = vld [vmem:[%s1 + $0x1c8] sm:$0xff]
      %v233 = vld [vmem:[%s1 + $0x1d0] sm:$0xff]
      %v234 = vld [vmem:[%s1 + $0x1d8] sm:$0xff]
      %v235 = vld [vmem:[%s1 + $0x1e0] sm:$0xff]
      %v236 = vld [vmem:[%s1 + $0x1e8] sm:$0xff]
      %v237 = vld [vmem:[%s1 + $0x1f0] sm:$0xff]
      %v238 = vld [vmem:[%s1 + $0x1f8] sm:$0xff]
      %v239 = vld [vmem:[%s1 + $0x200] sm:$0xff]
      %v240 = vld [vmem:[%s1 + $0x208] sm:$0xff]
      %v241 = vld [vmem:[%s1 + $0x210] sm:$0xff]
      %v242 = vld [vmem:[%s1 + $0x218] sm:$0xff]
      %v243 = vld [vmem:[%s1 + $0x220] sm:$0xff]
      %v244 = vld [vmem:[%s1 + $0x228] sm:$0xff]
      %v245 = vld [vmem:[%s1 + $0x230] sm:$0xff]
      %v246 = vld [vmem:[%s1 + $0x238] sm:$0xff]
      %v247 = vld [vmem:[%s1 + $0x240] sm:$0xff]
      %v248 = vld [vmem:[%s1 + $0x248] sm:$0xff]
      %v249 = vld [vmem:[%s1 + $0x250] sm:$0xff]
      %v250 = vld [vmem:[%s1 + $0x258] sm:$0xff]
      %v251 = vld [vmem:[%s1 + $0x260] sm:$0xff]
      %v252 = vld [vmem:[%s1 + $0x268] sm:$0xff]
      %v253 = vld [vmem:[%s1 + $0x270] sm:$0xff]
      %v254 = vld [vmem:[%s1 + $0x278] sm:$0xff]
      %v255 = vld [vmem:[%s1 + $0x280] sm:$0xff]
      %v256 = vld [vmem:[%s1 + $0x288] sm:$0xff]
      %v257 = vld [vmem:[%s1 + $0x290] sm:$0xff]
      %v258 = vld [vmem:[%s1 + $0x298] sm:$0xff]
      %v259 = vld [vmem:[%s1 + $0x2a0] sm:$0xff]
      %v260 = vld [vmem:[%s1 + $0x2a8] sm:$0xff]
      %v261 = vld [vmem:[%s1 + $0x2b0] sm:$0xff]
      %v262 = vld [vmem:[%s1 + $0x2b8] sm:$0xff]
      %v263 = vld [vmem:[%s1 + $0x2c0] sm:$0xff]
      %v264 = vld [vmem:[%s1 + $0x2c8] sm:$0xff]
      %v265 = vld [vmem:[%s1 + $0x2d0] sm:$0xff]
      %v266 = vld [vmem:[%s1 + $0x2d8] sm:$0xff]
      %v267 = vld [vmem:[%s1 + $0x2e0] sm:$0xff]
      %v268 = vld [vmem:[%s1 + $0x2e8] sm:$0xff]
      %v269 = vld [vmem:[%s1 + $0x2f0] sm:$0xff]
      %v270 = vld [vmem:[%s1 + $0x2f8] sm:$0xff]
      %v271 = vld [vmem:[%s1 + $0x300] sm:$0xff]
      %v272 = vld [vmem:[%s1 + $0x308] sm:$0xff]
      %v273 = vld [vmem:[%s1 + $0x310] sm:$0xff]
      %v274 = vld [vmem:[%s1 + $0x318] sm:$0xff]
      %v275 = vld [vmem:[%s1 + $0x320] sm:$0xff]
      %v276 = vld [vmem:[%s1 + $0x328] sm:$0xff]
      %v277 = vld [vmem:[%s1 + $0x330] sm:$0xff]
      %v278 = vld [vmem:[%s1 + $0x338] sm:$0xff]
      %v279 = vld [vmem:[%s1 + $0x340] sm:$0xff]
      %v280 = vld [vmem:[%s1 + $0x348] sm:$0xff]
      %v281 = vld [vmem:[%s1 + $0x350] sm:$0xff]
      %v282 = vld [vmem:[%s1 + $0x358] sm:$0xff]
      %v283 = vld [vmem:[%s1 + $0x360] sm:$0xff]
      %v284 = vld [vmem:[%s1 + $0x368] sm:$0xff]
      %v285 = vld [vmem:[%s1 + $0x370] sm:$0xff]
      %v286 = vld [vmem:[%s1 + $0x378] sm:$0xff]
      %v287 = vld [vmem:[%s1 + $0x380] sm:$0xff]
      %v288 = vld [vmem:[%s1 + $0x388] sm:$0xff]
      %v289 = vld [vmem:[%s1 + $0x390] sm:$0xff]
      %v290 = vld [vmem:[%s1 + $0x398] sm:$0xff]
      %v291 = vld [vmem:[%s1 + $0x3a0] sm:$0xff]
      %v292 = vld [vmem:[%s1 + $0x3a8] sm:$0xff]
      %v293 = vld [vmem:[%s1 + $0x3b0] sm:$0xff]
      %v294 = vld [vmem:[%s1 + $0x3b8] sm:$0xff]
      %v295 = vld [vmem:[%s1 + $0x3c0] sm:$0xff]
      %v296 = vld [vmem:[%s1 + $0x3c8] sm:$0xff]
      %v297 = vld [vmem:[%s1 + $0x3d0] sm:$0xff]
      %v298 = vld [vmem:[%s1 + $0x3d8] sm:$0xff]
      %v299 = vld [vmem:[%s1 + $0x3e0] sm:$0xff]
      %v300 = vld [vmem:[%s1 + $0x3e8] sm:$0xff]
      %v301 = vld [vmem:[%s1 + $0x3f0] sm:$0xff]
      %v302 = vld [vmem:[%s1 + $0x3f8] sm:$0xff]
      %v303 = vld [vmem:[%s1 + $0x400] sm:$0xff]
      %v304 = vld [vmem:[%s1 + $0x408] sm:$0xff]
      %v305 = vld [vmem:[%s1 + $0x410] sm:$0xff]
      %v306 = vld [vmem:[%s1 + $0x418] sm:$0xff]
      %v307 = vld [vmem:[%s1 + $0x420] sm:$0xff]
      %v308 = vld [vmem:[%s1 + $0x428] sm:$0xff]
      %v309 = vld [vmem:[%s1 + $0x430] sm:$0xff]
      %v310 = vld [vmem:[%s1 + $0x438] sm:$0xff]
      %v311 = vld [vmem:[%s1 + $0x440] sm:$0xff]
      %v312 = vld [vmem:[%s1 + $0x448] sm:$0xff]
      %v313 = vld [vmem:[%s1 + $0x450] sm:$0xff]
      %v314 = vld [vmem:[%s1 + $0x458] sm:$0xff]
      %v315 = vld [vmem:[%s1 + $0x460] sm:$0xff]
      %v316 = vld [vmem:[%s1 + $0x468] sm:$0xff]
      %v317 = vld [vmem:[%s1 + $0x470] sm:$0xff]
      %v318 = vld [vmem:[%s1 + $0x478] sm:$0xff]
      %v319 = vld [vmem:[%s1 + $0x480] sm:$0xff]
      %v320 = vld [vmem:[%s1 + $0x488] sm:$0xff]
      %v321 = vld [vmem:[%s1 + $0x490] sm:$0xff]
      %v322 = vld [vmem:[%s1 + $0x498] sm:$0xff]
      %v323 = vld [vmem:[%s1 + $0x4a0] sm:$0xff]
      %v324 = vld [vmem:[%s1 + $0x4a8] sm:$0xff]
      %v325 = vld [vmem:[%s1 + $0x4b0] sm:$0xff]
      %v326 = vld [vmem:[%s1 + $0x4b8] sm:$0xff]
      %v327 = vld [vmem:[%s1 + $0x4c0] sm:$0xff]
      %v328 = vld [vmem:[%s1 + $0x4c8] sm:$0xff]
      %v329 = vld [vmem:[%s1 + $0x4d0] sm:$0xff]
      %v330 = vld [vmem:[%s1 + $0x4d8] sm:$0xff]
      %v331 = vld [vmem:[%s1 + $0x4e0] sm:$0xff]
      %v332 = vld [vmem:[%s1 + $0x4e8] sm:$0xff]
      %v333 = vld [vmem:[%s1 + $0x4f0] sm:$0xff]
      %v334 = vld [vmem:[%s1 + $0x4f8] sm:$0xff]
      %v335 = vld [vmem:[%s1 + $0x500] sm:$0xff]
      %v336 = vld [vmem:[%s1 + $0x508] sm:$0xff]
      %v337 = vld [vmem:[%s1 + $0x510] sm:$0xff]
      %v338 = vld [vmem:[%s1 + $0x518] sm:$0xff]
      %v339 = vld [vmem:[%s1 + $0x520] sm:$0xff]
      %v340 = vld [vmem:[%s1 + $0x528] sm:$0xff]
      %v341 = vld [vmem:[%s1 + $0x530] sm:$0xff]
      %v342 = vld [vmem:[%s1 + $0x538] sm:$0xff]
      %v343 = vld [vmem:[%s1 + $0x540] sm:$0xff]
      %v344 = vld [vmem:[%s1 + $0x548] sm:$0xff]
      %v345 = vld [vmem:[%s1 + $0x550] sm:$0xff]
      %v346 = vld [vmem:[%s1 + $0x558] sm:$0xff]
      %v347 = vld [vmem:[%s1 + $0x560] sm:$0xff]
      %v348 = vld [vmem:[%s1 + $0x568] sm:$0xff]
      %v349 = vld [vmem:[%s1 + $0x570] sm:$0xff]
      %v350 = vld [vmem:[%s1 + $0x578] sm:$0xff]
      %v351 = vld [vmem:[%s1 + $0x580] sm:$0xff]
      %v352 = vld [vmem:[%s1 + $0x588] sm:$0xff]
      %v353 = vld [vmem:[%s1 + $0x590] sm:$0xff]
      %v354 = vld [vmem:[%s1 + $0x598] sm:$0xff]
      %v355 = vld [vmem:[%s1 + $0x5a0] sm:$0xff]
      %v356 = vld [vmem:[%s1 + $0x5a8] sm:$0xff]
      %v357 = vld [vmem:[%s1 + $0x5b0] sm:$0xff]
      %v358 = vld [vmem:[%s1 + $0x5b8] sm:$0xff]
      %v359 = vld [vmem:[%s1 + $0x5c0] sm:$0xff]
      %v360 = vld [vmem:[%s1 + $0x5c8] sm:$0xff]
      %v361 = vld [vmem:[%s1 + $0x5d0] sm:$0xff]
      %v362 = vld [vmem:[%s1 + $0x5d8] sm:$0xff]
      %v363 = vld [vmem:[%s1 + $0x5e0] sm:$0xff]
      %v364 = vld [vmem:[%s1 + $0x5e8] sm:$0xff]
      %v365 = vld [vmem:[%s1 + $0x5f0] sm:$0xff]
      %v366 = vld [vmem:[%s1 + $0x5f8] sm:$0xff]
      %v367 = vld [vmem:[%s1 + $0x600] sm:$0xff]
      %v368 = vld [vmem:[%s1 + $0x608] sm:$0xff]
      %v369 = vld [vmem:[%s1 + $0x610] sm:$0xff]
      %v370 = vld [vmem:[%s1 + $0x618] sm:$0xff]
      %v371 = vld [vmem:[%s1 + $0x620] sm:$0xff]
      %v372 = vld [vmem:[%s1 + $0x628] sm:$0xff]
      %v373 = vld [vmem:[%s1 + $0x630] sm:$0xff]
      %v374 = vld [vmem:[%s1 + $0x638] sm:$0xff]
      %v375 = vld [vmem:[%s1 + $0x640] sm:$0xff]
      %v376 = vld [vmem:[%s1 + $0x648] sm:$0xff]
      %v377 = vld [vmem:[%s1 + $0x650] sm:$0xff]
      %v378 = vld [vmem:[%s1 + $0x658] sm:$0xff]
      %v379 = vld [vmem:[%s1 + $0x660] sm:$0xff]
      %v380 = vld [vmem:[%s1 + $0x668] sm:$0xff]
      %v381 = vld [vmem:[%s1 + $0x670] sm:$0xff]
      %v382 = vld [vmem:[%s1 + $0x678] sm:$0xff]
      %v383 = vld [vmem:[%s1 + $0x680] sm:$0xff]
      %v384 = vld [vmem:[%s1 + $0x688] sm:$0xff]
      %v385 = vld [vmem:[%s1 + $0x690] sm:$0xff]
      %v386 = vld [vmem:[%s1 + $0x698] sm:$0xff]
      %v387 = vld [vmem:[%s1 + $0x6a0] sm:$0xff]
      %v388 = vld [vmem:[%s1 + $0x6a8] sm:$0xff]
      %v389 = vld [vmem:[%s1 + $0x6b0] sm:$0xff]
      %v390 = vld [vmem:[%s1 + $0x6b8] sm:$0xff]
      %v391 = vld [vmem:[%s1 + $0x6c0] sm:$0xff]
      %v392 = vld [vmem:[%s1 + $0x6c8] sm:$0xff]
      %v393 = vld [vmem:[%s1 + $0x6d0] sm:$0xff]
      %v394 = vld [vmem:[%s1 + $0x6d8] sm:$0xff]
      %v395 = vld [vmem:[%s1 + $0x6e0] sm:$0xff]
      %v396 = vld [vmem:[%s1 + $0x6e8] sm:$0xff]
      %v397 = vld [vmem:[%s1 + $0x6f0] sm:$0xff]
      %v398 = vld [vmem:[%s1 + $0x6f8] sm:$0xff]
      %v399 = vld [vmem:[%s1 + $0x700] sm:$0xff]
      %v400 = vld [vmem:[%s1 + $0x708] sm:$0xff]
      %v401 = vld [vmem:[%s1 + $0x710] sm:$0xff]
      %v402 = vld [vmem:[%s1 + $0x718] sm:$0xff]
      %v403 = vld [vmem:[%s1 + $0x720] sm:$0xff]
      %v404 = vld [vmem:[%s1 + $0x728] sm:$0xff]
      %v405 = vld [vmem:[%s1 + $0x730] sm:$0xff]
      %v406 = vld [vmem:[%s1 + $0x738] sm:$0xff]
      %v407 = vld [vmem:[%s1 + $0x740] sm:$0xff]
      %v408 = vld [vmem:[%s1 + $0x748] sm:$0xff]
      %v409 = vld [vmem:[%s1 + $0x750] sm:$0xff]
      %v410 = vld [vmem:[%s1 + $0x758] sm:$0xff]
      %v411 = vld [vmem:[%s1 + $0x760] sm:$0xff]
      %v412 = vld [vmem:[%s1 + $0x768] sm:$0xff]
      %v413 = vld [vmem:[%s1 + $0x770] sm:$0xff]
      %v414 = vld [vmem:[%s1 + $0x778] sm:$0xff]
      %v415 = vld [vmem:[%s1 + $0x780] sm:$0xff]
      %v416 = vld [vmem:[%s1 + $0x788] sm:$0xff]
      %v417 = vld [vmem:[%s1 + $0x790] sm:$0xff]
      %v418 = vld [vmem:[%s1 + $0x798] sm:$0xff]
      %v419 = vld [vmem:[%s1 + $0x7a0] sm:$0xff]
      %v420 = vld [vmem:[%s1 + $0x7a8] sm:$0xff]
      %v421 = vld [vmem:[%s1 + $0x7b0] sm:$0xff]
      %v422 = vld [vmem:[%s1 + $0x7b8] sm:$0xff]
      %v423 = vld [vmem:[%s1 + $0x7c0] sm:$0xff]
      %v424 = vld [vmem:[%s1 + $0x7c8] sm:$0xff]
      %v425 = vld [vmem:[%s1 + $0x7d0] sm:$0xff]
      %v426 = vld [vmem:[%s1 + $0x7d8] sm:$0xff]
      %v427 = vld [vmem:[%s1 + $0x7e0] sm:$0xff]
      %v428 = vld [vmem:[%s1 + $0x7e8] sm:$0xff]
      %v429 = vld [vmem:[%s1 + $0x7f0] sm:$0xff]
      %v430 = vld [vmem:[%s1 + $0x7f8] sm:$0xff]
      %v431 = vld [vmem:[%s1 + $0x800] sm:$0xff]
      %v432 = vld [vmem:[%s1 + $0x808] sm:$0xff]
      %v433 = vld [vmem:[%s1 + $0x810] sm:$0xff]
      %v434 = vld [vmem:[%s1 + $0x818] sm:$0xff]
      %v435 = vld [vmem:[%s1 + $0x820] sm:$0xff]
      %v436 = vld [vmem:[%s1 + $0x828] sm:$0xff]
      %v437 = vld [vmem:[%s1 + $0x830] sm:$0xff]
      %v438 = vld [vmem:[%s1 + $0x838] sm:$0xff]
      %v439 = vld [vmem:[%s1 + $0x840] sm:$0xff]
      %v440 = vld [vmem:[%s1 + $0x848] sm:$0xff]
      %v441 = vld [vmem:[%s1 + $0x850] sm:$0xff]
      %v442 = vld [vmem:[%s1 + $0x858] sm:$0xff]
      %v443 = vld [vmem:[%s1 + $0x860] sm:$0xff]
      %v444 = vld [vmem:[%s1 + $0x868] sm:$0xff]
      %v445 = vld [vmem:[%s1 + $0x870] sm:$0xff]
      %v446 = vld [vmem:[%s1 + $0x878] sm:$0xff]
      %v447 = vld [vmem:[%s1 + $0x880] sm:$0xff]
      %v448 = vld [vmem:[%s1 + $0x888] sm:$0xff]
      %v449 = vld [vmem:[%s1 + $0x890] sm:$0xff]
      %v450 = vld [vmem:[%s1 + $0x898] sm:$0xff]
      %v451 = vld [vmem:[%s1 + $0x8a0] sm:$0xff]
      %v452 = vld [vmem:[%s1 + $0x8a8] sm:$0xff]
      %v453 = vld [vmem:[%s1 + $0x8b0] sm:$0xff]
      %v454 = vld [vmem:[%s1 + $0x8b8] sm:$0xff]
      %v455 = vld [vmem:[%s1 + $0x8c0] sm:$0xff]
      %v456 = vld [vmem:[%s1 + $0x8c8] sm:$0xff]
      %v457 = vld [vmem:[%s1 + $0x8d0] sm:$0xff]
      %v458 = vld [vmem:[%s1 + $0x8d8] sm:$0xff]
      %v459 = vld [vmem:[%s1 + $0x8e0] sm:$0xff]
      %v460 = vld [vmem:[%s1 + $0x8e8] sm:$0xff]
      %v461 = vld [vmem:[%s1 + $0x8f0] sm:$0xff]
      %v462 = vld [vmem:[%s1 + $0x8f8] sm:$0xff]
      %v463 = vld [vmem:[%s1 + $0x900] sm:$0xff]
      %v464 = vld [vmem:[%s1 + $0x908] sm:$0xff]
      %v465 = vld [vmem:[%s1 + $0x910] sm:$0xff]
      %v466 = vld [vmem:[%s1 + $0x918] sm:$0xff]
      %v467 = vld [vmem:[%s1 + $0x920] sm:$0xff]
      %v468 = vld [vmem:[%s1 + $0x928] sm:$0xff]
      %v469 = vld [vmem:[%s1 + $0x930] sm:$0xff]
      %v470 = vld [vmem:[%s1 + $0x938] sm:$0xff]
      %v471 = vld [vmem:[%s1 + $0x940] sm:$0xff]
      %v472 = vld [vmem:[%s1 + $0x948] sm:$0xff]
      %v473 = vld [vmem:[%s1 + $0x950] sm:$0xff]
      %v474 = vld [vmem:[%s1 + $0x958] sm:$0xff]
      %v475 = vld [vmem:[%s1 + $0x960] sm:$0xff]
      %v476 = vld [vmem:[%s1 + $0x968] sm:$0xff]
      %v477 = vld [vmem:[%s1 + $0x970] sm:$0xff]
      %v478 = vld [vmem:[%s1 + $0x978] sm:$0xff]
      %v479 = vld [vmem:[%s1 + $0x980] sm:$0xff]
      %v480 = vld [vmem:[%s1 + $0x988] sm:$0xff]
      %v481 = vld [vmem:[%s1 + $0x990] sm:$0xff]
      %v482 = vld [vmem:[%s1 + $0x998] sm:$0xff]
      %v483 = vld [vmem:[%s1 + $0x9a0] sm:$0xff]
      %v484 = vld [vmem:[%s1 + $0x9a8] sm:$0xff]
      %v485 = vld [vmem:[%s1 + $0x9b0] sm:$0xff]
      %v486 = vld [vmem:[%s1 + $0x9b8] sm:$0xff]
      %v487 = vld [vmem:[%s1 + $0x9c0] sm:$0xff]
      %v488 = vld [vmem:[%s1 + $0x9c8] sm:$0xff]
      %v489 = vld [vmem:[%s1 + $0x9d0] sm:$0xff]
      %v490 = vld [vmem:[%s1 + $0x9d8] sm:$0xff]
      %v491 = vld [vmem:[%s1 + $0x9e0] sm:$0xff]
      %v492 = vld [vmem:[%s1 + $0x9e8] sm:$0xff]
      %v493 = vld [vmem:[%s1 + $0x9f0] sm:$0xff]
      %v494 = vld [vmem:[%s1 + $0x9f8] sm:$0xff]
      %v495 = vld [vmem:[%s1 + $0xa00] sm:$0xff]
      %v496 = vld [vmem:[%s1 + $0xa08] sm:$0xff]
      %v497 = vld [vmem:[%s1 + $0xa10] sm:$0xff]
      %v498 = vld [vmem:[%s1 + $0xa18] sm:$0xff]
      %v499 = vld [vmem:[%s1 + $0xa20] sm:$0xff]
      %v500 = vld [vmem:[%s1 + $0xa28] sm:$0xff]
      %v501 = vld [vmem:[%s1 + $0xa30] sm:$0xff]
      %v502 = vld [vmem:[%s1 + $0xa38] sm:$0xff]
      %v503 = vld [vmem:[%s1 + $0xa40] sm:$0xff]
      %v504 = vld [vmem:[%s1 + $0xa48] sm:$0xff]
      %v505 = vld [vmem:[%s1 + $0xa50] sm:$0xff]
      %v506 = vld [vmem:[%s1 + $0xa58] sm:$0xff]
      %v507 = vld [vmem:[%s1 + $0xa60] sm:$0xff]
      %v508 = vld [vmem:[%s1 + $0xa68] sm:$0xff]
      %v509 = vld [vmem:[%s1 + $0xa70] sm:$0xff]
      %v510 = vld [vmem:[%s1 + $0xa78] sm:$0xff]
      %v511 = vld [vmem:[%s1 + $0xa80] sm:$0xff]
      %v512 = vld [vmem:[%s1 + $0xa88] sm:$0xff]
      %v513 = vld [vmem:[%s1 + $0xa90] sm:$0xff]
      %v514 = vld [vmem:[%s1 + $0xa98] sm:$0xff]
      %v515 = vld [vmem:[%s1 + $0xaa0] sm:$0xff]
      %v516 = vld [vmem:[%s1 + $0xaa8] sm:$0xff]
      %v517 = vld [vmem:[%s1 + $0xab0] sm:$0xff]
      %v518 = vld [vmem:[%s1 + $0xab8] sm:$0xff]
      %v519 = vld [vmem:[%s1 + $0xac0] sm:$0xff]
      %v520 = vld [vmem:[%s1 + $0xac8] sm:$0xff]
      %v521 = vld [vmem:[%s1 + $0xad0] sm:$0xff]
      %v522 = vld [vmem:[%s1 + $0xad8] sm:$0xff]
      %v523 = vld [vmem:[%s1 + $0xae0] sm:$0xff]
      %v524 = vld [vmem:[%s1 + $0xae8] sm:$0xff]
      %v525 = vld [vmem:[%s1 + $0xaf0] sm:$0xff]
      %v526 = vld [vmem:[%s1 + $0xaf8] sm:$0xff]
      %v527 = vld [vmem:[%s1 + $0xb00] sm:$0xff]
      %v528 = vld [vmem:[%s1 + $0xb08] sm:$0xff]
      %v529 = vld [vmem:[%s1 + $0xb10] sm:$0xff]
      %v530 = vld [vmem:[%s1 + $0xb18] sm:$0xff]
      %v531 = vld [vmem:[%s1 + $0xb20] sm:$0xff]
      %v532 = vld [vmem:[%s1 + $0xb28] sm:$0xff]
      %v533 = vld [vmem:[%s1 + $0xb30] sm:$0xff]
      %v534 = vld [vmem:[%s1 + $0xb38] sm:$0xff]
      %v535 = vld [vmem:[%s1 + $0xb40] sm:$0xff]
      %v536 = vld [vmem:[%s1 + $0xb48] sm:$0xff]
      %v537 = vld [vmem:[%s1 + $0xb50] sm:$0xff]
      %v538 = vld [vmem:[%s1 + $0xb58] sm:$0xff]
      %v539 = vld [vmem:[%s1 + $0xb60] sm:$0xff]
      %v540 = vld [vmem:[%s1 + $0xb68] sm:$0xff]
      %v541 = vld [vmem:[%s1 + $0xb70] sm:$0xff]
      %v542 = vld [vmem:[%s1 + $0xb78] sm:$0xff]
      %v543 = vld [vmem:[%s1 + $0xb80] sm:$0xff]
      %v544 = vld [vmem:[%s1 + $0xb88] sm:$0xff]
      %v545 = vld [vmem:[%s1 + $0xb90] sm:$0xff]
      %v546 = vld [vmem:[%s1 + $0xb98] sm:$0xff]
      %v547 = vld [vmem:[%s1 + $0xba0] sm:$0xff]
      %v548 = vld [vmem:[%s1 + $0xba8] sm:$0xff]
      %v549 = vld [vmem:[%s1 + $0xbb0] sm:$0xff]
      %v550 = vld [vmem:[%s1 + $0xbb8] sm:$0xff]
      %v551 = vld [vmem:[%s1 + $0xbc0] sm:$0xff]
      %v552 = vld [vmem:[%s1 + $0xbc8] sm:$0xff]
      %v553 = vld [vmem:[%s1 + $0xbd0] sm:$0xff]
      %v554 = vld [vmem:[%s1 + $0xbd8] sm:$0xff]
      %v555 = vld [vmem:[%s1 + $0xbe0] sm:$0xff]
      %v556 = vld [vmem:[%s1 + $0xbe8] sm:$0xff]
      %v557 = vld [vmem:[%s1 + $0xbf0] sm:$0xff]
      %v558 = vld [vmem:[%s1 + $0xbf8] sm:$0xff]
      %v559 = vld [vmem:[%s1 + $0xc00] sm:$0xff]
      %v560 = vld [vmem:[%s1 + $0xc08] sm:$0xff]
      %v561 = vld [vmem:[%s1 + $0xc10] sm:$0xff]
      %v562 = vld [vmem:[%s1 + $0xc18] sm:$0xff]
      %v563 = vld [vmem:[%s1 + $0xc20] sm:$0xff]
      %v564 = vld [vmem:[%s1 + $0xc28] sm:$0xff]
      %v565 = vld [vmem:[%s1 + $0xc30] sm:$0xff]
      %v566 = vld [vmem:[%s1 + $0xc38] sm:$0xff]
      %v567 = vld [vmem:[%s1 + $0xc40] sm:$0xff]
      %v568 = vld [vmem:[%s1 + $0xc48] sm:$0xff]
      %v569 = vld [vmem:[%s1 + $0xc50] sm:$0xff]
      %v570 = vld [vmem:[%s1 + $0xc58] sm:$0xff]
      %v571 = vld [vmem:[%s1 + $0xc60] sm:$0xff]
      %v572 = vld [vmem:[%s1 + $0xc68] sm:$0xff]
      %v573 = vld [vmem:[%s1 + $0xc70] sm:$0xff]
      %v574 = vld [vmem:[%s1 + $0xc78] sm:$0xff]
      %v575 = vld [vmem:[%s1 + $0xc80] sm:$0xff]
      %v576 = vld [vmem:[%s1 + $0xc88] sm:$0xff]
      %v577 = vld [vmem:[%s1 + $0xc90] sm:$0xff]
      %v578 = vld [vmem:[%s1 + $0xc98] sm:$0xff]
      %v579 = vld [vmem:[%s1 + $0xca0] sm:$0xff]
      %v580 = vld [vmem:[%s1 + $0xca8] sm:$0xff]
      %v581 = vld [vmem:[%s1 + $0xcb0] sm:$0xff]
      %v582 = vld [vmem:[%s1 + $0xcb8] sm:$0xff]
      %v583 = vld [vmem:[%s1 + $0xcc0] sm:$0xff]
      %v584 = vld [vmem:[%s1 + $0xcc8] sm:$0xff]
      %v585 = vld [vmem:[%s1 + $0xcd0] sm:$0xff]
      %v586 = vld [vmem:[%s1 + $0xcd8] sm:$0xff]
      %v587 = vld [vmem:[%s1 + $0xce0] sm:$0xff]
      %v588 = vld [vmem:[%s1 + $0xce8] sm:$0xff]
      %v589 = vld [vmem:[%s1 + $0xcf0] sm:$0xff]
      %v590 = vld [vmem:[%s1 + $0xcf8] sm:$0xff]
      %v591 = vld [vmem:[%s1 + $0xd00] sm:$0xff]
      %v592 = vld [vmem:[%s1 + $0xd08] sm:$0xff]
      %v593 = vld [vmem:[%s1 + $0xd10] sm:$0xff]
      %v594 = vld [vmem:[%s1 + $0xd18] sm:$0xff]
      %v595 = vld [vmem:[%s1 + $0xd20] sm:$0xff]
      %v596 = vld [vmem:[%s1 + $0xd28] sm:$0xff]
      %v597 = vld [vmem:[%s1 + $0xd30] sm:$0xff]
      %v598 = vld [vmem:[%s1 + $0xd38] sm:$0xff]
      %v599 = vld [vmem:[%s1 + $0xd40] sm:$0xff]
      %v600 = vld [vmem:[%s1 + $0xd48] sm:$0xff]
      %v601 = vld [vmem:[%s1 + $0xd50] sm:$0xff]
      %v602 = vld [vmem:[%s1 + $0xd58] sm:$0xff]
      %v603 = vld [vmem:[%s1 + $0xd60] sm:$0xff]
      %v604 = vld [vmem:[%s1 + $0xd68] sm:$0xff]
      %v605 = vld [vmem:[%s1 + $0xd70] sm:$0xff]
      %v606 = vld [vmem:[%s1 + $0xd78] sm:$0xff]
      %v607 = vld [vmem:[%s1 + $0xd80] sm:$0xff]
      %v608 = vld [vmem:[%s1 + $0xd88] sm:$0xff]
      %v609 = vld [vmem:[%s1 + $0xd90] sm:$0xff]
      %v610 = vld [vmem:[%s1 + $0xd98] sm:$0xff]
      %v611 = vld [vmem:[%s1 + $0xda0] sm:$0xff]
      %v612 = vld [vmem:[%s1 + $0xda8] sm:$0xff]
      %v613 = vld [vmem:[%s1 + $0xdb0] sm:$0xff]
      %v614 = vld [vmem:[%s1 + $0xdb8] sm:$0xff]
      %v615 = vld [vmem:[%s1 + $0xdc0] sm:$0xff]
      %v616 = vld [vmem:[%s1 + $0xdc8] sm:$0xff]
      %v617 = vld [vmem:[%s1 + $0xdd0] sm:$0xff]
      %v618 = vld [vmem:[%s1 + $0xdd8] sm:$0xff]
      %v619 = vld [vmem:[%s1 + $0xde0] sm:$0xff]
      %v620 = vld [vmem:[%s1 + $0xde8] sm:$0xff]
      %v621 = vld [vmem:[%s1 + $0xdf0] sm:$0xff]
      %v622 = vld [vmem:[%s1 + $0xdf8] sm:$0xff]
      %v623 = vld [vmem:[%s1 + $0xe00] sm:$0xff]
      %v624 = vld [vmem:[%s1 + $0xe08] sm:$0xff]
      %v625 = vld [vmem:[%s1 + $0xe10] sm:$0xff]
      %v626 = vld [vmem:[%s1 + $0xe18] sm:$0xff]
      %v627 = vld [vmem:[%s1 + $0xe20] sm:$0xff]
      %v628 = vld [vmem:[%s1 + $0xe28] sm:$0xff]
      %v629 = vld [vmem:[%s1 + $0xe30] sm:$0xff]
      %v630 = vld [vmem:[%s1 + $0xe38] sm:$0xff]
      %v631 = vld [vmem:[%s1 + $0xe40] sm:$0xff]
      %v632 = vld [vmem:[%s1 + $0xe48] sm:$0xff]
      %v633 = vld [vmem:[%s1 + $0xe50] sm:$0xff]
      %v634 = vld [vmem:[%s1 + $0xe58] sm:$0xff]
      %v635 = vld [vmem:[%s1 + $0xe60] sm:$0xff]
      %v636 = vld [vmem:[%s1 + $0xe68] sm:$0xff]
      %v637 = vld [vmem:[%s1 + $0xe70] sm:$0xff]
      %v638 = vld [vmem:[%s1 + $0xe78] sm:$0xff]
      %v639 = vld [vmem:[%s1 + $0xe80] sm:$0xff]
      %v640 = vld [vmem:[%s1 + $0xe88] sm:$0xff]
      %v641 = vld [vmem:[%s1 + $0xe90] sm:$0xff]
      %v642 = vld [vmem:[%s1 + $0xe98] sm:$0xff]
      %v643 = vld [vmem:[%s1 + $0xea0] sm:$0xff]
      %v644 = vld [vmem:[%s1 + $0xea8] sm:$0xff]
      %v645 = vld [vmem:[%s1 + $0xeb0] sm:$0xff]
      %v646 = vld [vmem:[%s1 + $0xeb8] sm:$0xff]
      %v647 = vld [vmem:[%s1 + $0xec0] sm:$0xff]
      %v648 = vld [vmem:[%s1 + $0xec8] sm:$0xff]
      %v649 = vld [vmem:[%s1 + $0xed0] sm:$0xff]
      %v650 = vld [vmem:[%s1 + $0xed8] sm:$0xff]
      %v651 = vld [vmem:[%s1 + $0xee0] sm:$0xff]
      %v652 = vld [vmem:[%s1 + $0xee8] sm:$0xff]
      %v653 = vld [vmem:[%s1 + $0xef0] sm:$0xff]
      %v654 = vld [vmem:[%s1 + $0xef8] sm:$0xff]
      %v655 = vld [vmem:[%s1 + $0xf00] sm:$0xff]
      %v656 = vld [vmem:[%s1 + $0xf08] sm:$0xff]
      %v657 = vld [vmem:[%s1 + $0xf10] sm:$0xff]
      %v658 = vld [vmem:[%s1 + $0xf18] sm:$0xff]
      %v659 = vld [vmem:[%s1 + $0xf20] sm:$0xff]
      %v660 = vld [vmem:[%s1 + $0xf28] sm:$0xff]
      %v661 = vld [vmem:[%s1 + $0xf30] sm:$0xff]
      %v662 = vld [vmem:[%s1 + $0xf38] sm:$0xff]
      %v663 = vld [vmem:[%s1 + $0xf40] sm:$0xff]
      %v664 = vld [vmem:[%s1 + $0xf48] sm:$0xff]
      %v665 = vld [vmem:[%s1 + $0xf50] sm:$0xff]
      %v666 = vld [vmem:[%s1 + $0xf58] sm:$0xff]
      %v667 = vld [vmem:[%s1 + $0xf60] sm:$0xff]
      %v668 = vld [vmem:[%s1 + $0xf68] sm:$0xff]
      %v669 = vld [vmem:[%s1 + $0xf70] sm:$0xff]
      %v670 = vld [vmem:[%s1 + $0xf78] sm:$0xff]
      %v671 = vld [vmem:[%s1 + $0xf80] sm:$0xff]
      %v672 = vld [vmem:[%s1 + $0xf88] sm:$0xff]
      %v673 = vld [vmem:[%s1 + $0xf90] sm:$0xff]
      %v674 = vld [vmem:[%s1 + $0xf98] sm:$0xff]
      %v675 = vld [vmem:[%s1 + $0xfa0] sm:$0xff]
      %v676 = vld [vmem:[%s1 + $0xfa8] sm:$0xff]
      %v677 = vld [vmem:[%s1 + $0xfb0] sm:$0xff]
      %v678 = vld [vmem:[%s1 + $0xfb8] sm:$0xff]
      %v679 = vld [vmem:[%s1 + $0xfc0] sm:$0xff]
      %v680 = vld [vmem:[%s1 + $0xfc8] sm:$0xff]
      %v681 = vld [vmem:[%s1 + $0xfd0] sm:$0xff]
      %v682 = vld [vmem:[%s1 + $0xfd8] sm:$0xff]
      %v683 = vld [vmem:[%s1 + $0xfe0] sm:$0xff]
      %v684 = vld [vmem:[%s1 + $0xfe8] sm:$0xff]
      %v685 = vld [vmem:[%s1 + $0xff0] sm:$0xff]
      %v686 = vld [vmem:[%s1 + $0xff8] sm:$0xff]
      %v687 = vld [vmem:[%s1 + $0x1000] sm:$0xff]
      %v688 = vld [vmem:[%s1 + $0x1008] sm:$0xff]
      %v689 = vld [vmem:[%s1 + $0x1010] sm:$0xff]
      %v690 = vld [vmem:[%s1 + $0x1018] sm:$0xff]
      %v691 = vld [vmem:[%s1 + $0x1020] sm:$0xff]
      %v692 = vld [vmem:[%s1 + $0x1028] sm:$0xff]
      %v693 = vld [vmem:[%s1 + $0x1030] sm:$0xff]
      %v694 = vld [vmem:[%s1 + $0x1038] sm:$0xff]
      %v695 = vld [vmem:[%s1 + $0x1040] sm:$0xff]
      %v696 = vld [vmem:[%s1 + $0x1048] sm:$0xff]
      %v697 = vld [vmem:[%s1 + $0x1050] sm:$0xff]
      %v698 = vld [vmem:[%s1 + $0x1058] sm:$0xff]
      %v699 = vld [vmem:[%s1 + $0x1060] sm:$0xff]
      %v700 = vld [vmem:[%s1 + $0x1068] sm:$0xff]
      %v701 = vld [vmem:[%s1 + $0x1070] sm:$0xff]
      %v702 = vld [vmem:[%s1 + $0x1078] sm:$0xff]
      %v703 = vld [vmem:[%s1 + $0x1080] sm:$0xff]
      %v704 = vld [vmem:[%s1 + $0x1088] sm:$0xff]
      %v705 = vld [vmem:[%s1 + $0x1090] sm:$0xff]
      %v706 = vld [vmem:[%s1 + $0x1098] sm:$0xff]
      %v707 = vld [vmem:[%s1 + $0x10a0] sm:$0xff]
      %v708 = vld [vmem:[%s1 + $0x10a8] sm:$0xff]
      %v709 = vld [vmem:[%s1 + $0x10b0] sm:$0xff]
      %v710 = vld [vmem:[%s1 + $0x10b8] sm:$0xff]
      %v711 = vld [vmem:[%s1 + $0x10c0] sm:$0xff]
      %v712 = vld [vmem:[%s1 + $0x10c8] sm:$0xff]
      %v713 = vld [vmem:[%s1 + $0x10d0] sm:$0xff]
      %v714 = vld [vmem:[%s1 + $0x10d8] sm:$0xff]
      %v715 = vld [vmem:[%s1 + $0x10e0] sm:$0xff]
      %v716 = vld [vmem:[%s1 + $0x10e8] sm:$0xff]
      %v717 = vld [vmem:[%s1 + $0x10f0] sm:$0xff]
      %v718 = vld [vmem:[%s1 + $0x10f8] sm:$0xff]
      %v719 = vld [vmem:[%s1 + $0x1100] sm:$0xff]
      %v720 = vld [vmem:[%s1 + $0x1108] sm:$0xff]
      %v721 = vld [vmem:[%s1 + $0x1110] sm:$0xff]
      %v722 = vld [vmem:[%s1 + $0x1118] sm:$0xff]
      %v723 = vld [vmem:[%s1 + $0x1120] sm:$0xff]
      %v724 = vld [vmem:[%s1 + $0x1128] sm:$0xff]
      %v725 = vld [vmem:[%s1 + $0x1130] sm:$0xff]
      %v726 = vld [vmem:[%s1 + $0x1138] sm:$0xff]
      %v727 = vld [vmem:[%s1 + $0x1140] sm:$0xff]
      %v728 = vld [vmem:[%s1 + $0x1148] sm:$0xff]
      %v729 = vld [vmem:[%s1 + $0x1150] sm:$0xff]
      %v730 = vld [vmem:[%s1 + $0x1158] sm:$0xff]
      %v731 = vld [vmem:[%s1 + $0x1160] sm:$0xff]
      %v732 = vld [vmem:[%s1 + $0x1168] sm:$0xff]
      %v733 = vld [vmem:[%s1 + $0x1170] sm:$0xff]
      %v734 = vld [vmem:[%s1 + $0x1178] sm:$0xff]
      %v735 = vld [vmem:[%s1 + $0x1180] sm:$0xff]
      %v736 = vld [vmem:[%s1 + $0x1188] sm:$0xff]
      %v737 = vld [vmem:[%s1 + $0x1190] sm:$0xff]
      %v738 = vld [vmem:[%s1 + $0x1198] sm:$0xff]
      %v739 = vld [vmem:[%s1 + $0x11a0] sm:$0xff]
      %v740 = vld [vmem:[%s1 + $0x11a8] sm:$0xff]
      %v741 = vld [vmem:[%s1 + $0x11b0] sm:$0xff]
      %v742 = vld [vmem:[%s1 + $0x11b8] sm:$0xff]
      %v743 = vld [vmem:[%s1 + $0x11c0] sm:$0xff]
      %v744 = vld [vmem:[%s1 + $0x11c8] sm:$0xff]
      %v745 = vld [vmem:[%s1 + $0x11d0] sm:$0xff]
      %v746 = vld [vmem:[%s1 + $0x11d8] sm:$0xff]
      %v747 = vld [vmem:[%s1 + $0x11e0] sm:$0xff]
      %v748 = vld [vmem:[%s1 + $0x11e8] sm:$0xff]
      %v749 = vld [vmem:[%s1 + $0x11f0] sm:$0xff]
      %v750 = vld [vmem:[%s1 + $0x11f8] sm:$0xff]
      %v751 = vld [vmem:[%s1 + $0x1200] sm:$0xff]
      %v752 = vld [vmem:[%s1 + $0x1208] sm:$0xff]
      %v753 = vld [vmem:[%s1 + $0x1210] sm:$0xff]
      %v754 = vld [vmem:[%s1 + $0x1218] sm:$0xff]
      %v755 = vld [vmem:[%s1 + $0x1220] sm:$0xff]
      %v756 = vld [vmem:[%s1 + $0x1228] sm:$0xff]
      %v757 = vld [vmem:[%s1 + $0x1230] sm:$0xff]
      %v758 = vld [vmem:[%s1 + $0x1238] sm:$0xff]
      %v759 = vld [vmem:[%s1 + $0x1240] sm:$0xff]
      %v760 = vld [vmem:[%s1 + $0x1248] sm:$0xff]
      %v761 = vld [vmem:[%s1 + $0x1250] sm:$0xff]
      %v762 = vld [vmem:[%s1 + $0x1258] sm:$0xff]
      %v763 = vld [vmem:[%s1 + $0x1260] sm:$0xff]
      %v764 = vld [vmem:[%s1 + $0x1268] sm:$0xff]
      %v765 = vld [vmem:[%s1 + $0x1270] sm:$0xff]
      %v766 = vld [vmem:[%s1 + $0x1278] sm:$0xff]
      %v767 = vld [vmem:[%s1 + $0x1280] sm:$0xff]
      %v768 = vld [vmem:[%s1 + $0x1288] sm:$0xff]
      %v769 = vld [vmem:[%s1 + $0x1290] sm:$0xff]
      %v770 = vld [vmem:[%s1 + $0x1298] sm:$0xff]
      %v771 = vld [vmem:[%s1 + $0x12a0] sm:$0xff]
      %v772 = vld [vmem:[%s1 + $0x12a8] sm:$0xff]
      %v773 = vld [vmem:[%s1 + $0x12b0] sm:$0xff]
      %v774 = vld [vmem:[%s1 + $0x12b8] sm:$0xff]
      %v775 = vld [vmem:[%s1 + $0x12c0] sm:$0xff]
      %v776 = vld [vmem:[%s1 + $0x12c8] sm:$0xff]
      %v777 = vld [vmem:[%s1 + $0x12d0] sm:$0xff]
      %v778 = vld [vmem:[%s1 + $0x12d8] sm:$0xff]
      %v779 = vld [vmem:[%s1 + $0x12e0] sm:$0xff]
      %v780 = vld [vmem:[%s1 + $0x12e8] sm:$0xff]
      %v781 = vld [vmem:[%s1 + $0x12f0] sm:$0xff]
      %v782 = vld [vmem:[%s1 + $0x12f8] sm:$0xff]
      %v783 = vld [vmem:[%s1 + $0x1300] sm:$0xff]
      %v784 = vld [vmem:[%s1 + $0x1308] sm:$0xff]
      %v785 = vld [vmem:[%s1 + $0x1310] sm:$0xff]
      %v786 = vld [vmem:[%s1 + $0x1318] sm:$0xff]
      %v787 = vld [vmem:[%s1 + $0x1320] sm:$0xff]
      %v788 = vld [vmem:[%s1 + $0x1328] sm:$0xff]
      %v789 = vld [vmem:[%s1 + $0x1330] sm:$0xff]
      %v790 = vld [vmem:[%s1 + $0x1338] sm:$0xff]
      %v791 = vld [vmem:[%s1 + $0x1340] sm:$0xff]
      %v792 = vld [vmem:[%s1 + $0x1348] sm:$0xff]
      %v793 = vld [vmem:[%s1 + $0x1350] sm:$0xff]
      %v794 = vld [vmem:[%s1 + $0x1358] sm:$0xff]
      %v795 = vld [vmem:[%s1 + $0x1360] sm:$0xff]
      %v796 = vld [vmem:[%s1 + $0x1368] sm:$0xff]
      %v797 = vld [vmem:[%s1 + $0x1370] sm:$0xff]
      %v798 = vld [vmem:[%s1 + $0x1378] sm:$0xff]
      %v799 = vld [vmem:[%s1 + $0x1380] sm:$0xff]
      %v800 = vld [vmem:[%s1 + $0x1388] sm:$0xff]
      %v801 = vld [vmem:[%s1 + $0x1390] sm:$0xff]
      %v802 = vld [vmem:[%s1 + $0x1398] sm:$0xff]
      %v803 = vld [vmem:[%s1 + $0x13a0] sm:$0xff]
      %v804 = vld [vmem:[%s1 + $0x13a8] sm:$0xff]
      %v805 = vld [vmem:[%s1 + $0x13b0] sm:$0xff]
      %v806 = vld [vmem:[%s1 + $0x13b8] sm:$0xff]
      %v807 = vld [vmem:[%s1 + $0x13c0] sm:$0xff]
      %v808 = vld [vmem:[%s1 + $0x13c8] sm:$0xff]
      %v809 = vld [vmem:[%s1 + $0x13d0] sm:$0xff]
      %v810 = vld [vmem:[%s1 + $0x13d8] sm:$0xff]
      %v811 = vld [vmem:[%s1 + $0x13e0] sm:$0xff]
      %v812 = vld [vmem:[%s1 + $0x13e8] sm:$0xff]
      %v813 = vld [vmem:[%s1 + $0x13f0] sm:$0xff]
      %v814 = vld [vmem:[%s1 + $0x13f8] sm:$0xff]
      %v815 = vld [vmem:[%s1 + $0x1400] sm:$0xff]
      %v816 = vld [vmem:[%s1 + $0x1408] sm:$0xff]
      %v817 = vld [vmem:[%s1 + $0x1410] sm:$0xff]
      %v818 = vld [vmem:[%s1 + $0x1418] sm:$0xff]
      %v819 = vld [vmem:[%s1 + $0x1420] sm:$0xff]
      %v820 = vld [vmem:[%s1 + $0x1428] sm:$0xff]
      %v821 = vld [vmem:[%s1 + $0x1430] sm:$0xff]
      %v822 = vld [vmem:[%s1 + $0x1438] sm:$0xff]
      %v823 = vld [vmem:[%s1 + $0x1440] sm:$0xff]
      %v824 = vld [vmem:[%s1 + $0x1448] sm:$0xff]
      %v825 = vld [vmem:[%s1 + $0x1450] sm:$0xff]
      %v826 = vld [vmem:[%s1 + $0x1458] sm:$0xff]
      %v827 = vld [vmem:[%s1 + $0x1460] sm:$0xff]
      %v828 = vld [vmem:[%s1 + $0x1468] sm:$0xff]
      %v829 = vld [vmem:[%s1 + $0x1470] sm:$0xff]
      %v830 = vld [vmem:[%s1 + $0x1478] sm:$0xff]
      %v831 = vld [vmem:[%s1 + $0x1480] sm:$0xff]
      %v832 = vld [vmem:[%s1 + $0x1488] sm:$0xff]
      %v833 = vld [vmem:[%s1 + $0x1490] sm:$0xff]
      %v834 = vld [vmem:[%s1 + $0x1498] sm:$0xff]
      %v835 = vld [vmem:[%s1 + $0x14a0] sm:$0xff]
      %v836 = vld [vmem:[%s1 + $0x14a8] sm:$0xff]
      %v837 = vld [vmem:[%s1 + $0x14b0] sm:$0xff]
      %v838 = vld [vmem:[%s1 + $0x14b8] sm:$0xff]
      %v839 = vld [vmem:[%s1 + $0x14c0] sm:$0xff]
      %v840 = vld [vmem:[%s1 + $0x14c8] sm:$0xff]
      %v841 = vld [vmem:[%s1 + $0x14d0] sm:$0xff]
      %v842 = vld [vmem:[%s1 + $0x14d8] sm:$0xff]
      %v843 = vld [vmem:[%s1 + $0x14e0] sm:$0xff]
      %v844 = vld [vmem:[%s1 + $0x14e8] sm:$0xff]
      %v845 = vld [vmem:[%s1 + $0x14f0] sm:$0xff]
      %v846 = vld [vmem:[%s1 + $0x14f8] sm:$0xff]
      %v847 = vld [vmem:[%s1 + $0x1500] sm:$0xff]
      %v848 = vld [vmem:[%s1 + $0x1508] sm:$0xff]
      %v849 = vld [vmem:[%s1 + $0x1510] sm:$0xff]
      %v850 = vld [vmem:[%s1 + $0x1518] sm:$0xff]
      %v851 = vld [vmem:[%s1 + $0x1520] sm:$0xff]
      %v852 = vld [vmem:[%s1 + $0x1528] sm:$0xff]
      %v853 = vld [vmem:[%s1 + $0x1530] sm:$0xff]
      %v854 = vld [vmem:[%s1 + $0x1538] sm:$0xff]
      %v855 = vld [vmem:[%s1 + $0x1540] sm:$0xff]
      %v856 = vld [vmem:[%s1 + $0x1548] sm:$0xff]
      %v857 = vld [vmem:[%s1 + $0x1550] sm:$0xff]
      %v858 = vld [vmem:[%s1 + $0x1558] sm:$0xff]
      %v859 = vld [vmem:[%s1 + $0x1560] sm:$0xff]
      %v860 = vld [vmem:[%s1 + $0x1568] sm:$0xff]
      %v861 = vld [vmem:[%s1 + $0x1570] sm:$0xff]
      %v862 = vld [vmem:[%s1 + $0x1578] sm:$0xff]
      %v863 = vld [vmem:[%s1 + $0x1580] sm:$0xff]
      %v864 = vld [vmem:[%s1 + $0x1588] sm:$0xff]
      %v865 = vld [vmem:[%s1 + $0x1590] sm:$0xff]
      %v866 = vld [vmem:[%s1 + $0x1598] sm:$0xff]
      %v867 = vld [vmem:[%s1 + $0x15a0] sm:$0xff]
      %v868 = vld [vmem:[%s1 + $0x15a8] sm:$0xff]
      %v869 = vld [vmem:[%s1 + $0x15b0] sm:$0xff]
      %v870 = vld [vmem:[%s1 + $0x15b8] sm:$0xff]
      %v871 = vld [vmem:[%s1 + $0x15c0] sm:$0xff]
      %v872 = vld [vmem:[%s1 + $0x15c8] sm:$0xff]
      %v873 = vld [vmem:[%s1 + $0x15d0] sm:$0xff]
      %v874 = vld [vmem:[%s1 + $0x15d8] sm:$0xff]
      %v875 = vld [vmem:[%s1 + $0x15e0] sm:$0xff]
      %v876 = vld [vmem:[%s1 + $0x15e8] sm:$0xff]
      %v877 = vld [vmem:[%s1 + $0x15f0] sm:$0xff]
      %v878 = vld [vmem:[%s1 + $0x15f8] sm:$0xff]
      %v879 = vld [vmem:[%s1 + $0x1600] sm:$0xff]
      %v880 = vld [vmem:[%s1 + $0x1608] sm:$0xff]
      %v881 = vld [vmem:[%s1 + $0x1610] sm:$0xff]
      %v882 = vld [vmem:[%s1 + $0x1618] sm:$0xff]
      %v883 = vld [vmem:[%s1 + $0x1620] sm:$0xff]
      %v884 = vld [vmem:[%s1 + $0x1628] sm:$0xff]
      %v885 = vld [vmem:[%s1 + $0x1630] sm:$0xff]
      %v886 = vld [vmem:[%s1 + $0x1638] sm:$0xff]
      %v887 = vld [vmem:[%s1 + $0x1640] sm:$0xff]
      %v888 = vld [vmem:[%s1 + $0x1648] sm:$0xff]
      %v889 = vld [vmem:[%s1 + $0x1650] sm:$0xff]
      %v890 = vld [vmem:[%s1 + $0x1658] sm:$0xff]
      %v891 = vld [vmem:[%s1 + $0x1660] sm:$0xff]
      %v892 = vld [vmem:[%s1 + $0x1668] sm:$0xff]
      %v893 = vld [vmem:[%s1 + $0x1670] sm:$0xff]
      %v894 = vld [vmem:[%s1 + $0x1678] sm:$0xff]
      %v895 = vld [vmem:[%s1 + $0x1680] sm:$0xff]
      %v896 = vld [vmem:[%s1 + $0x1688] sm:$0xff]
      %v897 = vld [vmem:[%s1 + $0x1690] sm:$0xff]
      %v898 = vld [vmem:[%s1 + $0x1698] sm:$0xff]
      %v899 = vld [vmem:[%s1 + $0x16a0] sm:$0xff]
      %v900 = vld [vmem:[%s1 + $0x16a8] sm:$0xff]
      %v901 = vld [vmem:[%s1 + $0x16b0] sm:$0xff]
      %v902 = vld [vmem:[%s1 + $0x16b8] sm:$0xff]
      %v903 = vld [vmem:[%s1 + $0x16c0] sm:$0xff]
      %v904 = vld [vmem:[%s1 + $0x16c8] sm:$0xff]
      %v905 = vld [vmem:[%s1 + $0x16d0] sm:$0xff]
      %v906 = vld [vmem:[%s1 + $0x16d8] sm:$0xff]
      %v907 = vld [vmem:[%s1 + $0x16e0] sm:$0xff]
      %v908 = vld [vmem:[%s1 + $0x16e8] sm:$0xff]
      %v909 = vld [vmem:[%s1 + $0x16f0] sm:$0xff]
      %v910 = vld [vmem:[%s1 + $0x16f8] sm:$0xff]
      %v911 = vld [vmem:[%s1 + $0x1700] sm:$0xff]
      %v912 = vld [vmem:[%s1 + $0x1708] sm:$0xff]
      %v913 = vld [vmem:[%s1 + $0x1710] sm:$0xff]
      %v914 = vld [vmem:[%s1 + $0x1718] sm:$0xff]
      %v915 = vld [vmem:[%s1 + $0x1720] sm:$0xff]
      %v916 = vld [vmem:[%s1 + $0x1728] sm:$0xff]
      %v917 = vld [vmem:[%s1 + $0x1730] sm:$0xff]
      %v918 = vld [vmem:[%s1 + $0x1738] sm:$0xff]
      %v919 = vld [vmem:[%s1 + $0x1740] sm:$0xff]
      %v920 = vld [vmem:[%s1 + $0x1748] sm:$0xff]
      %v921 = vld [vmem:[%s1 + $0x1750] sm:$0xff]
      %v922 = vld [vmem:[%s1 + $0x1758] sm:$0xff]
      %v923 = vld [vmem:[%s1 + $0x1760] sm:$0xff]
      %v924 = vld [vmem:[%s1 + $0x1768] sm:$0xff]
      %v925 = vld [vmem:[%s1 + $0x1770] sm:$0xff]
      %v926 = vld [vmem:[%s1 + $0x1778] sm:$0xff]
      %v927 = vld [vmem:[%s1 + $0x1780] sm:$0xff]
      %v928 = vld [vmem:[%s1 + $0x1788] sm:$0xff]
      %v929 = vld [vmem:[%s1 + $0x1790] sm:$0xff]
      %v930 = vld [vmem:[%s1 + $0x1798] sm:$0xff]
      %v931 = vld [vmem:[%s1 + $0x17a0] sm:$0xff]
      %v932 = vld [vmem:[%s1 + $0x17a8] sm:$0xff]
      %v933 = vld [vmem:[%s1 + $0x17b0] sm:$0xff]
      %v934 = vld [vmem:[%s1 + $0x17b8] sm:$0xff]
      %v935 = vld [vmem:[%s1 + $0x17c0] sm:$0xff]
      %v936 = vld [vmem:[%s1 + $0x17c8] sm:$0xff]
      %v937 = vld [vmem:[%s1 + $0x17d0] sm:$0xff]
      %v938 = vld [vmem:[%s1 + $0x17d8] sm:$0xff]
      %v939 = vld [vmem:[%s1 + $0x17e0] sm:$0xff]
      %v940 = vld [vmem:[%s1 + $0x17e8] sm:$0xff]
      %v941 = vld [vmem:[%s1 + $0x17f0] sm:$0xff]
      %v942 = vld [vmem:[%s1 + $0x17f8] sm:$0xff]
      %v943 = vld [vmem:[%s1 + $0x1800] sm:$0xff]
      %v944 = vld [vmem:[%s1 + $0x1808] sm:$0xff]
      %v945 = vld [vmem:[%s1 + $0x1810] sm:$0xff]
      %v946 = vld [vmem:[%s1 + $0x1818] sm:$0xff]
      %v947 = vld [vmem:[%s1 + $0x1820] sm:$0xff]
      %v948 = vld [vmem:[%s1 + $0x1828] sm:$0xff]
      %v949 = vld [vmem:[%s1 + $0x1830] sm:$0xff]
      %v950 = vld [vmem:[%s1 + $0x1838] sm:$0xff]
      %v951 = vld [vmem:[%s1 + $0x1840] sm:$0xff]
      %v952 = vld [vmem:[%s1 + $0x1848] sm:$0xff]
      %v953 = vld [vmem:[%s1 + $0x1850] sm:$0xff]
      %v954 = vld [vmem:[%s1 + $0x1858] sm:$0xff]
      %v955 = vld [vmem:[%s1 + $0x1860] sm:$0xff]
      %v956 = vld [vmem:[%s1 + $0x1868] sm:$0xff]
      %v957 = vld [vmem:[%s1 + $0x1870] sm:$0xff]
      %v958 = vld [vmem:[%s1 + $0x1878] sm:$0xff]
      %v959 = vld [vmem:[%s1 + $0x1880] sm:$0xff]
      %v960 = vld [vmem:[%s1 + $0x1888] sm:$0xff]
      %v961 = vld [vmem:[%s1 + $0x1890] sm:$0xff]
      %v962 = vld [vmem:[%s1 + $0x1898] sm:$0xff]
      %v963 = vld [vmem:[%s1 + $0x18a0] sm:$0xff]
      %v964 = vld [vmem:[%s1 + $0x18a8] sm:$0xff]
      %v965 = vld [vmem:[%s1 + $0x18b0] sm:$0xff]
      %v966 = vld [vmem:[%s1 + $0x18b8] sm:$0xff]
      %v967 = vld [vmem:[%s1 + $0x18c0] sm:$0xff]
      %v968 = vld [vmem:[%s1 + $0x18c8] sm:$0xff]
      %v969 = vld [vmem:[%s1 + $0x18d0] sm:$0xff]
      %v970 = vld [vmem:[%s1 + $0x18d8] sm:$0xff]
      %v971 = vld [vmem:[%s1 + $0x18e0] sm:$0xff]
      %v972 = vld [vmem:[%s1 + $0x18e8] sm:$0xff]
      %v973 = vld [vmem:[%s1 + $0x18f0] sm:$0xff]
      %v974 = vld [vmem:[%s1 + $0x18f8] sm:$0xff]
      %v975 = vld [vmem:[%s1 + $0x1900] sm:$0xff]
      %v976 = vld [vmem:[%s1 + $0x1908] sm:$0xff]
      %v977 = vld [vmem:[%s1 + $0x1910] sm:$0xff]
      %v978 = vld [vmem:[%s1 + $0x1918] sm:$0xff]
      %v979 = vld [vmem:[%s1 + $0x1920] sm:$0xff]
      %v980 = vld [vmem:[%s1 + $0x1928] sm:$0xff]
      %v981 = vld [vmem:[%s1 + $0x1930] sm:$0xff]
      %v982 = vld [vmem:[%s1 + $0x1938] sm:$0xff]
      %v983 = vld [vmem:[%s1 + $0x1940] sm:$0xff]
      %v984 = vld [vmem:[%s1 + $0x1948] sm:$0xff]
      %v985 = vld [vmem:[%s1 + $0x1950] sm:$0xff]
      %v986 = vld [vmem:[%s1 + $0x1958] sm:$0xff]
      %v987 = vld [vmem:[%s1 + $0x1960] sm:$0xff]
      %v988 = vld [vmem:[%s1 + $0x1968] sm:$0xff]
      %v989 = vld [vmem:[%s1 + $0x1970] sm:$0xff]
      %v990 = vld [vmem:[%s1 + $0x1978] sm:$0xff]
      %v991 = vld [vmem:[%s1 + $0x1980] sm:$0xff]
      %v992 = vld [vmem:[%s1 + $0x1988] sm:$0xff]
      %v993 = vld [vmem:[%s1 + $0x1990] sm:$0xff]
      %v994 = vld [vmem:[%s1 + $0x1998] sm:$0xff]
      %v995 = vld [vmem:[%s1 + $0x19a0] sm:$0xff]
      %v996 = vld [vmem:[%s1 + $0x19a8] sm:$0xff]
      %v997 = vld [vmem:[%s1 + $0x19b0] sm:$0xff]
      %v998 = vld [vmem:[%s1 + $0x19b8] sm:$0xff]
      %v999 = vld [vmem:[%s1 + $0x19c0] sm:$0xff]
      %v1000 = vld [vmem:[%s1 + $0x19c8] sm:$0xff]
      %v1001 = vld [vmem:[%s1 + $0x19d0] sm:$0xff]
      %v1002 = vld [vmem:[%s1 + $0x19d8] sm:$0xff]
      %v1003 = vld [vmem:[%s1 + $0x19e0] sm:$0xff]
      %v1004 = vld [vmem:[%s1 + $0x19e8] sm:$0xff]
      %v1005 = vld [vmem:[%s1 + $0x19f0] sm:$0xff]
      %v1006 = vld [vmem:[%s1 + $0x19f8] sm:$0xff]
      %v1007 = vld [vmem:[%s1 + $0x1a00] sm:$0xff]
      %v1008 = vld [vmem:[%s1 + $0x1a08] sm:$0xff]
      %v1009 = vld [vmem:[%s1 + $0x1a10] sm:$0xff]
      %v1010 = vld [vmem:[%s1 + $0x1a18] sm:$0xff]
      %v1011 = vld [vmem:[%s1 + $0x1a20] sm:$0xff]
      %v1012 = vld [vmem:[%s1 + $0x1a28] sm:$0xff]
      %v1013 = vld [vmem:[%s1 + $0x1a30] sm:$0xff]
      %v1014 = vld [vmem:[%s1 + $0x1a38] sm:$0xff]
      %v1015 = vld [vmem:[%s1 + $0x1a40] sm:$0xff]
      %v1016 = vld [vmem:[%s1 + $0x1a48] sm:$0xff]
      %v1017 = vld [vmem:[%s1 + $0x1a50] sm:$0xff]
      %v1018 = vld [vmem:[%s1 + $0x1a58] sm:$0xff]
      %v1019 = vld [vmem:[%s1 + $0x1a60] sm:$0xff]
      %v1020 = vld [vmem:[%s1 + $0x1a68] sm:$0xff]
      %v1021 = vld [vmem:[%s1 + $0x1a70] sm:$0xff]
      %v1022 = vld [vmem:[%s1 + $0x1a78] sm:$0xff]
      %v1023 = vld [vmem:[%s1 + $0x1a80] sm:$0xff]
      %v1024 = vld [vmem:[%s1 + $0x1a88] sm:$0xff]
      %v1025 = vld [vmem:[%s1 + $0x1a90] sm:$0xff]
      %v1026 = vld [vmem:[%s1 + $0x1a98] sm:$0xff]
      %v1027 = vld [vmem:[%s1 + $0x1aa0] sm:$0xff]
      %v1028 = vld [vmem:[%s1 + $0x1aa8] sm:$0xff]
      %v1029 = vld [vmem:[%s1 + $0x1ab0] sm:$0xff]
      %v1030 = vld [vmem:[%s1 + $0x1ab8] sm:$0xff]
      %v1031 = vld [vmem:[%s1 + $0x1ac0] sm:$0xff]
      %v1032 = vld [vmem:[%s1 + $0x1ac8] sm:$0xff]
      %v1033 = vld [vmem:[%s1 + $0x1ad0] sm:$0xff]
      %v1034 = vld [vmem:[%s1 + $0x1ad8] sm:$0xff]
      %v1035 = vld [vmem:[%s1 + $0x1ae0] sm:$0xff]
      %v1036 = vld [vmem:[%s1 + $0x1ae8] sm:$0xff]
      %v1037 = vld [vmem:[%s1 + $0x1af0] sm:$0xff]
      %v1038 = vld [vmem:[%s1 + $0x1af8] sm:$0xff]
      %v1039 = vld [vmem:[%s1 + $0x1b00] sm:$0xff]
      %v1040 = vld [vmem:[%s1 + $0x1b08] sm:$0xff]
      %v1041 = vld [vmem:[%s1 + $0x1b10] sm:$0xff]
      %v1042 = vld [vmem:[%s1 + $0x1b18] sm:$0xff]
      %v1043 = vld [vmem:[%s1 + $0x1b20] sm:$0xff]
      %v1044 = vld [vmem:[%s1 + $0x1b28] sm:$0xff]
      %v1045 = vld [vmem:[%s1 + $0x1b30] sm:$0xff]
      %v1046 = vld [vmem:[%s1 + $0x1b38] sm:$0xff]
      %v1047 = vld [vmem:[%s1 + $0x1b40] sm:$0xff]
      %v1048 = vld [vmem:[%s1 + $0x1b48] sm:$0xff]
      %v1049 = vld [vmem:[%s1 + $0x1b50] sm:$0xff]
      %v1050 = vld [vmem:[%s1 + $0x1b58] sm:$0xff]
      %v1051 = vld [vmem:[%s1 + $0x1b60] sm:$0xff]
      %v1052 = vld [vmem:[%s1 + $0x1b68] sm:$0xff]
      %v1053 = vld [vmem:[%s1 + $0x1b70] sm:$0xff]
      %v1054 = vld [vmem:[%s1 + $0x1b78] sm:$0xff]
      %v1055 = vld [vmem:[%s1 + $0x1b80] sm:$0xff]
      %v1056 = vld [vmem:[%s1 + $0x1b88] sm:$0xff]
      %v1057 = vld [vmem:[%s1 + $0x1b90] sm:$0xff]
      %v1058 = vld [vmem:[%s1 + $0x1b98] sm:$0xff]
      %v1059 = vld [vmem:[%s1 + $0x1ba0] sm:$0xff]
      %v1060 = vld [vmem:[%s1 + $0x1ba8] sm:$0xff]
      %v1061 = vld [vmem:[%s1 + $0x1bb0] sm:$0xff]
      %v1062 = vld [vmem:[%s1 + $0x1bb8] sm:$0xff]
      %v1063 = vld [vmem:[%s1 + $0x1bc0] sm:$0xff]
      %v1064 = vld [vmem:[%s1 + $0x1bc8] sm:$0xff]
      %v1065 = vld [vmem:[%s1 + $0x1bd0] sm:$0xff]
      %v1066 = vld [vmem:[%s1 + $0x1bd8] sm:$0xff]
      %v1067 = vld [vmem:[%s1 + $0x1be0] sm:$0xff]
      %v1068 = vld [vmem:[%s1 + $0x1be8] sm:$0xff]
      %v1069 = vld [vmem:[%s1 + $0x1bf0] sm:$0xff]
      %v1070 = vld [vmem:[%s1 + $0x1bf8] sm:$0xff]
      %v1071 = vld [vmem:[%s1 + $0x1c00] sm:$0xff]
      %v1072 = vld [vmem:[%s1 + $0x1c08] sm:$0xff]
      %v1073 = vld [vmem:[%s1 + $0x1c10] sm:$0xff]
      %v1074 = vld [vmem:[%s1 + $0x1c18] sm:$0xff]
      %v1075 = vld [vmem:[%s1 + $0x1c20] sm:$0xff]
      %v1076 = vld [vmem:[%s1 + $0x1c28] sm:$0xff]
      %v1077 = vld [vmem:[%s1 + $0x1c30] sm:$0xff]
      %v1078 = vld [vmem:[%s1 + $0x1c38] sm:$0xff]
      %v1079 = vld [vmem:[%s1 + $0x1c40] sm:$0xff]
      %v1080 = vld [vmem:[%s1 + $0x1c48] sm:$0xff]
      %v1081 = vld [vmem:[%s1 + $0x1c50] sm:$0xff]
      %v1082 = vld [vmem:[%s1 + $0x1c58] sm:$0xff]
      %v1083 = vld [vmem:[%s1 + $0x1c60] sm:$0xff]
      %v1084 = vld [vmem:[%s1 + $0x1c68] sm:$0xff]
      %v1085 = vld [vmem:[%s1 + $0x1c70] sm:$0xff]
      %v1086 = vld [vmem:[%s1 + $0x1c78] sm:$0xff]
      %v1087 = vld [vmem:[%s1 + $0x1c80] sm:$0xff]
      %v1088 = vld [vmem:[%s1 + $0x1c88] sm:$0xff]
      %v1089 = vld [vmem:[%s1 + $0x1c90] sm:$0xff]
      %v1090 = vld [vmem:[%s1 + $0x1c98] sm:$0xff]
      %v1091 = vld [vmem:[%s1 + $0x1ca0] sm:$0xff]
      %v1092 = vld [vmem:[%s1 + $0x1ca8] sm:$0xff]
      %v1093 = vld [vmem:[%s1 + $0x1cb0] sm:$0xff]
      %v1094 = vld [vmem:[%s1 + $0x1cb8] sm:$0xff]
      %v1095 = vld [vmem:[%s1 + $0x1cc0] sm:$0xff]
      %v1096 = vld [vmem:[%s1 + $0x1cc8] sm:$0xff]
      %v1097 = vld [vmem:[%s1 + $0x1cd0] sm:$0xff]
      %v1098 = vld [vmem:[%s1 + $0x1cd8] sm:$0xff]
      %v1099 = vld [vmem:[%s1 + $0x1ce0] sm:$0xff]
      %v1100 = vld [vmem:[%s1 + $0x1ce8] sm:$0xff]
      %v1101 = vld [vmem:[%s1 + $0x1cf0] sm:$0xff]
      %v1102 = vld [vmem:[%s1 + $0x1cf8] sm:$0xff]
      %v1103 = vld [vmem:[%s1 + $0x1d00] sm:$0xff]
      %v1104 = vld [vmem:[%s1 + $0x1d08] sm:$0xff]
      %v1105 = vld [vmem:[%s1 + $0x1d10] sm:$0xff]
      %v1106 = vld [vmem:[%s1 + $0x1d18] sm:$0xff]
      %v1107 = vld [vmem:[%s1 + $0x1d20] sm:$0xff]
      %v1108 = vld [vmem:[%s1 + $0x1d28] sm:$0xff]
      %v1109 = vld [vmem:[%s1 + $0x1d30] sm:$0xff]
      %v1110 = vld [vmem:[%s1 + $0x1d38] sm:$0xff]
      %v1111 = vld [vmem:[%s1 + $0x1d40] sm:$0xff]
      %v1112 = vld [vmem:[%s1 + $0x1d48] sm:$0xff]
      %v1113 = vld [vmem:[%s1 + $0x1d50] sm:$0xff]
      %v1114 = vld [vmem:[%s1 + $0x1d58] sm:$0xff]
      %v1115 = vld [vmem:[%s1 + $0x1d60] sm:$0xff]
      %v1116 = vld [vmem:[%s1 + $0x1d68] sm:$0xff]
      %v1117 = vld [vmem:[%s1 + $0x1d70] sm:$0xff]
      %v1118 = vld [vmem:[%s1 + $0x1d78] sm:$0xff]
      %v1119 = vld [vmem:[%s1 + $0x1d80] sm:$0xff]
      %v1120 = vld [vmem:[%s1 + $0x1d88] sm:$0xff]
      %v1121 = vld [vmem:[%s1 + $0x1d90] sm:$0xff]
      %v1122 = vld [vmem:[%s1 + $0x1d98] sm:$0xff]
      %v1123 = vld [vmem:[%s1 + $0x1da0] sm:$0xff]
      %v1124 = vld [vmem:[%s1 + $0x1da8] sm:$0xff]
      %v1125 = vld [vmem:[%s1 + $0x1db0] sm:$0xff]
      %v1126 = vld [vmem:[%s1 + $0x1db8] sm:$0xff]
      %v1127 = vld [vmem:[%s1 + $0x1dc0] sm:$0xff]
      %v1128 = vld [vmem:[%s1 + $0x1dc8] sm:$0xff]
      %v1129 = vld [vmem:[%s1 + $0x1dd0] sm:$0xff]
      %v1130 = vld [vmem:[%s1 + $0x1dd8] sm:$0xff]
      %v1131 = vld [vmem:[%s1 + $0x1de0] sm:$0xff]
      %v1132 = vld [vmem:[%s1 + $0x1de8] sm:$0xff]
      %v1133 = vld [vmem:[%s1 + $0x1df0] sm:$0xff]
      %v1134 = vld [vmem:[%s1 + $0x1df8] sm:$0xff]
      %v1135 = vld [vmem:[%s1 + $0x1e00] sm:$0xff]
      %v1136 = vld [vmem:[%s1 + $0x1e08] sm:$0xff]
      %v1137 = vld [vmem:[%s1 + $0x1e10] sm:$0xff]
      %v1138 = vld [vmem:[%s1 + $0x1e18] sm:$0xff]
      %v1139 = vld [vmem:[%s1 + $0x1e20] sm:$0xff]
      %v1140 = vld [vmem:[%s1 + $0x1e28] sm:$0xff]
      %v1141 = vld [vmem:[%s1 + $0x1e30] sm:$0xff]
      %v1142 = vld [vmem:[%s1 + $0x1e38] sm:$0xff]
      %v1143 = vld [vmem:[%s1 + $0x1e40] sm:$0xff]
      %v1144 = vld [vmem:[%s1 + $0x1e48] sm:$0xff]
      %v1145 = vld [vmem:[%s1 + $0x1e50] sm:$0xff]
      %v1146 = vld [vmem:[%s1 + $0x1e58] sm:$0xff]
      %v1147 = vld [vmem:[%s1 + $0x1e60] sm:$0xff]
      %v1148 = vld [vmem:[%s1 + $0x1e68] sm:$0xff]
      %v1149 = vld [vmem:[%s1 + $0x1e70] sm:$0xff]
      %v1150 = vld [vmem:[%s1 + $0x1e78] sm:$0xff]
      %v1151 = vld [vmem:[%s1 + $0x1e80] sm:$0xff]
      %v1152 = vld [vmem:[%s1 + $0x1e88] sm:$0xff]
      %v1153 = vld [vmem:[%s1 + $0x1e90] sm:$0xff]
      %v1154 = vld [vmem:[%s1 + $0x1e98] sm:$0xff]
      %v1155 = vld [vmem:[%s1 + $0x1ea0] sm:$0xff]
      %v1156 = vld [vmem:[%s1 + $0x1ea8] sm:$0xff]
      %v1157 = vld [vmem:[%s1 + $0x1eb0] sm:$0xff]
      %v1158 = vld [vmem:[%s1 + $0x1eb8] sm:$0xff]
      %v1159 = vld [vmem:[%s1 + $0x1ec0] sm:$0xff]
      %v1160 = vld [vmem:[%s1 + $0x1ec8] sm:$0xff]
      %v1161 = vld [vmem:[%s1 + $0x1ed0] sm:$0xff]
      %v1162 = vld [vmem:[%s1 + $0x1ed8] sm:$0xff]
      %v1163 = vld [vmem:[%s1 + $0x1ee0] sm:$0xff]
      %v1164 = vld [vmem:[%s1 + $0x1ee8] sm:$0xff]
      %v1165 = vld [vmem:[%s1 + $0x1ef0] sm:$0xff]
      %v1166 = vld [vmem:[%s1 + $0x1ef8] sm:$0xff]
      %v1167 = vld [vmem:[%s1 + $0x1f00] sm:$0xff]
      %v1168 = vld [vmem:[%s1 + $0x1f08] sm:$0xff]
      %v1169 = vld [vmem:[%s1 + $0x1f10] sm:$0xff]
      %v1170 = vld [vmem:[%s1 + $0x1f18] sm:$0xff]
      %v1171 = vld [vmem:[%s1 + $0x1f20] sm:$0xff]
      %v1172 = vld [vmem:[%s1 + $0x1f28] sm:$0xff]
      %v1173 = vld [vmem:[%s1 + $0x1f30] sm:$0xff]
      %v1174 = vld [vmem:[%s1 + $0x1f38] sm:$0xff]
      %v1175 = vld [vmem:[%s1 + $0x1f40] sm:$0xff]
      %v1176 = vld [vmem:[%s1 + $0x1f48] sm:$0xff]
      %v1177 = vld [vmem:[%s1 + $0x1f50] sm:$0xff]
      %v1178 = vld [vmem:[%s1 + $0x1f58] sm:$0xff]
      %v1179 = vld [vmem:[%s1 + $0x1f60] sm:$0xff]
      %v1180 = vld [vmem:[%s1 + $0x1f68] sm:$0xff]
      %v1181 = vld [vmem:[%s1 + $0x1f70] sm:$0xff]
      %v1182 = vld [vmem:[%s1 + $0x1f78] sm:$0xff]
      %v1183 = vld [vmem:[%s1 + $0x1f80] sm:$0xff]
      %v1184 = vld [vmem:[%s1 + $0x1f88] sm:$0xff]
      %v1185 = vld [vmem:[%s1 + $0x1f90] sm:$0xff]
      %v1186 = vld [vmem:[%s1 + $0x1f98] sm:$0xff]
      %v1187 = vld [vmem:[%s1 + $0x1fa0] sm:$0xff]
      %v1188 = vld [vmem:[%s1 + $0x1fa8] sm:$0xff]
      %v1189 = vld [vmem:[%s1 + $0x1fb0] sm:$0xff]
      %v1190 = vld [vmem:[%s1 + $0x1fb8] sm:$0xff]
      %v1191 = vld [vmem:[%s1 + $0x1fc0] sm:$0xff]
      %v1192 = vld [vmem:[%s1 + $0x1fc8] sm:$0xff]
      %v1193 = vld [vmem:[%s1 + $0x1fd0] sm:$0xff]
      %v1194 = vld [vmem:[%s1 + $0x1fd8] sm:$0xff]
      %v1195 = vld [vmem:[%s1 + $0x1fe0] sm:$0xff]
      %v1196 = vld [vmem:[%s1 + $0x1fe8] sm:$0xff]
      %v1197 = vld [vmem:[%s1 + $0x1ff0] sm:$0xff]
      %v1198 = vld [vmem:[%s1 + $0x1ff8] sm:$0xff]
      %v1207 = vcombine.high %v167, %v167
      %v1209 = vunpack.c.l.s4 1983009808
      %v1210 = vunpack.c.0.s8 %v1209
      %v1211 = vlaneseq
      %v1212 = vshrl.u32 %v1211, 7
      %v1213 = vsub.s32 %v1210, %v1212
      %v1214 = vrot.slane %v167, %v1213
      %v1216 = vunpack.c.l.s4 1983009808
      %v1217 = vunpack.c.0.s8 %v1216
      %v1218 = vlaneseq
      %v1219 = vshrl.u32 %v1218, 7
      %v1220 = vsub.s32 %v1217, %v1219
      %v1221 = vrot.slane %v1207, %v1220
      %v1222 = vcombine.high %v1214, %v1214
      %v1223 = vcombine.high %v1221, %v1221
      %v1224 = vcombine.high %v168, %v168
      %v1226 = vunpack.c.l.s4 1983009808
      %v1227 = vunpack.c.0.s8 %v1226
      %v1228 = vlaneseq
      %v1229 = vshrl.u32 %v1228, 7
      %v1230 = vsub.s32 %v1227, %v1229
      %v1231 = vrot.slane %v168, %v1230
      %v1233 = vunpack.c.l.s4 1983009808
      %v1234 = vunpack.c.0.s8 %v1233
      %v1235 = vlaneseq
      %v1236 = vshrl.u32 %v1235, 7
      %v1237 = vsub.s32 %v1234, %v1236
      %v1238 = vrot.slane %v1224, %v1237
      %v1239 = vcombine.high %v1231, %v1231
      %v1240 = vcombine.high %v1238, %v1238
      %v1241 = vcombine.high %v169, %v169
      %v1243 = vunpack.c.l.s4 1983009808
      %v1244 = vunpack.c.0.s8 %v1243
      %v1245 = vlaneseq
      %v1246 = vshrl.u32 %v1245, 7
      %v1247 = vsub.s32 %v1244, %v1246
      %v1248 = vrot.slane %v169, %v1247
      %v1250 = vunpack.c.l.s4 1983009808
      %v1251 = vunpack.c.0.s8 %v1250
      %v1252 = vlaneseq
      %v1253 = vshrl.u32 %v1252, 7
      %v1254 = vsub.s32 %v1251, %v1253
      %v1255 = vrot.slane %v1241, %v1254
      %v1256 = vcombine.high %v1248, %v1248
      %v1257 = vcombine.high %v1255, %v1255
      %v1258 = vcombine.high %v170, %v170
      %v1260 = vunpack.c.l.s4 1983009808
      %v1261 = vunpack.c.0.s8 %v1260
      %v1262 = vlaneseq
      %v1263 = vshrl.u32 %v1262, 7
      %v1264 = vsub.s32 %v1261, %v1263
      %v1265 = vrot.slane %v170, %v1264
      %v1267 = vunpack.c.l.s4 1983009808
      %v1268 = vunpack.c.0.s8 %v1267
      %v1269 = vlaneseq
      %v1270 = vshrl.u32 %v1269, 7
      %v1271 = vsub.s32 %v1268, %v1270
      %v1272 = vrot.slane %v1258, %v1271
      %v1273 = vcombine.high %v1265, %v1265
      %v1274 = vcombine.high %v1272, %v1272
      %v1275 = vcombine.high %v171, %v171
      %v1277 = vunpack.c.l.s4 1983009808
      %v1278 = vunpack.c.0.s8 %v1277
      %v1279 = vlaneseq
      %v1280 = vshrl.u32 %v1279, 7
      %v1281 = vsub.s32 %v1278, %v1280
      %v1282 = vrot.slane %v171, %v1281
      %v1284 = vunpack.c.l.s4 1983009808
      %v1285 = vunpack.c.0.s8 %v1284
      %v1286 = vlaneseq
      %v1287 = vshrl.u32 %v1286, 7
      %v1288 = vsub.s32 %v1285, %v1287
      %v1289 = vrot.slane %v1275, %v1288
      %v1290 = vcombine.high %v1282, %v1282
      %v1291 = vcombine.high %v1289, %v1289
      %v1292 = vcombine.high %v172, %v172
      %v1294 = vunpack.c.l.s4 1983009808
      %v1295 = vunpack.c.0.s8 %v1294
      %v1296 = vlaneseq
      %v1297 = vshrl.u32 %v1296, 7
      %v1298 = vsub.s32 %v1295, %v1297
      %v1299 = vrot.slane %v172, %v1298
      %v1301 = vunpack.c.l.s4 1983009808
      %v1302 = vunpack.c.0.s8 %v1301
      %v1303 = vlaneseq
      %v1304 = vshrl.u32 %v1303, 7
      %v1305 = vsub.s32 %v1302, %v1304
      %v1306 = vrot.slane %v1292, %v1305
      %v1307 = vcombine.high %v1299, %v1299
      %v1308 = vcombine.high %v1306, %v1306
      %v1309 = vcombine.high %v173, %v173
      %v1311 = vunpack.c.l.s4 1983009808
      %v1312 = vunpack.c.0.s8 %v1311
      %v1313 = vlaneseq
      %v1314 = vshrl.u32 %v1313, 7
      %v1315 = vsub.s32 %v1312, %v1314
      %v1316 = vrot.slane %v173, %v1315
      %v1318 = vunpack.c.l.s4 1983009808
      %v1319 = vunpack.c.0.s8 %v1318
      %v1320 = vlaneseq
      %v1321 = vshrl.u32 %v1320, 7
      %v1322 = vsub.s32 %v1319, %v1321
      %v1323 = vrot.slane %v1309, %v1322
      %v1324 = vcombine.high %v1316, %v1316
      %v1325 = vcombine.high %v1323, %v1323
      %v1326 = vcombine.high %v174, %v174
      %v1328 = vunpack.c.l.s4 1983009808
      %v1329 = vunpack.c.0.s8 %v1328
      %v1330 = vlaneseq
      %v1331 = vshrl.u32 %v1330, 7
      %v1332 = vsub.s32 %v1329, %v1331
      %v1333 = vrot.slane %v174, %v1332
      %v1335 = vunpack.c.l.s4 1983009808
      %v1336 = vunpack.c.0.s8 %v1335
      %v1337 = vlaneseq
      %v1338 = vshrl.u32 %v1337, 7
      %v1339 = vsub.s32 %v1336, %v1338
      %v1340 = vrot.slane %v1326, %v1339
      %v1341 = vcombine.high %v1333, %v1333
      %v1342 = vcombine.high %v1340, %v1340
      %v2399 = vunpack.c.l.b16 %v175
      %v2400 = vunpack.c.h.b16 %v175
      %v2401 = vunpack.c.l.b16 %v176
      %v2402 = vunpack.c.h.b16 %v176
      %v2403 = vunpack.c.l.b16 %v177
      %v2404 = vunpack.c.h.b16 %v177
      %v2405 = vunpack.c.l.b16 %v178
      %v2406 = vunpack.c.h.b16 %v178
      %v2407 = vunpack.c.l.b16 %v179
      %v2408 = vunpack.c.h.b16 %v179
      %v2409 = vunpack.c.l.b16 %v180
      %v2410 = vunpack.c.h.b16 %v180
      %v2411 = vunpack.c.l.b16 %v181
      %v2412 = vunpack.c.h.b16 %v181
      %v2413 = vunpack.c.l.b16 %v182
      %v2414 = vunpack.c.h.b16 %v182
      %v2415 = vunpack.c.l.b16 %v183
      %v2416 = vunpack.c.h.b16 %v183
      %v2417 = vunpack.c.l.b16 %v184
      %v2418 = vunpack.c.h.b16 %v184
      %v2419 = vunpack.c.l.b16 %v185
      %v2420 = vunpack.c.h.b16 %v185
      %v2421 = vunpack.c.l.b16 %v186
      %v2422 = vunpack.c.h.b16 %v186
      %v2423 = vunpack.c.l.b16 %v187
      %v2424 = vunpack.c.h.b16 %v187
      %v2425 = vunpack.c.l.b16 %v188
      %v2426 = vunpack.c.h.b16 %v188
      %v2427 = vunpack.c.l.b16 %v189
      %v2428 = vunpack.c.h.b16 %v189
      %v2429 = vunpack.c.l.b16 %v190
      %v2430 = vunpack.c.h.b16 %v190
      %v2431 = vunpack.c.l.b16 %v191
      %v2432 = vunpack.c.h.b16 %v191
      %v2433 = vunpack.c.l.b16 %v192
      %v2434 = vunpack.c.h.b16 %v192
      %v2435 = vunpack.c.l.b16 %v193
      %v2436 = vunpack.c.h.b16 %v193
      %v2437 = vunpack.c.l.b16 %v194
      %v2438 = vunpack.c.h.b16 %v194
      %v2439 = vunpack.c.l.b16 %v195
      %v2440 = vunpack.c.h.b16 %v195
      %v2441 = vunpack.c.l.b16 %v196
      %v2442 = vunpack.c.h.b16 %v196
      %v2443 = vunpack.c.l.b16 %v197
      %v2444 = vunpack.c.h.b16 %v197
      %v2445 = vunpack.c.l.b16 %v198
      %v2446 = vunpack.c.h.b16 %v198
      %v2447 = vunpack.c.l.b16 %v199
      %v2448 = vunpack.c.h.b16 %v199
      %v2449 = vunpack.c.l.b16 %v200
      %v2450 = vunpack.c.h.b16 %v200
      %v2451 = vunpack.c.l.b16 %v201
      %v2452 = vunpack.c.h.b16 %v201
      %v2453 = vunpack.c.l.b16 %v202
      %v2454 = vunpack.c.h.b16 %v202
      %v2455 = vunpack.c.l.b16 %v203
      %v2456 = vunpack.c.h.b16 %v203
      %v2457 = vunpack.c.l.b16 %v204
      %v2458 = vunpack.c.h.b16 %v204
      %v2459 = vunpack.c.l.b16 %v205
      %v2460 = vunpack.c.h.b16 %v205
      %v2461 = vunpack.c.l.b16 %v206
      %v2462 = vunpack.c.h.b16 %v206
      %v2463 = vunpack.c.l.b16 %v207
      %v2464 = vunpack.c.h.b16 %v207
      %v2465 = vunpack.c.l.b16 %v208
      %v2466 = vunpack.c.h.b16 %v208
      %v2467 = vunpack.c.l.b16 %v209
      %v2468 = vunpack.c.h.b16 %v209
      %v2469 = vunpack.c.l.b16 %v210
      %v2470 = vunpack.c.h.b16 %v210
      %v2471 = vunpack.c.l.b16 %v211
      %v2472 = vunpack.c.h.b16 %v211
      %v2473 = vunpack.c.l.b16 %v212
      %v2474 = vunpack.c.h.b16 %v212
      %v2475 = vunpack.c.l.b16 %v213
      %v2476 = vunpack.c.h.b16 %v213
      %v2477 = vunpack.c.l.b16 %v214
      %v2478 = vunpack.c.h.b16 %v214
      %v2479 = vunpack.c.l.b16 %v215
      %v2480 = vunpack.c.h.b16 %v215
      %v2481 = vunpack.c.l.b16 %v216
      %v2482 = vunpack.c.h.b16 %v216
      %v2483 = vunpack.c.l.b16 %v217
      %v2484 = vunpack.c.h.b16 %v217
      %v2485 = vunpack.c.l.b16 %v218
      %v2486 = vunpack.c.h.b16 %v218
      %v2487 = vunpack.c.l.b16 %v219
      %v2488 = vunpack.c.h.b16 %v219
      %v2489 = vunpack.c.l.b16 %v220
      %v2490 = vunpack.c.h.b16 %v220
      %v2491 = vunpack.c.l.b16 %v221
      %v2492 = vunpack.c.h.b16 %v221
      %v2493 = vunpack.c.l.b16 %v222
      %v2494 = vunpack.c.h.b16 %v222
      %v2495 = vunpack.c.l.b16 %v223
      %v2496 = vunpack.c.h.b16 %v223
      %v2497 = vunpack.c.l.b16 %v224
      %v2498 = vunpack.c.h.b16 %v224
      %v2499 = vunpack.c.l.b16 %v225
      %v2500 = vunpack.c.h.b16 %v225
      %v2501 = vunpack.c.l.b16 %v226
      %v2502 = vunpack.c.h.b16 %v226
      %v2503 = vunpack.c.l.b16 %v227
      %v2504 = vunpack.c.h.b16 %v227
      %v2505 = vunpack.c.l.b16 %v228
      %v2506 = vunpack.c.h.b16 %v228
      %v2507 = vunpack.c.l.b16 %v229
      %v2508 = vunpack.c.h.b16 %v229
      %v2509 = vunpack.c.l.b16 %v230
      %v2510 = vunpack.c.h.b16 %v230
      %v2511 = vunpack.c.l.b16 %v231
      %v2512 = vunpack.c.h.b16 %v231
      %v2513 = vunpack.c.l.b16 %v232
      %v2514 = vunpack.c.h.b16 %v232
      %v2515 = vunpack.c.l.b16 %v233
      %v2516 = vunpack.c.h.b16 %v233
      %v2517 = vunpack.c.l.b16 %v234
      %v2518 = vunpack.c.h.b16 %v234
      %v2519 = vunpack.c.l.b16 %v235
      %v2520 = vunpack.c.h.b16 %v235
      %v2521 = vunpack.c.l.b16 %v236
      %v2522 = vunpack.c.h.b16 %v236
      %v2523 = vunpack.c.l.b16 %v237
      %v2524 = vunpack.c.h.b16 %v237
      %v2525 = vunpack.c.l.b16 %v238
      %v2526 = vunpack.c.h.b16 %v238
      %v2527 = vunpack.c.l.b16 %v239
      %v2528 = vunpack.c.h.b16 %v239
      %v2529 = vunpack.c.l.b16 %v240
      %v2530 = vunpack.c.h.b16 %v240
      %v2531 = vunpack.c.l.b16 %v241
      %v2532 = vunpack.c.h.b16 %v241
      %v2533 = vunpack.c.l.b16 %v242
      %v2534 = vunpack.c.h.b16 %v242
      %v2535 = vunpack.c.l.b16 %v243
      %v2536 = vunpack.c.h.b16 %v243
      %v2537 = vunpack.c.l.b16 %v244
      %v2538 = vunpack.c.h.b16 %v244
      %v2539 = vunpack.c.l.b16 %v245
      %v2540 = vunpack.c.h.b16 %v245
      %v2541 = vunpack.c.l.b16 %v246
      %v2542 = vunpack.c.h.b16 %v246
      %v2543 = vunpack.c.l.b16 %v247
      %v2544 = vunpack.c.h.b16 %v247
      %v2545 = vunpack.c.l.b16 %v248
      %v2546 = vunpack.c.h.b16 %v248
      %v2547 = vunpack.c.l.b16 %v249
      %v2548 = vunpack.c.h.b16 %v249
      %v2549 = vunpack.c.l.b16 %v250
      %v2550 = vunpack.c.h.b16 %v250
      %v2551 = vunpack.c.l.b16 %v251
      %v2552 = vunpack.c.h.b16 %v251
      %v2553 = vunpack.c.l.b16 %v252
      %v2554 = vunpack.c.h.b16 %v252
      %v2555 = vunpack.c.l.b16 %v253
      %v2556 = vunpack.c.h.b16 %v253
      %v2557 = vunpack.c.l.b16 %v254
      %v2558 = vunpack.c.h.b16 %v254
      %v2559 = vunpack.c.l.b16 %v255
      %v2560 = vunpack.c.h.b16 %v255
      %v2561 = vunpack.c.l.b16 %v256
      %v2562 = vunpack.c.h.b16 %v256
      %v2563 = vunpack.c.l.b16 %v257
      %v2564 = vunpack.c.h.b16 %v257
      %v2565 = vunpack.c.l.b16 %v258
      %v2566 = vunpack.c.h.b16 %v258
      %v2567 = vunpack.c.l.b16 %v259
      %v2568 = vunpack.c.h.b16 %v259
      %v2569 = vunpack.c.l.b16 %v260
      %v2570 = vunpack.c.h.b16 %v260
      %v2571 = vunpack.c.l.b16 %v261
      %v2572 = vunpack.c.h.b16 %v261
      %v2573 = vunpack.c.l.b16 %v262
      %v2574 = vunpack.c.h.b16 %v262
      %v2575 = vunpack.c.l.b16 %v263
      %v2576 = vunpack.c.h.b16 %v263
      %v2577 = vunpack.c.l.b16 %v264
      %v2578 = vunpack.c.h.b16 %v264
      %v2579 = vunpack.c.l.b16 %v265
      %v2580 = vunpack.c.h.b16 %v265
      %v2581 = vunpack.c.l.b16 %v266
      %v2582 = vunpack.c.h.b16 %v266
      %v2583 = vunpack.c.l.b16 %v267
      %v2584 = vunpack.c.h.b16 %v267
      %v2585 = vunpack.c.l.b16 %v268
      %v2586 = vunpack.c.h.b16 %v268
      %v2587 = vunpack.c.l.b16 %v269
      %v2588 = vunpack.c.h.b16 %v269
      %v2589 = vunpack.c.l.b16 %v270
      %v2590 = vunpack.c.h.b16 %v270
      %v2591 = vunpack.c.l.b16 %v271
      %v2592 = vunpack.c.h.b16 %v271
      %v2593 = vunpack.c.l.b16 %v272
      %v2594 = vunpack.c.h.b16 %v272
      %v2595 = vunpack.c.l.b16 %v273
      %v2596 = vunpack.c.h.b16 %v273
      %v2597 = vunpack.c.l.b16 %v274
      %v2598 = vunpack.c.h.b16 %v274
      %v2599 = vunpack.c.l.b16 %v275
      %v2600 = vunpack.c.h.b16 %v275
      %v2601 = vunpack.c.l.b16 %v276
      %v2602 = vunpack.c.h.b16 %v276
      %v2603 = vunpack.c.l.b16 %v277
      %v2604 = vunpack.c.h.b16 %v277
      %v2605 = vunpack.c.l.b16 %v278
      %v2606 = vunpack.c.h.b16 %v278
      %v2607 = vunpack.c.l.b16 %v279
      %v2608 = vunpack.c.h.b16 %v279
      %v2609 = vunpack.c.l.b16 %v280
      %v2610 = vunpack.c.h.b16 %v280
      %v2611 = vunpack.c.l.b16 %v281
      %v2612 = vunpack.c.h.b16 %v281
      %v2613 = vunpack.c.l.b16 %v282
      %v2614 = vunpack.c.h.b16 %v282
      %v2615 = vunpack.c.l.b16 %v283
      %v2616 = vunpack.c.h.b16 %v283
      %v2617 = vunpack.c.l.b16 %v284
      %v2618 = vunpack.c.h.b16 %v284
      %v2619 = vunpack.c.l.b16 %v285
      %v2620 = vunpack.c.h.b16 %v285
      %v2621 = vunpack.c.l.b16 %v286
      %v2622 = vunpack.c.h.b16 %v286
      %v2623 = vunpack.c.l.b16 %v287
      %v2624 = vunpack.c.h.b16 %v287
      %v2625 = vunpack.c.l.b16 %v288
      %v2626 = vunpack.c.h.b16 %v288
      %v2627 = vunpack.c.l.b16 %v289
      %v2628 = vunpack.c.h.b16 %v289
      %v2629 = vunpack.c.l.b16 %v290
      %v2630 = vunpack.c.h.b16 %v290
      %v2631 = vunpack.c.l.b16 %v291
      %v2632 = vunpack.c.h.b16 %v291
      %v2633 = vunpack.c.l.b16 %v292
      %v2634 = vunpack.c.h.b16 %v292
      %v2635 = vunpack.c.l.b16 %v293
      %v2636 = vunpack.c.h.b16 %v293
      %v2637 = vunpack.c.l.b16 %v294
      %v2638 = vunpack.c.h.b16 %v294
      %v2639 = vunpack.c.l.b16 %v295
      %v2640 = vunpack.c.h.b16 %v295
      %v2641 = vunpack.c.l.b16 %v296
      %v2642 = vunpack.c.h.b16 %v296
      %v2643 = vunpack.c.l.b16 %v297
      %v2644 = vunpack.c.h.b16 %v297
      %v2645 = vunpack.c.l.b16 %v298
      %v2646 = vunpack.c.h.b16 %v298
      %v2647 = vunpack.c.l.b16 %v299
      %v2648 = vunpack.c.h.b16 %v299
      %v2649 = vunpack.c.l.b16 %v300
      %v2650 = vunpack.c.h.b16 %v300
      %v2651 = vunpack.c.l.b16 %v301
      %v2652 = vunpack.c.h.b16 %v301
      %v2653 = vunpack.c.l.b16 %v302
      %v2654 = vunpack.c.h.b16 %v302
      %v2655 = vunpack.c.l.b16 %v303
      %v2656 = vunpack.c.h.b16 %v303
      %v2657 = vunpack.c.l.b16 %v304
      %v2658 = vunpack.c.h.b16 %v304
      %v2659 = vunpack.c.l.b16 %v305
      %v2660 = vunpack.c.h.b16 %v305
      %v2661 = vunpack.c.l.b16 %v306
      %v2662 = vunpack.c.h.b16 %v306
      %v2663 = vunpack.c.l.b16 %v307
      %v2664 = vunpack.c.h.b16 %v307
      %v2665 = vunpack.c.l.b16 %v308
      %v2666 = vunpack.c.h.b16 %v308
      %v2667 = vunpack.c.l.b16 %v309
      %v2668 = vunpack.c.h.b16 %v309
      %v2669 = vunpack.c.l.b16 %v310
      %v2670 = vunpack.c.h.b16 %v310
      %v2671 = vunpack.c.l.b16 %v311
      %v2672 = vunpack.c.h.b16 %v311
      %v2673 = vunpack.c.l.b16 %v312
      %v2674 = vunpack.c.h.b16 %v312
      %v2675 = vunpack.c.l.b16 %v313
      %v2676 = vunpack.c.h.b16 %v313
      %v2677 = vunpack.c.l.b16 %v314
      %v2678 = vunpack.c.h.b16 %v314
      %v2679 = vunpack.c.l.b16 %v315
      %v2680 = vunpack.c.h.b16 %v315
      %v2681 = vunpack.c.l.b16 %v316
      %v2682 = vunpack.c.h.b16 %v316
      %v2683 = vunpack.c.l.b16 %v317
      %v2684 = vunpack.c.h.b16 %v317
      %v2685 = vunpack.c.l.b16 %v318
      %v2686 = vunpack.c.h.b16 %v318
      %v2687 = vunpack.c.l.b16 %v319
      %v2688 = vunpack.c.h.b16 %v319
      %v2689 = vunpack.c.l.b16 %v320
      %v2690 = vunpack.c.h.b16 %v320
      %v2691 = vunpack.c.l.b16 %v321
      %v2692 = vunpack.c.h.b16 %v321
      %v2693 = vunpack.c.l.b16 %v322
      %v2694 = vunpack.c.h.b16 %v322
      %v2695 = vunpack.c.l.b16 %v323
      %v2696 = vunpack.c.h.b16 %v323
      %v2697 = vunpack.c.l.b16 %v324
      %v2698 = vunpack.c.h.b16 %v324
      %v2699 = vunpack.c.l.b16 %v325
      %v2700 = vunpack.c.h.b16 %v325
      %v2701 = vunpack.c.l.b16 %v326
      %v2702 = vunpack.c.h.b16 %v326
      %v2703 = vunpack.c.l.b16 %v327
      %v2704 = vunpack.c.h.b16 %v327
      %v2705 = vunpack.c.l.b16 %v328
      %v2706 = vunpack.c.h.b16 %v328
      %v2707 = vunpack.c.l.b16 %v329
      %v2708 = vunpack.c.h.b16 %v329
      %v2709 = vunpack.c.l.b16 %v330
      %v2710 = vunpack.c.h.b16 %v330
      %v2711 = vunpack.c.l.b16 %v331
      %v2712 = vunpack.c.h.b16 %v331
      %v2713 = vunpack.c.l.b16 %v332
      %v2714 = vunpack.c.h.b16 %v332
      %v2715 = vunpack.c.l.b16 %v333
      %v2716 = vunpack.c.h.b16 %v333
      %v2717 = vunpack.c.l.b16 %v334
      %v2718 = vunpack.c.h.b16 %v334
      %v2719 = vunpack.c.l.b16 %v335
      %v2720 = vunpack.c.h.b16 %v335
      %v2721 = vunpack.c.l.b16 %v336
      %v2722 = vunpack.c.h.b16 %v336
      %v2723 = vunpack.c.l.b16 %v337
      %v2724 = vunpack.c.h.b16 %v337
      %v2725 = vunpack.c.l.b16 %v338
      %v2726 = vunpack.c.h.b16 %v338
      %v2727 = vunpack.c.l.b16 %v339
      %v2728 = vunpack.c.h.b16 %v339
      %v2729 = vunpack.c.l.b16 %v340
      %v2730 = vunpack.c.h.b16 %v340
      %v2731 = vunpack.c.l.b16 %v341
      %v2732 = vunpack.c.h.b16 %v341
      %v2733 = vunpack.c.l.b16 %v342
      %v2734 = vunpack.c.h.b16 %v342
      %v2735 = vunpack.c.l.b16 %v343
      %v2736 = vunpack.c.h.b16 %v343
      %v2737 = vunpack.c.l.b16 %v344
      %v2738 = vunpack.c.h.b16 %v344
      %v2739 = vunpack.c.l.b16 %v345
      %v2740 = vunpack.c.h.b16 %v345
      %v2741 = vunpack.c.l.b16 %v346
      %v2742 = vunpack.c.h.b16 %v346
      %v2743 = vunpack.c.l.b16 %v347
      %v2744 = vunpack.c.h.b16 %v347
      %v2745 = vunpack.c.l.b16 %v348
      %v2746 = vunpack.c.h.b16 %v348
      %v2747 = vunpack.c.l.b16 %v349
      %v2748 = vunpack.c.h.b16 %v349
      %v2749 = vunpack.c.l.b16 %v350
      %v2750 = vunpack.c.h.b16 %v350
      %v2751 = vunpack.c.l.b16 %v351
      %v2752 = vunpack.c.h.b16 %v351
      %v2753 = vunpack.c.l.b16 %v352
      %v2754 = vunpack.c.h.b16 %v352
      %v2755 = vunpack.c.l.b16 %v353
      %v2756 = vunpack.c.h.b16 %v353
      %v2757 = vunpack.c.l.b16 %v354
      %v2758 = vunpack.c.h.b16 %v354
      %v2759 = vunpack.c.l.b16 %v355
      %v2760 = vunpack.c.h.b16 %v355
      %v2761 = vunpack.c.l.b16 %v356
      %v2762 = vunpack.c.h.b16 %v356
      %v2763 = vunpack.c.l.b16 %v357
      %v2764 = vunpack.c.h.b16 %v357
      %v2765 = vunpack.c.l.b16 %v358
      %v2766 = vunpack.c.h.b16 %v358
      %v2767 = vunpack.c.l.b16 %v359
      %v2768 = vunpack.c.h.b16 %v359
      %v2769 = vunpack.c.l.b16 %v360
      %v2770 = vunpack.c.h.b16 %v360
      %v2771 = vunpack.c.l.b16 %v361
      %v2772 = vunpack.c.h.b16 %v361
      %v2773 = vunpack.c.l.b16 %v362
      %v2774 = vunpack.c.h.b16 %v362
      %v2775 = vunpack.c.l.b16 %v363
      %v2776 = vunpack.c.h.b16 %v363
      %v2777 = vunpack.c.l.b16 %v364
      %v2778 = vunpack.c.h.b16 %v364
      %v2779 = vunpack.c.l.b16 %v365
      %v2780 = vunpack.c.h.b16 %v365
      %v2781 = vunpack.c.l.b16 %v366
      %v2782 = vunpack.c.h.b16 %v366
      %v2783 = vunpack.c.l.b16 %v367
      %v2784 = vunpack.c.h.b16 %v367
      %v2785 = vunpack.c.l.b16 %v368
      %v2786 = vunpack.c.h.b16 %v368
      %v2787 = vunpack.c.l.b16 %v369
      %v2788 = vunpack.c.h.b16 %v369
      %v2789 = vunpack.c.l.b16 %v370
      %v2790 = vunpack.c.h.b16 %v370
      %v2791 = vunpack.c.l.b16 %v371
      %v2792 = vunpack.c.h.b16 %v371
      %v2793 = vunpack.c.l.b16 %v372
      %v2794 = vunpack.c.h.b16 %v372
      %v2795 = vunpack.c.l.b16 %v373
      %v2796 = vunpack.c.h.b16 %v373
      %v2797 = vunpack.c.l.b16 %v374
      %v2798 = vunpack.c.h.b16 %v374
      %v2799 = vunpack.c.l.b16 %v375
      %v2800 = vunpack.c.h.b16 %v375
      %v2801 = vunpack.c.l.b16 %v376
      %v2802 = vunpack.c.h.b16 %v376
      %v2803 = vunpack.c.l.b16 %v377
      %v2804 = vunpack.c.h.b16 %v377
      %v2805 = vunpack.c.l.b16 %v378
      %v2806 = vunpack.c.h.b16 %v378
      %v2807 = vunpack.c.l.b16 %v379
      %v2808 = vunpack.c.h.b16 %v379
      %v2809 = vunpack.c.l.b16 %v380
      %v2810 = vunpack.c.h.b16 %v380
      %v2811 = vunpack.c.l.b16 %v381
      %v2812 = vunpack.c.h.b16 %v381
      %v2813 = vunpack.c.l.b16 %v382
      %v2814 = vunpack.c.h.b16 %v382
      %v2815 = vunpack.c.l.b16 %v383
      %v2816 = vunpack.c.h.b16 %v383
      %v2817 = vunpack.c.l.b16 %v384
      %v2818 = vunpack.c.h.b16 %v384
      %v2819 = vunpack.c.l.b16 %v385
      %v2820 = vunpack.c.h.b16 %v385
      %v2821 = vunpack.c.l.b16 %v386
      %v2822 = vunpack.c.h.b16 %v386
      %v2823 = vunpack.c.l.b16 %v387
      %v2824 = vunpack.c.h.b16 %v387
      %v2825 = vunpack.c.l.b16 %v388
      %v2826 = vunpack.c.h.b16 %v388
      %v2827 = vunpack.c.l.b16 %v389
      %v2828 = vunpack.c.h.b16 %v389
      %v2829 = vunpack.c.l.b16 %v390
      %v2830 = vunpack.c.h.b16 %v390
      %v2831 = vunpack.c.l.b16 %v391
      %v2832 = vunpack.c.h.b16 %v391
      %v2833 = vunpack.c.l.b16 %v392
      %v2834 = vunpack.c.h.b16 %v392
      %v2835 = vunpack.c.l.b16 %v393
      %v2836 = vunpack.c.h.b16 %v393
      %v2837 = vunpack.c.l.b16 %v394
      %v2838 = vunpack.c.h.b16 %v394
      %v2839 = vunpack.c.l.b16 %v395
      %v2840 = vunpack.c.h.b16 %v395
      %v2841 = vunpack.c.l.b16 %v396
      %v2842 = vunpack.c.h.b16 %v396
      %v2843 = vunpack.c.l.b16 %v397
      %v2844 = vunpack.c.h.b16 %v397
      %v2845 = vunpack.c.l.b16 %v398
      %v2846 = vunpack.c.h.b16 %v398
      %v2847 = vunpack.c.l.b16 %v399
      %v2848 = vunpack.c.h.b16 %v399
      %v2849 = vunpack.c.l.b16 %v400
      %v2850 = vunpack.c.h.b16 %v400
      %v2851 = vunpack.c.l.b16 %v401
      %v2852 = vunpack.c.h.b16 %v401
      %v2853 = vunpack.c.l.b16 %v402
      %v2854 = vunpack.c.h.b16 %v402
      %v2855 = vunpack.c.l.b16 %v403
      %v2856 = vunpack.c.h.b16 %v403
      %v2857 = vunpack.c.l.b16 %v404
      %v2858 = vunpack.c.h.b16 %v404
      %v2859 = vunpack.c.l.b16 %v405
      %v2860 = vunpack.c.h.b16 %v405
      %v2861 = vunpack.c.l.b16 %v406
      %v2862 = vunpack.c.h.b16 %v406
      %v2863 = vunpack.c.l.b16 %v407
      %v2864 = vunpack.c.h.b16 %v407
      %v2865 = vunpack.c.l.b16 %v408
      %v2866 = vunpack.c.h.b16 %v408
      %v2867 = vunpack.c.l.b16 %v409
      %v2868 = vunpack.c.h.b16 %v409
      %v2869 = vunpack.c.l.b16 %v410
      %v2870 = vunpack.c.h.b16 %v410
      %v2871 = vunpack.c.l.b16 %v411
      %v2872 = vunpack.c.h.b16 %v411
      %v2873 = vunpack.c.l.b16 %v412
      %v2874 = vunpack.c.h.b16 %v412
      %v2875 = vunpack.c.l.b16 %v413
      %v2876 = vunpack.c.h.b16 %v413
      %v2877 = vunpack.c.l.b16 %v414
      %v2878 = vunpack.c.h.b16 %v414
      %v2879 = vunpack.c.l.b16 %v415
      %v2880 = vunpack.c.h.b16 %v415
      %v2881 = vunpack.c.l.b16 %v416
      %v2882 = vunpack.c.h.b16 %v416
      %v2883 = vunpack.c.l.b16 %v417
      %v2884 = vunpack.c.h.b16 %v417
      %v2885 = vunpack.c.l.b16 %v418
      %v2886 = vunpack.c.h.b16 %v418
      %v2887 = vunpack.c.l.b16 %v419
      %v2888 = vunpack.c.h.b16 %v419
      %v2889 = vunpack.c.l.b16 %v420
      %v2890 = vunpack.c.h.b16 %v420
      %v2891 = vunpack.c.l.b16 %v421
      %v2892 = vunpack.c.h.b16 %v421
      %v2893 = vunpack.c.l.b16 %v422
      %v2894 = vunpack.c.h.b16 %v422
      %v2895 = vunpack.c.l.b16 %v423
      %v2896 = vunpack.c.h.b16 %v423
      %v2897 = vunpack.c.l.b16 %v424
      %v2898 = vunpack.c.h.b16 %v424
      %v2899 = vunpack.c.l.b16 %v425
      %v2900 = vunpack.c.h.b16 %v425
      %v2901 = vunpack.c.l.b16 %v426
      %v2902 = vunpack.c.h.b16 %v426
      %v2903 = vunpack.c.l.b16 %v427
      %v2904 = vunpack.c.h.b16 %v427
      %v2905 = vunpack.c.l.b16 %v428
      %v2906 = vunpack.c.h.b16 %v428
      %v2907 = vunpack.c.l.b16 %v429
      %v2908 = vunpack.c.h.b16 %v429
      %v2909 = vunpack.c.l.b16 %v430
      %v2910 = vunpack.c.h.b16 %v430
      %v2911 = vunpack.c.l.b16 %v431
      %v2912 = vunpack.c.h.b16 %v431
      %v2913 = vunpack.c.l.b16 %v432
      %v2914 = vunpack.c.h.b16 %v432
      %v2915 = vunpack.c.l.b16 %v433
      %v2916 = vunpack.c.h.b16 %v433
      %v2917 = vunpack.c.l.b16 %v434
      %v2918 = vunpack.c.h.b16 %v434
      %v2919 = vunpack.c.l.b16 %v435
      %v2920 = vunpack.c.h.b16 %v435
      %v2921 = vunpack.c.l.b16 %v436
      %v2922 = vunpack.c.h.b16 %v436
      %v2923 = vunpack.c.l.b16 %v437
      %v2924 = vunpack.c.h.b16 %v437
      %v2925 = vunpack.c.l.b16 %v438
      %v2926 = vunpack.c.h.b16 %v438
      %v2927 = vunpack.c.l.b16 %v439
      %v2928 = vunpack.c.h.b16 %v439
      %v2929 = vunpack.c.l.b16 %v440
      %v2930 = vunpack.c.h.b16 %v440
      %v2931 = vunpack.c.l.b16 %v441
      %v2932 = vunpack.c.h.b16 %v441
      %v2933 = vunpack.c.l.b16 %v442
      %v2934 = vunpack.c.h.b16 %v442
      %v2935 = vunpack.c.l.b16 %v443
      %v2936 = vunpack.c.h.b16 %v443
      %v2937 = vunpack.c.l.b16 %v444
      %v2938 = vunpack.c.h.b16 %v444
      %v2939 = vunpack.c.l.b16 %v445
      %v2940 = vunpack.c.h.b16 %v445
      %v2941 = vunpack.c.l.b16 %v446
      %v2942 = vunpack.c.h.b16 %v446
      %v2943 = vunpack.c.l.b16 %v447
      %v2944 = vunpack.c.h.b16 %v447
      %v2945 = vunpack.c.l.b16 %v448
      %v2946 = vunpack.c.h.b16 %v448
      %v2947 = vunpack.c.l.b16 %v449
      %v2948 = vunpack.c.h.b16 %v449
      %v2949 = vunpack.c.l.b16 %v450
      %v2950 = vunpack.c.h.b16 %v450
      %v2951 = vunpack.c.l.b16 %v451
      %v2952 = vunpack.c.h.b16 %v451
      %v2953 = vunpack.c.l.b16 %v452
      %v2954 = vunpack.c.h.b16 %v452
      %v2955 = vunpack.c.l.b16 %v453
      %v2956 = vunpack.c.h.b16 %v453
      %v2957 = vunpack.c.l.b16 %v454
      %v2958 = vunpack.c.h.b16 %v454
      %v2959 = vunpack.c.l.b16 %v455
      %v2960 = vunpack.c.h.b16 %v455
      %v2961 = vunpack.c.l.b16 %v456
      %v2962 = vunpack.c.h.b16 %v456
      %v2963 = vunpack.c.l.b16 %v457
      %v2964 = vunpack.c.h.b16 %v457
      %v2965 = vunpack.c.l.b16 %v458
      %v2966 = vunpack.c.h.b16 %v458
      %v2967 = vunpack.c.l.b16 %v459
      %v2968 = vunpack.c.h.b16 %v459
      %v2969 = vunpack.c.l.b16 %v460
      %v2970 = vunpack.c.h.b16 %v460
      %v2971 = vunpack.c.l.b16 %v461
      %v2972 = vunpack.c.h.b16 %v461
      %v2973 = vunpack.c.l.b16 %v462
      %v2974 = vunpack.c.h.b16 %v462
      %v2975 = vunpack.c.l.b16 %v463
      %v2976 = vunpack.c.h.b16 %v463
      %v2977 = vunpack.c.l.b16 %v464
      %v2978 = vunpack.c.h.b16 %v464
      %v2979 = vunpack.c.l.b16 %v465
      %v2980 = vunpack.c.h.b16 %v465
      %v2981 = vunpack.c.l.b16 %v466
      %v2982 = vunpack.c.h.b16 %v466
      %v2983 = vunpack.c.l.b16 %v467
      %v2984 = vunpack.c.h.b16 %v467
      %v2985 = vunpack.c.l.b16 %v468
      %v2986 = vunpack.c.h.b16 %v468
      %v2987 = vunpack.c.l.b16 %v469
      %v2988 = vunpack.c.h.b16 %v469
      %v2989 = vunpack.c.l.b16 %v470
      %v2990 = vunpack.c.h.b16 %v470
      %v2991 = vunpack.c.l.b16 %v471
      %v2992 = vunpack.c.h.b16 %v471
      %v2993 = vunpack.c.l.b16 %v472
      %v2994 = vunpack.c.h.b16 %v472
      %v2995 = vunpack.c.l.b16 %v473
      %v2996 = vunpack.c.h.b16 %v473
      %v2997 = vunpack.c.l.b16 %v474
      %v2998 = vunpack.c.h.b16 %v474
      %v2999 = vunpack.c.l.b16 %v475
      %v3000 = vunpack.c.h.b16 %v475
      %v3001 = vunpack.c.l.b16 %v476
      %v3002 = vunpack.c.h.b16 %v476
      %v3003 = vunpack.c.l.b16 %v477
      %v3004 = vunpack.c.h.b16 %v477
      %v3005 = vunpack.c.l.b16 %v478
      %v3006 = vunpack.c.h.b16 %v478
      %v3007 = vunpack.c.l.b16 %v479
      %v3008 = vunpack.c.h.b16 %v479
      %v3009 = vunpack.c.l.b16 %v480
      %v3010 = vunpack.c.h.b16 %v480
      %v3011 = vunpack.c.l.b16 %v481
      %v3012 = vunpack.c.h.b16 %v481
      %v3013 = vunpack.c.l.b16 %v482
      %v3014 = vunpack.c.h.b16 %v482
      %v3015 = vunpack.c.l.b16 %v483
      %v3016 = vunpack.c.h.b16 %v483
      %v3017 = vunpack.c.l.b16 %v484
      %v3018 = vunpack.c.h.b16 %v484
      %v3019 = vunpack.c.l.b16 %v485
      %v3020 = vunpack.c.h.b16 %v485
      %v3021 = vunpack.c.l.b16 %v486
      %v3022 = vunpack.c.h.b16 %v486
      %v3023 = vunpack.c.l.b16 %v487
      %v3024 = vunpack.c.h.b16 %v487
      %v3025 = vunpack.c.l.b16 %v488
      %v3026 = vunpack.c.h.b16 %v488
      %v3027 = vunpack.c.l.b16 %v489
      %v3028 = vunpack.c.h.b16 %v489
      %v3029 = vunpack.c.l.b16 %v490
      %v3030 = vunpack.c.h.b16 %v490
      %v3031 = vunpack.c.l.b16 %v491
      %v3032 = vunpack.c.h.b16 %v491
      %v3033 = vunpack.c.l.b16 %v492
      %v3034 = vunpack.c.h.b16 %v492
      %v3035 = vunpack.c.l.b16 %v493
      %v3036 = vunpack.c.h.b16 %v493
      %v3037 = vunpack.c.l.b16 %v494
      %v3038 = vunpack.c.h.b16 %v494
      %v3039 = vunpack.c.l.b16 %v495
      %v3040 = vunpack.c.h.b16 %v495
      %v3041 = vunpack.c.l.b16 %v496
      %v3042 = vunpack.c.h.b16 %v496
      %v3043 = vunpack.c.l.b16 %v497
      %v3044 = vunpack.c.h.b16 %v497
      %v3045 = vunpack.c.l.b16 %v498
      %v3046 = vunpack.c.h.b16 %v498
      %v3047 = vunpack.c.l.b16 %v499
      %v3048 = vunpack.c.h.b16 %v499
      %v3049 = vunpack.c.l.b16 %v500
      %v3050 = vunpack.c.h.b16 %v500
      %v3051 = vunpack.c.l.b16 %v501
      %v3052 = vunpack.c.h.b16 %v501
      %v3053 = vunpack.c.l.b16 %v502
      %v3054 = vunpack.c.h.b16 %v502
      %v3055 = vunpack.c.l.b16 %v503
      %v3056 = vunpack.c.h.b16 %v503
      %v3057 = vunpack.c.l.b16 %v504
      %v3058 = vunpack.c.h.b16 %v504
      %v3059 = vunpack.c.l.b16 %v505
      %v3060 = vunpack.c.h.b16 %v505
      %v3061 = vunpack.c.l.b16 %v506
      %v3062 = vunpack.c.h.b16 %v506
      %v3063 = vunpack.c.l.b16 %v507
      %v3064 = vunpack.c.h.b16 %v507
      %v3065 = vunpack.c.l.b16 %v508
      %v3066 = vunpack.c.h.b16 %v508
      %v3067 = vunpack.c.l.b16 %v509
      %v3068 = vunpack.c.h.b16 %v509
      %v3069 = vunpack.c.l.b16 %v510
      %v3070 = vunpack.c.h.b16 %v510
      %v3071 = vunpack.c.l.b16 %v511
      %v3072 = vunpack.c.h.b16 %v511
      %v3073 = vunpack.c.l.b16 %v512
      %v3074 = vunpack.c.h.b16 %v512
      %v3075 = vunpack.c.l.b16 %v513
      %v3076 = vunpack.c.h.b16 %v513
      %v3077 = vunpack.c.l.b16 %v514
      %v3078 = vunpack.c.h.b16 %v514
      %v3079 = vunpack.c.l.b16 %v515
      %v3080 = vunpack.c.h.b16 %v515
      %v3081 = vunpack.c.l.b16 %v516
      %v3082 = vunpack.c.h.b16 %v516
      %v3083 = vunpack.c.l.b16 %v517
      %v3084 = vunpack.c.h.b16 %v517
      %v3085 = vunpack.c.l.b16 %v518
      %v3086 = vunpack.c.h.b16 %v518
      %v3087 = vunpack.c.l.b16 %v519
      %v3088 = vunpack.c.h.b16 %v519
      %v3089 = vunpack.c.l.b16 %v520
      %v3090 = vunpack.c.h.b16 %v520
      %v3091 = vunpack.c.l.b16 %v521
      %v3092 = vunpack.c.h.b16 %v521
      %v3093 = vunpack.c.l.b16 %v522
      %v3094 = vunpack.c.h.b16 %v522
      %v3095 = vunpack.c.l.b16 %v523
      %v3096 = vunpack.c.h.b16 %v523
      %v3097 = vunpack.c.l.b16 %v524
      %v3098 = vunpack.c.h.b16 %v524
      %v3099 = vunpack.c.l.b16 %v525
      %v3100 = vunpack.c.h.b16 %v525
      %v3101 = vunpack.c.l.b16 %v526
      %v3102 = vunpack.c.h.b16 %v526
      %v3103 = vunpack.c.l.b16 %v527
      %v3104 = vunpack.c.h.b16 %v527
      %v3105 = vunpack.c.l.b16 %v528
      %v3106 = vunpack.c.h.b16 %v528
      %v3107 = vunpack.c.l.b16 %v529
      %v3108 = vunpack.c.h.b16 %v529
      %v3109 = vunpack.c.l.b16 %v530
      %v3110 = vunpack.c.h.b16 %v530
      %v3111 = vunpack.c.l.b16 %v531
      %v3112 = vunpack.c.h.b16 %v531
      %v3113 = vunpack.c.l.b16 %v532
      %v3114 = vunpack.c.h.b16 %v532
      %v3115 = vunpack.c.l.b16 %v533
      %v3116 = vunpack.c.h.b16 %v533
      %v3117 = vunpack.c.l.b16 %v534
      %v3118 = vunpack.c.h.b16 %v534
      %v3119 = vunpack.c.l.b16 %v535
      %v3120 = vunpack.c.h.b16 %v535
      %v3121 = vunpack.c.l.b16 %v536
      %v3122 = vunpack.c.h.b16 %v536
      %v3123 = vunpack.c.l.b16 %v537
      %v3124 = vunpack.c.h.b16 %v537
      %v3125 = vunpack.c.l.b16 %v538
      %v3126 = vunpack.c.h.b16 %v538
      %v3127 = vunpack.c.l.b16 %v539
      %v3128 = vunpack.c.h.b16 %v539
      %v3129 = vunpack.c.l.b16 %v540
      %v3130 = vunpack.c.h.b16 %v540
      %v3131 = vunpack.c.l.b16 %v541
      %v3132 = vunpack.c.h.b16 %v541
      %v3133 = vunpack.c.l.b16 %v542
      %v3134 = vunpack.c.h.b16 %v542
      %v3135 = vunpack.c.l.b16 %v543
      %v3136 = vunpack.c.h.b16 %v543
      %v3137 = vunpack.c.l.b16 %v544
      %v3138 = vunpack.c.h.b16 %v544
      %v3139 = vunpack.c.l.b16 %v545
      %v3140 = vunpack.c.h.b16 %v545
      %v3141 = vunpack.c.l.b16 %v546
      %v3142 = vunpack.c.h.b16 %v546
      %v3143 = vunpack.c.l.b16 %v547
      %v3144 = vunpack.c.h.b16 %v547
      %v3145 = vunpack.c.l.b16 %v548
      %v3146 = vunpack.c.h.b16 %v548
      %v3147 = vunpack.c.l.b16 %v549
      %v3148 = vunpack.c.h.b16 %v549
      %v3149 = vunpack.c.l.b16 %v550
      %v3150 = vunpack.c.h.b16 %v550
      %v3151 = vunpack.c.l.b16 %v551
      %v3152 = vunpack.c.h.b16 %v551
      %v3153 = vunpack.c.l.b16 %v552
      %v3154 = vunpack.c.h.b16 %v552
      %v3155 = vunpack.c.l.b16 %v553
      %v3156 = vunpack.c.h.b16 %v553
      %v3157 = vunpack.c.l.b16 %v554
      %v3158 = vunpack.c.h.b16 %v554
      %v3159 = vunpack.c.l.b16 %v555
      %v3160 = vunpack.c.h.b16 %v555
      %v3161 = vunpack.c.l.b16 %v556
      %v3162 = vunpack.c.h.b16 %v556
      %v3163 = vunpack.c.l.b16 %v557
      %v3164 = vunpack.c.h.b16 %v557
      %v3165 = vunpack.c.l.b16 %v558
      %v3166 = vunpack.c.h.b16 %v558
      %v3167 = vunpack.c.l.b16 %v559
      %v3168 = vunpack.c.h.b16 %v559
      %v3169 = vunpack.c.l.b16 %v560
      %v3170 = vunpack.c.h.b16 %v560
      %v3171 = vunpack.c.l.b16 %v561
      %v3172 = vunpack.c.h.b16 %v561
      %v3173 = vunpack.c.l.b16 %v562
      %v3174 = vunpack.c.h.b16 %v562
      %v3175 = vunpack.c.l.b16 %v563
      %v3176 = vunpack.c.h.b16 %v563
      %v3177 = vunpack.c.l.b16 %v564
      %v3178 = vunpack.c.h.b16 %v564
      %v3179 = vunpack.c.l.b16 %v565
      %v3180 = vunpack.c.h.b16 %v565
      %v3181 = vunpack.c.l.b16 %v566
      %v3182 = vunpack.c.h.b16 %v566
      %v3183 = vunpack.c.l.b16 %v567
      %v3184 = vunpack.c.h.b16 %v567
      %v3185 = vunpack.c.l.b16 %v568
      %v3186 = vunpack.c.h.b16 %v568
      %v3187 = vunpack.c.l.b16 %v569
      %v3188 = vunpack.c.h.b16 %v569
      %v3189 = vunpack.c.l.b16 %v570
      %v3190 = vunpack.c.h.b16 %v570
      %v3191 = vunpack.c.l.b16 %v571
      %v3192 = vunpack.c.h.b16 %v571
      %v3193 = vunpack.c.l.b16 %v572
      %v3194 = vunpack.c.h.b16 %v572
      %v3195 = vunpack.c.l.b16 %v573
      %v3196 = vunpack.c.h.b16 %v573
      %v3197 = vunpack.c.l.b16 %v574
      %v3198 = vunpack.c.h.b16 %v574
      %v3199 = vunpack.c.l.b16 %v575
      %v3200 = vunpack.c.h.b16 %v575
      %v3201 = vunpack.c.l.b16 %v576
      %v3202 = vunpack.c.h.b16 %v576
      %v3203 = vunpack.c.l.b16 %v577
      %v3204 = vunpack.c.h.b16 %v577
      %v3205 = vunpack.c.l.b16 %v578
      %v3206 = vunpack.c.h.b16 %v578
      %v3207 = vunpack.c.l.b16 %v579
      %v3208 = vunpack.c.h.b16 %v579
      %v3209 = vunpack.c.l.b16 %v580
      %v3210 = vunpack.c.h.b16 %v580
      %v3211 = vunpack.c.l.b16 %v581
      %v3212 = vunpack.c.h.b16 %v581
      %v3213 = vunpack.c.l.b16 %v582
      %v3214 = vunpack.c.h.b16 %v582
      %v3215 = vunpack.c.l.b16 %v583
      %v3216 = vunpack.c.h.b16 %v583
      %v3217 = vunpack.c.l.b16 %v584
      %v3218 = vunpack.c.h.b16 %v584
      %v3219 = vunpack.c.l.b16 %v585
      %v3220 = vunpack.c.h.b16 %v585
      %v3221 = vunpack.c.l.b16 %v586
      %v3222 = vunpack.c.h.b16 %v586
      %v3223 = vunpack.c.l.b16 %v587
      %v3224 = vunpack.c.h.b16 %v587
      %v3225 = vunpack.c.l.b16 %v588
      %v3226 = vunpack.c.h.b16 %v588
      %v3227 = vunpack.c.l.b16 %v589
      %v3228 = vunpack.c.h.b16 %v589
      %v3229 = vunpack.c.l.b16 %v590
      %v3230 = vunpack.c.h.b16 %v590
      %v3231 = vunpack.c.l.b16 %v591
      %v3232 = vunpack.c.h.b16 %v591
      %v3233 = vunpack.c.l.b16 %v592
      %v3234 = vunpack.c.h.b16 %v592
      %v3235 = vunpack.c.l.b16 %v593
      %v3236 = vunpack.c.h.b16 %v593
      %v3237 = vunpack.c.l.b16 %v594
      %v3238 = vunpack.c.h.b16 %v594
      %v3239 = vunpack.c.l.b16 %v595
      %v3240 = vunpack.c.h.b16 %v595
      %v3241 = vunpack.c.l.b16 %v596
      %v3242 = vunpack.c.h.b16 %v596
      %v3243 = vunpack.c.l.b16 %v597
      %v3244 = vunpack.c.h.b16 %v597
      %v3245 = vunpack.c.l.b16 %v598
      %v3246 = vunpack.c.h.b16 %v598
      %v3247 = vunpack.c.l.b16 %v599
      %v3248 = vunpack.c.h.b16 %v599
      %v3249 = vunpack.c.l.b16 %v600
      %v3250 = vunpack.c.h.b16 %v600
      %v3251 = vunpack.c.l.b16 %v601
      %v3252 = vunpack.c.h.b16 %v601
      %v3253 = vunpack.c.l.b16 %v602
      %v3254 = vunpack.c.h.b16 %v602
      %v3255 = vunpack.c.l.b16 %v603
      %v3256 = vunpack.c.h.b16 %v603
      %v3257 = vunpack.c.l.b16 %v604
      %v3258 = vunpack.c.h.b16 %v604
      %v3259 = vunpack.c.l.b16 %v605
      %v3260 = vunpack.c.h.b16 %v605
      %v3261 = vunpack.c.l.b16 %v606
      %v3262 = vunpack.c.h.b16 %v606
      %v3263 = vunpack.c.l.b16 %v607
      %v3264 = vunpack.c.h.b16 %v607
      %v3265 = vunpack.c.l.b16 %v608
      %v3266 = vunpack.c.h.b16 %v608
      %v3267 = vunpack.c.l.b16 %v609
      %v3268 = vunpack.c.h.b16 %v609
      %v3269 = vunpack.c.l.b16 %v610
      %v3270 = vunpack.c.h.b16 %v610
      %v3271 = vunpack.c.l.b16 %v611
      %v3272 = vunpack.c.h.b16 %v611
      %v3273 = vunpack.c.l.b16 %v612
      %v3274 = vunpack.c.h.b16 %v612
      %v3275 = vunpack.c.l.b16 %v613
      %v3276 = vunpack.c.h.b16 %v613
      %v3277 = vunpack.c.l.b16 %v614
      %v3278 = vunpack.c.h.b16 %v614
      %v3279 = vunpack.c.l.b16 %v615
      %v3280 = vunpack.c.h.b16 %v615
      %v3281 = vunpack.c.l.b16 %v616
      %v3282 = vunpack.c.h.b16 %v616
      %v3283 = vunpack.c.l.b16 %v617
      %v3284 = vunpack.c.h.b16 %v617
      %v3285 = vunpack.c.l.b16 %v618
      %v3286 = vunpack.c.h.b16 %v618
      %v3287 = vunpack.c.l.b16 %v619
      %v3288 = vunpack.c.h.b16 %v619
      %v3289 = vunpack.c.l.b16 %v620
      %v3290 = vunpack.c.h.b16 %v620
      %v3291 = vunpack.c.l.b16 %v621
      %v3292 = vunpack.c.h.b16 %v621
      %v3293 = vunpack.c.l.b16 %v622
      %v3294 = vunpack.c.h.b16 %v622
      %v3295 = vunpack.c.l.b16 %v623
      %v3296 = vunpack.c.h.b16 %v623
      %v3297 = vunpack.c.l.b16 %v624
      %v3298 = vunpack.c.h.b16 %v624
      %v3299 = vunpack.c.l.b16 %v625
      %v3300 = vunpack.c.h.b16 %v625
      %v3301 = vunpack.c.l.b16 %v626
      %v3302 = vunpack.c.h.b16 %v626
      %v3303 = vunpack.c.l.b16 %v627
      %v3304 = vunpack.c.h.b16 %v627
      %v3305 = vunpack.c.l.b16 %v628
      %v3306 = vunpack.c.h.b16 %v628
      %v3307 = vunpack.c.l.b16 %v629
      %v3308 = vunpack.c.h.b16 %v629
      %v3309 = vunpack.c.l.b16 %v630
      %v3310 = vunpack.c.h.b16 %v630
      %v3311 = vunpack.c.l.b16 %v631
      %v3312 = vunpack.c.h.b16 %v631
      %v3313 = vunpack.c.l.b16 %v632
      %v3314 = vunpack.c.h.b16 %v632
      %v3315 = vunpack.c.l.b16 %v633
      %v3316 = vunpack.c.h.b16 %v633
      %v3317 = vunpack.c.l.b16 %v634
      %v3318 = vunpack.c.h.b16 %v634
      %v3319 = vunpack.c.l.b16 %v635
      %v3320 = vunpack.c.h.b16 %v635
      %v3321 = vunpack.c.l.b16 %v636
      %v3322 = vunpack.c.h.b16 %v636
      %v3323 = vunpack.c.l.b16 %v637
      %v3324 = vunpack.c.h.b16 %v637
      %v3325 = vunpack.c.l.b16 %v638
      %v3326 = vunpack.c.h.b16 %v638
      %v3327 = vunpack.c.l.b16 %v639
      %v3328 = vunpack.c.h.b16 %v639
      %v3329 = vunpack.c.l.b16 %v640
      %v3330 = vunpack.c.h.b16 %v640
      %v3331 = vunpack.c.l.b16 %v641
      %v3332 = vunpack.c.h.b16 %v641
      %v3333 = vunpack.c.l.b16 %v642
      %v3334 = vunpack.c.h.b16 %v642
      %v3335 = vunpack.c.l.b16 %v643
      %v3336 = vunpack.c.h.b16 %v643
      %v3337 = vunpack.c.l.b16 %v644
      %v3338 = vunpack.c.h.b16 %v644
      %v3339 = vunpack.c.l.b16 %v645
      %v3340 = vunpack.c.h.b16 %v645
      %v3341 = vunpack.c.l.b16 %v646
      %v3342 = vunpack.c.h.b16 %v646
      %v3343 = vunpack.c.l.b16 %v647
      %v3344 = vunpack.c.h.b16 %v647
      %v3345 = vunpack.c.l.b16 %v648
      %v3346 = vunpack.c.h.b16 %v648
      %v3347 = vunpack.c.l.b16 %v649
      %v3348 = vunpack.c.h.b16 %v649
      %v3349 = vunpack.c.l.b16 %v650
      %v3350 = vunpack.c.h.b16 %v650
      %v3351 = vunpack.c.l.b16 %v651
      %v3352 = vunpack.c.h.b16 %v651
      %v3353 = vunpack.c.l.b16 %v652
      %v3354 = vunpack.c.h.b16 %v652
      %v3355 = vunpack.c.l.b16 %v653
      %v3356 = vunpack.c.h.b16 %v653
      %v3357 = vunpack.c.l.b16 %v654
      %v3358 = vunpack.c.h.b16 %v654
      %v3359 = vunpack.c.l.b16 %v655
      %v3360 = vunpack.c.h.b16 %v655
      %v3361 = vunpack.c.l.b16 %v656
      %v3362 = vunpack.c.h.b16 %v656
      %v3363 = vunpack.c.l.b16 %v657
      %v3364 = vunpack.c.h.b16 %v657
      %v3365 = vunpack.c.l.b16 %v658
      %v3366 = vunpack.c.h.b16 %v658
      %v3367 = vunpack.c.l.b16 %v659
      %v3368 = vunpack.c.h.b16 %v659
      %v3369 = vunpack.c.l.b16 %v660
      %v3370 = vunpack.c.h.b16 %v660
      %v3371 = vunpack.c.l.b16 %v661
      %v3372 = vunpack.c.h.b16 %v661
      %v3373 = vunpack.c.l.b16 %v662
      %v3374 = vunpack.c.h.b16 %v662
      %v3375 = vunpack.c.l.b16 %v663
      %v3376 = vunpack.c.h.b16 %v663
      %v3377 = vunpack.c.l.b16 %v664
      %v3378 = vunpack.c.h.b16 %v664
      %v3379 = vunpack.c.l.b16 %v665
      %v3380 = vunpack.c.h.b16 %v665
      %v3381 = vunpack.c.l.b16 %v666
      %v3382 = vunpack.c.h.b16 %v666
      %v3383 = vunpack.c.l.b16 %v667
      %v3384 = vunpack.c.h.b16 %v667
      %v3385 = vunpack.c.l.b16 %v668
      %v3386 = vunpack.c.h.b16 %v668
      %v3387 = vunpack.c.l.b16 %v669
      %v3388 = vunpack.c.h.b16 %v669
      %v3389 = vunpack.c.l.b16 %v670
      %v3390 = vunpack.c.h.b16 %v670
      %v3391 = vunpack.c.l.b16 %v671
      %v3392 = vunpack.c.h.b16 %v671
      %v3393 = vunpack.c.l.b16 %v672
      %v3394 = vunpack.c.h.b16 %v672
      %v3395 = vunpack.c.l.b16 %v673
      %v3396 = vunpack.c.h.b16 %v673
      %v3397 = vunpack.c.l.b16 %v674
      %v3398 = vunpack.c.h.b16 %v674
      %v3399 = vunpack.c.l.b16 %v675
      %v3400 = vunpack.c.h.b16 %v675
      %v3401 = vunpack.c.l.b16 %v676
      %v3402 = vunpack.c.h.b16 %v676
      %v3403 = vunpack.c.l.b16 %v677
      %v3404 = vunpack.c.h.b16 %v677
      %v3405 = vunpack.c.l.b16 %v678
      %v3406 = vunpack.c.h.b16 %v678
      %v3407 = vunpack.c.l.b16 %v679
      %v3408 = vunpack.c.h.b16 %v679
      %v3409 = vunpack.c.l.b16 %v680
      %v3410 = vunpack.c.h.b16 %v680
      %v3411 = vunpack.c.l.b16 %v681
      %v3412 = vunpack.c.h.b16 %v681
      %v3413 = vunpack.c.l.b16 %v682
      %v3414 = vunpack.c.h.b16 %v682
      %v3415 = vunpack.c.l.b16 %v683
      %v3416 = vunpack.c.h.b16 %v683
      %v3417 = vunpack.c.l.b16 %v684
      %v3418 = vunpack.c.h.b16 %v684
      %v3419 = vunpack.c.l.b16 %v685
      %v3420 = vunpack.c.h.b16 %v685
      %v3421 = vunpack.c.l.b16 %v686
      %v3422 = vunpack.c.h.b16 %v686
      %v3423 = vunpack.c.l.b16 %v687
      %v3424 = vunpack.c.h.b16 %v687
      %v3425 = vunpack.c.l.b16 %v688
      %v3426 = vunpack.c.h.b16 %v688
      %v3427 = vunpack.c.l.b16 %v689
      %v3428 = vunpack.c.h.b16 %v689
      %v3429 = vunpack.c.l.b16 %v690
      %v3430 = vunpack.c.h.b16 %v690
      %v3431 = vunpack.c.l.b16 %v691
      %v3432 = vunpack.c.h.b16 %v691
      %v3433 = vunpack.c.l.b16 %v692
      %v3434 = vunpack.c.h.b16 %v692
      %v3435 = vunpack.c.l.b16 %v693
      %v3436 = vunpack.c.h.b16 %v693
      %v3437 = vunpack.c.l.b16 %v694
      %v3438 = vunpack.c.h.b16 %v694
      %v3439 = vunpack.c.l.b16 %v695
      %v3440 = vunpack.c.h.b16 %v695
      %v3441 = vunpack.c.l.b16 %v696
      %v3442 = vunpack.c.h.b16 %v696
      %v3443 = vunpack.c.l.b16 %v697
      %v3444 = vunpack.c.h.b16 %v697
      %v3445 = vunpack.c.l.b16 %v698
      %v3446 = vunpack.c.h.b16 %v698
      %v3447 = vunpack.c.l.b16 %v699
      %v3448 = vunpack.c.h.b16 %v699
      %v3449 = vunpack.c.l.b16 %v700
      %v3450 = vunpack.c.h.b16 %v700
      %v3451 = vunpack.c.l.b16 %v701
      %v3452 = vunpack.c.h.b16 %v701
      %v3453 = vunpack.c.l.b16 %v702
      %v3454 = vunpack.c.h.b16 %v702
      %v3455 = vunpack.c.l.b16 %v703
      %v3456 = vunpack.c.h.b16 %v703
      %v3457 = vunpack.c.l.b16 %v704
      %v3458 = vunpack.c.h.b16 %v704
      %v3459 = vunpack.c.l.b16 %v705
      %v3460 = vunpack.c.h.b16 %v705
      %v3461 = vunpack.c.l.b16 %v706
      %v3462 = vunpack.c.h.b16 %v706
      %v3463 = vunpack.c.l.b16 %v707
      %v3464 = vunpack.c.h.b16 %v707
      %v3465 = vunpack.c.l.b16 %v708
      %v3466 = vunpack.c.h.b16 %v708
      %v3467 = vunpack.c.l.b16 %v709
      %v3468 = vunpack.c.h.b16 %v709
      %v3469 = vunpack.c.l.b16 %v710
      %v3470 = vunpack.c.h.b16 %v710
      %v3471 = vunpack.c.l.b16 %v711
      %v3472 = vunpack.c.h.b16 %v711
      %v3473 = vunpack.c.l.b16 %v712
      %v3474 = vunpack.c.h.b16 %v712
      %v3475 = vunpack.c.l.b16 %v713
      %v3476 = vunpack.c.h.b16 %v713
      %v3477 = vunpack.c.l.b16 %v714
      %v3478 = vunpack.c.h.b16 %v714
      %v3479 = vunpack.c.l.b16 %v715
      %v3480 = vunpack.c.h.b16 %v715
      %v3481 = vunpack.c.l.b16 %v716
      %v3482 = vunpack.c.h.b16 %v716
      %v3483 = vunpack.c.l.b16 %v717
      %v3484 = vunpack.c.h.b16 %v717
      %v3485 = vunpack.c.l.b16 %v718
      %v3486 = vunpack.c.h.b16 %v718
      %v3487 = vunpack.c.l.b16 %v719
      %v3488 = vunpack.c.h.b16 %v719
      %v3489 = vunpack.c.l.b16 %v720
      %v3490 = vunpack.c.h.b16 %v720
      %v3491 = vunpack.c.l.b16 %v721
      %v3492 = vunpack.c.h.b16 %v721
      %v3493 = vunpack.c.l.b16 %v722
      %v3494 = vunpack.c.h.b16 %v722
      %v3495 = vunpack.c.l.b16 %v723
      %v3496 = vunpack.c.h.b16 %v723
      %v3497 = vunpack.c.l.b16 %v724
      %v3498 = vunpack.c.h.b16 %v724
      %v3499 = vunpack.c.l.b16 %v725
      %v3500 = vunpack.c.h.b16 %v725
      %v3501 = vunpack.c.l.b16 %v726
      %v3502 = vunpack.c.h.b16 %v726
      %v3503 = vunpack.c.l.b16 %v727
      %v3504 = vunpack.c.h.b16 %v727
      %v3505 = vunpack.c.l.b16 %v728
      %v3506 = vunpack.c.h.b16 %v728
      %v3507 = vunpack.c.l.b16 %v729
      %v3508 = vunpack.c.h.b16 %v729
      %v3509 = vunpack.c.l.b16 %v730
      %v3510 = vunpack.c.h.b16 %v730
      %v3511 = vunpack.c.l.b16 %v731
      %v3512 = vunpack.c.h.b16 %v731
      %v3513 = vunpack.c.l.b16 %v732
      %v3514 = vunpack.c.h.b16 %v732
      %v3515 = vunpack.c.l.b16 %v733
      %v3516 = vunpack.c.h.b16 %v733
      %v3517 = vunpack.c.l.b16 %v734
      %v3518 = vunpack.c.h.b16 %v734
      %v3519 = vunpack.c.l.b16 %v735
      %v3520 = vunpack.c.h.b16 %v735
      %v3521 = vunpack.c.l.b16 %v736
      %v3522 = vunpack.c.h.b16 %v736
      %v3523 = vunpack.c.l.b16 %v737
      %v3524 = vunpack.c.h.b16 %v737
      %v3525 = vunpack.c.l.b16 %v738
      %v3526 = vunpack.c.h.b16 %v738
      %v3527 = vunpack.c.l.b16 %v739
      %v3528 = vunpack.c.h.b16 %v739
      %v3529 = vunpack.c.l.b16 %v740
      %v3530 = vunpack.c.h.b16 %v740
      %v3531 = vunpack.c.l.b16 %v741
      %v3532 = vunpack.c.h.b16 %v741
      %v3533 = vunpack.c.l.b16 %v742
      %v3534 = vunpack.c.h.b16 %v742
      %v3535 = vunpack.c.l.b16 %v743
      %v3536 = vunpack.c.h.b16 %v743
      %v3537 = vunpack.c.l.b16 %v744
      %v3538 = vunpack.c.h.b16 %v744
      %v3539 = vunpack.c.l.b16 %v745
      %v3540 = vunpack.c.h.b16 %v745
      %v3541 = vunpack.c.l.b16 %v746
      %v3542 = vunpack.c.h.b16 %v746
      %v3543 = vunpack.c.l.b16 %v747
      %v3544 = vunpack.c.h.b16 %v747
      %v3545 = vunpack.c.l.b16 %v748
      %v3546 = vunpack.c.h.b16 %v748
      %v3547 = vunpack.c.l.b16 %v749
      %v3548 = vunpack.c.h.b16 %v749
      %v3549 = vunpack.c.l.b16 %v750
      %v3550 = vunpack.c.h.b16 %v750
      %v3551 = vunpack.c.l.b16 %v751
      %v3552 = vunpack.c.h.b16 %v751
      %v3553 = vunpack.c.l.b16 %v752
      %v3554 = vunpack.c.h.b16 %v752
      %v3555 = vunpack.c.l.b16 %v753
      %v3556 = vunpack.c.h.b16 %v753
      %v3557 = vunpack.c.l.b16 %v754
      %v3558 = vunpack.c.h.b16 %v754
      %v3559 = vunpack.c.l.b16 %v755
      %v3560 = vunpack.c.h.b16 %v755
      %v3561 = vunpack.c.l.b16 %v756
      %v3562 = vunpack.c.h.b16 %v756
      %v3563 = vunpack.c.l.b16 %v757
      %v3564 = vunpack.c.h.b16 %v757
      %v3565 = vunpack.c.l.b16 %v758
      %v3566 = vunpack.c.h.b16 %v758
      %v3567 = vunpack.c.l.b16 %v759
      %v3568 = vunpack.c.h.b16 %v759
      %v3569 = vunpack.c.l.b16 %v760
      %v3570 = vunpack.c.h.b16 %v760
      %v3571 = vunpack.c.l.b16 %v761
      %v3572 = vunpack.c.h.b16 %v761
      %v3573 = vunpack.c.l.b16 %v762
      %v3574 = vunpack.c.h.b16 %v762
      %v3575 = vunpack.c.l.b16 %v763
      %v3576 = vunpack.c.h.b16 %v763
      %v3577 = vunpack.c.l.b16 %v764
      %v3578 = vunpack.c.h.b16 %v764
      %v3579 = vunpack.c.l.b16 %v765
      %v3580 = vunpack.c.h.b16 %v765
      %v3581 = vunpack.c.l.b16 %v766
      %v3582 = vunpack.c.h.b16 %v766
      %v3583 = vunpack.c.l.b16 %v767
      %v3584 = vunpack.c.h.b16 %v767
      %v3585 = vunpack.c.l.b16 %v768
      %v3586 = vunpack.c.h.b16 %v768
      %v3587 = vunpack.c.l.b16 %v769
      %v3588 = vunpack.c.h.b16 %v769
      %v3589 = vunpack.c.l.b16 %v770
      %v3590 = vunpack.c.h.b16 %v770
      %v3591 = vunpack.c.l.b16 %v771
      %v3592 = vunpack.c.h.b16 %v771
      %v3593 = vunpack.c.l.b16 %v772
      %v3594 = vunpack.c.h.b16 %v772
      %v3595 = vunpack.c.l.b16 %v773
      %v3596 = vunpack.c.h.b16 %v773
      %v3597 = vunpack.c.l.b16 %v774
      %v3598 = vunpack.c.h.b16 %v774
      %v3599 = vunpack.c.l.b16 %v775
      %v3600 = vunpack.c.h.b16 %v775
      %v3601 = vunpack.c.l.b16 %v776
      %v3602 = vunpack.c.h.b16 %v776
      %v3603 = vunpack.c.l.b16 %v777
      %v3604 = vunpack.c.h.b16 %v777
      %v3605 = vunpack.c.l.b16 %v778
      %v3606 = vunpack.c.h.b16 %v778
      %v3607 = vunpack.c.l.b16 %v779
      %v3608 = vunpack.c.h.b16 %v779
      %v3609 = vunpack.c.l.b16 %v780
      %v3610 = vunpack.c.h.b16 %v780
      %v3611 = vunpack.c.l.b16 %v781
      %v3612 = vunpack.c.h.b16 %v781
      %v3613 = vunpack.c.l.b16 %v782
      %v3614 = vunpack.c.h.b16 %v782
      %v3615 = vunpack.c.l.b16 %v783
      %v3616 = vunpack.c.h.b16 %v783
      %v3617 = vunpack.c.l.b16 %v784
      %v3618 = vunpack.c.h.b16 %v784
      %v3619 = vunpack.c.l.b16 %v785
      %v3620 = vunpack.c.h.b16 %v785
      %v3621 = vunpack.c.l.b16 %v786
      %v3622 = vunpack.c.h.b16 %v786
      %v3623 = vunpack.c.l.b16 %v787
      %v3624 = vunpack.c.h.b16 %v787
      %v3625 = vunpack.c.l.b16 %v788
      %v3626 = vunpack.c.h.b16 %v788
      %v3627 = vunpack.c.l.b16 %v789
      %v3628 = vunpack.c.h.b16 %v789
      %v3629 = vunpack.c.l.b16 %v790
      %v3630 = vunpack.c.h.b16 %v790
      %v3631 = vunpack.c.l.b16 %v791
      %v3632 = vunpack.c.h.b16 %v791
      %v3633 = vunpack.c.l.b16 %v792
      %v3634 = vunpack.c.h.b16 %v792
      %v3635 = vunpack.c.l.b16 %v793
      %v3636 = vunpack.c.h.b16 %v793
      %v3637 = vunpack.c.l.b16 %v794
      %v3638 = vunpack.c.h.b16 %v794
      %v3639 = vunpack.c.l.b16 %v795
      %v3640 = vunpack.c.h.b16 %v795
      %v3641 = vunpack.c.l.b16 %v796
      %v3642 = vunpack.c.h.b16 %v796
      %v3643 = vunpack.c.l.b16 %v797
      %v3644 = vunpack.c.h.b16 %v797
      %v3645 = vunpack.c.l.b16 %v798
      %v3646 = vunpack.c.h.b16 %v798
      %v3647 = vunpack.c.l.b16 %v799
      %v3648 = vunpack.c.h.b16 %v799
      %v3649 = vunpack.c.l.b16 %v800
      %v3650 = vunpack.c.h.b16 %v800
      %v3651 = vunpack.c.l.b16 %v801
      %v3652 = vunpack.c.h.b16 %v801
      %v3653 = vunpack.c.l.b16 %v802
      %v3654 = vunpack.c.h.b16 %v802
      %v3655 = vunpack.c.l.b16 %v803
      %v3656 = vunpack.c.h.b16 %v803
      %v3657 = vunpack.c.l.b16 %v804
      %v3658 = vunpack.c.h.b16 %v804
      %v3659 = vunpack.c.l.b16 %v805
      %v3660 = vunpack.c.h.b16 %v805
      %v3661 = vunpack.c.l.b16 %v806
      %v3662 = vunpack.c.h.b16 %v806
      %v3663 = vunpack.c.l.b16 %v807
      %v3664 = vunpack.c.h.b16 %v807
      %v3665 = vunpack.c.l.b16 %v808
      %v3666 = vunpack.c.h.b16 %v808
      %v3667 = vunpack.c.l.b16 %v809
      %v3668 = vunpack.c.h.b16 %v809
      %v3669 = vunpack.c.l.b16 %v810
      %v3670 = vunpack.c.h.b16 %v810
      %v3671 = vunpack.c.l.b16 %v811
      %v3672 = vunpack.c.h.b16 %v811
      %v3673 = vunpack.c.l.b16 %v812
      %v3674 = vunpack.c.h.b16 %v812
      %v3675 = vunpack.c.l.b16 %v813
      %v3676 = vunpack.c.h.b16 %v813
      %v3677 = vunpack.c.l.b16 %v814
      %v3678 = vunpack.c.h.b16 %v814
      %v3679 = vunpack.c.l.b16 %v815
      %v3680 = vunpack.c.h.b16 %v815
      %v3681 = vunpack.c.l.b16 %v816
      %v3682 = vunpack.c.h.b16 %v816
      %v3683 = vunpack.c.l.b16 %v817
      %v3684 = vunpack.c.h.b16 %v817
      %v3685 = vunpack.c.l.b16 %v818
      %v3686 = vunpack.c.h.b16 %v818
      %v3687 = vunpack.c.l.b16 %v819
      %v3688 = vunpack.c.h.b16 %v819
      %v3689 = vunpack.c.l.b16 %v820
      %v3690 = vunpack.c.h.b16 %v820
      %v3691 = vunpack.c.l.b16 %v821
      %v3692 = vunpack.c.h.b16 %v821
      %v3693 = vunpack.c.l.b16 %v822
      %v3694 = vunpack.c.h.b16 %v822
      %v3695 = vunpack.c.l.b16 %v823
      %v3696 = vunpack.c.h.b16 %v823
      %v3697 = vunpack.c.l.b16 %v824
      %v3698 = vunpack.c.h.b16 %v824
      %v3699 = vunpack.c.l.b16 %v825
      %v3700 = vunpack.c.h.b16 %v825
      %v3701 = vunpack.c.l.b16 %v826
      %v3702 = vunpack.c.h.b16 %v826
      %v3703 = vunpack.c.l.b16 %v827
      %v3704 = vunpack.c.h.b16 %v827
      %v3705 = vunpack.c.l.b16 %v828
      %v3706 = vunpack.c.h.b16 %v828
      %v3707 = vunpack.c.l.b16 %v829
      %v3708 = vunpack.c.h.b16 %v829
      %v3709 = vunpack.c.l.b16 %v830
      %v3710 = vunpack.c.h.b16 %v830
      %v3711 = vunpack.c.l.b16 %v831
      %v3712 = vunpack.c.h.b16 %v831
      %v3713 = vunpack.c.l.b16 %v832
      %v3714 = vunpack.c.h.b16 %v832
      %v3715 = vunpack.c.l.b16 %v833
      %v3716 = vunpack.c.h.b16 %v833
      %v3717 = vunpack.c.l.b16 %v834
      %v3718 = vunpack.c.h.b16 %v834
      %v3719 = vunpack.c.l.b16 %v835
      %v3720 = vunpack.c.h.b16 %v835
      %v3721 = vunpack.c.l.b16 %v836
      %v3722 = vunpack.c.h.b16 %v836
      %v3723 = vunpack.c.l.b16 %v837
      %v3724 = vunpack.c.h.b16 %v837
      %v3725 = vunpack.c.l.b16 %v838
      %v3726 = vunpack.c.h.b16 %v838
      %v3727 = vunpack.c.l.b16 %v839
      %v3728 = vunpack.c.h.b16 %v839
      %v3729 = vunpack.c.l.b16 %v840
      %v3730 = vunpack.c.h.b16 %v840
      %v3731 = vunpack.c.l.b16 %v841
      %v3732 = vunpack.c.h.b16 %v841
      %v3733 = vunpack.c.l.b16 %v842
      %v3734 = vunpack.c.h.b16 %v842
      %v3735 = vunpack.c.l.b16 %v843
      %v3736 = vunpack.c.h.b16 %v843
      %v3737 = vunpack.c.l.b16 %v844
      %v3738 = vunpack.c.h.b16 %v844
      %v3739 = vunpack.c.l.b16 %v845
      %v3740 = vunpack.c.h.b16 %v845
      %v3741 = vunpack.c.l.b16 %v846
      %v3742 = vunpack.c.h.b16 %v846
      %v3743 = vunpack.c.l.b16 %v847
      %v3744 = vunpack.c.h.b16 %v847
      %v3745 = vunpack.c.l.b16 %v848
      %v3746 = vunpack.c.h.b16 %v848
      %v3747 = vunpack.c.l.b16 %v849
      %v3748 = vunpack.c.h.b16 %v849
      %v3749 = vunpack.c.l.b16 %v850
      %v3750 = vunpack.c.h.b16 %v850
      %v3751 = vunpack.c.l.b16 %v851
      %v3752 = vunpack.c.h.b16 %v851
      %v3753 = vunpack.c.l.b16 %v852
      %v3754 = vunpack.c.h.b16 %v852
      %v3755 = vunpack.c.l.b16 %v853
      %v3756 = vunpack.c.h.b16 %v853
      %v3757 = vunpack.c.l.b16 %v854
      %v3758 = vunpack.c.h.b16 %v854
      %v3759 = vunpack.c.l.b16 %v855
      %v3760 = vunpack.c.h.b16 %v855
      %v3761 = vunpack.c.l.b16 %v856
      %v3762 = vunpack.c.h.b16 %v856
      %v3763 = vunpack.c.l.b16 %v857
      %v3764 = vunpack.c.h.b16 %v857
      %v3765 = vunpack.c.l.b16 %v858
      %v3766 = vunpack.c.h.b16 %v858
      %v3767 = vunpack.c.l.b16 %v859
      %v3768 = vunpack.c.h.b16 %v859
      %v3769 = vunpack.c.l.b16 %v860
      %v3770 = vunpack.c.h.b16 %v860
      %v3771 = vunpack.c.l.b16 %v861
      %v3772 = vunpack.c.h.b16 %v861
      %v3773 = vunpack.c.l.b16 %v862
      %v3774 = vunpack.c.h.b16 %v862
      %v3775 = vunpack.c.l.b16 %v863
      %v3776 = vunpack.c.h.b16 %v863
      %v3777 = vunpack.c.l.b16 %v864
      %v3778 = vunpack.c.h.b16 %v864
      %v3779 = vunpack.c.l.b16 %v865
      %v3780 = vunpack.c.h.b16 %v865
      %v3781 = vunpack.c.l.b16 %v866
      %v3782 = vunpack.c.h.b16 %v866
      %v3783 = vunpack.c.l.b16 %v867
      %v3784 = vunpack.c.h.b16 %v867
      %v3785 = vunpack.c.l.b16 %v868
      %v3786 = vunpack.c.h.b16 %v868
      %v3787 = vunpack.c.l.b16 %v869
      %v3788 = vunpack.c.h.b16 %v869
      %v3789 = vunpack.c.l.b16 %v870
      %v3790 = vunpack.c.h.b16 %v870
      %v3791 = vunpack.c.l.b16 %v871
      %v3792 = vunpack.c.h.b16 %v871
      %v3793 = vunpack.c.l.b16 %v872
      %v3794 = vunpack.c.h.b16 %v872
      %v3795 = vunpack.c.l.b16 %v873
      %v3796 = vunpack.c.h.b16 %v873
      %v3797 = vunpack.c.l.b16 %v874
      %v3798 = vunpack.c.h.b16 %v874
      %v3799 = vunpack.c.l.b16 %v875
      %v3800 = vunpack.c.h.b16 %v875
      %v3801 = vunpack.c.l.b16 %v876
      %v3802 = vunpack.c.h.b16 %v876
      %v3803 = vunpack.c.l.b16 %v877
      %v3804 = vunpack.c.h.b16 %v877
      %v3805 = vunpack.c.l.b16 %v878
      %v3806 = vunpack.c.h.b16 %v878
      %v3807 = vunpack.c.l.b16 %v879
      %v3808 = vunpack.c.h.b16 %v879
      %v3809 = vunpack.c.l.b16 %v880
      %v3810 = vunpack.c.h.b16 %v880
      %v3811 = vunpack.c.l.b16 %v881
      %v3812 = vunpack.c.h.b16 %v881
      %v3813 = vunpack.c.l.b16 %v882
      %v3814 = vunpack.c.h.b16 %v882
      %v3815 = vunpack.c.l.b16 %v883
      %v3816 = vunpack.c.h.b16 %v883
      %v3817 = vunpack.c.l.b16 %v884
      %v3818 = vunpack.c.h.b16 %v884
      %v3819 = vunpack.c.l.b16 %v885
      %v3820 = vunpack.c.h.b16 %v885
      %v3821 = vunpack.c.l.b16 %v886
      %v3822 = vunpack.c.h.b16 %v886
      %v3823 = vunpack.c.l.b16 %v887
      %v3824 = vunpack.c.h.b16 %v887
      %v3825 = vunpack.c.l.b16 %v888
      %v3826 = vunpack.c.h.b16 %v888
      %v3827 = vunpack.c.l.b16 %v889
      %v3828 = vunpack.c.h.b16 %v889
      %v3829 = vunpack.c.l.b16 %v890
      %v3830 = vunpack.c.h.b16 %v890
      %v3831 = vunpack.c.l.b16 %v891
      %v3832 = vunpack.c.h.b16 %v891
      %v3833 = vunpack.c.l.b16 %v892
      %v3834 = vunpack.c.h.b16 %v892
      %v3835 = vunpack.c.l.b16 %v893
      %v3836 = vunpack.c.h.b16 %v893
      %v3837 = vunpack.c.l.b16 %v894
      %v3838 = vunpack.c.h.b16 %v894
      %v3839 = vunpack.c.l.b16 %v895
      %v3840 = vunpack.c.h.b16 %v895
      %v3841 = vunpack.c.l.b16 %v896
      %v3842 = vunpack.c.h.b16 %v896
      %v3843 = vunpack.c.l.b16 %v897
      %v3844 = vunpack.c.h.b16 %v897
      %v3845 = vunpack.c.l.b16 %v898
      %v3846 = vunpack.c.h.b16 %v898
      %v3847 = vunpack.c.l.b16 %v899
      %v3848 = vunpack.c.h.b16 %v899
      %v3849 = vunpack.c.l.b16 %v900
      %v3850 = vunpack.c.h.b16 %v900
      %v3851 = vunpack.c.l.b16 %v901
      %v3852 = vunpack.c.h.b16 %v901
      %v3853 = vunpack.c.l.b16 %v902
      %v3854 = vunpack.c.h.b16 %v902
      %v3855 = vunpack.c.l.b16 %v903
      %v3856 = vunpack.c.h.b16 %v903
      %v3857 = vunpack.c.l.b16 %v904
      %v3858 = vunpack.c.h.b16 %v904
      %v3859 = vunpack.c.l.b16 %v905
      %v3860 = vunpack.c.h.b16 %v905
      %v3861 = vunpack.c.l.b16 %v906
      %v3862 = vunpack.c.h.b16 %v906
      %v3863 = vunpack.c.l.b16 %v907
      %v3864 = vunpack.c.h.b16 %v907
      %v3865 = vunpack.c.l.b16 %v908
      %v3866 = vunpack.c.h.b16 %v908
      %v3867 = vunpack.c.l.b16 %v909
      %v3868 = vunpack.c.h.b16 %v909
      %v3869 = vunpack.c.l.b16 %v910
      %v3870 = vunpack.c.h.b16 %v910
      %v3871 = vunpack.c.l.b16 %v911
      %v3872 = vunpack.c.h.b16 %v911
      %v3873 = vunpack.c.l.b16 %v912
      %v3874 = vunpack.c.h.b16 %v912
      %v3875 = vunpack.c.l.b16 %v913
      %v3876 = vunpack.c.h.b16 %v913
      %v3877 = vunpack.c.l.b16 %v914
      %v3878 = vunpack.c.h.b16 %v914
      %v3879 = vunpack.c.l.b16 %v915
      %v3880 = vunpack.c.h.b16 %v915
      %v3881 = vunpack.c.l.b16 %v916
      %v3882 = vunpack.c.h.b16 %v916
      %v3883 = vunpack.c.l.b16 %v917
      %v3884 = vunpack.c.h.b16 %v917
      %v3885 = vunpack.c.l.b16 %v918
      %v3886 = vunpack.c.h.b16 %v918
      %v3887 = vunpack.c.l.b16 %v919
      %v3888 = vunpack.c.h.b16 %v919
      %v3889 = vunpack.c.l.b16 %v920
      %v3890 = vunpack.c.h.b16 %v920
      %v3891 = vunpack.c.l.b16 %v921
      %v3892 = vunpack.c.h.b16 %v921
      %v3893 = vunpack.c.l.b16 %v922
      %v3894 = vunpack.c.h.b16 %v922
      %v3895 = vunpack.c.l.b16 %v923
      %v3896 = vunpack.c.h.b16 %v923
      %v3897 = vunpack.c.l.b16 %v924
      %v3898 = vunpack.c.h.b16 %v924
      %v3899 = vunpack.c.l.b16 %v925
      %v3900 = vunpack.c.h.b16 %v925
      %v3901 = vunpack.c.l.b16 %v926
      %v3902 = vunpack.c.h.b16 %v926
      %v3903 = vunpack.c.l.b16 %v927
      %v3904 = vunpack.c.h.b16 %v927
      %v3905 = vunpack.c.l.b16 %v928
      %v3906 = vunpack.c.h.b16 %v928
      %v3907 = vunpack.c.l.b16 %v929
      %v3908 = vunpack.c.h.b16 %v929
      %v3909 = vunpack.c.l.b16 %v930
      %v3910 = vunpack.c.h.b16 %v930
      %v3911 = vunpack.c.l.b16 %v931
      %v3912 = vunpack.c.h.b16 %v931
      %v3913 = vunpack.c.l.b16 %v932
      %v3914 = vunpack.c.h.b16 %v932
      %v3915 = vunpack.c.l.b16 %v933
      %v3916 = vunpack.c.h.b16 %v933
      %v3917 = vunpack.c.l.b16 %v934
      %v3918 = vunpack.c.h.b16 %v934
      %v3919 = vunpack.c.l.b16 %v935
      %v3920 = vunpack.c.h.b16 %v935
      %v3921 = vunpack.c.l.b16 %v936
      %v3922 = vunpack.c.h.b16 %v936
      %v3923 = vunpack.c.l.b16 %v937
      %v3924 = vunpack.c.h.b16 %v937
      %v3925 = vunpack.c.l.b16 %v938
      %v3926 = vunpack.c.h.b16 %v938
      %v3927 = vunpack.c.l.b16 %v939
      %v3928 = vunpack.c.h.b16 %v939
      %v3929 = vunpack.c.l.b16 %v940
      %v3930 = vunpack.c.h.b16 %v940
      %v3931 = vunpack.c.l.b16 %v941
      %v3932 = vunpack.c.h.b16 %v941
      %v3933 = vunpack.c.l.b16 %v942
      %v3934 = vunpack.c.h.b16 %v942
      %v3935 = vunpack.c.l.b16 %v943
      %v3936 = vunpack.c.h.b16 %v943
      %v3937 = vunpack.c.l.b16 %v944
      %v3938 = vunpack.c.h.b16 %v944
      %v3939 = vunpack.c.l.b16 %v945
      %v3940 = vunpack.c.h.b16 %v945
      %v3941 = vunpack.c.l.b16 %v946
      %v3942 = vunpack.c.h.b16 %v946
      %v3943 = vunpack.c.l.b16 %v947
      %v3944 = vunpack.c.h.b16 %v947
      %v3945 = vunpack.c.l.b16 %v948
      %v3946 = vunpack.c.h.b16 %v948
      %v3947 = vunpack.c.l.b16 %v949
      %v3948 = vunpack.c.h.b16 %v949
      %v3949 = vunpack.c.l.b16 %v950
      %v3950 = vunpack.c.h.b16 %v950
      %v3951 = vunpack.c.l.b16 %v951
      %v3952 = vunpack.c.h.b16 %v951
      %v3953 = vunpack.c.l.b16 %v952
      %v3954 = vunpack.c.h.b16 %v952
      %v3955 = vunpack.c.l.b16 %v953
      %v3956 = vunpack.c.h.b16 %v953
      %v3957 = vunpack.c.l.b16 %v954
      %v3958 = vunpack.c.h.b16 %v954
      %v3959 = vunpack.c.l.b16 %v955
      %v3960 = vunpack.c.h.b16 %v955
      %v3961 = vunpack.c.l.b16 %v956
      %v3962 = vunpack.c.h.b16 %v956
      %v3963 = vunpack.c.l.b16 %v957
      %v3964 = vunpack.c.h.b16 %v957
      %v3965 = vunpack.c.l.b16 %v958
      %v3966 = vunpack.c.h.b16 %v958
      %v3967 = vunpack.c.l.b16 %v959
      %v3968 = vunpack.c.h.b16 %v959
      %v3969 = vunpack.c.l.b16 %v960
      %v3970 = vunpack.c.h.b16 %v960
      %v3971 = vunpack.c.l.b16 %v961
      %v3972 = vunpack.c.h.b16 %v961
      %v3973 = vunpack.c.l.b16 %v962
      %v3974 = vunpack.c.h.b16 %v962
      %v3975 = vunpack.c.l.b16 %v963
      %v3976 = vunpack.c.h.b16 %v963
      %v3977 = vunpack.c.l.b16 %v964
      %v3978 = vunpack.c.h.b16 %v964
      %v3979 = vunpack.c.l.b16 %v965
      %v3980 = vunpack.c.h.b16 %v965
      %v3981 = vunpack.c.l.b16 %v966
      %v3982 = vunpack.c.h.b16 %v966
      %v3983 = vunpack.c.l.b16 %v967
      %v3984 = vunpack.c.h.b16 %v967
      %v3985 = vunpack.c.l.b16 %v968
      %v3986 = vunpack.c.h.b16 %v968
      %v3987 = vunpack.c.l.b16 %v969
      %v3988 = vunpack.c.h.b16 %v969
      %v3989 = vunpack.c.l.b16 %v970
      %v3990 = vunpack.c.h.b16 %v970
      %v3991 = vunpack.c.l.b16 %v971
      %v3992 = vunpack.c.h.b16 %v971
      %v3993 = vunpack.c.l.b16 %v972
      %v3994 = vunpack.c.h.b16 %v972
      %v3995 = vunpack.c.l.b16 %v973
      %v3996 = vunpack.c.h.b16 %v973
      %v3997 = vunpack.c.l.b16 %v974
      %v3998 = vunpack.c.h.b16 %v974
      %v3999 = vunpack.c.l.b16 %v975
      %v4000 = vunpack.c.h.b16 %v975
      %v4001 = vunpack.c.l.b16 %v976
      %v4002 = vunpack.c.h.b16 %v976
      %v4003 = vunpack.c.l.b16 %v977
      %v4004 = vunpack.c.h.b16 %v977
      %v4005 = vunpack.c.l.b16 %v978
      %v4006 = vunpack.c.h.b16 %v978
      %v4007 = vunpack.c.l.b16 %v979
      %v4008 = vunpack.c.h.b16 %v979
      %v4009 = vunpack.c.l.b16 %v980
      %v4010 = vunpack.c.h.b16 %v980
      %v4011 = vunpack.c.l.b16 %v981
      %v4012 = vunpack.c.h.b16 %v981
      %v4013 = vunpack.c.l.b16 %v982
      %v4014 = vunpack.c.h.b16 %v982
      %v4015 = vunpack.c.l.b16 %v983
      %v4016 = vunpack.c.h.b16 %v983
      %v4017 = vunpack.c.l.b16 %v984
      %v4018 = vunpack.c.h.b16 %v984
      %v4019 = vunpack.c.l.b16 %v985
      %v4020 = vunpack.c.h.b16 %v985
      %v4021 = vunpack.c.l.b16 %v986
      %v4022 = vunpack.c.h.b16 %v986
      %v4023 = vunpack.c.l.b16 %v987
      %v4024 = vunpack.c.h.b16 %v987
      %v4025 = vunpack.c.l.b16 %v988
      %v4026 = vunpack.c.h.b16 %v988
      %v4027 = vunpack.c.l.b16 %v989
      %v4028 = vunpack.c.h.b16 %v989
      %v4029 = vunpack.c.l.b16 %v990
      %v4030 = vunpack.c.h.b16 %v990
      %v4031 = vunpack.c.l.b16 %v991
      %v4032 = vunpack.c.h.b16 %v991
      %v4033 = vunpack.c.l.b16 %v992
      %v4034 = vunpack.c.h.b16 %v992
      %v4035 = vunpack.c.l.b16 %v993
      %v4036 = vunpack.c.h.b16 %v993
      %v4037 = vunpack.c.l.b16 %v994
      %v4038 = vunpack.c.h.b16 %v994
      %v4039 = vunpack.c.l.b16 %v995
      %v4040 = vunpack.c.h.b16 %v995
      %v4041 = vunpack.c.l.b16 %v996
      %v4042 = vunpack.c.h.b16 %v996
      %v4043 = vunpack.c.l.b16 %v997
      %v4044 = vunpack.c.h.b16 %v997
      %v4045 = vunpack.c.l.b16 %v998
      %v4046 = vunpack.c.h.b16 %v998
      %v4047 = vunpack.c.l.b16 %v999
      %v4048 = vunpack.c.h.b16 %v999
      %v4049 = vunpack.c.l.b16 %v1000
      %v4050 = vunpack.c.h.b16 %v1000
      %v4051 = vunpack.c.l.b16 %v1001
      %v4052 = vunpack.c.h.b16 %v1001
      %v4053 = vunpack.c.l.b16 %v1002
      %v4054 = vunpack.c.h.b16 %v1002
      %v4055 = vunpack.c.l.b16 %v1003
      %v4056 = vunpack.c.h.b16 %v1003
      %v4057 = vunpack.c.l.b16 %v1004
      %v4058 = vunpack.c.h.b16 %v1004
      %v4059 = vunpack.c.l.b16 %v1005
      %v4060 = vunpack.c.h.b16 %v1005
      %v4061 = vunpack.c.l.b16 %v1006
      %v4062 = vunpack.c.h.b16 %v1006
      %v4063 = vunpack.c.l.b16 %v1007
      %v4064 = vunpack.c.h.b16 %v1007
      %v4065 = vunpack.c.l.b16 %v1008
      %v4066 = vunpack.c.h.b16 %v1008
      %v4067 = vunpack.c.l.b16 %v1009
      %v4068 = vunpack.c.h.b16 %v1009
      %v4069 = vunpack.c.l.b16 %v1010
      %v4070 = vunpack.c.h.b16 %v1010
      %v4071 = vunpack.c.l.b16 %v1011
      %v4072 = vunpack.c.h.b16 %v1011
      %v4073 = vunpack.c.l.b16 %v1012
      %v4074 = vunpack.c.h.b16 %v1012
      %v4075 = vunpack.c.l.b16 %v1013
      %v4076 = vunpack.c.h.b16 %v1013
      %v4077 = vunpack.c.l.b16 %v1014
      %v4078 = vunpack.c.h.b16 %v1014
      %v4079 = vunpack.c.l.b16 %v1015
      %v4080 = vunpack.c.h.b16 %v1015
      %v4081 = vunpack.c.l.b16 %v1016
      %v4082 = vunpack.c.h.b16 %v1016
      %v4083 = vunpack.c.l.b16 %v1017
      %v4084 = vunpack.c.h.b16 %v1017
      %v4085 = vunpack.c.l.b16 %v1018
      %v4086 = vunpack.c.h.b16 %v1018
      %v4087 = vunpack.c.l.b16 %v1019
      %v4088 = vunpack.c.h.b16 %v1019
      %v4089 = vunpack.c.l.b16 %v1020
      %v4090 = vunpack.c.h.b16 %v1020
      %v4091 = vunpack.c.l.b16 %v1021
      %v4092 = vunpack.c.h.b16 %v1021
      %v4093 = vunpack.c.l.b16 %v1022
      %v4094 = vunpack.c.h.b16 %v1022
      %v4095 = vunpack.c.l.b16 %v1023
      %v4096 = vunpack.c.h.b16 %v1023
      %v4097 = vunpack.c.l.b16 %v1024
      %v4098 = vunpack.c.h.b16 %v1024
      %v4099 = vunpack.c.l.b16 %v1025
      %v4100 = vunpack.c.h.b16 %v1025
      %v4101 = vunpack.c.l.b16 %v1026
      %v4102 = vunpack.c.h.b16 %v1026
      %v4103 = vunpack.c.l.b16 %v1027
      %v4104 = vunpack.c.h.b16 %v1027
      %v4105 = vunpack.c.l.b16 %v1028
      %v4106 = vunpack.c.h.b16 %v1028
      %v4107 = vunpack.c.l.b16 %v1029
      %v4108 = vunpack.c.h.b16 %v1029
      %v4109 = vunpack.c.l.b16 %v1030
      %v4110 = vunpack.c.h.b16 %v1030
      %v4111 = vunpack.c.l.b16 %v1031
      %v4112 = vunpack.c.h.b16 %v1031
      %v4113 = vunpack.c.l.b16 %v1032
      %v4114 = vunpack.c.h.b16 %v1032
      %v4115 = vunpack.c.l.b16 %v1033
      %v4116 = vunpack.c.h.b16 %v1033
      %v4117 = vunpack.c.l.b16 %v1034
      %v4118 = vunpack.c.h.b16 %v1034
      %v4119 = vunpack.c.l.b16 %v1035
      %v4120 = vunpack.c.h.b16 %v1035
      %v4121 = vunpack.c.l.b16 %v1036
      %v4122 = vunpack.c.h.b16 %v1036
      %v4123 = vunpack.c.l.b16 %v1037
      %v4124 = vunpack.c.h.b16 %v1037
      %v4125 = vunpack.c.l.b16 %v1038
      %v4126 = vunpack.c.h.b16 %v1038
      %v4127 = vunpack.c.l.b16 %v1039
      %v4128 = vunpack.c.h.b16 %v1039
      %v4129 = vunpack.c.l.b16 %v1040
      %v4130 = vunpack.c.h.b16 %v1040
      %v4131 = vunpack.c.l.b16 %v1041
      %v4132 = vunpack.c.h.b16 %v1041
      %v4133 = vunpack.c.l.b16 %v1042
      %v4134 = vunpack.c.h.b16 %v1042
      %v4135 = vunpack.c.l.b16 %v1043
      %v4136 = vunpack.c.h.b16 %v1043
      %v4137 = vunpack.c.l.b16 %v1044
      %v4138 = vunpack.c.h.b16 %v1044
      %v4139 = vunpack.c.l.b16 %v1045
      %v4140 = vunpack.c.h.b16 %v1045
      %v4141 = vunpack.c.l.b16 %v1046
      %v4142 = vunpack.c.h.b16 %v1046
      %v4143 = vunpack.c.l.b16 %v1047
      %v4144 = vunpack.c.h.b16 %v1047
      %v4145 = vunpack.c.l.b16 %v1048
      %v4146 = vunpack.c.h.b16 %v1048
      %v4147 = vunpack.c.l.b16 %v1049
      %v4148 = vunpack.c.h.b16 %v1049
      %v4149 = vunpack.c.l.b16 %v1050
      %v4150 = vunpack.c.h.b16 %v1050
      %v4151 = vunpack.c.l.b16 %v1051
      %v4152 = vunpack.c.h.b16 %v1051
      %v4153 = vunpack.c.l.b16 %v1052
      %v4154 = vunpack.c.h.b16 %v1052
      %v4155 = vunpack.c.l.b16 %v1053
      %v4156 = vunpack.c.h.b16 %v1053
      %v4157 = vunpack.c.l.b16 %v1054
      %v4158 = vunpack.c.h.b16 %v1054
      %v4159 = vunpack.c.l.b16 %v1055
      %v4160 = vunpack.c.h.b16 %v1055
      %v4161 = vunpack.c.l.b16 %v1056
      %v4162 = vunpack.c.h.b16 %v1056
      %v4163 = vunpack.c.l.b16 %v1057
      %v4164 = vunpack.c.h.b16 %v1057
      %v4165 = vunpack.c.l.b16 %v1058
      %v4166 = vunpack.c.h.b16 %v1058
      %v4167 = vunpack.c.l.b16 %v1059
      %v4168 = vunpack.c.h.b16 %v1059
      %v4169 = vunpack.c.l.b16 %v1060
      %v4170 = vunpack.c.h.b16 %v1060
      %v4171 = vunpack.c.l.b16 %v1061
      %v4172 = vunpack.c.h.b16 %v1061
      %v4173 = vunpack.c.l.b16 %v1062
      %v4174 = vunpack.c.h.b16 %v1062
      %v4175 = vunpack.c.l.b16 %v1063
      %v4176 = vunpack.c.h.b16 %v1063
      %v4177 = vunpack.c.l.b16 %v1064
      %v4178 = vunpack.c.h.b16 %v1064
      %v4179 = vunpack.c.l.b16 %v1065
      %v4180 = vunpack.c.h.b16 %v1065
      %v4181 = vunpack.c.l.b16 %v1066
      %v4182 = vunpack.c.h.b16 %v1066
      %v4183 = vunpack.c.l.b16 %v1067
      %v4184 = vunpack.c.h.b16 %v1067
      %v4185 = vunpack.c.l.b16 %v1068
      %v4186 = vunpack.c.h.b16 %v1068
      %v4187 = vunpack.c.l.b16 %v1069
      %v4188 = vunpack.c.h.b16 %v1069
      %v4189 = vunpack.c.l.b16 %v1070
      %v4190 = vunpack.c.h.b16 %v1070
      %v4191 = vunpack.c.l.b16 %v1071
      %v4192 = vunpack.c.h.b16 %v1071
      %v4193 = vunpack.c.l.b16 %v1072
      %v4194 = vunpack.c.h.b16 %v1072
      %v4195 = vunpack.c.l.b16 %v1073
      %v4196 = vunpack.c.h.b16 %v1073
      %v4197 = vunpack.c.l.b16 %v1074
      %v4198 = vunpack.c.h.b16 %v1074
      %v4199 = vunpack.c.l.b16 %v1075
      %v4200 = vunpack.c.h.b16 %v1075
      %v4201 = vunpack.c.l.b16 %v1076
      %v4202 = vunpack.c.h.b16 %v1076
      %v4203 = vunpack.c.l.b16 %v1077
      %v4204 = vunpack.c.h.b16 %v1077
      %v4205 = vunpack.c.l.b16 %v1078
      %v4206 = vunpack.c.h.b16 %v1078
      %v4207 = vunpack.c.l.b16 %v1079
      %v4208 = vunpack.c.h.b16 %v1079
      %v4209 = vunpack.c.l.b16 %v1080
      %v4210 = vunpack.c.h.b16 %v1080
      %v4211 = vunpack.c.l.b16 %v1081
      %v4212 = vunpack.c.h.b16 %v1081
      %v4213 = vunpack.c.l.b16 %v1082
      %v4214 = vunpack.c.h.b16 %v1082
      %v4215 = vunpack.c.l.b16 %v1083
      %v4216 = vunpack.c.h.b16 %v1083
      %v4217 = vunpack.c.l.b16 %v1084
      %v4218 = vunpack.c.h.b16 %v1084
      %v4219 = vunpack.c.l.b16 %v1085
      %v4220 = vunpack.c.h.b16 %v1085
      %v4221 = vunpack.c.l.b16 %v1086
      %v4222 = vunpack.c.h.b16 %v1086
      %v4223 = vunpack.c.l.b16 %v1087
      %v4224 = vunpack.c.h.b16 %v1087
      %v4225 = vunpack.c.l.b16 %v1088
      %v4226 = vunpack.c.h.b16 %v1088
      %v4227 = vunpack.c.l.b16 %v1089
      %v4228 = vunpack.c.h.b16 %v1089
      %v4229 = vunpack.c.l.b16 %v1090
      %v4230 = vunpack.c.h.b16 %v1090
      %v4231 = vunpack.c.l.b16 %v1091
      %v4232 = vunpack.c.h.b16 %v1091
      %v4233 = vunpack.c.l.b16 %v1092
      %v4234 = vunpack.c.h.b16 %v1092
      %v4235 = vunpack.c.l.b16 %v1093
      %v4236 = vunpack.c.h.b16 %v1093
      %v4237 = vunpack.c.l.b16 %v1094
      %v4238 = vunpack.c.h.b16 %v1094
      %v4239 = vunpack.c.l.b16 %v1095
      %v4240 = vunpack.c.h.b16 %v1095
      %v4241 = vunpack.c.l.b16 %v1096
      %v4242 = vunpack.c.h.b16 %v1096
      %v4243 = vunpack.c.l.b16 %v1097
      %v4244 = vunpack.c.h.b16 %v1097
      %v4245 = vunpack.c.l.b16 %v1098
      %v4246 = vunpack.c.h.b16 %v1098
      %v4247 = vunpack.c.l.b16 %v1099
      %v4248 = vunpack.c.h.b16 %v1099
      %v4249 = vunpack.c.l.b16 %v1100
      %v4250 = vunpack.c.h.b16 %v1100
      %v4251 = vunpack.c.l.b16 %v1101
      %v4252 = vunpack.c.h.b16 %v1101
      %v4253 = vunpack.c.l.b16 %v1102
      %v4254 = vunpack.c.h.b16 %v1102
      %v4255 = vunpack.c.l.b16 %v1103
      %v4256 = vunpack.c.h.b16 %v1103
      %v4257 = vunpack.c.l.b16 %v1104
      %v4258 = vunpack.c.h.b16 %v1104
      %v4259 = vunpack.c.l.b16 %v1105
      %v4260 = vunpack.c.h.b16 %v1105
      %v4261 = vunpack.c.l.b16 %v1106
      %v4262 = vunpack.c.h.b16 %v1106
      %v4263 = vunpack.c.l.b16 %v1107
      %v4264 = vunpack.c.h.b16 %v1107
      %v4265 = vunpack.c.l.b16 %v1108
      %v4266 = vunpack.c.h.b16 %v1108
      %v4267 = vunpack.c.l.b16 %v1109
      %v4268 = vunpack.c.h.b16 %v1109
      %v4269 = vunpack.c.l.b16 %v1110
      %v4270 = vunpack.c.h.b16 %v1110
      %v4271 = vunpack.c.l.b16 %v1111
      %v4272 = vunpack.c.h.b16 %v1111
      %v4273 = vunpack.c.l.b16 %v1112
      %v4274 = vunpack.c.h.b16 %v1112
      %v4275 = vunpack.c.l.b16 %v1113
      %v4276 = vunpack.c.h.b16 %v1113
      %v4277 = vunpack.c.l.b16 %v1114
      %v4278 = vunpack.c.h.b16 %v1114
      %v4279 = vunpack.c.l.b16 %v1115
      %v4280 = vunpack.c.h.b16 %v1115
      %v4281 = vunpack.c.l.b16 %v1116
      %v4282 = vunpack.c.h.b16 %v1116
      %v4283 = vunpack.c.l.b16 %v1117
      %v4284 = vunpack.c.h.b16 %v1117
      %v4285 = vunpack.c.l.b16 %v1118
      %v4286 = vunpack.c.h.b16 %v1118
      %v4287 = vunpack.c.l.b16 %v1119
      %v4288 = vunpack.c.h.b16 %v1119
      %v4289 = vunpack.c.l.b16 %v1120
      %v4290 = vunpack.c.h.b16 %v1120
      %v4291 = vunpack.c.l.b16 %v1121
      %v4292 = vunpack.c.h.b16 %v1121
      %v4293 = vunpack.c.l.b16 %v1122
      %v4294 = vunpack.c.h.b16 %v1122
      %v4295 = vunpack.c.l.b16 %v1123
      %v4296 = vunpack.c.h.b16 %v1123
      %v4297 = vunpack.c.l.b16 %v1124
      %v4298 = vunpack.c.h.b16 %v1124
      %v4299 = vunpack.c.l.b16 %v1125
      %v4300 = vunpack.c.h.b16 %v1125
      %v4301 = vunpack.c.l.b16 %v1126
      %v4302 = vunpack.c.h.b16 %v1126
      %v4303 = vunpack.c.l.b16 %v1127
      %v4304 = vunpack.c.h.b16 %v1127
      %v4305 = vunpack.c.l.b16 %v1128
      %v4306 = vunpack.c.h.b16 %v1128
      %v4307 = vunpack.c.l.b16 %v1129
      %v4308 = vunpack.c.h.b16 %v1129
      %v4309 = vunpack.c.l.b16 %v1130
      %v4310 = vunpack.c.h.b16 %v1130
      %v4311 = vunpack.c.l.b16 %v1131
      %v4312 = vunpack.c.h.b16 %v1131
      %v4313 = vunpack.c.l.b16 %v1132
      %v4314 = vunpack.c.h.b16 %v1132
      %v4315 = vunpack.c.l.b16 %v1133
      %v4316 = vunpack.c.h.b16 %v1133
      %v4317 = vunpack.c.l.b16 %v1134
      %v4318 = vunpack.c.h.b16 %v1134
      %v4319 = vunpack.c.l.b16 %v1135
      %v4320 = vunpack.c.h.b16 %v1135
      %v4321 = vunpack.c.l.b16 %v1136
      %v4322 = vunpack.c.h.b16 %v1136
      %v4323 = vunpack.c.l.b16 %v1137
      %v4324 = vunpack.c.h.b16 %v1137
      %v4325 = vunpack.c.l.b16 %v1138
      %v4326 = vunpack.c.h.b16 %v1138
      %v4327 = vunpack.c.l.b16 %v1139
      %v4328 = vunpack.c.h.b16 %v1139
      %v4329 = vunpack.c.l.b16 %v1140
      %v4330 = vunpack.c.h.b16 %v1140
      %v4331 = vunpack.c.l.b16 %v1141
      %v4332 = vunpack.c.h.b16 %v1141
      %v4333 = vunpack.c.l.b16 %v1142
      %v4334 = vunpack.c.h.b16 %v1142
      %v4335 = vunpack.c.l.b16 %v1143
      %v4336 = vunpack.c.h.b16 %v1143
      %v4337 = vunpack.c.l.b16 %v1144
      %v4338 = vunpack.c.h.b16 %v1144
      %v4339 = vunpack.c.l.b16 %v1145
      %v4340 = vunpack.c.h.b16 %v1145
      %v4341 = vunpack.c.l.b16 %v1146
      %v4342 = vunpack.c.h.b16 %v1146
      %v4343 = vunpack.c.l.b16 %v1147
      %v4344 = vunpack.c.h.b16 %v1147
      %v4345 = vunpack.c.l.b16 %v1148
      %v4346 = vunpack.c.h.b16 %v1148
      %v4347 = vunpack.c.l.b16 %v1149
      %v4348 = vunpack.c.h.b16 %v1149
      %v4349 = vunpack.c.l.b16 %v1150
      %v4350 = vunpack.c.h.b16 %v1150
      %v4351 = vunpack.c.l.b16 %v1151
      %v4352 = vunpack.c.h.b16 %v1151
      %v4353 = vunpack.c.l.b16 %v1152
      %v4354 = vunpack.c.h.b16 %v1152
      %v4355 = vunpack.c.l.b16 %v1153
      %v4356 = vunpack.c.h.b16 %v1153
      %v4357 = vunpack.c.l.b16 %v1154
      %v4358 = vunpack.c.h.b16 %v1154
      %v4359 = vunpack.c.l.b16 %v1155
      %v4360 = vunpack.c.h.b16 %v1155
      %v4361 = vunpack.c.l.b16 %v1156
      %v4362 = vunpack.c.h.b16 %v1156
      %v4363 = vunpack.c.l.b16 %v1157
      %v4364 = vunpack.c.h.b16 %v1157
      %v4365 = vunpack.c.l.b16 %v1158
      %v4366 = vunpack.c.h.b16 %v1158
      %v4367 = vunpack.c.l.b16 %v1159
      %v4368 = vunpack.c.h.b16 %v1159
      %v4369 = vunpack.c.l.b16 %v1160
      %v4370 = vunpack.c.h.b16 %v1160
      %v4371 = vunpack.c.l.b16 %v1161
      %v4372 = vunpack.c.h.b16 %v1161
      %v4373 = vunpack.c.l.b16 %v1162
      %v4374 = vunpack.c.h.b16 %v1162
      %v4375 = vunpack.c.l.b16 %v1163
      %v4376 = vunpack.c.h.b16 %v1163
      %v4377 = vunpack.c.l.b16 %v1164
      %v4378 = vunpack.c.h.b16 %v1164
      %v4379 = vunpack.c.l.b16 %v1165
      %v4380 = vunpack.c.h.b16 %v1165
      %v4381 = vunpack.c.l.b16 %v1166
      %v4382 = vunpack.c.h.b16 %v1166
      %v4383 = vunpack.c.l.b16 %v1167
      %v4384 = vunpack.c.h.b16 %v1167
      %v4385 = vunpack.c.l.b16 %v1168
      %v4386 = vunpack.c.h.b16 %v1168
      %v4387 = vunpack.c.l.b16 %v1169
      %v4388 = vunpack.c.h.b16 %v1169
      %v4389 = vunpack.c.l.b16 %v1170
      %v4390 = vunpack.c.h.b16 %v1170
      %v4391 = vunpack.c.l.b16 %v1171
      %v4392 = vunpack.c.h.b16 %v1171
      %v4393 = vunpack.c.l.b16 %v1172
      %v4394 = vunpack.c.h.b16 %v1172
      %v4395 = vunpack.c.l.b16 %v1173
      %v4396 = vunpack.c.h.b16 %v1173
      %v4397 = vunpack.c.l.b16 %v1174
      %v4398 = vunpack.c.h.b16 %v1174
      %v4399 = vunpack.c.l.b16 %v1175
      %v4400 = vunpack.c.h.b16 %v1175
      %v4401 = vunpack.c.l.b16 %v1176
      %v4402 = vunpack.c.h.b16 %v1176
      %v4403 = vunpack.c.l.b16 %v1177
      %v4404 = vunpack.c.h.b16 %v1177
      %v4405 = vunpack.c.l.b16 %v1178
      %v4406 = vunpack.c.h.b16 %v1178
      %v4407 = vunpack.c.l.b16 %v1179
      %v4408 = vunpack.c.h.b16 %v1179
      %v4409 = vunpack.c.l.b16 %v1180
      %v4410 = vunpack.c.h.b16 %v1180
      %v4411 = vunpack.c.l.b16 %v1181
      %v4412 = vunpack.c.h.b16 %v1181
      %v4413 = vunpack.c.l.b16 %v1182
      %v4414 = vunpack.c.h.b16 %v1182
      %v4415 = vunpack.c.l.b16 %v1183
      %v4416 = vunpack.c.h.b16 %v1183
      %v4417 = vunpack.c.l.b16 %v1184
      %v4418 = vunpack.c.h.b16 %v1184
      %v4419 = vunpack.c.l.b16 %v1185
      %v4420 = vunpack.c.h.b16 %v1185
      %v4421 = vunpack.c.l.b16 %v1186
      %v4422 = vunpack.c.h.b16 %v1186
      %v4423 = vunpack.c.l.b16 %v1187
      %v4424 = vunpack.c.h.b16 %v1187
      %v4425 = vunpack.c.l.b16 %v1188
      %v4426 = vunpack.c.h.b16 %v1188
      %v4427 = vunpack.c.l.b16 %v1189
      %v4428 = vunpack.c.h.b16 %v1189
      %v4429 = vunpack.c.l.b16 %v1190
      %v4430 = vunpack.c.h.b16 %v1190
      %v4431 = vunpack.c.l.b16 %v1191
      %v4432 = vunpack.c.h.b16 %v1191
      %v4433 = vunpack.c.l.b16 %v1192
      %v4434 = vunpack.c.h.b16 %v1192
      %v4435 = vunpack.c.l.b16 %v1193
      %v4436 = vunpack.c.h.b16 %v1193
      %v4437 = vunpack.c.l.b16 %v1194
      %v4438 = vunpack.c.h.b16 %v1194
      %v4439 = vunpack.c.l.b16 %v1195
      %v4440 = vunpack.c.h.b16 %v1195
      %v4441 = vunpack.c.l.b16 %v1196
      %v4442 = vunpack.c.h.b16 %v1196
      %v4443 = vunpack.c.l.b16 %v1197
      %v4444 = vunpack.c.h.b16 %v1197
      %v4445 = vunpack.c.l.b16 %v1198
      %v4446 = vunpack.c.h.b16 %v1198
      %v4447 = vpack.c.b16 %v2403, %v2399
      %v4448 = vpack.c.b16 %v2404, %v2400
      %v4449 = vpack.c.b16 %v2405, %v2401
      %v4450 = vpack.c.b16 %v2406, %v2402
      %v4451 = vpack.c.b16 %v2411, %v2407
      %v4452 = vpack.c.b16 %v2412, %v2408
      %v4453 = vpack.c.b16 %v2413, %v2409
      %v4454 = vpack.c.b16 %v2414, %v2410
      %v4455 = vpack.c.b16 %v2419, %v2415
      %v4456 = vpack.c.b16 %v2420, %v2416
      %v4457 = vpack.c.b16 %v2421, %v2417
      %v4458 = vpack.c.b16 %v2422, %v2418
      %v4459 = vpack.c.b16 %v2427, %v2423
      %v4460 = vpack.c.b16 %v2428, %v2424
      %v4461 = vpack.c.b16 %v2429, %v2425
      %v4462 = vpack.c.b16 %v2430, %v2426
      %v4463 = vpack.c.b16 %v2435, %v2431
      %v4464 = vpack.c.b16 %v2436, %v2432
      %v4465 = vpack.c.b16 %v2437, %v2433
      %v4466 = vpack.c.b16 %v2438, %v2434
      %v4467 = vpack.c.b16 %v2443, %v2439
      %v4468 = vpack.c.b16 %v2444, %v2440
      %v4469 = vpack.c.b16 %v2445, %v2441
      %v4470 = vpack.c.b16 %v2446, %v2442
      %v4471 = vpack.c.b16 %v2451, %v2447
      %v4472 = vpack.c.b16 %v2452, %v2448
      %v4473 = vpack.c.b16 %v2453, %v2449
      %v4474 = vpack.c.b16 %v2454, %v2450
      %v4475 = vpack.c.b16 %v2459, %v2455
      %v4476 = vpack.c.b16 %v2460, %v2456
      %v4477 = vpack.c.b16 %v2461, %v2457
      %v4478 = vpack.c.b16 %v2462, %v2458
      %v4479 = vpack.c.b16 %v2467, %v2463
      %v4480 = vpack.c.b16 %v2468, %v2464
      %v4481 = vpack.c.b16 %v2469, %v2465
      %v4482 = vpack.c.b16 %v2470, %v2466
      %v4483 = vpack.c.b16 %v2475, %v2471
      %v4484 = vpack.c.b16 %v2476, %v2472
      %v4485 = vpack.c.b16 %v2477, %v2473
      %v4486 = vpack.c.b16 %v2478, %v2474
      %v4487 = vpack.c.b16 %v2483, %v2479
      %v4488 = vpack.c.b16 %v2484, %v2480
      %v4489 = vpack.c.b16 %v2485, %v2481
      %v4490 = vpack.c.b16 %v2486, %v2482
      %v4491 = vpack.c.b16 %v2491, %v2487
      %v4492 = vpack.c.b16 %v2492, %v2488
      %v4493 = vpack.c.b16 %v2493, %v2489
      %v4494 = vpack.c.b16 %v2494, %v2490
      %v4495 = vpack.c.b16 %v2499, %v2495
      %v4496 = vpack.c.b16 %v2500, %v2496
      %v4497 = vpack.c.b16 %v2501, %v2497
      %v4498 = vpack.c.b16 %v2502, %v2498
      %v4499 = vpack.c.b16 %v2507, %v2503
      %v4500 = vpack.c.b16 %v2508, %v2504
      %v4501 = vpack.c.b16 %v2509, %v2505
      %v4502 = vpack.c.b16 %v2510, %v2506
      %v4503 = vpack.c.b16 %v2515, %v2511
      %v4504 = vpack.c.b16 %v2516, %v2512
      %v4505 = vpack.c.b16 %v2517, %v2513
      %v4506 = vpack.c.b16 %v2518, %v2514
      %v4507 = vpack.c.b16 %v2523, %v2519
      %v4508 = vpack.c.b16 %v2524, %v2520
      %v4509 = vpack.c.b16 %v2525, %v2521
      %v4510 = vpack.c.b16 %v2526, %v2522
      %v4511 = vpack.c.b16 %v2531, %v2527
      %v4512 = vpack.c.b16 %v2532, %v2528
      %v4513 = vpack.c.b16 %v2533, %v2529
      %v4514 = vpack.c.b16 %v2534, %v2530
      %v4515 = vpack.c.b16 %v2539, %v2535
      %v4516 = vpack.c.b16 %v2540, %v2536
      %v4517 = vpack.c.b16 %v2541, %v2537
      %v4518 = vpack.c.b16 %v2542, %v2538
      %v4519 = vpack.c.b16 %v2547, %v2543
      %v4520 = vpack.c.b16 %v2548, %v2544
      %v4521 = vpack.c.b16 %v2549, %v2545
      %v4522 = vpack.c.b16 %v2550, %v2546
      %v4523 = vpack.c.b16 %v2555, %v2551
      %v4524 = vpack.c.b16 %v2556, %v2552
      %v4525 = vpack.c.b16 %v2557, %v2553
      %v4526 = vpack.c.b16 %v2558, %v2554
      %v4527 = vpack.c.b16 %v2563, %v2559
      %v4528 = vpack.c.b16 %v2564, %v2560
      %v4529 = vpack.c.b16 %v2565, %v2561
      %v4530 = vpack.c.b16 %v2566, %v2562
      %v4531 = vpack.c.b16 %v2571, %v2567
      %v4532 = vpack.c.b16 %v2572, %v2568
      %v4533 = vpack.c.b16 %v2573, %v2569
      %v4534 = vpack.c.b16 %v2574, %v2570
      %v4535 = vpack.c.b16 %v2579, %v2575
      %v4536 = vpack.c.b16 %v2580, %v2576
      %v4537 = vpack.c.b16 %v2581, %v2577
      %v4538 = vpack.c.b16 %v2582, %v2578
      %v4539 = vpack.c.b16 %v2587, %v2583
      %v4540 = vpack.c.b16 %v2588, %v2584
      %v4541 = vpack.c.b16 %v2589, %v2585
      %v4542 = vpack.c.b16 %v2590, %v2586
      %v4543 = vpack.c.b16 %v2595, %v2591
      %v4544 = vpack.c.b16 %v2596, %v2592
      %v4545 = vpack.c.b16 %v2597, %v2593
      %v4546 = vpack.c.b16 %v2598, %v2594
      %v4547 = vpack.c.b16 %v2603, %v2599
      %v4548 = vpack.c.b16 %v2604, %v2600
      %v4549 = vpack.c.b16 %v2605, %v2601
      %v4550 = vpack.c.b16 %v2606, %v2602
      %v4551 = vpack.c.b16 %v2611, %v2607
      %v4552 = vpack.c.b16 %v2612, %v2608
      %v4553 = vpack.c.b16 %v2613, %v2609
      %v4554 = vpack.c.b16 %v2614, %v2610
      %v4555 = vpack.c.b16 %v2619, %v2615
      %v4556 = vpack.c.b16 %v2620, %v2616
      %v4557 = vpack.c.b16 %v2621, %v2617
      %v4558 = vpack.c.b16 %v2622, %v2618
      %v4559 = vpack.c.b16 %v2627, %v2623
      %v4560 = vpack.c.b16 %v2628, %v2624
      %v4561 = vpack.c.b16 %v2629, %v2625
      %v4562 = vpack.c.b16 %v2630, %v2626
      %v4563 = vpack.c.b16 %v2635, %v2631
      %v4564 = vpack.c.b16 %v2636, %v2632
      %v4565 = vpack.c.b16 %v2637, %v2633
      %v4566 = vpack.c.b16 %v2638, %v2634
      %v4567 = vpack.c.b16 %v2643, %v2639
      %v4568 = vpack.c.b16 %v2644, %v2640
      %v4569 = vpack.c.b16 %v2645, %v2641
      %v4570 = vpack.c.b16 %v2646, %v2642
      %v4571 = vpack.c.b16 %v2651, %v2647
      %v4572 = vpack.c.b16 %v2652, %v2648
      %v4573 = vpack.c.b16 %v2653, %v2649
      %v4574 = vpack.c.b16 %v2654, %v2650
      %v4575 = vpack.c.b16 %v2659, %v2655
      %v4576 = vpack.c.b16 %v2660, %v2656
      %v4577 = vpack.c.b16 %v2661, %v2657
      %v4578 = vpack.c.b16 %v2662, %v2658
      %v4579 = vpack.c.b16 %v2667, %v2663
      %v4580 = vpack.c.b16 %v2668, %v2664
      %v4581 = vpack.c.b16 %v2669, %v2665
      %v4582 = vpack.c.b16 %v2670, %v2666
      %v4583 = vpack.c.b16 %v2675, %v2671
      %v4584 = vpack.c.b16 %v2676, %v2672
      %v4585 = vpack.c.b16 %v2677, %v2673
      %v4586 = vpack.c.b16 %v2678, %v2674
      %v4587 = vpack.c.b16 %v2683, %v2679
      %v4588 = vpack.c.b16 %v2684, %v2680
      %v4589 = vpack.c.b16 %v2685, %v2681
      %v4590 = vpack.c.b16 %v2686, %v2682
      %v4591 = vpack.c.b16 %v2691, %v2687
      %v4592 = vpack.c.b16 %v2692, %v2688
      %v4593 = vpack.c.b16 %v2693, %v2689
      %v4594 = vpack.c.b16 %v2694, %v2690
      %v4595 = vpack.c.b16 %v2699, %v2695
      %v4596 = vpack.c.b16 %v2700, %v2696
      %v4597 = vpack.c.b16 %v2701, %v2697
      %v4598 = vpack.c.b16 %v2702, %v2698
      %v4599 = vpack.c.b16 %v2707, %v2703
      %v4600 = vpack.c.b16 %v2708, %v2704
      %v4601 = vpack.c.b16 %v2709, %v2705
      %v4602 = vpack.c.b16 %v2710, %v2706
      %v4603 = vpack.c.b16 %v2715, %v2711
      %v4604 = vpack.c.b16 %v2716, %v2712
      %v4605 = vpack.c.b16 %v2717, %v2713
      %v4606 = vpack.c.b16 %v2718, %v2714
      %v4607 = vpack.c.b16 %v2723, %v2719
      %v4608 = vpack.c.b16 %v2724, %v2720
      %v4609 = vpack.c.b16 %v2725, %v2721
      %v4610 = vpack.c.b16 %v2726, %v2722
      %v4611 = vpack.c.b16 %v2731, %v2727
      %v4612 = vpack.c.b16 %v2732, %v2728
      %v4613 = vpack.c.b16 %v2733, %v2729
      %v4614 = vpack.c.b16 %v2734, %v2730
      %v4615 = vpack.c.b16 %v2739, %v2735
      %v4616 = vpack.c.b16 %v2740, %v2736
      %v4617 = vpack.c.b16 %v2741, %v2737
      %v4618 = vpack.c.b16 %v2742, %v2738
      %v4619 = vpack.c.b16 %v2747, %v2743
      %v4620 = vpack.c.b16 %v2748, %v2744
      %v4621 = vpack.c.b16 %v2749, %v2745
      %v4622 = vpack.c.b16 %v2750, %v2746
      %v4623 = vpack.c.b16 %v2755, %v2751
      %v4624 = vpack.c.b16 %v2756, %v2752
      %v4625 = vpack.c.b16 %v2757, %v2753
      %v4626 = vpack.c.b16 %v2758, %v2754
      %v4627 = vpack.c.b16 %v2763, %v2759
      %v4628 = vpack.c.b16 %v2764, %v2760
      %v4629 = vpack.c.b16 %v2765, %v2761
      %v4630 = vpack.c.b16 %v2766, %v2762
      %v4631 = vpack.c.b16 %v2771, %v2767
      %v4632 = vpack.c.b16 %v2772, %v2768
      %v4633 = vpack.c.b16 %v2773, %v2769
      %v4634 = vpack.c.b16 %v2774, %v2770
      %v4635 = vpack.c.b16 %v2779, %v2775
      %v4636 = vpack.c.b16 %v2780, %v2776
      %v4637 = vpack.c.b16 %v2781, %v2777
      %v4638 = vpack.c.b16 %v2782, %v2778
      %v4639 = vpack.c.b16 %v2787, %v2783
      %v4640 = vpack.c.b16 %v2788, %v2784
      %v4641 = vpack.c.b16 %v2789, %v2785
      %v4642 = vpack.c.b16 %v2790, %v2786
      %v4643 = vpack.c.b16 %v2795, %v2791
      %v4644 = vpack.c.b16 %v2796, %v2792
      %v4645 = vpack.c.b16 %v2797, %v2793
      %v4646 = vpack.c.b16 %v2798, %v2794
      %v4647 = vpack.c.b16 %v2803, %v2799
      %v4648 = vpack.c.b16 %v2804, %v2800
      %v4649 = vpack.c.b16 %v2805, %v2801
      %v4650 = vpack.c.b16 %v2806, %v2802
      %v4651 = vpack.c.b16 %v2811, %v2807
      %v4652 = vpack.c.b16 %v2812, %v2808
      %v4653 = vpack.c.b16 %v2813, %v2809
      %v4654 = vpack.c.b16 %v2814, %v2810
      %v4655 = vpack.c.b16 %v2819, %v2815
      %v4656 = vpack.c.b16 %v2820, %v2816
      %v4657 = vpack.c.b16 %v2821, %v2817
      %v4658 = vpack.c.b16 %v2822, %v2818
      %v4659 = vpack.c.b16 %v2827, %v2823
      %v4660 = vpack.c.b16 %v2828, %v2824
      %v4661 = vpack.c.b16 %v2829, %v2825
      %v4662 = vpack.c.b16 %v2830, %v2826
      %v4663 = vpack.c.b16 %v2835, %v2831
      %v4664 = vpack.c.b16 %v2836, %v2832
      %v4665 = vpack.c.b16 %v2837, %v2833
      %v4666 = vpack.c.b16 %v2838, %v2834
      %v4667 = vpack.c.b16 %v2843, %v2839
      %v4668 = vpack.c.b16 %v2844, %v2840
      %v4669 = vpack.c.b16 %v2845, %v2841
      %v4670 = vpack.c.b16 %v2846, %v2842
      %v4671 = vpack.c.b16 %v2851, %v2847
      %v4672 = vpack.c.b16 %v2852, %v2848
      %v4673 = vpack.c.b16 %v2853, %v2849
      %v4674 = vpack.c.b16 %v2854, %v2850
      %v4675 = vpack.c.b16 %v2859, %v2855
      %v4676 = vpack.c.b16 %v2860, %v2856
      %v4677 = vpack.c.b16 %v2861, %v2857
      %v4678 = vpack.c.b16 %v2862, %v2858
      %v4679 = vpack.c.b16 %v2867, %v2863
      %v4680 = vpack.c.b16 %v2868, %v2864
      %v4681 = vpack.c.b16 %v2869, %v2865
      %v4682 = vpack.c.b16 %v2870, %v2866
      %v4683 = vpack.c.b16 %v2875, %v2871
      %v4684 = vpack.c.b16 %v2876, %v2872
      %v4685 = vpack.c.b16 %v2877, %v2873
      %v4686 = vpack.c.b16 %v2878, %v2874
      %v4687 = vpack.c.b16 %v2883, %v2879
      %v4688 = vpack.c.b16 %v2884, %v2880
      %v4689 = vpack.c.b16 %v2885, %v2881
      %v4690 = vpack.c.b16 %v2886, %v2882
      %v4691 = vpack.c.b16 %v2891, %v2887
      %v4692 = vpack.c.b16 %v2892, %v2888
      %v4693 = vpack.c.b16 %v2893, %v2889
      %v4694 = vpack.c.b16 %v2894, %v2890
      %v4695 = vpack.c.b16 %v2899, %v2895
      %v4696 = vpack.c.b16 %v2900, %v2896
      %v4697 = vpack.c.b16 %v2901, %v2897
      %v4698 = vpack.c.b16 %v2902, %v2898
      %v4699 = vpack.c.b16 %v2907, %v2903
      %v4700 = vpack.c.b16 %v2908, %v2904
      %v4701 = vpack.c.b16 %v2909, %v2905
      %v4702 = vpack.c.b16 %v2910, %v2906
      %v4703 = vpack.c.b16 %v2915, %v2911
      %v4704 = vpack.c.b16 %v2916, %v2912
      %v4705 = vpack.c.b16 %v2917, %v2913
      %v4706 = vpack.c.b16 %v2918, %v2914
      %v4707 = vpack.c.b16 %v2923, %v2919
      %v4708 = vpack.c.b16 %v2924, %v2920
      %v4709 = vpack.c.b16 %v2925, %v2921
      %v4710 = vpack.c.b16 %v2926, %v2922
      %v4711 = vpack.c.b16 %v2931, %v2927
      %v4712 = vpack.c.b16 %v2932, %v2928
      %v4713 = vpack.c.b16 %v2933, %v2929
      %v4714 = vpack.c.b16 %v2934, %v2930
      %v4715 = vpack.c.b16 %v2939, %v2935
      %v4716 = vpack.c.b16 %v2940, %v2936
      %v4717 = vpack.c.b16 %v2941, %v2937
      %v4718 = vpack.c.b16 %v2942, %v2938
      %v4719 = vpack.c.b16 %v2947, %v2943
      %v4720 = vpack.c.b16 %v2948, %v2944
      %v4721 = vpack.c.b16 %v2949, %v2945
      %v4722 = vpack.c.b16 %v2950, %v2946
      %v4723 = vpack.c.b16 %v2955, %v2951
      %v4724 = vpack.c.b16 %v2956, %v2952
      %v4725 = vpack.c.b16 %v2957, %v2953
      %v4726 = vpack.c.b16 %v2958, %v2954
      %v4727 = vpack.c.b16 %v2963, %v2959
      %v4728 = vpack.c.b16 %v2964, %v2960
      %v4729 = vpack.c.b16 %v2965, %v2961
      %v4730 = vpack.c.b16 %v2966, %v2962
      %v4731 = vpack.c.b16 %v2971, %v2967
      %v4732 = vpack.c.b16 %v2972, %v2968
      %v4733 = vpack.c.b16 %v2973, %v2969
      %v4734 = vpack.c.b16 %v2974, %v2970
      %v4735 = vpack.c.b16 %v2979, %v2975
      %v4736 = vpack.c.b16 %v2980, %v2976
      %v4737 = vpack.c.b16 %v2981, %v2977
      %v4738 = vpack.c.b16 %v2982, %v2978
      %v4739 = vpack.c.b16 %v2987, %v2983
      %v4740 = vpack.c.b16 %v2988, %v2984
      %v4741 = vpack.c.b16 %v2989, %v2985
      %v4742 = vpack.c.b16 %v2990, %v2986
      %v4743 = vpack.c.b16 %v2995, %v2991
      %v4744 = vpack.c.b16 %v2996, %v2992
      %v4745 = vpack.c.b16 %v2997, %v2993
      %v4746 = vpack.c.b16 %v2998, %v2994
      %v4747 = vpack.c.b16 %v3003, %v2999
      %v4748 = vpack.c.b16 %v3004, %v3000
      %v4749 = vpack.c.b16 %v3005, %v3001
      %v4750 = vpack.c.b16 %v3006, %v3002
      %v4751 = vpack.c.b16 %v3011, %v3007
      %v4752 = vpack.c.b16 %v3012, %v3008
      %v4753 = vpack.c.b16 %v3013, %v3009
      %v4754 = vpack.c.b16 %v3014, %v3010
      %v4755 = vpack.c.b16 %v3019, %v3015
      %v4756 = vpack.c.b16 %v3020, %v3016
      %v4757 = vpack.c.b16 %v3021, %v3017
      %v4758 = vpack.c.b16 %v3022, %v3018
      %v4759 = vpack.c.b16 %v3027, %v3023
      %v4760 = vpack.c.b16 %v3028, %v3024
      %v4761 = vpack.c.b16 %v3029, %v3025
      %v4762 = vpack.c.b16 %v3030, %v3026
      %v4763 = vpack.c.b16 %v3035, %v3031
      %v4764 = vpack.c.b16 %v3036, %v3032
      %v4765 = vpack.c.b16 %v3037, %v3033
      %v4766 = vpack.c.b16 %v3038, %v3034
      %v4767 = vpack.c.b16 %v3043, %v3039
      %v4768 = vpack.c.b16 %v3044, %v3040
      %v4769 = vpack.c.b16 %v3045, %v3041
      %v4770 = vpack.c.b16 %v3046, %v3042
      %v4771 = vpack.c.b16 %v3051, %v3047
      %v4772 = vpack.c.b16 %v3052, %v3048
      %v4773 = vpack.c.b16 %v3053, %v3049
      %v4774 = vpack.c.b16 %v3054, %v3050
      %v4775 = vpack.c.b16 %v3059, %v3055
      %v4776 = vpack.c.b16 %v3060, %v3056
      %v4777 = vpack.c.b16 %v3061, %v3057
      %v4778 = vpack.c.b16 %v3062, %v3058
      %v4779 = vpack.c.b16 %v3067, %v3063
      %v4780 = vpack.c.b16 %v3068, %v3064
      %v4781 = vpack.c.b16 %v3069, %v3065
      %v4782 = vpack.c.b16 %v3070, %v3066
      %v4783 = vpack.c.b16 %v3075, %v3071
      %v4784 = vpack.c.b16 %v3076, %v3072
      %v4785 = vpack.c.b16 %v3077, %v3073
      %v4786 = vpack.c.b16 %v3078, %v3074
      %v4787 = vpack.c.b16 %v3083, %v3079
      %v4788 = vpack.c.b16 %v3084, %v3080
      %v4789 = vpack.c.b16 %v3085, %v3081
      %v4790 = vpack.c.b16 %v3086, %v3082
      %v4791 = vpack.c.b16 %v3091, %v3087
      %v4792 = vpack.c.b16 %v3092, %v3088
      %v4793 = vpack.c.b16 %v3093, %v3089
      %v4794 = vpack.c.b16 %v3094, %v3090
      %v4795 = vpack.c.b16 %v3099, %v3095
      %v4796 = vpack.c.b16 %v3100, %v3096
      %v4797 = vpack.c.b16 %v3101, %v3097
      %v4798 = vpack.c.b16 %v3102, %v3098
      %v4799 = vpack.c.b16 %v3107, %v3103
      %v4800 = vpack.c.b16 %v3108, %v3104
      %v4801 = vpack.c.b16 %v3109, %v3105
      %v4802 = vpack.c.b16 %v3110, %v3106
      %v4803 = vpack.c.b16 %v3115, %v3111
      %v4804 = vpack.c.b16 %v3116, %v3112
      %v4805 = vpack.c.b16 %v3117, %v3113
      %v4806 = vpack.c.b16 %v3118, %v3114
      %v4807 = vpack.c.b16 %v3123, %v3119
      %v4808 = vpack.c.b16 %v3124, %v3120
      %v4809 = vpack.c.b16 %v3125, %v3121
      %v4810 = vpack.c.b16 %v3126, %v3122
      %v4811 = vpack.c.b16 %v3131, %v3127
      %v4812 = vpack.c.b16 %v3132, %v3128
      %v4813 = vpack.c.b16 %v3133, %v3129
      %v4814 = vpack.c.b16 %v3134, %v3130
      %v4815 = vpack.c.b16 %v3139, %v3135
      %v4816 = vpack.c.b16 %v3140, %v3136
      %v4817 = vpack.c.b16 %v3141, %v3137
      %v4818 = vpack.c.b16 %v3142, %v3138
      %v4819 = vpack.c.b16 %v3147, %v3143
      %v4820 = vpack.c.b16 %v3148, %v3144
      %v4821 = vpack.c.b16 %v3149, %v3145
      %v4822 = vpack.c.b16 %v3150, %v3146
      %v4823 = vpack.c.b16 %v3155, %v3151
      %v4824 = vpack.c.b16 %v3156, %v3152
      %v4825 = vpack.c.b16 %v3157, %v3153
      %v4826 = vpack.c.b16 %v3158, %v3154
      %v4827 = vpack.c.b16 %v3163, %v3159
      %v4828 = vpack.c.b16 %v3164, %v3160
      %v4829 = vpack.c.b16 %v3165, %v3161
      %v4830 = vpack.c.b16 %v3166, %v3162
      %v4831 = vpack.c.b16 %v3171, %v3167
      %v4832 = vpack.c.b16 %v3172, %v3168
      %v4833 = vpack.c.b16 %v3173, %v3169
      %v4834 = vpack.c.b16 %v3174, %v3170
      %v4835 = vpack.c.b16 %v3179, %v3175
      %v4836 = vpack.c.b16 %v3180, %v3176
      %v4837 = vpack.c.b16 %v3181, %v3177
      %v4838 = vpack.c.b16 %v3182, %v3178
      %v4839 = vpack.c.b16 %v3187, %v3183
      %v4840 = vpack.c.b16 %v3188, %v3184
      %v4841 = vpack.c.b16 %v3189, %v3185
      %v4842 = vpack.c.b16 %v3190, %v3186
      %v4843 = vpack.c.b16 %v3195, %v3191
      %v4844 = vpack.c.b16 %v3196, %v3192
      %v4845 = vpack.c.b16 %v3197, %v3193
      %v4846 = vpack.c.b16 %v3198, %v3194
      %v4847 = vpack.c.b16 %v3203, %v3199
      %v4848 = vpack.c.b16 %v3204, %v3200
      %v4849 = vpack.c.b16 %v3205, %v3201
      %v4850 = vpack.c.b16 %v3206, %v3202
      %v4851 = vpack.c.b16 %v3211, %v3207
      %v4852 = vpack.c.b16 %v3212, %v3208
      %v4853 = vpack.c.b16 %v3213, %v3209
      %v4854 = vpack.c.b16 %v3214, %v3210
      %v4855 = vpack.c.b16 %v3219, %v3215
      %v4856 = vpack.c.b16 %v3220, %v3216
      %v4857 = vpack.c.b16 %v3221, %v3217
      %v4858 = vpack.c.b16 %v3222, %v3218
      %v4859 = vpack.c.b16 %v3227, %v3223
      %v4860 = vpack.c.b16 %v3228, %v3224
      %v4861 = vpack.c.b16 %v3229, %v3225
      %v4862 = vpack.c.b16 %v3230, %v3226
      %v4863 = vpack.c.b16 %v3235, %v3231
      %v4864 = vpack.c.b16 %v3236, %v3232
      %v4865 = vpack.c.b16 %v3237, %v3233
      %v4866 = vpack.c.b16 %v3238, %v3234
      %v4867 = vpack.c.b16 %v3243, %v3239
      %v4868 = vpack.c.b16 %v3244, %v3240
      %v4869 = vpack.c.b16 %v3245, %v3241
      %v4870 = vpack.c.b16 %v3246, %v3242
      %v4871 = vpack.c.b16 %v3251, %v3247
      %v4872 = vpack.c.b16 %v3252, %v3248
      %v4873 = vpack.c.b16 %v3253, %v3249
      %v4874 = vpack.c.b16 %v3254, %v3250
      %v4875 = vpack.c.b16 %v3259, %v3255
      %v4876 = vpack.c.b16 %v3260, %v3256
      %v4877 = vpack.c.b16 %v3261, %v3257
      %v4878 = vpack.c.b16 %v3262, %v3258
      %v4879 = vpack.c.b16 %v3267, %v3263
      %v4880 = vpack.c.b16 %v3268, %v3264
      %v4881 = vpack.c.b16 %v3269, %v3265
      %v4882 = vpack.c.b16 %v3270, %v3266
      %v4883 = vpack.c.b16 %v3275, %v3271
      %v4884 = vpack.c.b16 %v3276, %v3272
      %v4885 = vpack.c.b16 %v3277, %v3273
      %v4886 = vpack.c.b16 %v3278, %v3274
      %v4887 = vpack.c.b16 %v3283, %v3279
      %v4888 = vpack.c.b16 %v3284, %v3280
      %v4889 = vpack.c.b16 %v3285, %v3281
      %v4890 = vpack.c.b16 %v3286, %v3282
      %v4891 = vpack.c.b16 %v3291, %v3287
      %v4892 = vpack.c.b16 %v3292, %v3288
      %v4893 = vpack.c.b16 %v3293, %v3289
      %v4894 = vpack.c.b16 %v3294, %v3290
      %v4895 = vpack.c.b16 %v3299, %v3295
      %v4896 = vpack.c.b16 %v3300, %v3296
      %v4897 = vpack.c.b16 %v3301, %v3297
      %v4898 = vpack.c.b16 %v3302, %v3298
      %v4899 = vpack.c.b16 %v3307, %v3303
      %v4900 = vpack.c.b16 %v3308, %v3304
      %v4901 = vpack.c.b16 %v3309, %v3305
      %v4902 = vpack.c.b16 %v3310, %v3306
      %v4903 = vpack.c.b16 %v3315, %v3311
      %v4904 = vpack.c.b16 %v3316, %v3312
      %v4905 = vpack.c.b16 %v3317, %v3313
      %v4906 = vpack.c.b16 %v3318, %v3314
      %v4907 = vpack.c.b16 %v3323, %v3319
      %v4908 = vpack.c.b16 %v3324, %v3320
      %v4909 = vpack.c.b16 %v3325, %v3321
      %v4910 = vpack.c.b16 %v3326, %v3322
      %v4911 = vpack.c.b16 %v3331, %v3327
      %v4912 = vpack.c.b16 %v3332, %v3328
      %v4913 = vpack.c.b16 %v3333, %v3329
      %v4914 = vpack.c.b16 %v3334, %v3330
      %v4915 = vpack.c.b16 %v3339, %v3335
      %v4916 = vpack.c.b16 %v3340, %v3336
      %v4917 = vpack.c.b16 %v3341, %v3337
      %v4918 = vpack.c.b16 %v3342, %v3338
      %v4919 = vpack.c.b16 %v3347, %v3343
      %v4920 = vpack.c.b16 %v3348, %v3344
      %v4921 = vpack.c.b16 %v3349, %v3345
      %v4922 = vpack.c.b16 %v3350, %v3346
      %v4923 = vpack.c.b16 %v3355, %v3351
      %v4924 = vpack.c.b16 %v3356, %v3352
      %v4925 = vpack.c.b16 %v3357, %v3353
      %v4926 = vpack.c.b16 %v3358, %v3354
      %v4927 = vpack.c.b16 %v3363, %v3359
      %v4928 = vpack.c.b16 %v3364, %v3360
      %v4929 = vpack.c.b16 %v3365, %v3361
      %v4930 = vpack.c.b16 %v3366, %v3362
      %v4931 = vpack.c.b16 %v3371, %v3367
      %v4932 = vpack.c.b16 %v3372, %v3368
      %v4933 = vpack.c.b16 %v3373, %v3369
      %v4934 = vpack.c.b16 %v3374, %v3370
      %v4935 = vpack.c.b16 %v3379, %v3375
      %v4936 = vpack.c.b16 %v3380, %v3376
      %v4937 = vpack.c.b16 %v3381, %v3377
      %v4938 = vpack.c.b16 %v3382, %v3378
      %v4939 = vpack.c.b16 %v3387, %v3383
      %v4940 = vpack.c.b16 %v3388, %v3384
      %v4941 = vpack.c.b16 %v3389, %v3385
      %v4942 = vpack.c.b16 %v3390, %v3386
      %v4943 = vpack.c.b16 %v3395, %v3391
      %v4944 = vpack.c.b16 %v3396, %v3392
      %v4945 = vpack.c.b16 %v3397, %v3393
      %v4946 = vpack.c.b16 %v3398, %v3394
      %v4947 = vpack.c.b16 %v3403, %v3399
      %v4948 = vpack.c.b16 %v3404, %v3400
      %v4949 = vpack.c.b16 %v3405, %v3401
      %v4950 = vpack.c.b16 %v3406, %v3402
      %v4951 = vpack.c.b16 %v3411, %v3407
      %v4952 = vpack.c.b16 %v3412, %v3408
      %v4953 = vpack.c.b16 %v3413, %v3409
      %v4954 = vpack.c.b16 %v3414, %v3410
      %v4955 = vpack.c.b16 %v3419, %v3415
      %v4956 = vpack.c.b16 %v3420, %v3416
      %v4957 = vpack.c.b16 %v3421, %v3417
      %v4958 = vpack.c.b16 %v3422, %v3418
      %v4959 = vpack.c.b16 %v3427, %v3423
      %v4960 = vpack.c.b16 %v3428, %v3424
      %v4961 = vpack.c.b16 %v3429, %v3425
      %v4962 = vpack.c.b16 %v3430, %v3426
      %v4963 = vpack.c.b16 %v3435, %v3431
      %v4964 = vpack.c.b16 %v3436, %v3432
      %v4965 = vpack.c.b16 %v3437, %v3433
      %v4966 = vpack.c.b16 %v3438, %v3434
      %v4967 = vpack.c.b16 %v3443, %v3439
      %v4968 = vpack.c.b16 %v3444, %v3440
      %v4969 = vpack.c.b16 %v3445, %v3441
      %v4970 = vpack.c.b16 %v3446, %v3442
      %v4971 = vpack.c.b16 %v3451, %v3447
      %v4972 = vpack.c.b16 %v3452, %v3448
      %v4973 = vpack.c.b16 %v3453, %v3449
      %v4974 = vpack.c.b16 %v3454, %v3450
      %v4975 = vpack.c.b16 %v3459, %v3455
      %v4976 = vpack.c.b16 %v3460, %v3456
      %v4977 = vpack.c.b16 %v3461, %v3457
      %v4978 = vpack.c.b16 %v3462, %v3458
      %v4979 = vpack.c.b16 %v3467, %v3463
      %v4980 = vpack.c.b16 %v3468, %v3464
      %v4981 = vpack.c.b16 %v3469, %v3465
      %v4982 = vpack.c.b16 %v3470, %v3466
      %v4983 = vpack.c.b16 %v3475, %v3471
      %v4984 = vpack.c.b16 %v3476, %v3472
      %v4985 = vpack.c.b16 %v3477, %v3473
      %v4986 = vpack.c.b16 %v3478, %v3474
      %v4987 = vpack.c.b16 %v3483, %v3479
      %v4988 = vpack.c.b16 %v3484, %v3480
      %v4989 = vpack.c.b16 %v3485, %v3481
      %v4990 = vpack.c.b16 %v3486, %v3482
      %v4991 = vpack.c.b16 %v3491, %v3487
      %v4992 = vpack.c.b16 %v3492, %v3488
      %v4993 = vpack.c.b16 %v3493, %v3489
      %v4994 = vpack.c.b16 %v3494, %v3490
      %v4995 = vpack.c.b16 %v3499, %v3495
      %v4996 = vpack.c.b16 %v3500, %v3496
      %v4997 = vpack.c.b16 %v3501, %v3497
      %v4998 = vpack.c.b16 %v3502, %v3498
      %v4999 = vpack.c.b16 %v3507, %v3503
      %v5000 = vpack.c.b16 %v3508, %v3504
      %v5001 = vpack.c.b16 %v3509, %v3505
      %v5002 = vpack.c.b16 %v3510, %v3506
      %v5003 = vpack.c.b16 %v3515, %v3511
      %v5004 = vpack.c.b16 %v3516, %v3512
      %v5005 = vpack.c.b16 %v3517, %v3513
      %v5006 = vpack.c.b16 %v3518, %v3514
      %v5007 = vpack.c.b16 %v3523, %v3519
      %v5008 = vpack.c.b16 %v3524, %v3520
      %v5009 = vpack.c.b16 %v3525, %v3521
      %v5010 = vpack.c.b16 %v3526, %v3522
      %v5011 = vpack.c.b16 %v3531, %v3527
      %v5012 = vpack.c.b16 %v3532, %v3528
      %v5013 = vpack.c.b16 %v3533, %v3529
      %v5014 = vpack.c.b16 %v3534, %v3530
      %v5015 = vpack.c.b16 %v3539, %v3535
      %v5016 = vpack.c.b16 %v3540, %v3536
      %v5017 = vpack.c.b16 %v3541, %v3537
      %v5018 = vpack.c.b16 %v3542, %v3538
      %v5019 = vpack.c.b16 %v3547, %v3543
      %v5020 = vpack.c.b16 %v3548, %v3544
      %v5021 = vpack.c.b16 %v3549, %v3545
      %v5022 = vpack.c.b16 %v3550, %v3546
      %v5023 = vpack.c.b16 %v3555, %v3551
      %v5024 = vpack.c.b16 %v3556, %v3552
      %v5025 = vpack.c.b16 %v3557, %v3553
      %v5026 = vpack.c.b16 %v3558, %v3554
      %v5027 = vpack.c.b16 %v3563, %v3559
      %v5028 = vpack.c.b16 %v3564, %v3560
      %v5029 = vpack.c.b16 %v3565, %v3561
      %v5030 = vpack.c.b16 %v3566, %v3562
      %v5031 = vpack.c.b16 %v3571, %v3567
      %v5032 = vpack.c.b16 %v3572, %v3568
      %v5033 = vpack.c.b16 %v3573, %v3569
      %v5034 = vpack.c.b16 %v3574, %v3570
      %v5035 = vpack.c.b16 %v3579, %v3575
      %v5036 = vpack.c.b16 %v3580, %v3576
      %v5037 = vpack.c.b16 %v3581, %v3577
      %v5038 = vpack.c.b16 %v3582, %v3578
      %v5039 = vpack.c.b16 %v3587, %v3583
      %v5040 = vpack.c.b16 %v3588, %v3584
      %v5041 = vpack.c.b16 %v3589, %v3585
      %v5042 = vpack.c.b16 %v3590, %v3586
      %v5043 = vpack.c.b16 %v3595, %v3591
      %v5044 = vpack.c.b16 %v3596, %v3592
      %v5045 = vpack.c.b16 %v3597, %v3593
      %v5046 = vpack.c.b16 %v3598, %v3594
      %v5047 = vpack.c.b16 %v3603, %v3599
      %v5048 = vpack.c.b16 %v3604, %v3600
      %v5049 = vpack.c.b16 %v3605, %v3601
      %v5050 = vpack.c.b16 %v3606, %v3602
      %v5051 = vpack.c.b16 %v3611, %v3607
      %v5052 = vpack.c.b16 %v3612, %v3608
      %v5053 = vpack.c.b16 %v3613, %v3609
      %v5054 = vpack.c.b16 %v3614, %v3610
      %v5055 = vpack.c.b16 %v3619, %v3615
      %v5056 = vpack.c.b16 %v3620, %v3616
      %v5057 = vpack.c.b16 %v3621, %v3617
      %v5058 = vpack.c.b16 %v3622, %v3618
      %v5059 = vpack.c.b16 %v3627, %v3623
      %v5060 = vpack.c.b16 %v3628, %v3624
      %v5061 = vpack.c.b16 %v3629, %v3625
      %v5062 = vpack.c.b16 %v3630, %v3626
      %v5063 = vpack.c.b16 %v3635, %v3631
      %v5064 = vpack.c.b16 %v3636, %v3632
      %v5065 = vpack.c.b16 %v3637, %v3633
      %v5066 = vpack.c.b16 %v3638, %v3634
      %v5067 = vpack.c.b16 %v3643, %v3639
      %v5068 = vpack.c.b16 %v3644, %v3640
      %v5069 = vpack.c.b16 %v3645, %v3641
      %v5070 = vpack.c.b16 %v3646, %v3642
      %v5071 = vpack.c.b16 %v3651, %v3647
      %v5072 = vpack.c.b16 %v3652, %v3648
      %v5073 = vpack.c.b16 %v3653, %v3649
      %v5074 = vpack.c.b16 %v3654, %v3650
      %v5075 = vpack.c.b16 %v3659, %v3655
      %v5076 = vpack.c.b16 %v3660, %v3656
      %v5077 = vpack.c.b16 %v3661, %v3657
      %v5078 = vpack.c.b16 %v3662, %v3658
      %v5079 = vpack.c.b16 %v3667, %v3663
      %v5080 = vpack.c.b16 %v3668, %v3664
      %v5081 = vpack.c.b16 %v3669, %v3665
      %v5082 = vpack.c.b16 %v3670, %v3666
      %v5083 = vpack.c.b16 %v3675, %v3671
      %v5084 = vpack.c.b16 %v3676, %v3672
      %v5085 = vpack.c.b16 %v3677, %v3673
      %v5086 = vpack.c.b16 %v3678, %v3674
      %v5087 = vpack.c.b16 %v3683, %v3679
      %v5088 = vpack.c.b16 %v3684, %v3680
      %v5089 = vpack.c.b16 %v3685, %v3681
      %v5090 = vpack.c.b16 %v3686, %v3682
      %v5091 = vpack.c.b16 %v3691, %v3687
      %v5092 = vpack.c.b16 %v3692, %v3688
      %v5093 = vpack.c.b16 %v3693, %v3689
      %v5094 = vpack.c.b16 %v3694, %v3690
      %v5095 = vpack.c.b16 %v3699, %v3695
      %v5096 = vpack.c.b16 %v3700, %v3696
      %v5097 = vpack.c.b16 %v3701, %v3697
      %v5098 = vpack.c.b16 %v3702, %v3698
      %v5099 = vpack.c.b16 %v3707, %v3703
      %v5100 = vpack.c.b16 %v3708, %v3704
      %v5101 = vpack.c.b16 %v3709, %v3705
      %v5102 = vpack.c.b16 %v3710, %v3706
      %v5103 = vpack.c.b16 %v3715, %v3711
      %v5104 = vpack.c.b16 %v3716, %v3712
      %v5105 = vpack.c.b16 %v3717, %v3713
      %v5106 = vpack.c.b16 %v3718, %v3714
      %v5107 = vpack.c.b16 %v3723, %v3719
      %v5108 = vpack.c.b16 %v3724, %v3720
      %v5109 = vpack.c.b16 %v3725, %v3721
      %v5110 = vpack.c.b16 %v3726, %v3722
      %v5111 = vpack.c.b16 %v3731, %v3727
      %v5112 = vpack.c.b16 %v3732, %v3728
      %v5113 = vpack.c.b16 %v3733, %v3729
      %v5114 = vpack.c.b16 %v3734, %v3730
      %v5115 = vpack.c.b16 %v3739, %v3735
      %v5116 = vpack.c.b16 %v3740, %v3736
      %v5117 = vpack.c.b16 %v3741, %v3737
      %v5118 = vpack.c.b16 %v3742, %v3738
      %v5119 = vpack.c.b16 %v3747, %v3743
      %v5120 = vpack.c.b16 %v3748, %v3744
      %v5121 = vpack.c.b16 %v3749, %v3745
      %v5122 = vpack.c.b16 %v3750, %v3746
      %v5123 = vpack.c.b16 %v3755, %v3751
      %v5124 = vpack.c.b16 %v3756, %v3752
      %v5125 = vpack.c.b16 %v3757, %v3753
      %v5126 = vpack.c.b16 %v3758, %v3754
      %v5127 = vpack.c.b16 %v3763, %v3759
      %v5128 = vpack.c.b16 %v3764, %v3760
      %v5129 = vpack.c.b16 %v3765, %v3761
      %v5130 = vpack.c.b16 %v3766, %v3762
      %v5131 = vpack.c.b16 %v3771, %v3767
      %v5132 = vpack.c.b16 %v3772, %v3768
      %v5133 = vpack.c.b16 %v3773, %v3769
      %v5134 = vpack.c.b16 %v3774, %v3770
      %v5135 = vpack.c.b16 %v3779, %v3775
      %v5136 = vpack.c.b16 %v3780, %v3776
      %v5137 = vpack.c.b16 %v3781, %v3777
      %v5138 = vpack.c.b16 %v3782, %v3778
      %v5139 = vpack.c.b16 %v3787, %v3783
      %v5140 = vpack.c.b16 %v3788, %v3784
      %v5141 = vpack.c.b16 %v3789, %v3785
      %v5142 = vpack.c.b16 %v3790, %v3786
      %v5143 = vpack.c.b16 %v3795, %v3791
      %v5144 = vpack.c.b16 %v3796, %v3792
      %v5145 = vpack.c.b16 %v3797, %v3793
      %v5146 = vpack.c.b16 %v3798, %v3794
      %v5147 = vpack.c.b16 %v3803, %v3799
      %v5148 = vpack.c.b16 %v3804, %v3800
      %v5149 = vpack.c.b16 %v3805, %v3801
      %v5150 = vpack.c.b16 %v3806, %v3802
      %v5151 = vpack.c.b16 %v3811, %v3807
      %v5152 = vpack.c.b16 %v3812, %v3808
      %v5153 = vpack.c.b16 %v3813, %v3809
      %v5154 = vpack.c.b16 %v3814, %v3810
      %v5155 = vpack.c.b16 %v3819, %v3815
      %v5156 = vpack.c.b16 %v3820, %v3816
      %v5157 = vpack.c.b16 %v3821, %v3817
      %v5158 = vpack.c.b16 %v3822, %v3818
      %v5159 = vpack.c.b16 %v3827, %v3823
      %v5160 = vpack.c.b16 %v3828, %v3824
      %v5161 = vpack.c.b16 %v3829, %v3825
      %v5162 = vpack.c.b16 %v3830, %v3826
      %v5163 = vpack.c.b16 %v3835, %v3831
      %v5164 = vpack.c.b16 %v3836, %v3832
      %v5165 = vpack.c.b16 %v3837, %v3833
      %v5166 = vpack.c.b16 %v3838, %v3834
      %v5167 = vpack.c.b16 %v3843, %v3839
      %v5168 = vpack.c.b16 %v3844, %v3840
      %v5169 = vpack.c.b16 %v3845, %v3841
      %v5170 = vpack.c.b16 %v3846, %v3842
      %v5171 = vpack.c.b16 %v3851, %v3847
      %v5172 = vpack.c.b16 %v3852, %v3848
      %v5173 = vpack.c.b16 %v3853, %v3849
      %v5174 = vpack.c.b16 %v3854, %v3850
      %v5175 = vpack.c.b16 %v3859, %v3855
      %v5176 = vpack.c.b16 %v3860, %v3856
      %v5177 = vpack.c.b16 %v3861, %v3857
      %v5178 = vpack.c.b16 %v3862, %v3858
      %v5179 = vpack.c.b16 %v3867, %v3863
      %v5180 = vpack.c.b16 %v3868, %v3864
      %v5181 = vpack.c.b16 %v3869, %v3865
      %v5182 = vpack.c.b16 %v3870, %v3866
      %v5183 = vpack.c.b16 %v3875, %v3871
      %v5184 = vpack.c.b16 %v3876, %v3872
      %v5185 = vpack.c.b16 %v3877, %v3873
      %v5186 = vpack.c.b16 %v3878, %v3874
      %v5187 = vpack.c.b16 %v3883, %v3879
      %v5188 = vpack.c.b16 %v3884, %v3880
      %v5189 = vpack.c.b16 %v3885, %v3881
      %v5190 = vpack.c.b16 %v3886, %v3882
      %v5191 = vpack.c.b16 %v3891, %v3887
      %v5192 = vpack.c.b16 %v3892, %v3888
      %v5193 = vpack.c.b16 %v3893, %v3889
      %v5194 = vpack.c.b16 %v3894, %v3890
      %v5195 = vpack.c.b16 %v3899, %v3895
      %v5196 = vpack.c.b16 %v3900, %v3896
      %v5197 = vpack.c.b16 %v3901, %v3897
      %v5198 = vpack.c.b16 %v3902, %v3898
      %v5199 = vpack.c.b16 %v3907, %v3903
      %v5200 = vpack.c.b16 %v3908, %v3904
      %v5201 = vpack.c.b16 %v3909, %v3905
      %v5202 = vpack.c.b16 %v3910, %v3906
      %v5203 = vpack.c.b16 %v3915, %v3911
      %v5204 = vpack.c.b16 %v3916, %v3912
      %v5205 = vpack.c.b16 %v3917, %v3913
      %v5206 = vpack.c.b16 %v3918, %v3914
      %v5207 = vpack.c.b16 %v3923, %v3919
      %v5208 = vpack.c.b16 %v3924, %v3920
      %v5209 = vpack.c.b16 %v3925, %v3921
      %v5210 = vpack.c.b16 %v3926, %v3922
      %v5211 = vpack.c.b16 %v3931, %v3927
      %v5212 = vpack.c.b16 %v3932, %v3928
      %v5213 = vpack.c.b16 %v3933, %v3929
      %v5214 = vpack.c.b16 %v3934, %v3930
      %v5215 = vpack.c.b16 %v3939, %v3935
      %v5216 = vpack.c.b16 %v3940, %v3936
      %v5217 = vpack.c.b16 %v3941, %v3937
      %v5218 = vpack.c.b16 %v3942, %v3938
      %v5219 = vpack.c.b16 %v3947, %v3943
      %v5220 = vpack.c.b16 %v3948, %v3944
      %v5221 = vpack.c.b16 %v3949, %v3945
      %v5222 = vpack.c.b16 %v3950, %v3946
      %v5223 = vpack.c.b16 %v3955, %v3951
      %v5224 = vpack.c.b16 %v3956, %v3952
      %v5225 = vpack.c.b16 %v3957, %v3953
      %v5226 = vpack.c.b16 %v3958, %v3954
      %v5227 = vpack.c.b16 %v3963, %v3959
      %v5228 = vpack.c.b16 %v3964, %v3960
      %v5229 = vpack.c.b16 %v3965, %v3961
      %v5230 = vpack.c.b16 %v3966, %v3962
      %v5231 = vpack.c.b16 %v3971, %v3967
      %v5232 = vpack.c.b16 %v3972, %v3968
      %v5233 = vpack.c.b16 %v3973, %v3969
      %v5234 = vpack.c.b16 %v3974, %v3970
      %v5235 = vpack.c.b16 %v3979, %v3975
      %v5236 = vpack.c.b16 %v3980, %v3976
      %v5237 = vpack.c.b16 %v3981, %v3977
      %v5238 = vpack.c.b16 %v3982, %v3978
      %v5239 = vpack.c.b16 %v3987, %v3983
      %v5240 = vpack.c.b16 %v3988, %v3984
      %v5241 = vpack.c.b16 %v3989, %v3985
      %v5242 = vpack.c.b16 %v3990, %v3986
      %v5243 = vpack.c.b16 %v3995, %v3991
      %v5244 = vpack.c.b16 %v3996, %v3992
      %v5245 = vpack.c.b16 %v3997, %v3993
      %v5246 = vpack.c.b16 %v3998, %v3994
      %v5247 = vpack.c.b16 %v4003, %v3999
      %v5248 = vpack.c.b16 %v4004, %v4000
      %v5249 = vpack.c.b16 %v4005, %v4001
      %v5250 = vpack.c.b16 %v4006, %v4002
      %v5251 = vpack.c.b16 %v4011, %v4007
      %v5252 = vpack.c.b16 %v4012, %v4008
      %v5253 = vpack.c.b16 %v4013, %v4009
      %v5254 = vpack.c.b16 %v4014, %v4010
      %v5255 = vpack.c.b16 %v4019, %v4015
      %v5256 = vpack.c.b16 %v4020, %v4016
      %v5257 = vpack.c.b16 %v4021, %v4017
      %v5258 = vpack.c.b16 %v4022, %v4018
      %v5259 = vpack.c.b16 %v4027, %v4023
      %v5260 = vpack.c.b16 %v4028, %v4024
      %v5261 = vpack.c.b16 %v4029, %v4025
      %v5262 = vpack.c.b16 %v4030, %v4026
      %v5263 = vpack.c.b16 %v4035, %v4031
      %v5264 = vpack.c.b16 %v4036, %v4032
      %v5265 = vpack.c.b16 %v4037, %v4033
      %v5266 = vpack.c.b16 %v4038, %v4034
      %v5267 = vpack.c.b16 %v4043, %v4039
      %v5268 = vpack.c.b16 %v4044, %v4040
      %v5269 = vpack.c.b16 %v4045, %v4041
      %v5270 = vpack.c.b16 %v4046, %v4042
      %v5271 = vpack.c.b16 %v4051, %v4047
      %v5272 = vpack.c.b16 %v4052, %v4048
      %v5273 = vpack.c.b16 %v4053, %v4049
      %v5274 = vpack.c.b16 %v4054, %v4050
      %v5275 = vpack.c.b16 %v4059, %v4055
      %v5276 = vpack.c.b16 %v4060, %v4056
      %v5277 = vpack.c.b16 %v4061, %v4057
      %v5278 = vpack.c.b16 %v4062, %v4058
      %v5279 = vpack.c.b16 %v4067, %v4063
      %v5280 = vpack.c.b16 %v4068, %v4064
      %v5281 = vpack.c.b16 %v4069, %v4065
      %v5282 = vpack.c.b16 %v4070, %v4066
      %v5283 = vpack.c.b16 %v4075, %v4071
      %v5284 = vpack.c.b16 %v4076, %v4072
      %v5285 = vpack.c.b16 %v4077, %v4073
      %v5286 = vpack.c.b16 %v4078, %v4074
      %v5287 = vpack.c.b16 %v4083, %v4079
      %v5288 = vpack.c.b16 %v4084, %v4080
      %v5289 = vpack.c.b16 %v4085, %v4081
      %v5290 = vpack.c.b16 %v4086, %v4082
      %v5291 = vpack.c.b16 %v4091, %v4087
      %v5292 = vpack.c.b16 %v4092, %v4088
      %v5293 = vpack.c.b16 %v4093, %v4089
      %v5294 = vpack.c.b16 %v4094, %v4090
      %v5295 = vpack.c.b16 %v4099, %v4095
      %v5296 = vpack.c.b16 %v4100, %v4096
      %v5297 = vpack.c.b16 %v4101, %v4097
      %v5298 = vpack.c.b16 %v4102, %v4098
      %v5299 = vpack.c.b16 %v4107, %v4103
      %v5300 = vpack.c.b16 %v4108, %v4104
      %v5301 = vpack.c.b16 %v4109, %v4105
      %v5302 = vpack.c.b16 %v4110, %v4106
      %v5303 = vpack.c.b16 %v4115, %v4111
      %v5304 = vpack.c.b16 %v4116, %v4112
      %v5305 = vpack.c.b16 %v4117, %v4113
      %v5306 = vpack.c.b16 %v4118, %v4114
      %v5307 = vpack.c.b16 %v4123, %v4119
      %v5308 = vpack.c.b16 %v4124, %v4120
      %v5309 = vpack.c.b16 %v4125, %v4121
      %v5310 = vpack.c.b16 %v4126, %v4122
      %v5311 = vpack.c.b16 %v4131, %v4127
      %v5312 = vpack.c.b16 %v4132, %v4128
      %v5313 = vpack.c.b16 %v4133, %v4129
      %v5314 = vpack.c.b16 %v4134, %v4130
      %v5315 = vpack.c.b16 %v4139, %v4135
      %v5316 = vpack.c.b16 %v4140, %v4136
      %v5317 = vpack.c.b16 %v4141, %v4137
      %v5318 = vpack.c.b16 %v4142, %v4138
      %v5319 = vpack.c.b16 %v4147, %v4143
      %v5320 = vpack.c.b16 %v4148, %v4144
      %v5321 = vpack.c.b16 %v4149, %v4145
      %v5322 = vpack.c.b16 %v4150, %v4146
      %v5323 = vpack.c.b16 %v4155, %v4151
      %v5324 = vpack.c.b16 %v4156, %v4152
      %v5325 = vpack.c.b16 %v4157, %v4153
      %v5326 = vpack.c.b16 %v4158, %v4154
      %v5327 = vpack.c.b16 %v4163, %v4159
      %v5328 = vpack.c.b16 %v4164, %v4160
      %v5329 = vpack.c.b16 %v4165, %v4161
      %v5330 = vpack.c.b16 %v4166, %v4162
      %v5331 = vpack.c.b16 %v4171, %v4167
      %v5332 = vpack.c.b16 %v4172, %v4168
      %v5333 = vpack.c.b16 %v4173, %v4169
      %v5334 = vpack.c.b16 %v4174, %v4170
      %v5335 = vpack.c.b16 %v4179, %v4175
      %v5336 = vpack.c.b16 %v4180, %v4176
      %v5337 = vpack.c.b16 %v4181, %v4177
      %v5338 = vpack.c.b16 %v4182, %v4178
      %v5339 = vpack.c.b16 %v4187, %v4183
      %v5340 = vpack.c.b16 %v4188, %v4184
      %v5341 = vpack.c.b16 %v4189, %v4185
      %v5342 = vpack.c.b16 %v4190, %v4186
      %v5343 = vpack.c.b16 %v4195, %v4191
      %v5344 = vpack.c.b16 %v4196, %v4192
      %v5345 = vpack.c.b16 %v4197, %v4193
      %v5346 = vpack.c.b16 %v4198, %v4194
      %v5347 = vpack.c.b16 %v4203, %v4199
      %v5348 = vpack.c.b16 %v4204, %v4200
      %v5349 = vpack.c.b16 %v4205, %v4201
      %v5350 = vpack.c.b16 %v4206, %v4202
      %v5351 = vpack.c.b16 %v4211, %v4207
      %v5352 = vpack.c.b16 %v4212, %v4208
      %v5353 = vpack.c.b16 %v4213, %v4209
      %v5354 = vpack.c.b16 %v4214, %v4210
      %v5355 = vpack.c.b16 %v4219, %v4215
      %v5356 = vpack.c.b16 %v4220, %v4216
      %v5357 = vpack.c.b16 %v4221, %v4217
      %v5358 = vpack.c.b16 %v4222, %v4218
      %v5359 = vpack.c.b16 %v4227, %v4223
      %v5360 = vpack.c.b16 %v4228, %v4224
      %v5361 = vpack.c.b16 %v4229, %v4225
      %v5362 = vpack.c.b16 %v4230, %v4226
      %v5363 = vpack.c.b16 %v4235, %v4231
      %v5364 = vpack.c.b16 %v4236, %v4232
      %v5365 = vpack.c.b16 %v4237, %v4233
      %v5366 = vpack.c.b16 %v4238, %v4234
      %v5367 = vpack.c.b16 %v4243, %v4239
      %v5368 = vpack.c.b16 %v4244, %v4240
      %v5369 = vpack.c.b16 %v4245, %v4241
      %v5370 = vpack.c.b16 %v4246, %v4242
      %v5371 = vpack.c.b16 %v4251, %v4247
      %v5372 = vpack.c.b16 %v4252, %v4248
      %v5373 = vpack.c.b16 %v4253, %v4249
      %v5374 = vpack.c.b16 %v4254, %v4250
      %v5375 = vpack.c.b16 %v4259, %v4255
      %v5376 = vpack.c.b16 %v4260, %v4256
      %v5377 = vpack.c.b16 %v4261, %v4257
      %v5378 = vpack.c.b16 %v4262, %v4258
      %v5379 = vpack.c.b16 %v4267, %v4263
      %v5380 = vpack.c.b16 %v4268, %v4264
      %v5381 = vpack.c.b16 %v4269, %v4265
      %v5382 = vpack.c.b16 %v4270, %v4266
      %v5383 = vpack.c.b16 %v4275, %v4271
      %v5384 = vpack.c.b16 %v4276, %v4272
      %v5385 = vpack.c.b16 %v4277, %v4273
      %v5386 = vpack.c.b16 %v4278, %v4274
      %v5387 = vpack.c.b16 %v4283, %v4279
      %v5388 = vpack.c.b16 %v4284, %v4280
      %v5389 = vpack.c.b16 %v4285, %v4281
      %v5390 = vpack.c.b16 %v4286, %v4282
      %v5391 = vpack.c.b16 %v4291, %v4287
      %v5392 = vpack.c.b16 %v4292, %v4288
      %v5393 = vpack.c.b16 %v4293, %v4289
      %v5394 = vpack.c.b16 %v4294, %v4290
      %v5395 = vpack.c.b16 %v4299, %v4295
      %v5396 = vpack.c.b16 %v4300, %v4296
      %v5397 = vpack.c.b16 %v4301, %v4297
      %v5398 = vpack.c.b16 %v4302, %v4298
      %v5399 = vpack.c.b16 %v4307, %v4303
      %v5400 = vpack.c.b16 %v4308, %v4304
      %v5401 = vpack.c.b16 %v4309, %v4305
      %v5402 = vpack.c.b16 %v4310, %v4306
      %v5403 = vpack.c.b16 %v4315, %v4311
      %v5404 = vpack.c.b16 %v4316, %v4312
      %v5405 = vpack.c.b16 %v4317, %v4313
      %v5406 = vpack.c.b16 %v4318, %v4314
      %v5407 = vpack.c.b16 %v4323, %v4319
      %v5408 = vpack.c.b16 %v4324, %v4320
      %v5409 = vpack.c.b16 %v4325, %v4321
      %v5410 = vpack.c.b16 %v4326, %v4322
      %v5411 = vpack.c.b16 %v4331, %v4327
      %v5412 = vpack.c.b16 %v4332, %v4328
      %v5413 = vpack.c.b16 %v4333, %v4329
      %v5414 = vpack.c.b16 %v4334, %v4330
      %v5415 = vpack.c.b16 %v4339, %v4335
      %v5416 = vpack.c.b16 %v4340, %v4336
      %v5417 = vpack.c.b16 %v4341, %v4337
      %v5418 = vpack.c.b16 %v4342, %v4338
      %v5419 = vpack.c.b16 %v4347, %v4343
      %v5420 = vpack.c.b16 %v4348, %v4344
      %v5421 = vpack.c.b16 %v4349, %v4345
      %v5422 = vpack.c.b16 %v4350, %v4346
      %v5423 = vpack.c.b16 %v4355, %v4351
      %v5424 = vpack.c.b16 %v4356, %v4352
      %v5425 = vpack.c.b16 %v4357, %v4353
      %v5426 = vpack.c.b16 %v4358, %v4354
      %v5427 = vpack.c.b16 %v4363, %v4359
      %v5428 = vpack.c.b16 %v4364, %v4360
      %v5429 = vpack.c.b16 %v4365, %v4361
      %v5430 = vpack.c.b16 %v4366, %v4362
      %v5431 = vpack.c.b16 %v4371, %v4367
      %v5432 = vpack.c.b16 %v4372, %v4368
      %v5433 = vpack.c.b16 %v4373, %v4369
      %v5434 = vpack.c.b16 %v4374, %v4370
      %v5435 = vpack.c.b16 %v4379, %v4375
      %v5436 = vpack.c.b16 %v4380, %v4376
      %v5437 = vpack.c.b16 %v4381, %v4377
      %v5438 = vpack.c.b16 %v4382, %v4378
      %v5439 = vpack.c.b16 %v4387, %v4383
      %v5440 = vpack.c.b16 %v4388, %v4384
      %v5441 = vpack.c.b16 %v4389, %v4385
      %v5442 = vpack.c.b16 %v4390, %v4386
      %v5443 = vpack.c.b16 %v4395, %v4391
      %v5444 = vpack.c.b16 %v4396, %v4392
      %v5445 = vpack.c.b16 %v4397, %v4393
      %v5446 = vpack.c.b16 %v4398, %v4394
      %v5447 = vpack.c.b16 %v4403, %v4399
      %v5448 = vpack.c.b16 %v4404, %v4400
      %v5449 = vpack.c.b16 %v4405, %v4401
      %v5450 = vpack.c.b16 %v4406, %v4402
      %v5451 = vpack.c.b16 %v4411, %v4407
      %v5452 = vpack.c.b16 %v4412, %v4408
      %v5453 = vpack.c.b16 %v4413, %v4409
      %v5454 = vpack.c.b16 %v4414, %v4410
      %v5455 = vpack.c.b16 %v4419, %v4415
      %v5456 = vpack.c.b16 %v4420, %v4416
      %v5457 = vpack.c.b16 %v4421, %v4417
      %v5458 = vpack.c.b16 %v4422, %v4418
      %v5459 = vpack.c.b16 %v4427, %v4423
      %v5460 = vpack.c.b16 %v4428, %v4424
      %v5461 = vpack.c.b16 %v4429, %v4425
      %v5462 = vpack.c.b16 %v4430, %v4426
      %v5463 = vpack.c.b16 %v4435, %v4431
      %v5464 = vpack.c.b16 %v4436, %v4432
      %v5465 = vpack.c.b16 %v4437, %v4433
      %v5466 = vpack.c.b16 %v4438, %v4434
      %v5467 = vpack.c.b16 %v4443, %v4439
      %v5468 = vpack.c.b16 %v4444, %v4440
      %v5469 = vpack.c.b16 %v4445, %v4441
      %v5470 = vpack.c.b16 %v4446, %v4442
      %6495 = vmatprep.subr.bf16.mxu0 %v4476
      %6496 = vmatpush1.bf16.msra.mxu0 %v4475
      %6497 = vmatprep.subr.bf16.mxu0 %v4472
      %6498 = vmatpush1.bf16.msra.mxu0 %v4471
      %6499 = vmatprep.subr.bf16.mxu0 %v4468
      %6500 = vmatpush1.bf16.msra.mxu0 %v4467
      %6501 = vmatprep.subr.bf16.mxu0 %v4464
      %6502 = vmatpush1.bf16.msra.mxu0 %v4463
      %6503 = vmatprep.subr.bf16.mxu0 %v4460
      %6504 = vmatpush1.bf16.msra.mxu0 %v4459
      %6505 = vmatprep.subr.bf16.mxu0 %v4456
      %6506 = vmatpush1.bf16.msra.mxu0 %v4455
      %6507 = vmatprep.subr.bf16.mxu0 %v4452
      %6508 = vmatpush1.bf16.msra.mxu0 %v4451
      %6509 = vmatprep.subr.bf16.mxu0 %v4448
      %6510 = vmatpush1.bf16.msra.mxu0 %v4447
      %6511 = vmatprep.subr.bf16.mxu0 %v4508
      %6512 = vmatpush2.bf16.msra.mxu0 %v4507
      %6513 = vmatprep.subr.bf16.mxu0 %v4504
      %6514 = vmatpush2.bf16.msra.mxu0 %v4503
      %6515 = vmatprep.subr.bf16.mxu0 %v4500
      %6516 = vmatpush2.bf16.msra.mxu0 %v4499
      %6517 = vmatprep.subr.bf16.mxu0 %v4496
      %6518 = vmatpush2.bf16.msra.mxu0 %v4495
      %6519 = vmatprep.subr.bf16.mxu0 %v4492
      %6520 = vmatpush2.bf16.msra.mxu0 %v4491
      %6521 = vmatprep.subr.bf16.mxu0 %v4488
      %6522 = vmatpush2.bf16.msra.mxu0 %v4487
      %6523 = vmatprep.subr.bf16.mxu0 %v4484
      %6524 = vmatpush2.bf16.msra.mxu0 %v4483
      %6525 = vmatprep.subr.bf16.mxu0 %v4480
      %6526 = vmatpush2.bf16.msra.mxu0 %v4479
      %6527 = vmatprep.mubr.bf16.mxu0 %v1222
      %6528 = vmatmul.mubr.bf16.gmra.mxu0 %v1214
      %v6529 = vpop.f32.mrf.mxu0
      %v6530 = vadd.f32 0.0, %v6529
      %v6531 = vpop.f32.mrf.mxu0
      %v6532 = vadd.f32 0.0, %v6531
      %v6533 = vpop.f32.mrf.mxu0
      %v6534 = vpop.f32.mrf.mxu0
      %6535 = vdwg.mxu0
      %6536 = vmatprep.subr.bf16.mxu0 %v4540
      %6537 = vmatpush1.bf16.msra.mxu0 %v4539
      %6538 = vmatprep.subr.bf16.mxu0 %v4536
      %6539 = vmatpush1.bf16.msra.mxu0 %v4535
      %6540 = vmatprep.subr.bf16.mxu0 %v4532
      %6541 = vmatpush1.bf16.msra.mxu0 %v4531
      %6542 = vmatprep.subr.bf16.mxu0 %v4528
      %6543 = vmatpush1.bf16.msra.mxu0 %v4527
      %6544 = vmatprep.subr.bf16.mxu0 %v4524
      %6545 = vmatpush1.bf16.msra.mxu0 %v4523
      %6546 = vmatprep.subr.bf16.mxu0 %v4520
      %6547 = vmatpush1.bf16.msra.mxu0 %v4519
      %6548 = vmatprep.subr.bf16.mxu0 %v4516
      %6549 = vmatpush1.bf16.msra.mxu0 %v4515
      %6550 = vmatprep.subr.bf16.mxu0 %v4512
      %6551 = vmatpush1.bf16.msra.mxu0 %v4511
      %6552 = vmatprep.subr.bf16.mxu0 %v4572
      %6553 = vmatpush2.bf16.msra.mxu0 %v4571
      %6554 = vmatprep.subr.bf16.mxu0 %v4568
      %6555 = vmatpush2.bf16.msra.mxu0 %v4567
      %6556 = vmatprep.subr.bf16.mxu0 %v4564
      %6557 = vmatpush2.bf16.msra.mxu0 %v4563
      %6558 = vmatprep.subr.bf16.mxu0 %v4560
      %6559 = vmatpush2.bf16.msra.mxu0 %v4559
      %6560 = vmatprep.subr.bf16.mxu0 %v4556
      %6561 = vmatpush2.bf16.msra.mxu0 %v4555
      %6562 = vmatprep.subr.bf16.mxu0 %v4552
      %6563 = vmatpush2.bf16.msra.mxu0 %v4551
      %6564 = vmatprep.subr.bf16.mxu0 %v4548
      %6565 = vmatpush2.bf16.msra.mxu0 %v4547
      %6566 = vmatprep.subr.bf16.mxu0 %v4544
      %6567 = vmatpush2.bf16.msra.mxu0 %v4543
      %6568 = vmatprep.mubr.bf16.mxu0 %v1223
      %6569 = vmatmul.mubr.bf16.gmra.mxu0 %v1221
      %v6570 = vpop.f32.mrf.mxu0
      %v6571 = vadd.f32 %v6530, %v6570
      %v6572 = vpop.f32.mrf.mxu0
      %v6573 = vadd.f32 %v6532, %v6572
      %v6574 = vpop.f32.mrf.mxu0
      %v6575 = vpop.f32.mrf.mxu0
      %6576 = vdwg.mxu0
      %6577 = vmatprep.subr.bf16.mxu0 %v4604
      %6578 = vmatpush1.bf16.msra.mxu0 %v4603
      %6579 = vmatprep.subr.bf16.mxu0 %v4600
      %6580 = vmatpush1.bf16.msra.mxu0 %v4599
      %6581 = vmatprep.subr.bf16.mxu0 %v4596
      %6582 = vmatpush1.bf16.msra.mxu0 %v4595
      %6583 = vmatprep.subr.bf16.mxu0 %v4592
      %6584 = vmatpush1.bf16.msra.mxu0 %v4591
      %6585 = vmatprep.subr.bf16.mxu0 %v4588
      %6586 = vmatpush1.bf16.msra.mxu0 %v4587
      %6587 = vmatprep.subr.bf16.mxu0 %v4584
      %6588 = vmatpush1.bf16.msra.mxu0 %v4583
      %6589 = vmatprep.subr.bf16.mxu0 %v4580
      %6590 = vmatpush1.bf16.msra.mxu0 %v4579
      %6591 = vmatprep.subr.bf16.mxu0 %v4576
      %6592 = vmatpush1.bf16.msra.mxu0 %v4575
      %6593 = vmatprep.subr.bf16.mxu0 %v4636
      %6594 = vmatpush2.bf16.msra.mxu0 %v4635
      %6595 = vmatprep.subr.bf16.mxu0 %v4632
      %6596 = vmatpush2.bf16.msra.mxu0 %v4631
      %6597 = vmatprep.subr.bf16.mxu0 %v4628
      %6598 = vmatpush2.bf16.msra.mxu0 %v4627
      %6599 = vmatprep.subr.bf16.mxu0 %v4624
      %6600 = vmatpush2.bf16.msra.mxu0 %v4623
      %6601 = vmatprep.subr.bf16.mxu0 %v4620
      %6602 = vmatpush2.bf16.msra.mxu0 %v4619
      %6603 = vmatprep.subr.bf16.mxu0 %v4616
      %6604 = vmatpush2.bf16.msra.mxu0 %v4615
      %6605 = vmatprep.subr.bf16.mxu0 %v4612
      %6606 = vmatpush2.bf16.msra.mxu0 %v4611
      %6607 = vmatprep.subr.bf16.mxu0 %v4608
      %6608 = vmatpush2.bf16.msra.mxu0 %v4607
      %6609 = vmatprep.mubr.bf16.mxu0 %v1239
      %6610 = vmatmul.mubr.bf16.gmra.mxu0 %v1231
      %v6611 = vpop.f32.mrf.mxu0
      %v6612 = vadd.f32 %v6571, %v6611
      %v6613 = vpop.f32.mrf.mxu0
      %v6614 = vadd.f32 %v6573, %v6613
      %v6615 = vpop.f32.mrf.mxu0
      %v6616 = vpop.f32.mrf.mxu0
      %6617 = vdwg.mxu0
      %6618 = vmatprep.subr.bf16.mxu0 %v4668
      %6619 = vmatpush1.bf16.msra.mxu0 %v4667
      %6620 = vmatprep.subr.bf16.mxu0 %v4664
      %6621 = vmatpush1.bf16.msra.mxu0 %v4663
      %6622 = vmatprep.subr.bf16.mxu0 %v4660
      %6623 = vmatpush1.bf16.msra.mxu0 %v4659
      %6624 = vmatprep.subr.bf16.mxu0 %v4656
      %6625 = vmatpush1.bf16.msra.mxu0 %v4655
      %6626 = vmatprep.subr.bf16.mxu0 %v4652
      %6627 = vmatpush1.bf16.msra.mxu0 %v4651
      %6628 = vmatprep.subr.bf16.mxu0 %v4648
      %6629 = vmatpush1.bf16.msra.mxu0 %v4647
      %6630 = vmatprep.subr.bf16.mxu0 %v4644
      %6631 = vmatpush1.bf16.msra.mxu0 %v4643
      %6632 = vmatprep.subr.bf16.mxu0 %v4640
      %6633 = vmatpush1.bf16.msra.mxu0 %v4639
      %6634 = vmatprep.subr.bf16.mxu0 %v4700
      %6635 = vmatpush2.bf16.msra.mxu0 %v4699
      %6636 = vmatprep.subr.bf16.mxu0 %v4696
      %6637 = vmatpush2.bf16.msra.mxu0 %v4695
      %6638 = vmatprep.subr.bf16.mxu0 %v4692
      %6639 = vmatpush2.bf16.msra.mxu0 %v4691
      %6640 = vmatprep.subr.bf16.mxu0 %v4688
      %6641 = vmatpush2.bf16.msra.mxu0 %v4687
      %6642 = vmatprep.subr.bf16.mxu0 %v4684
      %6643 = vmatpush2.bf16.msra.mxu0 %v4683
      %6644 = vmatprep.subr.bf16.mxu0 %v4680
      %6645 = vmatpush2.bf16.msra.mxu0 %v4679
      %6646 = vmatprep.subr.bf16.mxu0 %v4676
      %6647 = vmatpush2.bf16.msra.mxu0 %v4675
      %6648 = vmatprep.subr.bf16.mxu0 %v4672
      %6649 = vmatpush2.bf16.msra.mxu0 %v4671
      %6650 = vmatprep.mubr.bf16.mxu0 %v1240
      %6651 = vmatmul.mubr.bf16.gmra.mxu0 %v1238
      %v6652 = vpop.f32.mrf.mxu0
      %v6653 = vadd.f32 %v6612, %v6652
      %v6654 = vpop.f32.mrf.mxu0
      %v6655 = vadd.f32 %v6614, %v6654
      %v6656 = vpop.f32.mrf.mxu0
      %v6657 = vpop.f32.mrf.mxu0
      %6658 = vdwg.mxu0
      %6659 = vmatprep.subr.bf16.mxu0 %v4732
      %6660 = vmatpush1.bf16.msra.mxu0 %v4731
      %6661 = vmatprep.subr.bf16.mxu0 %v4728
      %6662 = vmatpush1.bf16.msra.mxu0 %v4727
      %6663 = vmatprep.subr.bf16.mxu0 %v4724
      %6664 = vmatpush1.bf16.msra.mxu0 %v4723
      %6665 = vmatprep.subr.bf16.mxu0 %v4720
      %6666 = vmatpush1.bf16.msra.mxu0 %v4719
      %6667 = vmatprep.subr.bf16.mxu0 %v4716
      %6668 = vmatpush1.bf16.msra.mxu0 %v4715
      %6669 = vmatprep.subr.bf16.mxu0 %v4712
      %6670 = vmatpush1.bf16.msra.mxu0 %v4711
      %6671 = vmatprep.subr.bf16.mxu0 %v4708
      %6672 = vmatpush1.bf16.msra.mxu0 %v4707
      %6673 = vmatprep.subr.bf16.mxu0 %v4704
      %6674 = vmatpush1.bf16.msra.mxu0 %v4703
      %6675 = vmatprep.subr.bf16.mxu0 %v4764
      %6676 = vmatpush2.bf16.msra.mxu0 %v4763
      %6677 = vmatprep.subr.bf16.mxu0 %v4760
      %6678 = vmatpush2.bf16.msra.mxu0 %v4759
      %6679 = vmatprep.subr.bf16.mxu0 %v4756
      %6680 = vmatpush2.bf16.msra.mxu0 %v4755
      %6681 = vmatprep.subr.bf16.mxu0 %v4752
      %6682 = vmatpush2.bf16.msra.mxu0 %v4751
      %6683 = vmatprep.subr.bf16.mxu0 %v4748
      %6684 = vmatpush2.bf16.msra.mxu0 %v4747
      %6685 = vmatprep.subr.bf16.mxu0 %v4744
      %6686 = vmatpush2.bf16.msra.mxu0 %v4743
      %6687 = vmatprep.subr.bf16.mxu0 %v4740
      %6688 = vmatpush2.bf16.msra.mxu0 %v4739
      %6689 = vmatprep.subr.bf16.mxu0 %v4736
      %6690 = vmatpush2.bf16.msra.mxu0 %v4735
      %6691 = vmatprep.mubr.bf16.mxu0 %v1256
      %6692 = vmatmul.mubr.bf16.gmra.mxu0 %v1248
      %v6693 = vpop.f32.mrf.mxu0
      %v6694 = vadd.f32 %v6653, %v6693
      %v6695 = vpop.f32.mrf.mxu0
      %v6696 = vadd.f32 %v6655, %v6695
      %v6697 = vpop.f32.mrf.mxu0
      %v6698 = vpop.f32.mrf.mxu0
      %6699 = vdwg.mxu0
      %6700 = vmatprep.subr.bf16.mxu0 %v4796
      %6701 = vmatpush1.bf16.msra.mxu0 %v4795
      %6702 = vmatprep.subr.bf16.mxu0 %v4792
      %6703 = vmatpush1.bf16.msra.mxu0 %v4791
      %6704 = vmatprep.subr.bf16.mxu0 %v4788
      %6705 = vmatpush1.bf16.msra.mxu0 %v4787
      %6706 = vmatprep.subr.bf16.mxu0 %v4784
      %6707 = vmatpush1.bf16.msra.mxu0 %v4783
      %6708 = vmatprep.subr.bf16.mxu0 %v4780
      %6709 = vmatpush1.bf16.msra.mxu0 %v4779
      %6710 = vmatprep.subr.bf16.mxu0 %v4776
      %6711 = vmatpush1.bf16.msra.mxu0 %v4775
      %6712 = vmatprep.subr.bf16.mxu0 %v4772
      %6713 = vmatpush1.bf16.msra.mxu0 %v4771
      %6714 = vmatprep.subr.bf16.mxu0 %v4768
      %6715 = vmatpush1.bf16.msra.mxu0 %v4767
      %6716 = vmatprep.subr.bf16.mxu0 %v4828
      %6717 = vmatpush2.bf16.msra.mxu0 %v4827
      %6718 = vmatprep.subr.bf16.mxu0 %v4824
      %6719 = vmatpush2.bf16.msra.mxu0 %v4823
      %6720 = vmatprep.subr.bf16.mxu0 %v4820
      %6721 = vmatpush2.bf16.msra.mxu0 %v4819
      %6722 = vmatprep.subr.bf16.mxu0 %v4816
      %6723 = vmatpush2.bf16.msra.mxu0 %v4815
      %6724 = vmatprep.subr.bf16.mxu0 %v4812
      %6725 = vmatpush2.bf16.msra.mxu0 %v4811
      %6726 = vmatprep.subr.bf16.mxu0 %v4808
      %6727 = vmatpush2.bf16.msra.mxu0 %v4807
      %6728 = vmatprep.subr.bf16.mxu0 %v4804
      %6729 = vmatpush2.bf16.msra.mxu0 %v4803
      %6730 = vmatprep.subr.bf16.mxu0 %v4800
      %6731 = vmatpush2.bf16.msra.mxu0 %v4799
      %6732 = vmatprep.mubr.bf16.mxu0 %v1257
      %6733 = vmatmul.mubr.bf16.gmra.mxu0 %v1255
      %v6734 = vpop.f32.mrf.mxu0
      %v6735 = vadd.f32 %v6694, %v6734
      %v6736 = vpop.f32.mrf.mxu0
      %v6737 = vadd.f32 %v6696, %v6736
      %v6738 = vpop.f32.mrf.mxu0
      %v6739 = vpop.f32.mrf.mxu0
      %6740 = vdwg.mxu0
      %6741 = vmatprep.subr.bf16.mxu0 %v4860
      %6742 = vmatpush1.bf16.msra.mxu0 %v4859
      %6743 = vmatprep.subr.bf16.mxu0 %v4856
      %6744 = vmatpush1.bf16.msra.mxu0 %v4855
      %6745 = vmatprep.subr.bf16.mxu0 %v4852
      %6746 = vmatpush1.bf16.msra.mxu0 %v4851
      %6747 = vmatprep.subr.bf16.mxu0 %v4848
      %6748 = vmatpush1.bf16.msra.mxu0 %v4847
      %6749 = vmatprep.subr.bf16.mxu0 %v4844
      %6750 = vmatpush1.bf16.msra.mxu0 %v4843
      %6751 = vmatprep.subr.bf16.mxu0 %v4840
      %6752 = vmatpush1.bf16.msra.mxu0 %v4839
      %6753 = vmatprep.subr.bf16.mxu0 %v4836
      %6754 = vmatpush1.bf16.msra.mxu0 %v4835
      %6755 = vmatprep.subr.bf16.mxu0 %v4832
      %6756 = vmatpush1.bf16.msra.mxu0 %v4831
      %6757 = vmatprep.subr.bf16.mxu0 %v4892
      %6758 = vmatpush2.bf16.msra.mxu0 %v4891
      %6759 = vmatprep.subr.bf16.mxu0 %v4888
      %6760 = vmatpush2.bf16.msra.mxu0 %v4887
      %6761 = vmatprep.subr.bf16.mxu0 %v4884
      %6762 = vmatpush2.bf16.msra.mxu0 %v4883
      %6763 = vmatprep.subr.bf16.mxu0 %v4880
      %6764 = vmatpush2.bf16.msra.mxu0 %v4879
      %6765 = vmatprep.subr.bf16.mxu0 %v4876
      %6766 = vmatpush2.bf16.msra.mxu0 %v4875
      %6767 = vmatprep.subr.bf16.mxu0 %v4872
      %6768 = vmatpush2.bf16.msra.mxu0 %v4871
      %6769 = vmatprep.subr.bf16.mxu0 %v4868
      %6770 = vmatpush2.bf16.msra.mxu0 %v4867
      %6771 = vmatprep.subr.bf16.mxu0 %v4864
      %6772 = vmatpush2.bf16.msra.mxu0 %v4863
      %6773 = vmatprep.mubr.bf16.mxu0 %v1273
      %6774 = vmatmul.mubr.bf16.gmra.mxu0 %v1265
      %v6775 = vpop.f32.mrf.mxu0
      %v6776 = vadd.f32 %v6735, %v6775
      %v6777 = vpop.f32.mrf.mxu0
      %v6778 = vadd.f32 %v6737, %v6777
      %v6779 = vpop.f32.mrf.mxu0
      %v6780 = vpop.f32.mrf.mxu0
      %6781 = vdwg.mxu0
      %6782 = vmatprep.subr.bf16.mxu0 %v4924
      %6783 = vmatpush1.bf16.msra.mxu0 %v4923
      %6784 = vmatprep.subr.bf16.mxu0 %v4920
      %6785 = vmatpush1.bf16.msra.mxu0 %v4919
      %6786 = vmatprep.subr.bf16.mxu0 %v4916
      %6787 = vmatpush1.bf16.msra.mxu0 %v4915
      %6788 = vmatprep.subr.bf16.mxu0 %v4912
      %6789 = vmatpush1.bf16.msra.mxu0 %v4911
      %6790 = vmatprep.subr.bf16.mxu0 %v4908
      %6791 = vmatpush1.bf16.msra.mxu0 %v4907
      %6792 = vmatprep.subr.bf16.mxu0 %v4904
      %6793 = vmatpush1.bf16.msra.mxu0 %v4903
      %6794 = vmatprep.subr.bf16.mxu0 %v4900
      %6795 = vmatpush1.bf16.msra.mxu0 %v4899
      %6796 = vmatprep.subr.bf16.mxu0 %v4896
      %6797 = vmatpush1.bf16.msra.mxu0 %v4895
      %6798 = vmatprep.subr.bf16.mxu0 %v4956
      %6799 = vmatpush2.bf16.msra.mxu0 %v4955
      %6800 = vmatprep.subr.bf16.mxu0 %v4952
      %6801 = vmatpush2.bf16.msra.mxu0 %v4951
      %6802 = vmatprep.subr.bf16.mxu0 %v4948
      %6803 = vmatpush2.bf16.msra.mxu0 %v4947
      %6804 = vmatprep.subr.bf16.mxu0 %v4944
      %6805 = vmatpush2.bf16.msra.mxu0 %v4943
      %6806 = vmatprep.subr.bf16.mxu0 %v4940
      %6807 = vmatpush2.bf16.msra.mxu0 %v4939
      %6808 = vmatprep.subr.bf16.mxu0 %v4936
      %6809 = vmatpush2.bf16.msra.mxu0 %v4935
      %6810 = vmatprep.subr.bf16.mxu0 %v4932
      %6811 = vmatpush2.bf16.msra.mxu0 %v4931
      %6812 = vmatprep.subr.bf16.mxu0 %v4928
      %6813 = vmatpush2.bf16.msra.mxu0 %v4927
      %6814 = vmatprep.mubr.bf16.mxu0 %v1274
      %6815 = vmatmul.mubr.bf16.gmra.mxu0 %v1272
      %v6816 = vpop.f32.mrf.mxu0
      %v6817 = vadd.f32 %v6776, %v6816
      %v6818 = vpop.f32.mrf.mxu0
      %v6819 = vadd.f32 %v6778, %v6818
      %v6820 = vpop.f32.mrf.mxu0
      %v6821 = vpop.f32.mrf.mxu0
      %6822 = vdwg.mxu0
      %6823 = vmatprep.subr.bf16.mxu0 %v4988
      %6824 = vmatpush1.bf16.msra.mxu0 %v4987
      %6825 = vmatprep.subr.bf16.mxu0 %v4984
      %6826 = vmatpush1.bf16.msra.mxu0 %v4983
      %6827 = vmatprep.subr.bf16.mxu0 %v4980
      %6828 = vmatpush1.bf16.msra.mxu0 %v4979
      %6829 = vmatprep.subr.bf16.mxu0 %v4976
      %6830 = vmatpush1.bf16.msra.mxu0 %v4975
      %6831 = vmatprep.subr.bf16.mxu0 %v4972
      %6832 = vmatpush1.bf16.msra.mxu0 %v4971
      %6833 = vmatprep.subr.bf16.mxu0 %v4968
      %6834 = vmatpush1.bf16.msra.mxu0 %v4967
      %6835 = vmatprep.subr.bf16.mxu0 %v4964
      %6836 = vmatpush1.bf16.msra.mxu0 %v4963
      %6837 = vmatprep.subr.bf16.mxu0 %v4960
      %6838 = vmatpush1.bf16.msra.mxu0 %v4959
      %6839 = vmatprep.subr.bf16.mxu0 %v5020
      %6840 = vmatpush2.bf16.msra.mxu0 %v5019
      %6841 = vmatprep.subr.bf16.mxu0 %v5016
      %6842 = vmatpush2.bf16.msra.mxu0 %v5015
      %6843 = vmatprep.subr.bf16.mxu0 %v5012
      %6844 = vmatpush2.bf16.msra.mxu0 %v5011
      %6845 = vmatprep.subr.bf16.mxu0 %v5008
      %6846 = vmatpush2.bf16.msra.mxu0 %v5007
      %6847 = vmatprep.subr.bf16.mxu0 %v5004
      %6848 = vmatpush2.bf16.msra.mxu0 %v5003
      %6849 = vmatprep.subr.bf16.mxu0 %v5000
      %6850 = vmatpush2.bf16.msra.mxu0 %v4999
      %6851 = vmatprep.subr.bf16.mxu0 %v4996
      %6852 = vmatpush2.bf16.msra.mxu0 %v4995
      %6853 = vmatprep.subr.bf16.mxu0 %v4992
      %6854 = vmatpush2.bf16.msra.mxu0 %v4991
      %6855 = vmatprep.mubr.bf16.mxu0 %v1290
      %6856 = vmatmul.mubr.bf16.gmra.mxu0 %v1282
      %v6857 = vpop.f32.mrf.mxu0
      %v6858 = vadd.f32 %v6817, %v6857
      %v6859 = vpop.f32.mrf.mxu0
      %v6860 = vadd.f32 %v6819, %v6859
      %v6861 = vpop.f32.mrf.mxu0
      %v6862 = vpop.f32.mrf.mxu0
      %6863 = vdwg.mxu0
      %6864 = vmatprep.subr.bf16.mxu0 %v5052
      %6865 = vmatpush1.bf16.msra.mxu0 %v5051
      %6866 = vmatprep.subr.bf16.mxu0 %v5048
      %6867 = vmatpush1.bf16.msra.mxu0 %v5047
      %6868 = vmatprep.subr.bf16.mxu0 %v5044
      %6869 = vmatpush1.bf16.msra.mxu0 %v5043
      %6870 = vmatprep.subr.bf16.mxu0 %v5040
      %6871 = vmatpush1.bf16.msra.mxu0 %v5039
      %6872 = vmatprep.subr.bf16.mxu0 %v5036
      %6873 = vmatpush1.bf16.msra.mxu0 %v5035
      %6874 = vmatprep.subr.bf16.mxu0 %v5032
      %6875 = vmatpush1.bf16.msra.mxu0 %v5031
      %6876 = vmatprep.subr.bf16.mxu0 %v5028
      %6877 = vmatpush1.bf16.msra.mxu0 %v5027
      %6878 = vmatprep.subr.bf16.mxu0 %v5024
      %6879 = vmatpush1.bf16.msra.mxu0 %v5023
      %6880 = vmatprep.subr.bf16.mxu0 %v5084
      %6881 = vmatpush2.bf16.msra.mxu0 %v5083
      %6882 = vmatprep.subr.bf16.mxu0 %v5080
      %6883 = vmatpush2.bf16.msra.mxu0 %v5079
      %6884 = vmatprep.subr.bf16.mxu0 %v5076
      %6885 = vmatpush2.bf16.msra.mxu0 %v5075
      %6886 = vmatprep.subr.bf16.mxu0 %v5072
      %6887 = vmatpush2.bf16.msra.mxu0 %v5071
      %6888 = vmatprep.subr.bf16.mxu0 %v5068
      %6889 = vmatpush2.bf16.msra.mxu0 %v5067
      %6890 = vmatprep.subr.bf16.mxu0 %v5064
      %6891 = vmatpush2.bf16.msra.mxu0 %v5063
      %6892 = vmatprep.subr.bf16.mxu0 %v5060
      %6893 = vmatpush2.bf16.msra.mxu0 %v5059
      %6894 = vmatprep.subr.bf16.mxu0 %v5056
      %6895 = vmatpush2.bf16.msra.mxu0 %v5055
      %6896 = vmatprep.mubr.bf16.mxu0 %v1291
      %6897 = vmatmul.mubr.bf16.gmra.mxu0 %v1289
      %v6898 = vpop.f32.mrf.mxu0
      %v6899 = vadd.f32 %v6858, %v6898
      %v6900 = vpop.f32.mrf.mxu0
      %v6901 = vadd.f32 %v6860, %v6900
      %v6902 = vpop.f32.mrf.mxu0
      %v6903 = vpop.f32.mrf.mxu0
      %6904 = vdwg.mxu0
      %6905 = vmatprep.subr.bf16.mxu0 %v5116
      %6906 = vmatpush1.bf16.msra.mxu0 %v5115
      %6907 = vmatprep.subr.bf16.mxu0 %v5112
      %6908 = vmatpush1.bf16.msra.mxu0 %v5111
      %6909 = vmatprep.subr.bf16.mxu0 %v5108
      %6910 = vmatpush1.bf16.msra.mxu0 %v5107
      %6911 = vmatprep.subr.bf16.mxu0 %v5104
      %6912 = vmatpush1.bf16.msra.mxu0 %v5103
      %6913 = vmatprep.subr.bf16.mxu0 %v5100
      %6914 = vmatpush1.bf16.msra.mxu0 %v5099
      %6915 = vmatprep.subr.bf16.mxu0 %v5096
      %6916 = vmatpush1.bf16.msra.mxu0 %v5095
      %6917 = vmatprep.subr.bf16.mxu0 %v5092
      %6918 = vmatpush1.bf16.msra.mxu0 %v5091
      %6919 = vmatprep.subr.bf16.mxu0 %v5088
      %6920 = vmatpush1.bf16.msra.mxu0 %v5087
      %6921 = vmatprep.subr.bf16.mxu0 %v5148
      %6922 = vmatpush2.bf16.msra.mxu0 %v5147
      %6923 = vmatprep.subr.bf16.mxu0 %v5144
      %6924 = vmatpush2.bf16.msra.mxu0 %v5143
      %6925 = vmatprep.subr.bf16.mxu0 %v5140
      %6926 = vmatpush2.bf16.msra.mxu0 %v5139
      %6927 = vmatprep.subr.bf16.mxu0 %v5136
      %6928 = vmatpush2.bf16.msra.mxu0 %v5135
      %6929 = vmatprep.subr.bf16.mxu0 %v5132
      %6930 = vmatpush2.bf16.msra.mxu0 %v5131
      %6931 = vmatprep.subr.bf16.mxu0 %v5128
      %6932 = vmatpush2.bf16.msra.mxu0 %v5127
      %6933 = vmatprep.subr.bf16.mxu0 %v5124
      %6934 = vmatpush2.bf16.msra.mxu0 %v5123
      %6935 = vmatprep.subr.bf16.mxu0 %v5120
      %6936 = vmatpush2.bf16.msra.mxu0 %v5119
      %6937 = vmatprep.mubr.bf16.mxu0 %v1307
      %6938 = vmatmul.mubr.bf16.gmra.mxu0 %v1299
      %v6939 = vpop.f32.mrf.mxu0
      %v6940 = vadd.f32 %v6899, %v6939
      %v6941 = vpop.f32.mrf.mxu0
      %v6942 = vadd.f32 %v6901, %v6941
      %v6943 = vpop.f32.mrf.mxu0
      %v6944 = vpop.f32.mrf.mxu0
      %6945 = vdwg.mxu0
      %6946 = vmatprep.subr.bf16.mxu0 %v5180
      %6947 = vmatpush1.bf16.msra.mxu0 %v5179
      %6948 = vmatprep.subr.bf16.mxu0 %v5176
      %6949 = vmatpush1.bf16.msra.mxu0 %v5175
      %6950 = vmatprep.subr.bf16.mxu0 %v5172
      %6951 = vmatpush1.bf16.msra.mxu0 %v5171
      %6952 = vmatprep.subr.bf16.mxu0 %v5168
      %6953 = vmatpush1.bf16.msra.mxu0 %v5167
      %6954 = vmatprep.subr.bf16.mxu0 %v5164
      %6955 = vmatpush1.bf16.msra.mxu0 %v5163
      %6956 = vmatprep.subr.bf16.mxu0 %v5160
      %6957 = vmatpush1.bf16.msra.mxu0 %v5159
      %6958 = vmatprep.subr.bf16.mxu0 %v5156
      %6959 = vmatpush1.bf16.msra.mxu0 %v5155
      %6960 = vmatprep.subr.bf16.mxu0 %v5152
      %6961 = vmatpush1.bf16.msra.mxu0 %v5151
      %6962 = vmatprep.subr.bf16.mxu0 %v5212
      %6963 = vmatpush2.bf16.msra.mxu0 %v5211
      %6964 = vmatprep.subr.bf16.mxu0 %v5208
      %6965 = vmatpush2.bf16.msra.mxu0 %v5207
      %6966 = vmatprep.subr.bf16.mxu0 %v5204
      %6967 = vmatpush2.bf16.msra.mxu0 %v5203
      %6968 = vmatprep.subr.bf16.mxu0 %v5200
      %6969 = vmatpush2.bf16.msra.mxu0 %v5199
      %6970 = vmatprep.subr.bf16.mxu0 %v5196
      %6971 = vmatpush2.bf16.msra.mxu0 %v5195
      %6972 = vmatprep.subr.bf16.mxu0 %v5192
      %6973 = vmatpush2.bf16.msra.mxu0 %v5191
      %6974 = vmatprep.subr.bf16.mxu0 %v5188
      %6975 = vmatpush2.bf16.msra.mxu0 %v5187
      %6976 = vmatprep.subr.bf16.mxu0 %v5184
      %6977 = vmatpush2.bf16.msra.mxu0 %v5183
      %6978 = vmatprep.mubr.bf16.mxu0 %v1308
      %6979 = vmatmul.mubr.bf16.gmra.mxu0 %v1306
      %v6980 = vpop.f32.mrf.mxu0
      %v6981 = vadd.f32 %v6940, %v6980
      %v6982 = vpop.f32.mrf.mxu0
      %v6983 = vadd.f32 %v6942, %v6982
      %v6984 = vpop.f32.mrf.mxu0
      %v6985 = vpop.f32.mrf.mxu0
      %6986 = vdwg.mxu0
      %6987 = vmatprep.subr.bf16.mxu0 %v5244
      %6988 = vmatpush1.bf16.msra.mxu0 %v5243
      %6989 = vmatprep.subr.bf16.mxu0 %v5240
      %6990 = vmatpush1.bf16.msra.mxu0 %v5239
      %6991 = vmatprep.subr.bf16.mxu0 %v5236
      %6992 = vmatpush1.bf16.msra.mxu0 %v5235
      %6993 = vmatprep.subr.bf16.mxu0 %v5232
      %6994 = vmatpush1.bf16.msra.mxu0 %v5231
      %6995 = vmatprep.subr.bf16.mxu0 %v5228
      %6996 = vmatpush1.bf16.msra.mxu0 %v5227
      %6997 = vmatprep.subr.bf16.mxu0 %v5224
      %6998 = vmatpush1.bf16.msra.mxu0 %v5223
      %6999 = vmatprep.subr.bf16.mxu0 %v5220
      %7000 = vmatpush1.bf16.msra.mxu0 %v5219
      %7001 = vmatprep.subr.bf16.mxu0 %v5216
      %7002 = vmatpush1.bf16.msra.mxu0 %v5215
      %7003 = vmatprep.subr.bf16.mxu0 %v5276
      %7004 = vmatpush2.bf16.msra.mxu0 %v5275
      %7005 = vmatprep.subr.bf16.mxu0 %v5272
      %7006 = vmatpush2.bf16.msra.mxu0 %v5271
      %7007 = vmatprep.subr.bf16.mxu0 %v5268
      %7008 = vmatpush2.bf16.msra.mxu0 %v5267
      %7009 = vmatprep.subr.bf16.mxu0 %v5264
      %7010 = vmatpush2.bf16.msra.mxu0 %v5263
      %7011 = vmatprep.subr.bf16.mxu0 %v5260
      %7012 = vmatpush2.bf16.msra.mxu0 %v5259
      %7013 = vmatprep.subr.bf16.mxu0 %v5256
      %7014 = vmatpush2.bf16.msra.mxu0 %v5255
      %7015 = vmatprep.subr.bf16.mxu0 %v5252
      %7016 = vmatpush2.bf16.msra.mxu0 %v5251
      %7017 = vmatprep.subr.bf16.mxu0 %v5248
      %7018 = vmatpush2.bf16.msra.mxu0 %v5247
      %7019 = vmatprep.mubr.bf16.mxu0 %v1324
      %7020 = vmatmul.mubr.bf16.gmra.mxu0 %v1316
      %v7021 = vpop.f32.mrf.mxu0
      %v7022 = vadd.f32 %v6981, %v7021
      %v7023 = vpop.f32.mrf.mxu0
      %v7024 = vadd.f32 %v6983, %v7023
      %v7025 = vpop.f32.mrf.mxu0
      %v7026 = vpop.f32.mrf.mxu0
      %7027 = vdwg.mxu0
      %7028 = vmatprep.subr.bf16.mxu0 %v5308
      %7029 = vmatpush1.bf16.msra.mxu0 %v5307
      %7030 = vmatprep.subr.bf16.mxu0 %v5304
      %7031 = vmatpush1.bf16.msra.mxu0 %v5303
      %7032 = vmatprep.subr.bf16.mxu0 %v5300
      %7033 = vmatpush1.bf16.msra.mxu0 %v5299
      %7034 = vmatprep.subr.bf16.mxu0 %v5296
      %7035 = vmatpush1.bf16.msra.mxu0 %v5295
      %7036 = vmatprep.subr.bf16.mxu0 %v5292
      %7037 = vmatpush1.bf16.msra.mxu0 %v5291
      %7038 = vmatprep.subr.bf16.mxu0 %v5288
      %7039 = vmatpush1.bf16.msra.mxu0 %v5287
      %7040 = vmatprep.subr.bf16.mxu0 %v5284
      %7041 = vmatpush1.bf16.msra.mxu0 %v5283
      %7042 = vmatprep.subr.bf16.mxu0 %v5280
      %7043 = vmatpush1.bf16.msra.mxu0 %v5279
      %7044 = vmatprep.subr.bf16.mxu0 %v5340
      %7045 = vmatpush2.bf16.msra.mxu0 %v5339
      %7046 = vmatprep.subr.bf16.mxu0 %v5336
      %7047 = vmatpush2.bf16.msra.mxu0 %v5335
      %7048 = vmatprep.subr.bf16.mxu0 %v5332
      %7049 = vmatpush2.bf16.msra.mxu0 %v5331
      %7050 = vmatprep.subr.bf16.mxu0 %v5328
      %7051 = vmatpush2.bf16.msra.mxu0 %v5327
      %7052 = vmatprep.subr.bf16.mxu0 %v5324
      %7053 = vmatpush2.bf16.msra.mxu0 %v5323
      %7054 = vmatprep.subr.bf16.mxu0 %v5320
      %7055 = vmatpush2.bf16.msra.mxu0 %v5319
      %7056 = vmatprep.subr.bf16.mxu0 %v5316
      %7057 = vmatpush2.bf16.msra.mxu0 %v5315
      %7058 = vmatprep.subr.bf16.mxu0 %v5312
      %7059 = vmatpush2.bf16.msra.mxu0 %v5311
      %7060 = vmatprep.mubr.bf16.mxu0 %v1325
      %7061 = vmatmul.mubr.bf16.gmra.mxu0 %v1323
      %v7062 = vpop.f32.mrf.mxu0
      %v7063 = vadd.f32 %v7022, %v7062
      %v7064 = vpop.f32.mrf.mxu0
      %v7065 = vadd.f32 %v7024, %v7064
      %v7066 = vpop.f32.mrf.mxu0
      %v7067 = vpop.f32.mrf.mxu0
      %7068 = vdwg.mxu0
      %7069 = vmatprep.subr.bf16.mxu0 %v5372
      %7070 = vmatpush1.bf16.msra.mxu0 %v5371
      %7071 = vmatprep.subr.bf16.mxu0 %v5368
      %7072 = vmatpush1.bf16.msra.mxu0 %v5367
      %7073 = vmatprep.subr.bf16.mxu0 %v5364
      %7074 = vmatpush1.bf16.msra.mxu0 %v5363
      %7075 = vmatprep.subr.bf16.mxu0 %v5360
      %7076 = vmatpush1.bf16.msra.mxu0 %v5359
      %7077 = vmatprep.subr.bf16.mxu0 %v5356
      %7078 = vmatpush1.bf16.msra.mxu0 %v5355
      %7079 = vmatprep.subr.bf16.mxu0 %v5352
      %7080 = vmatpush1.bf16.msra.mxu0 %v5351
      %7081 = vmatprep.subr.bf16.mxu0 %v5348
      %7082 = vmatpush1.bf16.msra.mxu0 %v5347
      %7083 = vmatprep.subr.bf16.mxu0 %v5344
      %7084 = vmatpush1.bf16.msra.mxu0 %v5343
      %7085 = vmatprep.subr.bf16.mxu0 %v5404
      %7086 = vmatpush2.bf16.msra.mxu0 %v5403
      %7087 = vmatprep.subr.bf16.mxu0 %v5400
      %7088 = vmatpush2.bf16.msra.mxu0 %v5399
      %7089 = vmatprep.subr.bf16.mxu0 %v5396
      %7090 = vmatpush2.bf16.msra.mxu0 %v5395
      %7091 = vmatprep.subr.bf16.mxu0 %v5392
      %7092 = vmatpush2.bf16.msra.mxu0 %v5391
      %7093 = vmatprep.subr.bf16.mxu0 %v5388
      %7094 = vmatpush2.bf16.msra.mxu0 %v5387
      %7095 = vmatprep.subr.bf16.mxu0 %v5384
      %7096 = vmatpush2.bf16.msra.mxu0 %v5383
      %7097 = vmatprep.subr.bf16.mxu0 %v5380
      %7098 = vmatpush2.bf16.msra.mxu0 %v5379
      %7099 = vmatprep.subr.bf16.mxu0 %v5376
      %7100 = vmatpush2.bf16.msra.mxu0 %v5375
      %7101 = vmatprep.mubr.bf16.mxu0 %v1341
      %7102 = vmatmul.mubr.bf16.gmra.mxu0 %v1333
      %v7103 = vpop.f32.mrf.mxu0
      %v7104 = vadd.f32 %v7063, %v7103
      %v7105 = vpop.f32.mrf.mxu0
      %v7106 = vadd.f32 %v7065, %v7105
      %v7107 = vpop.f32.mrf.mxu0
      %v7108 = vpop.f32.mrf.mxu0
      %7109 = vdwg.mxu0
      %7110 = vmatprep.subr.bf16.mxu0 %v5436
      %7111 = vmatpush1.bf16.msra.mxu0 %v5435
      %7112 = vmatprep.subr.bf16.mxu0 %v5432
      %7113 = vmatpush1.bf16.msra.mxu0 %v5431
      %7114 = vmatprep.subr.bf16.mxu0 %v5428
      %7115 = vmatpush1.bf16.msra.mxu0 %v5427
      %7116 = vmatprep.subr.bf16.mxu0 %v5424
      %7117 = vmatpush1.bf16.msra.mxu0 %v5423
      %7118 = vmatprep.subr.bf16.mxu0 %v5420
      %7119 = vmatpush1.bf16.msra.mxu0 %v5419
      %7120 = vmatprep.subr.bf16.mxu0 %v5416
      %7121 = vmatpush1.bf16.msra.mxu0 %v5415
      %7122 = vmatprep.subr.bf16.mxu0 %v5412
      %7123 = vmatpush1.bf16.msra.mxu0 %v5411
      %7124 = vmatprep.subr.bf16.mxu0 %v5408
      %7125 = vmatpush1.bf16.msra.mxu0 %v5407
      %7126 = vmatprep.subr.bf16.mxu0 %v5468
      %7127 = vmatpush2.bf16.msra.mxu0 %v5467
      %7128 = vmatprep.subr.bf16.mxu0 %v5464
      %7129 = vmatpush2.bf16.msra.mxu0 %v5463
      %7130 = vmatprep.subr.bf16.mxu0 %v5460
      %7131 = vmatpush2.bf16.msra.mxu0 %v5459
      %7132 = vmatprep.subr.bf16.mxu0 %v5456
      %7133 = vmatpush2.bf16.msra.mxu0 %v5455
      %7134 = vmatprep.subr.bf16.mxu0 %v5452
      %7135 = vmatpush2.bf16.msra.mxu0 %v5451
      %7136 = vmatprep.subr.bf16.mxu0 %v5448
      %7137 = vmatpush2.bf16.msra.mxu0 %v5447
      %7138 = vmatprep.subr.bf16.mxu0 %v5444
      %7139 = vmatpush2.bf16.msra.mxu0 %v5443
      %7140 = vmatprep.subr.bf16.mxu0 %v5440
      %7141 = vmatpush2.bf16.msra.mxu0 %v5439
      %7142 = vmatprep.mubr.bf16.mxu0 %v1342
      %7143 = vmatmul.mubr.bf16.gmra.mxu0 %v1340
      %v7144 = vpop.f32.mrf.mxu0
      %v7145 = vadd.f32 %v7104, %v7144
      %v7146 = vpop.f32.mrf.mxu0
      %v7147 = vadd.f32 %v7106, %v7146
      %v7148 = vpop.f32.mrf.mxu0
      %v7149 = vpop.f32.mrf.mxu0
      %7150 = vdwg.mxu0
      %7151 = vmatprep.subr.bf16.mxu0 %v4478
      %7152 = vmatpush1.bf16.msra.mxu0 %v4477
      %7153 = vmatprep.subr.bf16.mxu0 %v4474
      %7154 = vmatpush1.bf16.msra.mxu0 %v4473
      %7155 = vmatprep.subr.bf16.mxu0 %v4470
      %7156 = vmatpush1.bf16.msra.mxu0 %v4469
      %7157 = vmatprep.subr.bf16.mxu0 %v4466
      %7158 = vmatpush1.bf16.msra.mxu0 %v4465
      %7159 = vmatprep.subr.bf16.mxu0 %v4462
      %7160 = vmatpush1.bf16.msra.mxu0 %v4461
      %7161 = vmatprep.subr.bf16.mxu0 %v4458
      %7162 = vmatpush1.bf16.msra.mxu0 %v4457
      %7163 = vmatprep.subr.bf16.mxu0 %v4454
      %7164 = vmatpush1.bf16.msra.mxu0 %v4453
      %7165 = vmatprep.subr.bf16.mxu0 %v4450
      %7166 = vmatpush1.bf16.msra.mxu0 %v4449
      %7167 = vmatprep.subr.bf16.mxu0 %v4510
      %7168 = vmatpush2.bf16.msra.mxu0 %v4509
      %7169 = vmatprep.subr.bf16.mxu0 %v4506
      %7170 = vmatpush2.bf16.msra.mxu0 %v4505
      %7171 = vmatprep.subr.bf16.mxu0 %v4502
      %7172 = vmatpush2.bf16.msra.mxu0 %v4501
      %7173 = vmatprep.subr.bf16.mxu0 %v4498
      %7174 = vmatpush2.bf16.msra.mxu0 %v4497
      %7175 = vmatprep.subr.bf16.mxu0 %v4494
      %7176 = vmatpush2.bf16.msra.mxu0 %v4493
      %7177 = vmatprep.subr.bf16.mxu0 %v4490
      %7178 = vmatpush2.bf16.msra.mxu0 %v4489
      %7179 = vmatprep.subr.bf16.mxu0 %v4486
      %7180 = vmatpush2.bf16.msra.mxu0 %v4485
      %7181 = vmatprep.subr.bf16.mxu0 %v4482
      %7182 = vmatpush2.bf16.msra.mxu0 %v4481
      %7183 = vmatprep.mubr.bf16.mxu0 %v1222
      %7184 = vmatmul.mubr.bf16.gmra.mxu0 %v1214
      %v7185 = vpop.f32.mrf.mxu0
      %v7186 = vadd.f32 0.0, %v7185
      %v7187 = vpop.f32.mrf.mxu0
      %v7188 = vadd.f32 0.0, %v7187
      %v7189 = vpop.f32.mrf.mxu0
      %v7190 = vpop.f32.mrf.mxu0
      %7191 = vdwg.mxu0
      %7192 = vmatprep.subr.bf16.mxu0 %v4542
      %7193 = vmatpush1.bf16.msra.mxu0 %v4541
      %7194 = vmatprep.subr.bf16.mxu0 %v4538
      %7195 = vmatpush1.bf16.msra.mxu0 %v4537
      %7196 = vmatprep.subr.bf16.mxu0 %v4534
      %7197 = vmatpush1.bf16.msra.mxu0 %v4533
      %7198 = vmatprep.subr.bf16.mxu0 %v4530
      %7199 = vmatpush1.bf16.msra.mxu0 %v4529
      %7200 = vmatprep.subr.bf16.mxu0 %v4526
      %7201 = vmatpush1.bf16.msra.mxu0 %v4525
      %7202 = vmatprep.subr.bf16.mxu0 %v4522
      %7203 = vmatpush1.bf16.msra.mxu0 %v4521
      %7204 = vmatprep.subr.bf16.mxu0 %v4518
      %7205 = vmatpush1.bf16.msra.mxu0 %v4517
      %7206 = vmatprep.subr.bf16.mxu0 %v4514
      %7207 = vmatpush1.bf16.msra.mxu0 %v4513
      %7208 = vmatprep.subr.bf16.mxu0 %v4574
      %7209 = vmatpush2.bf16.msra.mxu0 %v4573
      %7210 = vmatprep.subr.bf16.mxu0 %v4570
      %7211 = vmatpush2.bf16.msra.mxu0 %v4569
      %7212 = vmatprep.subr.bf16.mxu0 %v4566
      %7213 = vmatpush2.bf16.msra.mxu0 %v4565
      %7214 = vmatprep.subr.bf16.mxu0 %v4562
      %7215 = vmatpush2.bf16.msra.mxu0 %v4561
      %7216 = vmatprep.subr.bf16.mxu0 %v4558
      %7217 = vmatpush2.bf16.msra.mxu0 %v4557
      %7218 = vmatprep.subr.bf16.mxu0 %v4554
      %7219 = vmatpush2.bf16.msra.mxu0 %v4553
      %7220 = vmatprep.subr.bf16.mxu0 %v4550
      %7221 = vmatpush2.bf16.msra.mxu0 %v4549
      %7222 = vmatprep.subr.bf16.mxu0 %v4546
      %7223 = vmatpush2.bf16.msra.mxu0 %v4545
      %7224 = vmatprep.mubr.bf16.mxu0 %v1223
      %7225 = vmatmul.mubr.bf16.gmra.mxu0 %v1221
      %v7226 = vpop.f32.mrf.mxu0
      %v7227 = vadd.f32 %v7186, %v7226
      %v7228 = vpop.f32.mrf.mxu0
      %v7229 = vadd.f32 %v7188, %v7228
      %v7230 = vpop.f32.mrf.mxu0
      %v7231 = vpop.f32.mrf.mxu0
      %7232 = vdwg.mxu0
      %7233 = vmatprep.subr.bf16.mxu0 %v4606
      %7234 = vmatpush1.bf16.msra.mxu0 %v4605
      %7235 = vmatprep.subr.bf16.mxu0 %v4602
      %7236 = vmatpush1.bf16.msra.mxu0 %v4601
      %7237 = vmatprep.subr.bf16.mxu0 %v4598
      %7238 = vmatpush1.bf16.msra.mxu0 %v4597
      %7239 = vmatprep.subr.bf16.mxu0 %v4594
      %7240 = vmatpush1.bf16.msra.mxu0 %v4593
      %7241 = vmatprep.subr.bf16.mxu0 %v4590
      %7242 = vmatpush1.bf16.msra.mxu0 %v4589
      %7243 = vmatprep.subr.bf16.mxu0 %v4586
      %7244 = vmatpush1.bf16.msra.mxu0 %v4585
      %7245 = vmatprep.subr.bf16.mxu0 %v4582
      %7246 = vmatpush1.bf16.msra.mxu0 %v4581
      %7247 = vmatprep.subr.bf16.mxu0 %v4578
      %7248 = vmatpush1.bf16.msra.mxu0 %v4577
      %7249 = vmatprep.subr.bf16.mxu0 %v4638
      %7250 = vmatpush2.bf16.msra.mxu0 %v4637
      %7251 = vmatprep.subr.bf16.mxu0 %v4634
      %7252 = vmatpush2.bf16.msra.mxu0 %v4633
      %7253 = vmatprep.subr.bf16.mxu0 %v4630
      %7254 = vmatpush2.bf16.msra.mxu0 %v4629
      %7255 = vmatprep.subr.bf16.mxu0 %v4626
      %7256 = vmatpush2.bf16.msra.mxu0 %v4625
      %7257 = vmatprep.subr.bf16.mxu0 %v4622
      %7258 = vmatpush2.bf16.msra.mxu0 %v4621
      %7259 = vmatprep.subr.bf16.mxu0 %v4618
      %7260 = vmatpush2.bf16.msra.mxu0 %v4617
      %7261 = vmatprep.subr.bf16.mxu0 %v4614
      %7262 = vmatpush2.bf16.msra.mxu0 %v4613
      %7263 = vmatprep.subr.bf16.mxu0 %v4610
      %7264 = vmatpush2.bf16.msra.mxu0 %v4609
      %7265 = vmatprep.mubr.bf16.mxu0 %v1239
      %7266 = vmatmul.mubr.bf16.gmra.mxu0 %v1231
      %v7267 = vpop.f32.mrf.mxu0
      %v7268 = vadd.f32 %v7227, %v7267
      %v7269 = vpop.f32.mrf.mxu0
      %v7270 = vadd.f32 %v7229, %v7269
      %v7271 = vpop.f32.mrf.mxu0
      %v7272 = vpop.f32.mrf.mxu0
      %7273 = vdwg.mxu0
      %7274 = vmatprep.subr.bf16.mxu0 %v4670
      %7275 = vmatpush1.bf16.msra.mxu0 %v4669
      %7276 = vmatprep.subr.bf16.mxu0 %v4666
      %7277 = vmatpush1.bf16.msra.mxu0 %v4665
      %7278 = vmatprep.subr.bf16.mxu0 %v4662
      %7279 = vmatpush1.bf16.msra.mxu0 %v4661
      %7280 = vmatprep.subr.bf16.mxu0 %v4658
      %7281 = vmatpush1.bf16.msra.mxu0 %v4657
      %7282 = vmatprep.subr.bf16.mxu0 %v4654
      %7283 = vmatpush1.bf16.msra.mxu0 %v4653
      %7284 = vmatprep.subr.bf16.mxu0 %v4650
      %7285 = vmatpush1.bf16.msra.mxu0 %v4649
      %7286 = vmatprep.subr.bf16.mxu0 %v4646
      %7287 = vmatpush1.bf16.msra.mxu0 %v4645
      %7288 = vmatprep.subr.bf16.mxu0 %v4642
      %7289 = vmatpush1.bf16.msra.mxu0 %v4641
      %7290 = vmatprep.subr.bf16.mxu0 %v4702
      %7291 = vmatpush2.bf16.msra.mxu0 %v4701
      %7292 = vmatprep.subr.bf16.mxu0 %v4698
      %7293 = vmatpush2.bf16.msra.mxu0 %v4697
      %7294 = vmatprep.subr.bf16.mxu0 %v4694
      %7295 = vmatpush2.bf16.msra.mxu0 %v4693
      %7296 = vmatprep.subr.bf16.mxu0 %v4690
      %7297 = vmatpush2.bf16.msra.mxu0 %v4689
      %7298 = vmatprep.subr.bf16.mxu0 %v4686
      %7299 = vmatpush2.bf16.msra.mxu0 %v4685
      %7300 = vmatprep.subr.bf16.mxu0 %v4682
      %7301 = vmatpush2.bf16.msra.mxu0 %v4681
      %7302 = vmatprep.subr.bf16.mxu0 %v4678
      %7303 = vmatpush2.bf16.msra.mxu0 %v4677
      %7304 = vmatprep.subr.bf16.mxu0 %v4674
      %7305 = vmatpush2.bf16.msra.mxu0 %v4673
      %7306 = vmatprep.mubr.bf16.mxu0 %v1240
      %7307 = vmatmul.mubr.bf16.gmra.mxu0 %v1238
      %v7308 = vpop.f32.mrf.mxu0
      %v7309 = vadd.f32 %v7268, %v7308
      %v7310 = vpop.f32.mrf.mxu0
      %v7311 = vadd.f32 %v7270, %v7310
      %v7312 = vpop.f32.mrf.mxu0
      %v7313 = vpop.f32.mrf.mxu0
      %7314 = vdwg.mxu0
      %7315 = vmatprep.subr.bf16.mxu0 %v4734
      %7316 = vmatpush1.bf16.msra.mxu0 %v4733
      %7317 = vmatprep.subr.bf16.mxu0 %v4730
      %7318 = vmatpush1.bf16.msra.mxu0 %v4729
      %7319 = vmatprep.subr.bf16.mxu0 %v4726
      %7320 = vmatpush1.bf16.msra.mxu0 %v4725
      %7321 = vmatprep.subr.bf16.mxu0 %v4722
      %7322 = vmatpush1.bf16.msra.mxu0 %v4721
      %7323 = vmatprep.subr.bf16.mxu0 %v4718
      %7324 = vmatpush1.bf16.msra.mxu0 %v4717
      %7325 = vmatprep.subr.bf16.mxu0 %v4714
      %7326 = vmatpush1.bf16.msra.mxu0 %v4713
      %7327 = vmatprep.subr.bf16.mxu0 %v4710
      %7328 = vmatpush1.bf16.msra.mxu0 %v4709
      %7329 = vmatprep.subr.bf16.mxu0 %v4706
      %7330 = vmatpush1.bf16.msra.mxu0 %v4705
      %7331 = vmatprep.subr.bf16.mxu0 %v4766
      %7332 = vmatpush2.bf16.msra.mxu0 %v4765
      %7333 = vmatprep.subr.bf16.mxu0 %v4762
      %7334 = vmatpush2.bf16.msra.mxu0 %v4761
      %7335 = vmatprep.subr.bf16.mxu0 %v4758
      %7336 = vmatpush2.bf16.msra.mxu0 %v4757
      %7337 = vmatprep.subr.bf16.mxu0 %v4754
      %7338 = vmatpush2.bf16.msra.mxu0 %v4753
      %7339 = vmatprep.subr.bf16.mxu0 %v4750
      %7340 = vmatpush2.bf16.msra.mxu0 %v4749
      %7341 = vmatprep.subr.bf16.mxu0 %v4746
      %7342 = vmatpush2.bf16.msra.mxu0 %v4745
      %7343 = vmatprep.subr.bf16.mxu0 %v4742
      %7344 = vmatpush2.bf16.msra.mxu0 %v4741
      %7345 = vmatprep.subr.bf16.mxu0 %v4738
      %7346 = vmatpush2.bf16.msra.mxu0 %v4737
      %7347 = vmatprep.mubr.bf16.mxu0 %v1256
      %7348 = vmatmul.mubr.bf16.gmra.mxu0 %v1248
      %v7349 = vpop.f32.mrf.mxu0
      %v7350 = vadd.f32 %v7309, %v7349
      %v7351 = vpop.f32.mrf.mxu0
      %v7352 = vadd.f32 %v7311, %v7351
      %v7353 = vpop.f32.mrf.mxu0
      %v7354 = vpop.f32.mrf.mxu0
      %7355 = vdwg.mxu0
      %7356 = vmatprep.subr.bf16.mxu0 %v4798
      %7357 = vmatpush1.bf16.msra.mxu0 %v4797
      %7358 = vmatprep.subr.bf16.mxu0 %v4794
      %7359 = vmatpush1.bf16.msra.mxu0 %v4793
      %7360 = vmatprep.subr.bf16.mxu0 %v4790
      %7361 = vmatpush1.bf16.msra.mxu0 %v4789
      %7362 = vmatprep.subr.bf16.mxu0 %v4786
      %7363 = vmatpush1.bf16.msra.mxu0 %v4785
      %7364 = vmatprep.subr.bf16.mxu0 %v4782
      %7365 = vmatpush1.bf16.msra.mxu0 %v4781
      %7366 = vmatprep.subr.bf16.mxu0 %v4778
      %7367 = vmatpush1.bf16.msra.mxu0 %v4777
      %7368 = vmatprep.subr.bf16.mxu0 %v4774
      %7369 = vmatpush1.bf16.msra.mxu0 %v4773
      %7370 = vmatprep.subr.bf16.mxu0 %v4770
      %7371 = vmatpush1.bf16.msra.mxu0 %v4769
      %7372 = vmatprep.subr.bf16.mxu0 %v4830
      %7373 = vmatpush2.bf16.msra.mxu0 %v4829
      %7374 = vmatprep.subr.bf16.mxu0 %v4826
      %7375 = vmatpush2.bf16.msra.mxu0 %v4825
      %7376 = vmatprep.subr.bf16.mxu0 %v4822
      %7377 = vmatpush2.bf16.msra.mxu0 %v4821
      %7378 = vmatprep.subr.bf16.mxu0 %v4818
      %7379 = vmatpush2.bf16.msra.mxu0 %v4817
      %7380 = vmatprep.subr.bf16.mxu0 %v4814
      %7381 = vmatpush2.bf16.msra.mxu0 %v4813
      %7382 = vmatprep.subr.bf16.mxu0 %v4810
      %7383 = vmatpush2.bf16.msra.mxu0 %v4809
      %7384 = vmatprep.subr.bf16.mxu0 %v4806
      %7385 = vmatpush2.bf16.msra.mxu0 %v4805
      %7386 = vmatprep.subr.bf16.mxu0 %v4802
      %7387 = vmatpush2.bf16.msra.mxu0 %v4801
      %7388 = vmatprep.mubr.bf16.mxu0 %v1257
      %7389 = vmatmul.mubr.bf16.gmra.mxu0 %v1255
      %v7390 = vpop.f32.mrf.mxu0
      %v7391 = vadd.f32 %v7350, %v7390
      %v7392 = vpop.f32.mrf.mxu0
      %v7393 = vadd.f32 %v7352, %v7392
      %v7394 = vpop.f32.mrf.mxu0
      %v7395 = vpop.f32.mrf.mxu0
      %7396 = vdwg.mxu0
      %7397 = vmatprep.subr.bf16.mxu0 %v4862
      %7398 = vmatpush1.bf16.msra.mxu0 %v4861
      %7399 = vmatprep.subr.bf16.mxu0 %v4858
      %7400 = vmatpush1.bf16.msra.mxu0 %v4857
      %7401 = vmatprep.subr.bf16.mxu0 %v4854
      %7402 = vmatpush1.bf16.msra.mxu0 %v4853
      %7403 = vmatprep.subr.bf16.mxu0 %v4850
      %7404 = vmatpush1.bf16.msra.mxu0 %v4849
      %7405 = vmatprep.subr.bf16.mxu0 %v4846
      %7406 = vmatpush1.bf16.msra.mxu0 %v4845
      %7407 = vmatprep.subr.bf16.mxu0 %v4842
      %7408 = vmatpush1.bf16.msra.mxu0 %v4841
      %7409 = vmatprep.subr.bf16.mxu0 %v4838
      %7410 = vmatpush1.bf16.msra.mxu0 %v4837
      %7411 = vmatprep.subr.bf16.mxu0 %v4834
      %7412 = vmatpush1.bf16.msra.mxu0 %v4833
      %7413 = vmatprep.subr.bf16.mxu0 %v4894
      %7414 = vmatpush2.bf16.msra.mxu0 %v4893
      %7415 = vmatprep.subr.bf16.mxu0 %v4890
      %7416 = vmatpush2.bf16.msra.mxu0 %v4889
      %7417 = vmatprep.subr.bf16.mxu0 %v4886
      %7418 = vmatpush2.bf16.msra.mxu0 %v4885
      %7419 = vmatprep.subr.bf16.mxu0 %v4882
      %7420 = vmatpush2.bf16.msra.mxu0 %v4881
      %7421 = vmatprep.subr.bf16.mxu0 %v4878
      %7422 = vmatpush2.bf16.msra.mxu0 %v4877
      %7423 = vmatprep.subr.bf16.mxu0 %v4874
      %7424 = vmatpush2.bf16.msra.mxu0 %v4873
      %7425 = vmatprep.subr.bf16.mxu0 %v4870
      %7426 = vmatpush2.bf16.msra.mxu0 %v4869
      %7427 = vmatprep.subr.bf16.mxu0 %v4866
      %7428 = vmatpush2.bf16.msra.mxu0 %v4865
      %7429 = vmatprep.mubr.bf16.mxu0 %v1273
      %7430 = vmatmul.mubr.bf16.gmra.mxu0 %v1265
      %v7431 = vpop.f32.mrf.mxu0
      %v7432 = vadd.f32 %v7391, %v7431
      %v7433 = vpop.f32.mrf.mxu0
      %v7434 = vadd.f32 %v7393, %v7433
      %v7435 = vpop.f32.mrf.mxu0
      %v7436 = vpop.f32.mrf.mxu0
      %7437 = vdwg.mxu0
      %7438 = vmatprep.subr.bf16.mxu0 %v4926
      %7439 = vmatpush1.bf16.msra.mxu0 %v4925
      %7440 = vmatprep.subr.bf16.mxu0 %v4922
      %7441 = vmatpush1.bf16.msra.mxu0 %v4921
      %7442 = vmatprep.subr.bf16.mxu0 %v4918
      %7443 = vmatpush1.bf16.msra.mxu0 %v4917
      %7444 = vmatprep.subr.bf16.mxu0 %v4914
      %7445 = vmatpush1.bf16.msra.mxu0 %v4913
      %7446 = vmatprep.subr.bf16.mxu0 %v4910
      %7447 = vmatpush1.bf16.msra.mxu0 %v4909
      %7448 = vmatprep.subr.bf16.mxu0 %v4906
      %7449 = vmatpush1.bf16.msra.mxu0 %v4905
      %7450 = vmatprep.subr.bf16.mxu0 %v4902
      %7451 = vmatpush1.bf16.msra.mxu0 %v4901
      %7452 = vmatprep.subr.bf16.mxu0 %v4898
      %7453 = vmatpush1.bf16.msra.mxu0 %v4897
      %7454 = vmatprep.subr.bf16.mxu0 %v4958
      %7455 = vmatpush2.bf16.msra.mxu0 %v4957
      %7456 = vmatprep.subr.bf16.mxu0 %v4954
      %7457 = vmatpush2.bf16.msra.mxu0 %v4953
      %7458 = vmatprep.subr.bf16.mxu0 %v4950
      %7459 = vmatpush2.bf16.msra.mxu0 %v4949
      %7460 = vmatprep.subr.bf16.mxu0 %v4946
      %7461 = vmatpush2.bf16.msra.mxu0 %v4945
      %7462 = vmatprep.subr.bf16.mxu0 %v4942
      %7463 = vmatpush2.bf16.msra.mxu0 %v4941
      %7464 = vmatprep.subr.bf16.mxu0 %v4938
      %7465 = vmatpush2.bf16.msra.mxu0 %v4937
      %7466 = vmatprep.subr.bf16.mxu0 %v4934
      %7467 = vmatpush2.bf16.msra.mxu0 %v4933
      %7468 = vmatprep.subr.bf16.mxu0 %v4930
      %7469 = vmatpush2.bf16.msra.mxu0 %v4929
      %7470 = vmatprep.mubr.bf16.mxu0 %v1274
      %7471 = vmatmul.mubr.bf16.gmra.mxu0 %v1272
      %v7472 = vpop.f32.mrf.mxu0
      %v7473 = vadd.f32 %v7432, %v7472
      %v7474 = vpop.f32.mrf.mxu0
      %v7475 = vadd.f32 %v7434, %v7474
      %v7476 = vpop.f32.mrf.mxu0
      %v7477 = vpop.f32.mrf.mxu0
      %7478 = vdwg.mxu0
      %7479 = vmatprep.subr.bf16.mxu0 %v4990
      %7480 = vmatpush1.bf16.msra.mxu0 %v4989
      %7481 = vmatprep.subr.bf16.mxu0 %v4986
      %7482 = vmatpush1.bf16.msra.mxu0 %v4985
      %7483 = vmatprep.subr.bf16.mxu0 %v4982
      %7484 = vmatpush1.bf16.msra.mxu0 %v4981
      %7485 = vmatprep.subr.bf16.mxu0 %v4978
      %7486 = vmatpush1.bf16.msra.mxu0 %v4977
      %7487 = vmatprep.subr.bf16.mxu0 %v4974
      %7488 = vmatpush1.bf16.msra.mxu0 %v4973
      %7489 = vmatprep.subr.bf16.mxu0 %v4970
      %7490 = vmatpush1.bf16.msra.mxu0 %v4969
      %7491 = vmatprep.subr.bf16.mxu0 %v4966
      %7492 = vmatpush1.bf16.msra.mxu0 %v4965
      %7493 = vmatprep.subr.bf16.mxu0 %v4962
      %7494 = vmatpush1.bf16.msra.mxu0 %v4961
      %7495 = vmatprep.subr.bf16.mxu0 %v5022
      %7496 = vmatpush2.bf16.msra.mxu0 %v5021
      %7497 = vmatprep.subr.bf16.mxu0 %v5018
      %7498 = vmatpush2.bf16.msra.mxu0 %v5017
      %7499 = vmatprep.subr.bf16.mxu0 %v5014
      %7500 = vmatpush2.bf16.msra.mxu0 %v5013
      %7501 = vmatprep.subr.bf16.mxu0 %v5010
      %7502 = vmatpush2.bf16.msra.mxu0 %v5009
      %7503 = vmatprep.subr.bf16.mxu0 %v5006
      %7504 = vmatpush2.bf16.msra.mxu0 %v5005
      %7505 = vmatprep.subr.bf16.mxu0 %v5002
      %7506 = vmatpush2.bf16.msra.mxu0 %v5001
      %7507 = vmatprep.subr.bf16.mxu0 %v4998
      %7508 = vmatpush2.bf16.msra.mxu0 %v4997
      %7509 = vmatprep.subr.bf16.mxu0 %v4994
      %7510 = vmatpush2.bf16.msra.mxu0 %v4993
      %7511 = vmatprep.mubr.bf16.mxu0 %v1290
      %7512 = vmatmul.mubr.bf16.gmra.mxu0 %v1282
      %v7513 = vpop.f32.mrf.mxu0
      %v7514 = vadd.f32 %v7473, %v7513
      %v7515 = vpop.f32.mrf.mxu0
      %v7516 = vadd.f32 %v7475, %v7515
      %v7517 = vpop.f32.mrf.mxu0
      %v7518 = vpop.f32.mrf.mxu0
      %7519 = vdwg.mxu0
      %7520 = vmatprep.subr.bf16.mxu0 %v5054
      %7521 = vmatpush1.bf16.msra.mxu0 %v5053
      %7522 = vmatprep.subr.bf16.mxu0 %v5050
      %7523 = vmatpush1.bf16.msra.mxu0 %v5049
      %7524 = vmatprep.subr.bf16.mxu0 %v5046
      %7525 = vmatpush1.bf16.msra.mxu0 %v5045
      %7526 = vmatprep.subr.bf16.mxu0 %v5042
      %7527 = vmatpush1.bf16.msra.mxu0 %v5041
      %7528 = vmatprep.subr.bf16.mxu0 %v5038
      %7529 = vmatpush1.bf16.msra.mxu0 %v5037
      %7530 = vmatprep.subr.bf16.mxu0 %v5034
      %7531 = vmatpush1.bf16.msra.mxu0 %v5033
      %7532 = vmatprep.subr.bf16.mxu0 %v5030
      %7533 = vmatpush1.bf16.msra.mxu0 %v5029
      %7534 = vmatprep.subr.bf16.mxu0 %v5026
      %7535 = vmatpush1.bf16.msra.mxu0 %v5025
      %7536 = vmatprep.subr.bf16.mxu0 %v5086
      %7537 = vmatpush2.bf16.msra.mxu0 %v5085
      %7538 = vmatprep.subr.bf16.mxu0 %v5082
      %7539 = vmatpush2.bf16.msra.mxu0 %v5081
      %7540 = vmatprep.subr.bf16.mxu0 %v5078
      %7541 = vmatpush2.bf16.msra.mxu0 %v5077
      %7542 = vmatprep.subr.bf16.mxu0 %v5074
      %7543 = vmatpush2.bf16.msra.mxu0 %v5073
      %7544 = vmatprep.subr.bf16.mxu0 %v5070
      %7545 = vmatpush2.bf16.msra.mxu0 %v5069
      %7546 = vmatprep.subr.bf16.mxu0 %v5066
      %7547 = vmatpush2.bf16.msra.mxu0 %v5065
      %7548 = vmatprep.subr.bf16.mxu0 %v5062
      %7549 = vmatpush2.bf16.msra.mxu0 %v5061
      %7550 = vmatprep.subr.bf16.mxu0 %v5058
      %7551 = vmatpush2.bf16.msra.mxu0 %v5057
      %7552 = vmatprep.mubr.bf16.mxu0 %v1291
      %7553 = vmatmul.mubr.bf16.gmra.mxu0 %v1289
      %v7554 = vpop.f32.mrf.mxu0
      %v7555 = vadd.f32 %v7514, %v7554
      %v7556 = vpop.f32.mrf.mxu0
      %v7557 = vadd.f32 %v7516, %v7556
      %v7558 = vpop.f32.mrf.mxu0
      %v7559 = vpop.f32.mrf.mxu0
      %7560 = vdwg.mxu0
      %7561 = vmatprep.subr.bf16.mxu0 %v5118
      %7562 = vmatpush1.bf16.msra.mxu0 %v5117
      %7563 = vmatprep.subr.bf16.mxu0 %v5114
      %7564 = vmatpush1.bf16.msra.mxu0 %v5113
      %7565 = vmatprep.subr.bf16.mxu0 %v5110
      %7566 = vmatpush1.bf16.msra.mxu0 %v5109
      %7567 = vmatprep.subr.bf16.mxu0 %v5106
      %7568 = vmatpush1.bf16.msra.mxu0 %v5105
      %7569 = vmatprep.subr.bf16.mxu0 %v5102
      %7570 = vmatpush1.bf16.msra.mxu0 %v5101
      %7571 = vmatprep.subr.bf16.mxu0 %v5098
      %7572 = vmatpush1.bf16.msra.mxu0 %v5097
      %7573 = vmatprep.subr.bf16.mxu0 %v5094
      %7574 = vmatpush1.bf16.msra.mxu0 %v5093
      %7575 = vmatprep.subr.bf16.mxu0 %v5090
      %7576 = vmatpush1.bf16.msra.mxu0 %v5089
      %7577 = vmatprep.subr.bf16.mxu0 %v5150
      %7578 = vmatpush2.bf16.msra.mxu0 %v5149
      %7579 = vmatprep.subr.bf16.mxu0 %v5146
      %7580 = vmatpush2.bf16.msra.mxu0 %v5145
      %7581 = vmatprep.subr.bf16.mxu0 %v5142
      %7582 = vmatpush2.bf16.msra.mxu0 %v5141
      %7583 = vmatprep.subr.bf16.mxu0 %v5138
      %7584 = vmatpush2.bf16.msra.mxu0 %v5137
      %7585 = vmatprep.subr.bf16.mxu0 %v5134
      %7586 = vmatpush2.bf16.msra.mxu0 %v5133
      %7587 = vmatprep.subr.bf16.mxu0 %v5130
      %7588 = vmatpush2.bf16.msra.mxu0 %v5129
      %7589 = vmatprep.subr.bf16.mxu0 %v5126
      %7590 = vmatpush2.bf16.msra.mxu0 %v5125
      %7591 = vmatprep.subr.bf16.mxu0 %v5122
      %7592 = vmatpush2.bf16.msra.mxu0 %v5121
      %7593 = vmatprep.mubr.bf16.mxu0 %v1307
      %7594 = vmatmul.mubr.bf16.gmra.mxu0 %v1299
      %v7595 = vpop.f32.mrf.mxu0
      %v7596 = vadd.f32 %v7555, %v7595
      %v7597 = vpop.f32.mrf.mxu0
      %v7598 = vadd.f32 %v7557, %v7597
      %v7599 = vpop.f32.mrf.mxu0
      %v7600 = vpop.f32.mrf.mxu0
      %7601 = vdwg.mxu0
      %7602 = vmatprep.subr.bf16.mxu0 %v5182
      %7603 = vmatpush1.bf16.msra.mxu0 %v5181
      %7604 = vmatprep.subr.bf16.mxu0 %v5178
      %7605 = vmatpush1.bf16.msra.mxu0 %v5177
      %7606 = vmatprep.subr.bf16.mxu0 %v5174
      %7607 = vmatpush1.bf16.msra.mxu0 %v5173
      %7608 = vmatprep.subr.bf16.mxu0 %v5170
      %7609 = vmatpush1.bf16.msra.mxu0 %v5169
      %7610 = vmatprep.subr.bf16.mxu0 %v5166
      %7611 = vmatpush1.bf16.msra.mxu0 %v5165
      %7612 = vmatprep.subr.bf16.mxu0 %v5162
      %7613 = vmatpush1.bf16.msra.mxu0 %v5161
      %7614 = vmatprep.subr.bf16.mxu0 %v5158
      %7615 = vmatpush1.bf16.msra.mxu0 %v5157
      %7616 = vmatprep.subr.bf16.mxu0 %v5154
      %7617 = vmatpush1.bf16.msra.mxu0 %v5153
      %7618 = vmatprep.subr.bf16.mxu0 %v5214
      %7619 = vmatpush2.bf16.msra.mxu0 %v5213
      %7620 = vmatprep.subr.bf16.mxu0 %v5210
      %7621 = vmatpush2.bf16.msra.mxu0 %v5209
      %7622 = vmatprep.subr.bf16.mxu0 %v5206
      %7623 = vmatpush2.bf16.msra.mxu0 %v5205
      %7624 = vmatprep.subr.bf16.mxu0 %v5202
      %7625 = vmatpush2.bf16.msra.mxu0 %v5201
      %7626 = vmatprep.subr.bf16.mxu0 %v5198
      %7627 = vmatpush2.bf16.msra.mxu0 %v5197
      %7628 = vmatprep.subr.bf16.mxu0 %v5194
      %7629 = vmatpush2.bf16.msra.mxu0 %v5193
      %7630 = vmatprep.subr.bf16.mxu0 %v5190
      %7631 = vmatpush2.bf16.msra.mxu0 %v5189
      %7632 = vmatprep.subr.bf16.mxu0 %v5186
      %7633 = vmatpush2.bf16.msra.mxu0 %v5185
      %7634 = vmatprep.mubr.bf16.mxu0 %v1308
      %7635 = vmatmul.mubr.bf16.gmra.mxu0 %v1306
      %v7636 = vpop.f32.mrf.mxu0
      %v7637 = vadd.f32 %v7596, %v7636
      %v7638 = vpop.f32.mrf.mxu0
      %v7639 = vadd.f32 %v7598, %v7638
      %v7640 = vpop.f32.mrf.mxu0
      %v7641 = vpop.f32.mrf.mxu0
      %7642 = vdwg.mxu0
      %7643 = vmatprep.subr.bf16.mxu0 %v5246
      %7644 = vmatpush1.bf16.msra.mxu0 %v5245
      %7645 = vmatprep.subr.bf16.mxu0 %v5242
      %7646 = vmatpush1.bf16.msra.mxu0 %v5241
      %7647 = vmatprep.subr.bf16.mxu0 %v5238
      %7648 = vmatpush1.bf16.msra.mxu0 %v5237
      %7649 = vmatprep.subr.bf16.mxu0 %v5234
      %7650 = vmatpush1.bf16.msra.mxu0 %v5233
      %7651 = vmatprep.subr.bf16.mxu0 %v5230
      %7652 = vmatpush1.bf16.msra.mxu0 %v5229
      %7653 = vmatprep.subr.bf16.mxu0 %v5226
      %7654 = vmatpush1.bf16.msra.mxu0 %v5225
      %7655 = vmatprep.subr.bf16.mxu0 %v5222
      %7656 = vmatpush1.bf16.msra.mxu0 %v5221
      %7657 = vmatprep.subr.bf16.mxu0 %v5218
      %7658 = vmatpush1.bf16.msra.mxu0 %v5217
      %7659 = vmatprep.subr.bf16.mxu0 %v5278
      %7660 = vmatpush2.bf16.msra.mxu0 %v5277
      %7661 = vmatprep.subr.bf16.mxu0 %v5274
      %7662 = vmatpush2.bf16.msra.mxu0 %v5273
      %7663 = vmatprep.subr.bf16.mxu0 %v5270
      %7664 = vmatpush2.bf16.msra.mxu0 %v5269
      %7665 = vmatprep.subr.bf16.mxu0 %v5266
      %7666 = vmatpush2.bf16.msra.mxu0 %v5265
      %7667 = vmatprep.subr.bf16.mxu0 %v5262
      %7668 = vmatpush2.bf16.msra.mxu0 %v5261
      %7669 = vmatprep.subr.bf16.mxu0 %v5258
      %7670 = vmatpush2.bf16.msra.mxu0 %v5257
      %7671 = vmatprep.subr.bf16.mxu0 %v5254
      %7672 = vmatpush2.bf16.msra.mxu0 %v5253
      %7673 = vmatprep.subr.bf16.mxu0 %v5250
      %7674 = vmatpush2.bf16.msra.mxu0 %v5249
      %7675 = vmatprep.mubr.bf16.mxu0 %v1324
      %7676 = vmatmul.mubr.bf16.gmra.mxu0 %v1316
      %v7677 = vpop.f32.mrf.mxu0
      %v7678 = vadd.f32 %v7637, %v7677
      %v7679 = vpop.f32.mrf.mxu0
      %v7680 = vadd.f32 %v7639, %v7679
      %v7681 = vpop.f32.mrf.mxu0
      %v7682 = vpop.f32.mrf.mxu0
      %7683 = vdwg.mxu0
      %7684 = vmatprep.subr.bf16.mxu0 %v5310
      %7685 = vmatpush1.bf16.msra.mxu0 %v5309
      %7686 = vmatprep.subr.bf16.mxu0 %v5306
      %7687 = vmatpush1.bf16.msra.mxu0 %v5305
      %7688 = vmatprep.subr.bf16.mxu0 %v5302
      %7689 = vmatpush1.bf16.msra.mxu0 %v5301
      %7690 = vmatprep.subr.bf16.mxu0 %v5298
      %7691 = vmatpush1.bf16.msra.mxu0 %v5297
      %7692 = vmatprep.subr.bf16.mxu0 %v5294
      %7693 = vmatpush1.bf16.msra.mxu0 %v5293
      %7694 = vmatprep.subr.bf16.mxu0 %v5290
      %7695 = vmatpush1.bf16.msra.mxu0 %v5289
      %7696 = vmatprep.subr.bf16.mxu0 %v5286
      %7697 = vmatpush1.bf16.msra.mxu0 %v5285
      %7698 = vmatprep.subr.bf16.mxu0 %v5282
      %7699 = vmatpush1.bf16.msra.mxu0 %v5281
      %7700 = vmatprep.subr.bf16.mxu0 %v5342
      %7701 = vmatpush2.bf16.msra.mxu0 %v5341
      %7702 = vmatprep.subr.bf16.mxu0 %v5338
      %7703 = vmatpush2.bf16.msra.mxu0 %v5337
      %7704 = vmatprep.subr.bf16.mxu0 %v5334
      %7705 = vmatpush2.bf16.msra.mxu0 %v5333
      %7706 = vmatprep.subr.bf16.mxu0 %v5330
      %7707 = vmatpush2.bf16.msra.mxu0 %v5329
      %7708 = vmatprep.subr.bf16.mxu0 %v5326
      %7709 = vmatpush2.bf16.msra.mxu0 %v5325
      %7710 = vmatprep.subr.bf16.mxu0 %v5322
      %7711 = vmatpush2.bf16.msra.mxu0 %v5321
      %7712 = vmatprep.subr.bf16.mxu0 %v5318
      %7713 = vmatpush2.bf16.msra.mxu0 %v5317
      %7714 = vmatprep.subr.bf16.mxu0 %v5314
      %7715 = vmatpush2.bf16.msra.mxu0 %v5313
      %7716 = vmatprep.mubr.bf16.mxu0 %v1325
      %7717 = vmatmul.mubr.bf16.gmra.mxu0 %v1323
      %v7718 = vpop.f32.mrf.mxu0
      %v7719 = vadd.f32 %v7678, %v7718
      %v7720 = vpop.f32.mrf.mxu0
      %v7721 = vadd.f32 %v7680, %v7720
      %v7722 = vpop.f32.mrf.mxu0
      %v7723 = vpop.f32.mrf.mxu0
      %7724 = vdwg.mxu0
      %7725 = vmatprep.subr.bf16.mxu0 %v5374
      %7726 = vmatpush1.bf16.msra.mxu0 %v5373
      %7727 = vmatprep.subr.bf16.mxu0 %v5370
      %7728 = vmatpush1.bf16.msra.mxu0 %v5369
      %7729 = vmatprep.subr.bf16.mxu0 %v5366
      %7730 = vmatpush1.bf16.msra.mxu0 %v5365
      %7731 = vmatprep.subr.bf16.mxu0 %v5362
      %7732 = vmatpush1.bf16.msra.mxu0 %v5361
      %7733 = vmatprep.subr.bf16.mxu0 %v5358
      %7734 = vmatpush1.bf16.msra.mxu0 %v5357
      %7735 = vmatprep.subr.bf16.mxu0 %v5354
      %7736 = vmatpush1.bf16.msra.mxu0 %v5353
      %7737 = vmatprep.subr.bf16.mxu0 %v5350
      %7738 = vmatpush1.bf16.msra.mxu0 %v5349
      %7739 = vmatprep.subr.bf16.mxu0 %v5346
      %7740 = vmatpush1.bf16.msra.mxu0 %v5345
      %7741 = vmatprep.subr.bf16.mxu0 %v5406
      %7742 = vmatpush2.bf16.msra.mxu0 %v5405
      %7743 = vmatprep.subr.bf16.mxu0 %v5402
      %7744 = vmatpush2.bf16.msra.mxu0 %v5401
      %7745 = vmatprep.subr.bf16.mxu0 %v5398
      %7746 = vmatpush2.bf16.msra.mxu0 %v5397
      %7747 = vmatprep.subr.bf16.mxu0 %v5394
      %7748 = vmatpush2.bf16.msra.mxu0 %v5393
      %7749 = vmatprep.subr.bf16.mxu0 %v5390
      %7750 = vmatpush2.bf16.msra.mxu0 %v5389
      %7751 = vmatprep.subr.bf16.mxu0 %v5386
      %7752 = vmatpush2.bf16.msra.mxu0 %v5385
      %7753 = vmatprep.subr.bf16.mxu0 %v5382
      %7754 = vmatpush2.bf16.msra.mxu0 %v5381
      %7755 = vmatprep.subr.bf16.mxu0 %v5378
      %7756 = vmatpush2.bf16.msra.mxu0 %v5377
      %7757 = vmatprep.mubr.bf16.mxu0 %v1341
      %7758 = vmatmul.mubr.bf16.gmra.mxu0 %v1333
      %v7759 = vpop.f32.mrf.mxu0
      %v7760 = vadd.f32 %v7719, %v7759
      %v7761 = vpop.f32.mrf.mxu0
      %v7762 = vadd.f32 %v7721, %v7761
      %v7763 = vpop.f32.mrf.mxu0
      %v7764 = vpop.f32.mrf.mxu0
      %7765 = vdwg.mxu0
      %7766 = vmatprep.subr.bf16.mxu0 %v5438
      %7767 = vmatpush1.bf16.msra.mxu0 %v5437
      %7768 = vmatprep.subr.bf16.mxu0 %v5434
      %7769 = vmatpush1.bf16.msra.mxu0 %v5433
      %7770 = vmatprep.subr.bf16.mxu0 %v5430
      %7771 = vmatpush1.bf16.msra.mxu0 %v5429
      %7772 = vmatprep.subr.bf16.mxu0 %v5426
      %7773 = vmatpush1.bf16.msra.mxu0 %v5425
      %7774 = vmatprep.subr.bf16.mxu0 %v5422
      %7775 = vmatpush1.bf16.msra.mxu0 %v5421
      %7776 = vmatprep.subr.bf16.mxu0 %v5418
      %7777 = vmatpush1.bf16.msra.mxu0 %v5417
      %7778 = vmatprep.subr.bf16.mxu0 %v5414
      %7779 = vmatpush1.bf16.msra.mxu0 %v5413
      %7780 = vmatprep.subr.bf16.mxu0 %v5410
      %7781 = vmatpush1.bf16.msra.mxu0 %v5409
      %7782 = vmatprep.subr.bf16.mxu0 %v5470
      %7783 = vmatpush2.bf16.msra.mxu0 %v5469
      %7784 = vmatprep.subr.bf16.mxu0 %v5466
      %7785 = vmatpush2.bf16.msra.mxu0 %v5465
      %7786 = vmatprep.subr.bf16.mxu0 %v5462
      %7787 = vmatpush2.bf16.msra.mxu0 %v5461
      %7788 = vmatprep.subr.bf16.mxu0 %v5458
      %7789 = vmatpush2.bf16.msra.mxu0 %v5457
      %7790 = vmatprep.subr.bf16.mxu0 %v5454
      %7791 = vmatpush2.bf16.msra.mxu0 %v5453
      %7792 = vmatprep.subr.bf16.mxu0 %v5450
      %7793 = vmatpush2.bf16.msra.mxu0 %v5449
      %7794 = vmatprep.subr.bf16.mxu0 %v5446
      %7795 = vmatpush2.bf16.msra.mxu0 %v5445
      %7796 = vmatprep.subr.bf16.mxu0 %v5442
      %7797 = vmatpush2.bf16.msra.mxu0 %v5441
      %7798 = vmatprep.mubr.bf16.mxu0 %v1342
      %7799 = vmatmul.mubr.bf16.gmra.mxu0 %v1340
      %v7800 = vpop.f32.mrf.mxu0
      %v7801 = vadd.f32 %v7760, %v7800
      %v7802 = vpop.f32.mrf.mxu0
      %v7803 = vadd.f32 %v7762, %v7802
      %v7804 = vpop.f32.mrf.mxu0
      %v7805 = vpop.f32.mrf.mxu0
      %7806 = vdwg.mxu0
      %vm7807 = vcmask 1043456
      %v7808 = vsel %vm7807, %v7145, 0.0
      %v7809 = vrot.slane %v7808, 4
      %v7810 = vadd.f32 %v7808, %v7809
      %v7811 = vrot.slane %v7810, 2
      %v7812 = vadd.f32 %v7810, %v7811
      %v7813 = vrot.slane %v7812, 1
      %v7814 = vadd.f32 %v7812, %v7813
      %v7815 = vsel %vm7807, %v7147, 0.0
      %v7816 = vrot.slane %v7815, 4
      %v7817 = vadd.f32 %v7815, %v7816
      %v7818 = vrot.slane %v7817, 2
      %v7819 = vadd.f32 %v7817, %v7818
      %v7820 = vrot.slane %v7819, 1
      %v7821 = vadd.f32 %v7819, %v7820
      %v7822 = vsel %vm7807, %v7801, 0.0
      %v7823 = vrot.slane %v7822, 4
      %v7824 = vadd.f32 %v7822, %v7823
      %v7825 = vrot.slane %v7824, 2
      %v7826 = vadd.f32 %v7824, %v7825
      %v7827 = vrot.slane %v7826, 1
      %v7828 = vadd.f32 %v7826, %v7827
      %v7829 = vsel %vm7807, %v7803, 0.0
      %v7830 = vrot.slane %v7829, 4
      %v7831 = vadd.f32 %v7829, %v7830
      %v7832 = vrot.slane %v7831, 2
      %v7833 = vadd.f32 %v7831, %v7832
      %v7834 = vrot.slane %v7833, 1
      %v7835 = vadd.f32 %v7833, %v7834
      %v7836 = vrcp.pop 4.0
      %v7837 = vmul.f32 %v7814, %v7836
      %v7838 = vmul.f32 %v7821, %v7836
      %v7839 = vmul.f32 %v7828, %v7836
      %v7840 = vmul.f32 %v7835, %v7836
      %v7841 = vsub.f32 %v7145, %v7837
      %v7842 = vsub.f32 %v7147, %v7838
      %v7843 = vsub.f32 %v7801, %v7839
      %v7844 = vsub.f32 %v7803, %v7840
      %v7845 = vmul.f32 %v7841, %v7841
      %v7846 = vmul.f32 %v7842, %v7842
      %v7847 = vmul.f32 %v7843, %v7843
      %v7848 = vmul.f32 %v7844, %v7844
      %v7849 = vsel %vm7807, %v7845, 0.0
      %v7850 = vrot.slane %v7849, 4
      %v7851 = vadd.f32 %v7849, %v7850
      %v7852 = vrot.slane %v7851, 2
      %v7853 = vadd.f32 %v7851, %v7852
      %v7854 = vrot.slane %v7853, 1
      %v7855 = vadd.f32 %v7853, %v7854
      %v7856 = vsel %vm7807, %v7846, 0.0
      %v7857 = vrot.slane %v7856, 4
      %v7858 = vadd.f32 %v7856, %v7857
      %v7859 = vrot.slane %v7858, 2
      %v7860 = vadd.f32 %v7858, %v7859
      %v7861 = vrot.slane %v7860, 1
      %v7862 = vadd.f32 %v7860, %v7861
      %v7863 = vsel %vm7807, %v7847, 0.0
      %v7864 = vrot.slane %v7863, 4
      %v7865 = vadd.f32 %v7863, %v7864
      %v7866 = vrot.slane %v7865, 2
      %v7867 = vadd.f32 %v7865, %v7866
      %v7868 = vrot.slane %v7867, 1
      %v7869 = vadd.f32 %v7867, %v7868
      %v7870 = vsel %vm7807, %v7848, 0.0
      %v7871 = vrot.slane %v7870, 4
      %v7872 = vadd.f32 %v7870, %v7871
      %v7873 = vrot.slane %v7872, 2
      %v7874 = vadd.f32 %v7872, %v7873
      %v7875 = vrot.slane %v7874, 1
      %v7876 = vadd.f32 %v7874, %v7875
      %v7877 = vmul.f32 %v7855, %v7836
      %v7878 = vmul.f32 %v7862, %v7836
      %v7879 = vmul.f32 %v7869, %v7836
      %v7880 = vmul.f32 %v7876, %v7836
      %v7881 = vadd.f32 %v7877, 1e-05
      %v7882 = vadd.f32 %v7878, 1e-05
      %v7883 = vadd.f32 %v7879, 1e-05
      %v7884 = vadd.f32 %v7880, 1e-05
      %v7885 = vrsqrt.pop %v7881
      %v7886 = vrsqrt.pop %v7882
      %v7887 = vrsqrt.pop %v7883
      %v7888 = vrsqrt.pop %v7884
      %v7889 = vmul.f32 %v7841, %v7885
      %v7890 = vmul.f32 %v7842, %v7886
      %v7891 = vmul.f32 %v7843, %v7887
      %v7892 = vmul.f32 %v7844, %v7888
      %vm7893 = vcmp.ge.f32.partialorder %v7889, 0.0
      %vm7894 = vcmp.ge.f32.partialorder %v7890, 0.0
      %vm7895 = vcmp.ge.f32.partialorder %v7891, 0.0
      %vm7896 = vcmp.ge.f32.partialorder %v7892, 0.0
      %v7897 = vmul.f32 %v7889, 0.2
      %v7898 = vmul.f32 %v7890, 0.2
      %v7899 = vmul.f32 %v7891, 0.2
      %v7900 = vmul.f32 %v7892, 0.2
      %v7901 = vsel %vm7893, %v7889, %v7897
      %v7902 = vsel %vm7894, %v7890, %v7898
      %v7903 = vsel %vm7895, %v7891, %v7899
      %v7904 = vsel %vm7896, %v7892, %v7900
      %v7905 = vld [vmem:[%s2] sm:$0xff]
      %v7906 = vld [vmem:[%s2 + $0x8] sm:$0xff]
      %v7907 = vld [vmem:[%s2 + $0x10] sm:$0xff]
      %v7908 = vld [vmem:[%s2 + $0x18] sm:$0xff]
      %v7909 = vld [vmem:[%s2 + $0x20] sm:$0xff]
      %v7910 = vld [vmem:[%s2 + $0x28] sm:$0xff]
      %v7911 = vld [vmem:[%s2 + $0x30] sm:$0xff]
      %v7912 = vld [vmem:[%s2 + $0x38] sm:$0xff]
      %v7913 = vld [vmem:[%s2 + $0x40] sm:$0xff]
      %v7914 = vld [vmem:[%s2 + $0x48] sm:$0xff]
      %v7915 = vld [vmem:[%s2 + $0x50] sm:$0xff]
      %v7916 = vld [vmem:[%s2 + $0x58] sm:$0xff]
      %v7917 = vld [vmem:[%s2 + $0x60] sm:$0xff]
      %v7918 = vld [vmem:[%s2 + $0x68] sm:$0xff]
      %v7919 = vld [vmem:[%s2 + $0x70] sm:$0xff]
      %v7920 = vld [vmem:[%s2 + $0x78] sm:$0xff]
      %v7921 = vld [vmem:[%s2 + $0x80] sm:$0xff]
      %v7922 = vld [vmem:[%s2 + $0x88] sm:$0xff]
      %v7923 = vld [vmem:[%s2 + $0x90] sm:$0xff]
      %v7924 = vld [vmem:[%s2 + $0x98] sm:$0xff]
      %v7925 = vld [vmem:[%s2 + $0xa0] sm:$0xff]
      %v7926 = vld [vmem:[%s2 + $0xa8] sm:$0xff]
      %v7927 = vld [vmem:[%s2 + $0xb0] sm:$0xff]
      %v7928 = vld [vmem:[%s2 + $0xb8] sm:$0xff]
      %v7929 = vld [vmem:[%s2 + $0xc0] sm:$0xff]
      %v7930 = vld [vmem:[%s2 + $0xc8] sm:$0xff]
      %v7931 = vld [vmem:[%s2 + $0xd0] sm:$0xff]
      %v7932 = vld [vmem:[%s2 + $0xd8] sm:$0xff]
      %v7933 = vld [vmem:[%s2 + $0xe0] sm:$0xff]
      %v7934 = vld [vmem:[%s2 + $0xe8] sm:$0xff]
      %v7935 = vld [vmem:[%s2 + $0xf0] sm:$0xff]
      %v7936 = vld [vmem:[%s2 + $0xf8] sm:$0xff]
      %v7937 = vld [vmem:[%s2 + $0x100] sm:$0xff]
      %v7938 = vld [vmem:[%s2 + $0x108] sm:$0xff]
      %v7939 = vld [vmem:[%s2 + $0x110] sm:$0xff]
      %v7940 = vld [vmem:[%s2 + $0x118] sm:$0xff]
      %v7941 = vld [vmem:[%s2 + $0x120] sm:$0xff]
      %v7942 = vld [vmem:[%s2 + $0x128] sm:$0xff]
      %v7943 = vld [vmem:[%s2 + $0x130] sm:$0xff]
      %v7944 = vld [vmem:[%s2 + $0x138] sm:$0xff]
      %v7945 = vld [vmem:[%s2 + $0x140] sm:$0xff]
      %v7946 = vld [vmem:[%s2 + $0x148] sm:$0xff]
      %v7947 = vld [vmem:[%s2 + $0x150] sm:$0xff]
      %v7948 = vld [vmem:[%s2 + $0x158] sm:$0xff]
      %v7949 = vld [vmem:[%s2 + $0x160] sm:$0xff]
      %v7950 = vld [vmem:[%s2 + $0x168] sm:$0xff]
      %v7951 = vld [vmem:[%s2 + $0x170] sm:$0xff]
      %v7952 = vld [vmem:[%s2 + $0x178] sm:$0xff]
      %v7953 = vld [vmem:[%s2 + $0x180] sm:$0xff]
      %v7954 = vld [vmem:[%s2 + $0x188] sm:$0xff]
      %v7955 = vld [vmem:[%s2 + $0x190] sm:$0xff]
      %v7956 = vld [vmem:[%s2 + $0x198] sm:$0xff]
      %v7957 = vld [vmem:[%s2 + $0x1a0] sm:$0xff]
      %v7958 = vld [vmem:[%s2 + $0x1a8] sm:$0xff]
      %v7959 = vld [vmem:[%s2 + $0x1b0] sm:$0xff]
      %v7960 = vld [vmem:[%s2 + $0x1b8] sm:$0xff]
      %v7961 = vld [vmem:[%s2 + $0x1c0] sm:$0xff]
      %v7962 = vld [vmem:[%s2 + $0x1c8] sm:$0xff]
      %v7963 = vld [vmem:[%s2 + $0x1d0] sm:$0xff]
      %v7964 = vld [vmem:[%s2 + $0x1d8] sm:$0xff]
      %v7965 = vld [vmem:[%s2 + $0x1e0] sm:$0xff]
      %v7966 = vld [vmem:[%s2 + $0x1e8] sm:$0xff]
      %v7967 = vld [vmem:[%s2 + $0x1f0] sm:$0xff]
      %v7968 = vld [vmem:[%s2 + $0x1f8] sm:$0xff]
      %s7969 = scalar_lea.vmem %s2, 512
      %v7970 = vld [vmem:[%s7969] sm:$0xff]
      %v7971 = vld [vmem:[%s7969 + $0x8] sm:$0xff]
      %v7972 = vld [vmem:[%s7969 + $0x10] sm:$0xff]
      %v7973 = vld [vmem:[%s7969 + $0x18] sm:$0xff]
      %v7974 = vld [vmem:[%s7969 + $0x20] sm:$0xff]
      %v7975 = vld [vmem:[%s7969 + $0x28] sm:$0xff]
      %v7976 = vld [vmem:[%s7969 + $0x30] sm:$0xff]
      %v7977 = vld [vmem:[%s7969 + $0x38] sm:$0xff]
      %v7978 = vld [vmem:[%s7969 + $0x40] sm:$0xff]
      %v7979 = vld [vmem:[%s7969 + $0x48] sm:$0xff]
      %v7980 = vld [vmem:[%s7969 + $0x50] sm:$0xff]
      %v7981 = vld [vmem:[%s7969 + $0x58] sm:$0xff]
      %v7982 = vld [vmem:[%s7969 + $0x60] sm:$0xff]
      %v7983 = vld [vmem:[%s7969 + $0x68] sm:$0xff]
      %v7984 = vld [vmem:[%s7969 + $0x70] sm:$0xff]
      %v7985 = vld [vmem:[%s7969 + $0x78] sm:$0xff]
      %v7986 = vld [vmem:[%s7969 + $0x80] sm:$0xff]
      %v7987 = vld [vmem:[%s7969 + $0x88] sm:$0xff]
      %v7988 = vld [vmem:[%s7969 + $0x90] sm:$0xff]
      %v7989 = vld [vmem:[%s7969 + $0x98] sm:$0xff]
      %v7990 = vld [vmem:[%s7969 + $0xa0] sm:$0xff]
      %v7991 = vld [vmem:[%s7969 + $0xa8] sm:$0xff]
      %v7992 = vld [vmem:[%s7969 + $0xb0] sm:$0xff]
      %v7993 = vld [vmem:[%s7969 + $0xb8] sm:$0xff]
      %v7994 = vld [vmem:[%s7969 + $0xc0] sm:$0xff]
      %v7995 = vld [vmem:[%s7969 + $0xc8] sm:$0xff]
      %v7996 = vld [vmem:[%s7969 + $0xd0] sm:$0xff]
      %v7997 = vld [vmem:[%s7969 + $0xd8] sm:$0xff]
      %v7998 = vld [vmem:[%s7969 + $0xe0] sm:$0xff]
      %v7999 = vld [vmem:[%s7969 + $0xe8] sm:$0xff]
      %v8000 = vld [vmem:[%s7969 + $0xf0] sm:$0xff]
      %v8001 = vld [vmem:[%s7969 + $0xf8] sm:$0xff]
      %v8002 = vld [vmem:[%s7969 + $0x100] sm:$0xff]
      %v8003 = vld [vmem:[%s7969 + $0x108] sm:$0xff]
      %v8004 = vld [vmem:[%s7969 + $0x110] sm:$0xff]
      %v8005 = vld [vmem:[%s7969 + $0x118] sm:$0xff]
      %v8006 = vld [vmem:[%s7969 + $0x120] sm:$0xff]
      %v8007 = vld [vmem:[%s7969 + $0x128] sm:$0xff]
      %v8008 = vld [vmem:[%s7969 + $0x130] sm:$0xff]
      %v8009 = vld [vmem:[%s7969 + $0x138] sm:$0xff]
      %v8010 = vld [vmem:[%s7969 + $0x140] sm:$0xff]
      %v8011 = vld [vmem:[%s7969 + $0x148] sm:$0xff]
      %v8012 = vld [vmem:[%s7969 + $0x150] sm:$0xff]
      %v8013 = vld [vmem:[%s7969 + $0x158] sm:$0xff]
      %v8014 = vld [vmem:[%s7969 + $0x160] sm:$0xff]
      %v8015 = vld [vmem:[%s7969 + $0x168] sm:$0xff]
      %v8016 = vld [vmem:[%s7969 + $0x170] sm:$0xff]
      %v8017 = vld [vmem:[%s7969 + $0x178] sm:$0xff]
      %v8018 = vld [vmem:[%s7969 + $0x180] sm:$0xff]
      %v8019 = vld [vmem:[%s7969 + $0x188] sm:$0xff]
      %v8020 = vld [vmem:[%s7969 + $0x190] sm:$0xff]
      %v8021 = vld [vmem:[%s7969 + $0x198] sm:$0xff]
      %v8022 = vld [vmem:[%s7969 + $0x1a0] sm:$0xff]
      %v8023 = vld [vmem:[%s7969 + $0x1a8] sm:$0xff]
      %v8024 = vld [vmem:[%s7969 + $0x1b0] sm:$0xff]
      %v8025 = vld [vmem:[%s7969 + $0x1b8] sm:$0xff]
      %v8026 = vld [vmem:[%s7969 + $0x1c0] sm:$0xff]
      %v8027 = vld [vmem:[%s7969 + $0x1c8] sm:$0xff]
      %v8028 = vld [vmem:[%s7969 + $0x1d0] sm:$0xff]
      %v8029 = vld [vmem:[%s7969 + $0x1d8] sm:$0xff]
      %v8030 = vld [vmem:[%s7969 + $0x1e0] sm:$0xff]
      %v8031 = vld [vmem:[%s7969 + $0x1e8] sm:$0xff]
      %v8032 = vld [vmem:[%s7969 + $0x1f0] sm:$0xff]
      %v8033 = vld [vmem:[%s7969 + $0x1f8] sm:$0xff]
      %v8038 = vrot.slane %v7901, 1
      %v8039 = vrot.slane %v7902, 1
      %v8040 = vrot.slane %v7903, 1
      %v8041 = vrot.slane %v7904, 1
      %8046 = vmatprep.subr.mxu0 0.0
      %8047 = vmatpush1.msra.mxu0 %v7985
      %8048 = vmatprep.subr.mxu0 0.0
      %8049 = vmatpush1.msra.mxu0 %v7984
      %8050 = vmatprep.subr.mxu0 0.0
      %8051 = vmatpush1.msra.mxu0 %v7983
      %8052 = vmatprep.subr.mxu0 0.0
      %8053 = vmatpush1.msra.mxu0 %v7982
      %8054 = vmatprep.subr.mxu0 0.0
      %8055 = vmatpush1.msra.mxu0 %v7981
      %8056 = vmatprep.subr.mxu0 0.0
      %8057 = vmatpush1.msra.mxu0 %v7980
      %8058 = vmatprep.subr.mxu0 0.0
      %8059 = vmatpush1.msra.mxu0 %v7979
      %8060 = vmatprep.subr.mxu0 0.0
      %8061 = vmatpush1.msra.mxu0 %v7978
      %8062 = vmatprep.subr.mxu0 0.0
      %8063 = vmatpush1.msra.mxu0 %v7977
      %8064 = vmatprep.subr.mxu0 0.0
      %8065 = vmatpush1.msra.mxu0 %v7976
      %8066 = vmatprep.subr.mxu0 0.0
      %8067 = vmatpush1.msra.mxu0 %v7975
      %8068 = vmatprep.subr.mxu0 0.0
      %8069 = vmatpush1.msra.mxu0 %v7974
      %8070 = vmatprep.subr.mxu0 0.0
      %8071 = vmatpush1.msra.mxu0 %v7973
      %8072 = vmatprep.subr.mxu0 0.0
      %8073 = vmatpush1.msra.mxu0 %v7972
      %8074 = vmatprep.subr.mxu0 0.0
      %8075 = vmatpush1.msra.mxu0 %v7971
      %8076 = vmatprep.subr.mxu0 0.0
      %8077 = vmatpush1.msra.mxu0 %v7970
      %8078 = vmatprep.subr.mxu0 0.0
      %8079 = vmatpush2.msra.mxu0 %v8001
      %8080 = vmatprep.subr.mxu0 0.0
      %8081 = vmatpush2.msra.mxu0 %v8000
      %8082 = vmatprep.subr.mxu0 0.0
      %8083 = vmatpush2.msra.mxu0 %v7999
      %8084 = vmatprep.subr.mxu0 0.0
      %8085 = vmatpush2.msra.mxu0 %v7998
      %8086 = vmatprep.subr.mxu0 0.0
      %8087 = vmatpush2.msra.mxu0 %v7997
      %8088 = vmatprep.subr.mxu0 0.0
      %8089 = vmatpush2.msra.mxu0 %v7996
      %8090 = vmatprep.subr.mxu0 0.0
      %8091 = vmatpush2.msra.mxu0 %v7995
      %8092 = vmatprep.subr.mxu0 0.0
      %8093 = vmatpush2.msra.mxu0 %v7994
      %8094 = vmatprep.subr.mxu0 0.0
      %8095 = vmatpush2.msra.mxu0 %v7993
      %8096 = vmatprep.subr.mxu0 0.0
      %8097 = vmatpush2.msra.mxu0 %v7992
      %8098 = vmatprep.subr.mxu0 0.0
      %8099 = vmatpush2.msra.mxu0 %v7991
      %8100 = vmatprep.subr.mxu0 0.0
      %8101 = vmatpush2.msra.mxu0 %v7990
      %8102 = vmatprep.subr.mxu0 0.0
      %8103 = vmatpush2.msra.mxu0 %v7989
      %8104 = vmatprep.subr.mxu0 0.0
      %8105 = vmatpush2.msra.mxu0 %v7988
      %8106 = vmatprep.subr.mxu0 0.0
      %8107 = vmatpush2.msra.mxu0 %v7987
      %8108 = vmatprep.subr.mxu0 0.0
      %8109 = vmatpush2.msra.mxu0 %v7986
      %8110 = vmatprep.mubr.f32.mxu0 %v8039
      %8111 = vmatmul.mubr.f32.gmra.mxu0 %v8038
      %v8112 = vpop.f32.mrf.mxu0
      %v8113 = vadd.f32 0.0, %v8112
      %v8114 = vpop.f32.mrf.mxu0
      %8115 = vdwg.mxu0
      %8116 = vmatprep.subr.mxu0 0.0
      %8117 = vmatpush1.msra.mxu0 %v8017
      %8118 = vmatprep.subr.mxu0 0.0
      %8119 = vmatpush1.msra.mxu0 %v8016
      %8120 = vmatprep.subr.mxu0 0.0
      %8121 = vmatpush1.msra.mxu0 %v8015
      %8122 = vmatprep.subr.mxu0 0.0
      %8123 = vmatpush1.msra.mxu0 %v8014
      %8124 = vmatprep.subr.mxu0 0.0
      %8125 = vmatpush1.msra.mxu0 %v8013
      %8126 = vmatprep.subr.mxu0 0.0
      %8127 = vmatpush1.msra.mxu0 %v8012
      %8128 = vmatprep.subr.mxu0 0.0
      %8129 = vmatpush1.msra.mxu0 %v8011
      %8130 = vmatprep.subr.mxu0 0.0
      %8131 = vmatpush1.msra.mxu0 %v8010
      %8132 = vmatprep.subr.mxu0 0.0
      %8133 = vmatpush1.msra.mxu0 %v8009
      %8134 = vmatprep.subr.mxu0 0.0
      %8135 = vmatpush1.msra.mxu0 %v8008
      %8136 = vmatprep.subr.mxu0 0.0
      %8137 = vmatpush1.msra.mxu0 %v8007
      %8138 = vmatprep.subr.mxu0 0.0
      %8139 = vmatpush1.msra.mxu0 %v8006
      %8140 = vmatprep.subr.mxu0 0.0
      %8141 = vmatpush1.msra.mxu0 %v8005
      %8142 = vmatprep.subr.mxu0 0.0
      %8143 = vmatpush1.msra.mxu0 %v8004
      %8144 = vmatprep.subr.mxu0 0.0
      %8145 = vmatpush1.msra.mxu0 %v8003
      %8146 = vmatprep.subr.mxu0 0.0
      %8147 = vmatpush1.msra.mxu0 %v8002
      %8148 = vmatprep.subr.mxu0 0.0
      %8149 = vmatpush2.msra.mxu0 %v8033
      %8150 = vmatprep.subr.mxu0 0.0
      %8151 = vmatpush2.msra.mxu0 %v8032
      %8152 = vmatprep.subr.mxu0 0.0
      %8153 = vmatpush2.msra.mxu0 %v8031
      %8154 = vmatprep.subr.mxu0 0.0
      %8155 = vmatpush2.msra.mxu0 %v8030
      %8156 = vmatprep.subr.mxu0 0.0
      %8157 = vmatpush2.msra.mxu0 %v8029
      %8158 = vmatprep.subr.mxu0 0.0
      %8159 = vmatpush2.msra.mxu0 %v8028
      %8160 = vmatprep.subr.mxu0 0.0
      %8161 = vmatpush2.msra.mxu0 %v8027
      %8162 = vmatprep.subr.mxu0 0.0
      %8163 = vmatpush2.msra.mxu0 %v8026
      %8164 = vmatprep.subr.mxu0 0.0
      %8165 = vmatpush2.msra.mxu0 %v8025
      %8166 = vmatprep.subr.mxu0 0.0
      %8167 = vmatpush2.msra.mxu0 %v8024
      %8168 = vmatprep.subr.mxu0 0.0
      %8169 = vmatpush2.msra.mxu0 %v8023
      %8170 = vmatprep.subr.mxu0 0.0
      %8171 = vmatpush2.msra.mxu0 %v8022
      %8172 = vmatprep.subr.mxu0 0.0
      %8173 = vmatpush2.msra.mxu0 %v8021
      %8174 = vmatprep.subr.mxu0 0.0
      %8175 = vmatpush2.msra.mxu0 %v8020
      %8176 = vmatprep.subr.mxu0 0.0
      %8177 = vmatpush2.msra.mxu0 %v8019
      %8178 = vmatprep.subr.mxu0 0.0
      %8179 = vmatpush2.msra.mxu0 %v8018
      %8180 = vmatprep.mubr.f32.mxu0 %v8041
      %8181 = vmatmul.mubr.f32.gmra.mxu0 %v8040
      %v8182 = vpop.f32.mrf.mxu0
      %v8183 = vadd.f32 %v8113, %v8182
      %v8184 = vpop.f32.mrf.mxu0
      %8185 = vdwg.mxu0
      %8186 = vmatprep.subr.mxu0 0.0
      %8187 = vmatpush1.msra.mxu0 %v7920
      %8188 = vmatprep.subr.mxu0 0.0
      %8189 = vmatpush1.msra.mxu0 %v7919
      %8190 = vmatprep.subr.mxu0 0.0
      %8191 = vmatpush1.msra.mxu0 %v7918
      %8192 = vmatprep.subr.mxu0 0.0
      %8193 = vmatpush1.msra.mxu0 %v7917
      %8194 = vmatprep.subr.mxu0 0.0
      %8195 = vmatpush1.msra.mxu0 %v7916
      %8196 = vmatprep.subr.mxu0 0.0
      %8197 = vmatpush1.msra.mxu0 %v7915
      %8198 = vmatprep.subr.mxu0 0.0
      %8199 = vmatpush1.msra.mxu0 %v7914
      %8200 = vmatprep.subr.mxu0 0.0
      %8201 = vmatpush1.msra.mxu0 %v7913
      %8202 = vmatprep.subr.mxu0 0.0
      %8203 = vmatpush1.msra.mxu0 %v7912
      %8204 = vmatprep.subr.mxu0 0.0
      %8205 = vmatpush1.msra.mxu0 %v7911
      %8206 = vmatprep.subr.mxu0 0.0
      %8207 = vmatpush1.msra.mxu0 %v7910
      %8208 = vmatprep.subr.mxu0 0.0
      %8209 = vmatpush1.msra.mxu0 %v7909
      %8210 = vmatprep.subr.mxu0 0.0
      %8211 = vmatpush1.msra.mxu0 %v7908
      %8212 = vmatprep.subr.mxu0 0.0
      %8213 = vmatpush1.msra.mxu0 %v7907
      %8214 = vmatprep.subr.mxu0 0.0
      %8215 = vmatpush1.msra.mxu0 %v7906
      %8216 = vmatprep.subr.mxu0 0.0
      %8217 = vmatpush1.msra.mxu0 %v7905
      %8218 = vmatprep.subr.mxu0 0.0
      %8219 = vmatpush2.msra.mxu0 %v7936
      %8220 = vmatprep.subr.mxu0 0.0
      %8221 = vmatpush2.msra.mxu0 %v7935
      %8222 = vmatprep.subr.mxu0 0.0
      %8223 = vmatpush2.msra.mxu0 %v7934
      %8224 = vmatprep.subr.mxu0 0.0
      %8225 = vmatpush2.msra.mxu0 %v7933
      %8226 = vmatprep.subr.mxu0 0.0
      %8227 = vmatpush2.msra.mxu0 %v7932
      %8228 = vmatprep.subr.mxu0 0.0
      %8229 = vmatpush2.msra.mxu0 %v7931
      %8230 = vmatprep.subr.mxu0 0.0
      %8231 = vmatpush2.msra.mxu0 %v7930
      %8232 = vmatprep.subr.mxu0 0.0
      %8233 = vmatpush2.msra.mxu0 %v7929
      %8234 = vmatprep.subr.mxu0 0.0
      %8235 = vmatpush2.msra.mxu0 %v7928
      %8236 = vmatprep.subr.mxu0 0.0
      %8237 = vmatpush2.msra.mxu0 %v7927
      %8238 = vmatprep.subr.mxu0 0.0
      %8239 = vmatpush2.msra.mxu0 %v7926
      %8240 = vmatprep.subr.mxu0 0.0
      %8241 = vmatpush2.msra.mxu0 %v7925
      %8242 = vmatprep.subr.mxu0 0.0
      %8243 = vmatpush2.msra.mxu0 %v7924
      %8244 = vmatprep.subr.mxu0 0.0
      %8245 = vmatpush2.msra.mxu0 %v7923
      %8246 = vmatprep.subr.mxu0 0.0
      %8247 = vmatpush2.msra.mxu0 %v7922
      %8248 = vmatprep.subr.mxu0 0.0
      %8249 = vmatpush2.msra.mxu0 %v7921
      %8250 = vmatprep.mubr.f32.mxu0 %v7902
      %8251 = vmatmul.mubr.f32.gmra.mxu0 %v7901
      %v8252 = vpop.f32.mrf.mxu0
      %v8253 = vadd.f32 %v8183, %v8252
      %v8254 = vpop.f32.mrf.mxu0
      %8255 = vdwg.mxu0
      %8256 = vmatprep.subr.mxu0 0.0
      %8257 = vmatpush1.msra.mxu0 %v7952
      %8258 = vmatprep.subr.mxu0 0.0
      %8259 = vmatpush1.msra.mxu0 %v7951
      %8260 = vmatprep.subr.mxu0 0.0
      %8261 = vmatpush1.msra.mxu0 %v7950
      %8262 = vmatprep.subr.mxu0 0.0
      %8263 = vmatpush1.msra.mxu0 %v7949
      %8264 = vmatprep.subr.mxu0 0.0
      %8265 = vmatpush1.msra.mxu0 %v7948
      %8266 = vmatprep.subr.mxu0 0.0
      %8267 = vmatpush1.msra.mxu0 %v7947
      %8268 = vmatprep.subr.mxu0 0.0
      %8269 = vmatpush1.msra.mxu0 %v7946
      %8270 = vmatprep.subr.mxu0 0.0
      %8271 = vmatpush1.msra.mxu0 %v7945
      %8272 = vmatprep.subr.mxu0 0.0
      %8273 = vmatpush1.msra.mxu0 %v7944
      %8274 = vmatprep.subr.mxu0 0.0
      %8275 = vmatpush1.msra.mxu0 %v7943
      %8276 = vmatprep.subr.mxu0 0.0
      %8277 = vmatpush1.msra.mxu0 %v7942
      %8278 = vmatprep.subr.mxu0 0.0
      %8279 = vmatpush1.msra.mxu0 %v7941
      %8280 = vmatprep.subr.mxu0 0.0
      %8281 = vmatpush1.msra.mxu0 %v7940
      %8282 = vmatprep.subr.mxu0 0.0
      %8283 = vmatpush1.msra.mxu0 %v7939
      %8284 = vmatprep.subr.mxu0 0.0
      %8285 = vmatpush1.msra.mxu0 %v7938
      %8286 = vmatprep.subr.mxu0 0.0
      %8287 = vmatpush1.msra.mxu0 %v7937
      %8288 = vmatprep.subr.mxu0 0.0
      %8289 = vmatpush2.msra.mxu0 %v7968
      %8290 = vmatprep.subr.mxu0 0.0
      %8291 = vmatpush2.msra.mxu0 %v7967
      %8292 = vmatprep.subr.mxu0 0.0
      %8293 = vmatpush2.msra.mxu0 %v7966
      %8294 = vmatprep.subr.mxu0 0.0
      %8295 = vmatpush2.msra.mxu0 %v7965
      %8296 = vmatprep.subr.mxu0 0.0
      %8297 = vmatpush2.msra.mxu0 %v7964
      %8298 = vmatprep.subr.mxu0 0.0
      %8299 = vmatpush2.msra.mxu0 %v7963
      %8300 = vmatprep.subr.mxu0 0.0
      %8301 = vmatpush2.msra.mxu0 %v7962
      %8302 = vmatprep.subr.mxu0 0.0
      %8303 = vmatpush2.msra.mxu0 %v7961
      %8304 = vmatprep.subr.mxu0 0.0
      %8305 = vmatpush2.msra.mxu0 %v7960
      %8306 = vmatprep.subr.mxu0 0.0
      %8307 = vmatpush2.msra.mxu0 %v7959
      %8308 = vmatprep.subr.mxu0 0.0
      %8309 = vmatpush2.msra.mxu0 %v7958
      %8310 = vmatprep.subr.mxu0 0.0
      %8311 = vmatpush2.msra.mxu0 %v7957
      %8312 = vmatprep.subr.mxu0 0.0
      %8313 = vmatpush2.msra.mxu0 %v7956
      %8314 = vmatprep.subr.mxu0 0.0
      %8315 = vmatpush2.msra.mxu0 %v7955
      %8316 = vmatprep.subr.mxu0 0.0
      %8317 = vmatpush2.msra.mxu0 %v7954
      %8318 = vmatprep.subr.mxu0 0.0
      %8319 = vmatpush2.msra.mxu0 %v7953
      %8320 = vmatprep.mubr.f32.mxu0 %v7904
      %8321 = vmatmul.mubr.f32.gmra.mxu0 %v7903
      %v8322 = vpop.f32.mrf.mxu0
      %v8323 = vadd.f32 %v8253, %v8322
      %v8324 = vpop.f32.mrf.mxu0
      %8325 = vdwg.mxu0
      %s8326 = scalar_lea.vmem %s2, 1024
      %v8327 = vld [vmem:[%s8326] sm:$0xff]
      %v8328 = vld [vmem:[%s8326 + $0x8] sm:$0xff]
      %v8329 = vld [vmem:[%s8326 + $0x10] sm:$0xff]
      %v8330 = vld [vmem:[%s8326 + $0x18] sm:$0xff]
      %v8331 = vld [vmem:[%s8326 + $0x20] sm:$0xff]
      %v8332 = vld [vmem:[%s8326 + $0x28] sm:$0xff]
      %v8333 = vld [vmem:[%s8326 + $0x30] sm:$0xff]
      %v8334 = vld [vmem:[%s8326 + $0x38] sm:$0xff]
      %v8335 = vld [vmem:[%s8326 + $0x40] sm:$0xff]
      %v8336 = vld [vmem:[%s8326 + $0x48] sm:$0xff]
      %v8337 = vld [vmem:[%s8326 + $0x50] sm:$0xff]
      %v8338 = vld [vmem:[%s8326 + $0x58] sm:$0xff]
      %v8339 = vld [vmem:[%s8326 + $0x60] sm:$0xff]
      %v8340 = vld [vmem:[%s8326 + $0x68] sm:$0xff]
      %v8341 = vld [vmem:[%s8326 + $0x70] sm:$0xff]
      %v8342 = vld [vmem:[%s8326 + $0x78] sm:$0xff]
      %v8343 = vld [vmem:[%s8326 + $0x80] sm:$0xff]
      %v8344 = vld [vmem:[%s8326 + $0x88] sm:$0xff]
      %v8345 = vld [vmem:[%s8326 + $0x90] sm:$0xff]
      %v8346 = vld [vmem:[%s8326 + $0x98] sm:$0xff]
      %v8347 = vld [vmem:[%s8326 + $0xa0] sm:$0xff]
      %v8348 = vld [vmem:[%s8326 + $0xa8] sm:$0xff]
      %v8349 = vld [vmem:[%s8326 + $0xb0] sm:$0xff]
      %v8350 = vld [vmem:[%s8326 + $0xb8] sm:$0xff]
      %v8351 = vld [vmem:[%s8326 + $0xc0] sm:$0xff]
      %v8352 = vld [vmem:[%s8326 + $0xc8] sm:$0xff]
      %v8353 = vld [vmem:[%s8326 + $0xd0] sm:$0xff]
      %v8354 = vld [vmem:[%s8326 + $0xd8] sm:$0xff]
      %v8355 = vld [vmem:[%s8326 + $0xe0] sm:$0xff]
      %v8356 = vld [vmem:[%s8326 + $0xe8] sm:$0xff]
      %v8357 = vld [vmem:[%s8326 + $0xf0] sm:$0xff]
      %v8358 = vld [vmem:[%s8326 + $0xf8] sm:$0xff]
      %v8359 = vld [vmem:[%s8326 + $0x100] sm:$0xff]
      %v8360 = vld [vmem:[%s8326 + $0x108] sm:$0xff]
      %v8361 = vld [vmem:[%s8326 + $0x110] sm:$0xff]
      %v8362 = vld [vmem:[%s8326 + $0x118] sm:$0xff]
      %v8363 = vld [vmem:[%s8326 + $0x120] sm:$0xff]
      %v8364 = vld [vmem:[%s8326 + $0x128] sm:$0xff]
      %v8365 = vld [vmem:[%s8326 + $0x130] sm:$0xff]
      %v8366 = vld [vmem:[%s8326 + $0x138] sm:$0xff]
      %v8367 = vld [vmem:[%s8326 + $0x140] sm:$0xff]
      %v8368 = vld [vmem:[%s8326 + $0x148] sm:$0xff]
      %v8369 = vld [vmem:[%s8326 + $0x150] sm:$0xff]
      %v8370 = vld [vmem:[%s8326 + $0x158] sm:$0xff]
      %v8371 = vld [vmem:[%s8326 + $0x160] sm:$0xff]
      %v8372 = vld [vmem:[%s8326 + $0x168] sm:$0xff]
      %v8373 = vld [vmem:[%s8326 + $0x170] sm:$0xff]
      %v8374 = vld [vmem:[%s8326 + $0x178] sm:$0xff]
      %v8375 = vld [vmem:[%s8326 + $0x180] sm:$0xff]
      %v8376 = vld [vmem:[%s8326 + $0x188] sm:$0xff]
      %v8377 = vld [vmem:[%s8326 + $0x190] sm:$0xff]
      %v8378 = vld [vmem:[%s8326 + $0x198] sm:$0xff]
      %v8379 = vld [vmem:[%s8326 + $0x1a0] sm:$0xff]
      %v8380 = vld [vmem:[%s8326 + $0x1a8] sm:$0xff]
      %v8381 = vld [vmem:[%s8326 + $0x1b0] sm:$0xff]
      %v8382 = vld [vmem:[%s8326 + $0x1b8] sm:$0xff]
      %v8383 = vld [vmem:[%s8326 + $0x1c0] sm:$0xff]
      %v8384 = vld [vmem:[%s8326 + $0x1c8] sm:$0xff]
      %v8385 = vld [vmem:[%s8326 + $0x1d0] sm:$0xff]
      %v8386 = vld [vmem:[%s8326 + $0x1d8] sm:$0xff]
      %v8387 = vld [vmem:[%s8326 + $0x1e0] sm:$0xff]
      %v8388 = vld [vmem:[%s8326 + $0x1e8] sm:$0xff]
      %v8389 = vld [vmem:[%s8326 + $0x1f0] sm:$0xff]
      %v8390 = vld [vmem:[%s8326 + $0x1f8] sm:$0xff]
      %v8391 = vrot.slane %v7901, 2
      %v8392 = vrot.slane %v7902, 2
      %v8393 = vrot.slane %v7903, 2
      %v8394 = vrot.slane %v7904, 2
      %8399 = vmatprep.subr.mxu0 0.0
      %8400 = vmatpush1.msra.mxu0 %v8342
      %8401 = vmatprep.subr.mxu0 0.0
      %8402 = vmatpush1.msra.mxu0 %v8341
      %8403 = vmatprep.subr.mxu0 0.0
      %8404 = vmatpush1.msra.mxu0 %v8340
      %8405 = vmatprep.subr.mxu0 0.0
      %8406 = vmatpush1.msra.mxu0 %v8339
      %8407 = vmatprep.subr.mxu0 0.0
      %8408 = vmatpush1.msra.mxu0 %v8338
      %8409 = vmatprep.subr.mxu0 0.0
      %8410 = vmatpush1.msra.mxu0 %v8337
      %8411 = vmatprep.subr.mxu0 0.0
      %8412 = vmatpush1.msra.mxu0 %v8336
      %8413 = vmatprep.subr.mxu0 0.0
      %8414 = vmatpush1.msra.mxu0 %v8335
      %8415 = vmatprep.subr.mxu0 0.0
      %8416 = vmatpush1.msra.mxu0 %v8334
      %8417 = vmatprep.subr.mxu0 0.0
      %8418 = vmatpush1.msra.mxu0 %v8333
      %8419 = vmatprep.subr.mxu0 0.0
      %8420 = vmatpush1.msra.mxu0 %v8332
      %8421 = vmatprep.subr.mxu0 0.0
      %8422 = vmatpush1.msra.mxu0 %v8331
      %8423 = vmatprep.subr.mxu0 0.0
      %8424 = vmatpush1.msra.mxu0 %v8330
      %8425 = vmatprep.subr.mxu0 0.0
      %8426 = vmatpush1.msra.mxu0 %v8329
      %8427 = vmatprep.subr.mxu0 0.0
      %8428 = vmatpush1.msra.mxu0 %v8328
      %8429 = vmatprep.subr.mxu0 0.0
      %8430 = vmatpush1.msra.mxu0 %v8327
      %8431 = vmatprep.subr.mxu0 0.0
      %8432 = vmatpush2.msra.mxu0 %v8358
      %8433 = vmatprep.subr.mxu0 0.0
      %8434 = vmatpush2.msra.mxu0 %v8357
      %8435 = vmatprep.subr.mxu0 0.0
      %8436 = vmatpush2.msra.mxu0 %v8356
      %8437 = vmatprep.subr.mxu0 0.0
      %8438 = vmatpush2.msra.mxu0 %v8355
      %8439 = vmatprep.subr.mxu0 0.0
      %8440 = vmatpush2.msra.mxu0 %v8354
      %8441 = vmatprep.subr.mxu0 0.0
      %8442 = vmatpush2.msra.mxu0 %v8353
      %8443 = vmatprep.subr.mxu0 0.0
      %8444 = vmatpush2.msra.mxu0 %v8352
      %8445 = vmatprep.subr.mxu0 0.0
      %8446 = vmatpush2.msra.mxu0 %v8351
      %8447 = vmatprep.subr.mxu0 0.0
      %8448 = vmatpush2.msra.mxu0 %v8350
      %8449 = vmatprep.subr.mxu0 0.0
      %8450 = vmatpush2.msra.mxu0 %v8349
      %8451 = vmatprep.subr.mxu0 0.0
      %8452 = vmatpush2.msra.mxu0 %v8348
      %8453 = vmatprep.subr.mxu0 0.0
      %8454 = vmatpush2.msra.mxu0 %v8347
      %8455 = vmatprep.subr.mxu0 0.0
      %8456 = vmatpush2.msra.mxu0 %v8346
      %8457 = vmatprep.subr.mxu0 0.0
      %8458 = vmatpush2.msra.mxu0 %v8345
      %8459 = vmatprep.subr.mxu0 0.0
      %8460 = vmatpush2.msra.mxu0 %v8344
      %8461 = vmatprep.subr.mxu0 0.0
      %8462 = vmatpush2.msra.mxu0 %v8343
      %8463 = vmatprep.mubr.f32.mxu0 %v8392
      %8464 = vmatmul.mubr.f32.gmra.mxu0 %v8391
      %v8465 = vpop.f32.mrf.mxu0
      %v8466 = vadd.f32 0.0, %v8465
      %v8467 = vpop.f32.mrf.mxu0
      %8468 = vdwg.mxu0
      %8469 = vmatprep.subr.mxu0 0.0
      %8470 = vmatpush1.msra.mxu0 %v8374
      %8471 = vmatprep.subr.mxu0 0.0
      %8472 = vmatpush1.msra.mxu0 %v8373
      %8473 = vmatprep.subr.mxu0 0.0
      %8474 = vmatpush1.msra.mxu0 %v8372
      %8475 = vmatprep.subr.mxu0 0.0
      %8476 = vmatpush1.msra.mxu0 %v8371
      %8477 = vmatprep.subr.mxu0 0.0
      %8478 = vmatpush1.msra.mxu0 %v8370
      %8479 = vmatprep.subr.mxu0 0.0
      %8480 = vmatpush1.msra.mxu0 %v8369
      %8481 = vmatprep.subr.mxu0 0.0
      %8482 = vmatpush1.msra.mxu0 %v8368
      %8483 = vmatprep.subr.mxu0 0.0
      %8484 = vmatpush1.msra.mxu0 %v8367
      %8485 = vmatprep.subr.mxu0 0.0
      %8486 = vmatpush1.msra.mxu0 %v8366
      %8487 = vmatprep.subr.mxu0 0.0
      %8488 = vmatpush1.msra.mxu0 %v8365
      %8489 = vmatprep.subr.mxu0 0.0
      %8490 = vmatpush1.msra.mxu0 %v8364
      %8491 = vmatprep.subr.mxu0 0.0
      %8492 = vmatpush1.msra.mxu0 %v8363
      %8493 = vmatprep.subr.mxu0 0.0
      %8494 = vmatpush1.msra.mxu0 %v8362
      %8495 = vmatprep.subr.mxu0 0.0
      %8496 = vmatpush1.msra.mxu0 %v8361
      %8497 = vmatprep.subr.mxu0 0.0
      %8498 = vmatpush1.msra.mxu0 %v8360
      %8499 = vmatprep.subr.mxu0 0.0
      %8500 = vmatpush1.msra.mxu0 %v8359
      %8501 = vmatprep.subr.mxu0 0.0
      %8502 = vmatpush2.msra.mxu0 %v8390
      %8503 = vmatprep.subr.mxu0 0.0
      %8504 = vmatpush2.msra.mxu0 %v8389
      %8505 = vmatprep.subr.mxu0 0.0
      %8506 = vmatpush2.msra.mxu0 %v8388
      %8507 = vmatprep.subr.mxu0 0.0
      %8508 = vmatpush2.msra.mxu0 %v8387
      %8509 = vmatprep.subr.mxu0 0.0
      %8510 = vmatpush2.msra.mxu0 %v8386
      %8511 = vmatprep.subr.mxu0 0.0
      %8512 = vmatpush2.msra.mxu0 %v8385
      %8513 = vmatprep.subr.mxu0 0.0
      %8514 = vmatpush2.msra.mxu0 %v8384
      %8515 = vmatprep.subr.mxu0 0.0
      %8516 = vmatpush2.msra.mxu0 %v8383
      %8517 = vmatprep.subr.mxu0 0.0
      %8518 = vmatpush2.msra.mxu0 %v8382
      %8519 = vmatprep.subr.mxu0 0.0
      %8520 = vmatpush2.msra.mxu0 %v8381
      %8521 = vmatprep.subr.mxu0 0.0
      %8522 = vmatpush2.msra.mxu0 %v8380
      %8523 = vmatprep.subr.mxu0 0.0
      %8524 = vmatpush2.msra.mxu0 %v8379
      %8525 = vmatprep.subr.mxu0 0.0
      %8526 = vmatpush2.msra.mxu0 %v8378
      %8527 = vmatprep.subr.mxu0 0.0
      %8528 = vmatpush2.msra.mxu0 %v8377
      %8529 = vmatprep.subr.mxu0 0.0
      %8530 = vmatpush2.msra.mxu0 %v8376
      %8531 = vmatprep.subr.mxu0 0.0
      %8532 = vmatpush2.msra.mxu0 %v8375
      %8533 = vmatprep.mubr.f32.mxu0 %v8394
      %8534 = vmatmul.mubr.f32.gmra.mxu0 %v8393
      %v8535 = vpop.f32.mrf.mxu0
      %v8536 = vadd.f32 %v8466, %v8535
      %v8537 = vpop.f32.mrf.mxu0
      %8538 = vdwg.mxu0
      %v8539 = vadd.f32 %v8323, %v8536
      %s8540 = scalar_lea.vmem %s2, 1536
      %v8541 = vld [vmem:[%s8540] sm:$0xff]
      %v8542 = vld [vmem:[%s8540 + $0x8] sm:$0xff]
      %v8543 = vld [vmem:[%s8540 + $0x10] sm:$0xff]
      %v8544 = vld [vmem:[%s8540 + $0x18] sm:$0xff]
      %v8545 = vld [vmem:[%s8540 + $0x20] sm:$0xff]
      %v8546 = vld [vmem:[%s8540 + $0x28] sm:$0xff]
      %v8547 = vld [vmem:[%s8540 + $0x30] sm:$0xff]
      %v8548 = vld [vmem:[%s8540 + $0x38] sm:$0xff]
      %v8549 = vld [vmem:[%s8540 + $0x40] sm:$0xff]
      %v8550 = vld [vmem:[%s8540 + $0x48] sm:$0xff]
      %v8551 = vld [vmem:[%s8540 + $0x50] sm:$0xff]
      %v8552 = vld [vmem:[%s8540 + $0x58] sm:$0xff]
      %v8553 = vld [vmem:[%s8540 + $0x60] sm:$0xff]
      %v8554 = vld [vmem:[%s8540 + $0x68] sm:$0xff]
      %v8555 = vld [vmem:[%s8540 + $0x70] sm:$0xff]
      %v8556 = vld [vmem:[%s8540 + $0x78] sm:$0xff]
      %v8557 = vld [vmem:[%s8540 + $0x80] sm:$0xff]
      %v8558 = vld [vmem:[%s8540 + $0x88] sm:$0xff]
      %v8559 = vld [vmem:[%s8540 + $0x90] sm:$0xff]
      %v8560 = vld [vmem:[%s8540 + $0x98] sm:$0xff]
      %v8561 = vld [vmem:[%s8540 + $0xa0] sm:$0xff]
      %v8562 = vld [vmem:[%s8540 + $0xa8] sm:$0xff]
      %v8563 = vld [vmem:[%s8540 + $0xb0] sm:$0xff]
      %v8564 = vld [vmem:[%s8540 + $0xb8] sm:$0xff]
      %v8565 = vld [vmem:[%s8540 + $0xc0] sm:$0xff]
      %v8566 = vld [vmem:[%s8540 + $0xc8] sm:$0xff]
      %v8567 = vld [vmem:[%s8540 + $0xd0] sm:$0xff]
      %v8568 = vld [vmem:[%s8540 + $0xd8] sm:$0xff]
      %v8569 = vld [vmem:[%s8540 + $0xe0] sm:$0xff]
      %v8570 = vld [vmem:[%s8540 + $0xe8] sm:$0xff]
      %v8571 = vld [vmem:[%s8540 + $0xf0] sm:$0xff]
      %v8572 = vld [vmem:[%s8540 + $0xf8] sm:$0xff]
      %v8573 = vld [vmem:[%s8540 + $0x100] sm:$0xff]
      %v8574 = vld [vmem:[%s8540 + $0x108] sm:$0xff]
      %v8575 = vld [vmem:[%s8540 + $0x110] sm:$0xff]
      %v8576 = vld [vmem:[%s8540 + $0x118] sm:$0xff]
      %v8577 = vld [vmem:[%s8540 + $0x120] sm:$0xff]
      %v8578 = vld [vmem:[%s8540 + $0x128] sm:$0xff]
      %v8579 = vld [vmem:[%s8540 + $0x130] sm:$0xff]
      %v8580 = vld [vmem:[%s8540 + $0x138] sm:$0xff]
      %v8581 = vld [vmem:[%s8540 + $0x140] sm:$0xff]
      %v8582 = vld [vmem:[%s8540 + $0x148] sm:$0xff]
      %v8583 = vld [vmem:[%s8540 + $0x150] sm:$0xff]
      %v8584 = vld [vmem:[%s8540 + $0x158] sm:$0xff]
      %v8585 = vld [vmem:[%s8540 + $0x160] sm:$0xff]
      %v8586 = vld [vmem:[%s8540 + $0x168] sm:$0xff]
      %v8587 = vld [vmem:[%s8540 + $0x170] sm:$0xff]
      %v8588 = vld [vmem:[%s8540 + $0x178] sm:$0xff]
      %v8589 = vld [vmem:[%s8540 + $0x180] sm:$0xff]
      %v8590 = vld [vmem:[%s8540 + $0x188] sm:$0xff]
      %v8591 = vld [vmem:[%s8540 + $0x190] sm:$0xff]
      %v8592 = vld [vmem:[%s8540 + $0x198] sm:$0xff]
      %v8593 = vld [vmem:[%s8540 + $0x1a0] sm:$0xff]
      %v8594 = vld [vmem:[%s8540 + $0x1a8] sm:$0xff]
      %v8595 = vld [vmem:[%s8540 + $0x1b0] sm:$0xff]
      %v8596 = vld [vmem:[%s8540 + $0x1b8] sm:$0xff]
      %v8597 = vld [vmem:[%s8540 + $0x1c0] sm:$0xff]
      %v8598 = vld [vmem:[%s8540 + $0x1c8] sm:$0xff]
      %v8599 = vld [vmem:[%s8540 + $0x1d0] sm:$0xff]
      %v8600 = vld [vmem:[%s8540 + $0x1d8] sm:$0xff]
      %v8601 = vld [vmem:[%s8540 + $0x1e0] sm:$0xff]
      %v8602 = vld [vmem:[%s8540 + $0x1e8] sm:$0xff]
      %v8603 = vld [vmem:[%s8540 + $0x1f0] sm:$0xff]
      %v8604 = vld [vmem:[%s8540 + $0x1f8] sm:$0xff]
      %v8605 = vrot.slane %v7901, 3
      %v8606 = vrot.slane %v7902, 3
      %v8607 = vrot.slane %v7903, 3
      %v8608 = vrot.slane %v7904, 3
      %8613 = vmatprep.subr.mxu0 0.0
      %8614 = vmatpush1.msra.mxu0 %v8556
      %8615 = vmatprep.subr.mxu0 0.0
      %8616 = vmatpush1.msra.mxu0 %v8555
      %8617 = vmatprep.subr.mxu0 0.0
      %8618 = vmatpush1.msra.mxu0 %v8554
      %8619 = vmatprep.subr.mxu0 0.0
      %8620 = vmatpush1.msra.mxu0 %v8553
      %8621 = vmatprep.subr.mxu0 0.0
      %8622 = vmatpush1.msra.mxu0 %v8552
      %8623 = vmatprep.subr.mxu0 0.0
      %8624 = vmatpush1.msra.mxu0 %v8551
      %8625 = vmatprep.subr.mxu0 0.0
      %8626 = vmatpush1.msra.mxu0 %v8550
      %8627 = vmatprep.subr.mxu0 0.0
      %8628 = vmatpush1.msra.mxu0 %v8549
      %8629 = vmatprep.subr.mxu0 0.0
      %8630 = vmatpush1.msra.mxu0 %v8548
      %8631 = vmatprep.subr.mxu0 0.0
      %8632 = vmatpush1.msra.mxu0 %v8547
      %8633 = vmatprep.subr.mxu0 0.0
      %8634 = vmatpush1.msra.mxu0 %v8546
      %8635 = vmatprep.subr.mxu0 0.0
      %8636 = vmatpush1.msra.mxu0 %v8545
      %8637 = vmatprep.subr.mxu0 0.0
      %8638 = vmatpush1.msra.mxu0 %v8544
      %8639 = vmatprep.subr.mxu0 0.0
      %8640 = vmatpush1.msra.mxu0 %v8543
      %8641 = vmatprep.subr.mxu0 0.0
      %8642 = vmatpush1.msra.mxu0 %v8542
      %8643 = vmatprep.subr.mxu0 0.0
      %8644 = vmatpush1.msra.mxu0 %v8541
      %8645 = vmatprep.subr.mxu0 0.0
      %8646 = vmatpush2.msra.mxu0 %v8572
      %8647 = vmatprep.subr.mxu0 0.0
      %8648 = vmatpush2.msra.mxu0 %v8571
      %8649 = vmatprep.subr.mxu0 0.0
      %8650 = vmatpush2.msra.mxu0 %v8570
      %8651 = vmatprep.subr.mxu0 0.0
      %8652 = vmatpush2.msra.mxu0 %v8569
      %8653 = vmatprep.subr.mxu0 0.0
      %8654 = vmatpush2.msra.mxu0 %v8568
      %8655 = vmatprep.subr.mxu0 0.0
      %8656 = vmatpush2.msra.mxu0 %v8567
      %8657 = vmatprep.subr.mxu0 0.0
      %8658 = vmatpush2.msra.mxu0 %v8566
      %8659 = vmatprep.subr.mxu0 0.0
      %8660 = vmatpush2.msra.mxu0 %v8565
      %8661 = vmatprep.subr.mxu0 0.0
      %8662 = vmatpush2.msra.mxu0 %v8564
      %8663 = vmatprep.subr.mxu0 0.0
      %8664 = vmatpush2.msra.mxu0 %v8563
      %8665 = vmatprep.subr.mxu0 0.0
      %8666 = vmatpush2.msra.mxu0 %v8562
      %8667 = vmatprep.subr.mxu0 0.0
      %8668 = vmatpush2.msra.mxu0 %v8561
      %8669 = vmatprep.subr.mxu0 0.0
      %8670 = vmatpush2.msra.mxu0 %v8560
      %8671 = vmatprep.subr.mxu0 0.0
      %8672 = vmatpush2.msra.mxu0 %v8559
      %8673 = vmatprep.subr.mxu0 0.0
      %8674 = vmatpush2.msra.mxu0 %v8558
      %8675 = vmatprep.subr.mxu0 0.0
      %8676 = vmatpush2.msra.mxu0 %v8557
      %8677 = vmatprep.mubr.f32.mxu0 %v8606
      %8678 = vmatmul.mubr.f32.gmra.mxu0 %v8605
      %v8679 = vpop.f32.mrf.mxu0
      %v8680 = vadd.f32 0.0, %v8679
      %v8681 = vpop.f32.mrf.mxu0
      %8682 = vdwg.mxu0
      %8683 = vmatprep.subr.mxu0 0.0
      %8684 = vmatpush1.msra.mxu0 %v8588
      %8685 = vmatprep.subr.mxu0 0.0
      %8686 = vmatpush1.msra.mxu0 %v8587
      %8687 = vmatprep.subr.mxu0 0.0
      %8688 = vmatpush1.msra.mxu0 %v8586
      %8689 = vmatprep.subr.mxu0 0.0
      %8690 = vmatpush1.msra.mxu0 %v8585
      %8691 = vmatprep.subr.mxu0 0.0
      %8692 = vmatpush1.msra.mxu0 %v8584
      %8693 = vmatprep.subr.mxu0 0.0
      %8694 = vmatpush1.msra.mxu0 %v8583
      %8695 = vmatprep.subr.mxu0 0.0
      %8696 = vmatpush1.msra.mxu0 %v8582
      %8697 = vmatprep.subr.mxu0 0.0
      %8698 = vmatpush1.msra.mxu0 %v8581
      %8699 = vmatprep.subr.mxu0 0.0
      %8700 = vmatpush1.msra.mxu0 %v8580
      %8701 = vmatprep.subr.mxu0 0.0
      %8702 = vmatpush1.msra.mxu0 %v8579
      %8703 = vmatprep.subr.mxu0 0.0
      %8704 = vmatpush1.msra.mxu0 %v8578
      %8705 = vmatprep.subr.mxu0 0.0
      %8706 = vmatpush1.msra.mxu0 %v8577
      %8707 = vmatprep.subr.mxu0 0.0
      %8708 = vmatpush1.msra.mxu0 %v8576
      %8709 = vmatprep.subr.mxu0 0.0
      %8710 = vmatpush1.msra.mxu0 %v8575
      %8711 = vmatprep.subr.mxu0 0.0
      %8712 = vmatpush1.msra.mxu0 %v8574
      %8713 = vmatprep.subr.mxu0 0.0
      %8714 = vmatpush1.msra.mxu0 %v8573
      %8715 = vmatprep.subr.mxu0 0.0
      %8716 = vmatpush2.msra.mxu0 %v8604
      %8717 = vmatprep.subr.mxu0 0.0
      %8718 = vmatpush2.msra.mxu0 %v8603
      %8719 = vmatprep.subr.mxu0 0.0
      %8720 = vmatpush2.msra.mxu0 %v8602
      %8721 = vmatprep.subr.mxu0 0.0
      %8722 = vmatpush2.msra.mxu0 %v8601
      %8723 = vmatprep.subr.mxu0 0.0
      %8724 = vmatpush2.msra.mxu0 %v8600
      %8725 = vmatprep.subr.mxu0 0.0
      %8726 = vmatpush2.msra.mxu0 %v8599
      %8727 = vmatprep.subr.mxu0 0.0
      %8728 = vmatpush2.msra.mxu0 %v8598
      %8729 = vmatprep.subr.mxu0 0.0
      %8730 = vmatpush2.msra.mxu0 %v8597
      %8731 = vmatprep.subr.mxu0 0.0
      %8732 = vmatpush2.msra.mxu0 %v8596
      %8733 = vmatprep.subr.mxu0 0.0
      %8734 = vmatpush2.msra.mxu0 %v8595
      %8735 = vmatprep.subr.mxu0 0.0
      %8736 = vmatpush2.msra.mxu0 %v8594
      %8737 = vmatprep.subr.mxu0 0.0
      %8738 = vmatpush2.msra.mxu0 %v8593
      %8739 = vmatprep.subr.mxu0 0.0
      %8740 = vmatpush2.msra.mxu0 %v8592
      %8741 = vmatprep.subr.mxu0 0.0
      %8742 = vmatpush2.msra.mxu0 %v8591
      %8743 = vmatprep.subr.mxu0 0.0
      %8744 = vmatpush2.msra.mxu0 %v8590
      %8745 = vmatprep.subr.mxu0 0.0
      %8746 = vmatpush2.msra.mxu0 %v8589
      %8747 = vmatprep.mubr.f32.mxu0 %v8608
      %8748 = vmatmul.mubr.f32.gmra.mxu0 %v8607
      %v8749 = vpop.f32.mrf.mxu0
      %v8750 = vadd.f32 %v8680, %v8749
      %v8751 = vpop.f32.mrf.mxu0
      %8752 = vdwg.mxu0
      %v8753 = vadd.f32 %v8539, %v8750
      %vm8754 = vcmask 24576
      %8755 = vst.msk [vmem:[%s166] sm:$0x1] %vm8754, %v8753
      %p8756 = scmp.lt.s32.totalorder %s14, 1
      %s8757 = scalar_select %p8756, %s14, 1
      %s8758 = scalar_lea.vmem %s3, %s8757
      // Predicated region
      $region33: #{discriminator_forward.7} parent=31 // pred_check
        %p8759 = pneg %p100
      $region34: #{discriminator_forward.7} parent=31 // pred_check_branch
        %8761 = sbr.rel (%p8759) target = $region36
      $region35: #{discriminator_forward.7} parent=31 // pred_region
        _
      $region36: #{discriminator_forward.7} parent=31 // pred_fallthru
        _
    $region32: #{discriminator_forward.7} parent=5 // pred_fallthru
      _
    %p8762 = scmp.le.s32.totalorder 2, %s9
    // Predicated region
    $region37: #{discriminator_forward.7} parent=5 // pred_check
      %p8763 = pneg %p8762
    $region38: #{discriminator_forward.7} parent=5 // pred_check_branch
      %8765 = sbr.rel (%p8763) target = $region40
    $region39: #{discriminator_forward.7} parent=5 // pred_region
      %s8766 = ssub.s32 %s9, 2
      // Predicated region
      $region41: #{discriminator_forward.7} parent=39 // pred_check
        %p8767 = pneg %p106
      $region42: #{discriminator_forward.7} parent=39 // pred_check_branch
        %8769 = sbr.rel (%p8767) target = $region44
      $region43: #{discriminator_forward.7} parent=39 // pred_region
        %p8770 = scmp.lt.s32.totalorder %s15, 1
        %s8771 = scalar_select %p8770, %s15, 1
        %s8772 = scalar_lea.vmem %s3, %s8771
      $region44: #{discriminator_forward.7} parent=39 // pred_fallthru
        _
    $region40: #{discriminator_forward.7} parent=5 // pred_fallthru
      _
  $region6: #{discriminator_forward.7} parent=0 // loop_footer
    %s13 = sadd.s32 1, %s9
  $region7: #{discriminator_forward.7} parent=0 // loop_footer_branch
    %8 = sbr.rel target = $region3
  $region8: #{discriminator_forward.7} parent=0 // loop_exit
    _

</llo_original>
